<compile_context>
chip_gen: v7x
topology: tpu7x:2x2x1
jax: 0.10.0
libtpu: 0.0.40
codegen_flags: <defaults>
</compile_context>

<pallas_src>
from functools import partial

import numpy as np
import jax
import jax.numpy as jnp
from jax import lax
from jax.experimental import pallas as pl
from jax.experimental.pallas import tpu as pltpu

# ---------------- problem sizes (small example, consistent with the module) ----
H = W = 16          # module uses 32x32; scaled down for a small runnable example
V = H * W           # graph nodes
K = 3               # Chebyshev order
BATCH = 2
EPS = 1e-5          # BatchNorm1d default eps
NUM_CLASSES = 10

LAYER_DIMS = [(3, 96), (96, 96), (96, 96), (96, 192), (192, 192), (192, 192), (192, 96)]

P_HIGH = jax.lax.Precision.HIGHEST   # used only in the pure-JAX reference


# ---------------- graph / Laplacian setup (glue, plain numpy) ------------------
def grid_adjacency(h, w):
    """4-neighbour grid-graph adjacency (what read_graph() would give for an image grid)."""
    n = h * w
    A = np.zeros((n, n), dtype=np.float32)
    for i in range(h):
        for j in range(w):
            u = i * w + j
            if i + 1 < h:
                A[u, (i + 1) * w + j] = 1.0
                A[(i + 1) * w + j, u] = 1.0
            if j + 1 < w:
                A[u, i * w + j + 1] = 1.0
                A[i * w + j + 1, u] = 1.0
    return A


def rescale_laplacian(A):
    """lmax_L + rescale_L as written in the module: L <- A/(2*lmax) - I."""
    evals = np.linalg.eigvalsh(A)
    lmax = evals[np.argmax(np.abs(evals))]          # largest-magnitude eigenvalue
    return (A / (lmax * 2.0) - np.eye(A.shape[0], dtype=A.dtype)).astype(np.float32)


def cheb_poly_cat(L_np):
    """Chebyshev matrix polynomials T_1(L) .. T_{K-1}(L) of the symmetric rescaled
    Laplacian, lane-concatenated: (V, (K-1)*V) float32.  Since L is symmetric,
    the channel-first tap h @ T_k(L) equals (T_k(L) @ h^T)^T of the reference."""
    assert K >= 2
    Ld = L_np.astype(np.float64)
    polys = [np.eye(Ld.shape[0], dtype=np.float64), Ld]
    for _ in range(2, K):
        polys.append(2.0 * Ld @ polys[-1] - polys[-2])
    return np.concatenate(polys[1:], axis=1).astype(np.float32)


# ---------------- Pallas kernels ------------------------------------------------
def fused_chebnet_kernel(T_ref, x_ref, *args, num_layers, cheb_k, v):
    """All ChebConv + (folded inference BN) + ReLU layers for one batch element.

    Channel-first layout: node axis V is the (lane-dense) last dim everywhere.

    T_ref : (V, (K-1)*V) bf16   [T_1(L) | ... | T_{K-1}(L)] Chebyshev polynomials
    x_ref : (Cin0, V) f32       input node features, channel-first
    args  : per layer (w_ref, b_ref), then o_ref
      w_ref : (K, Cout, Cin) bf16, BN scale folded in:
              w_ref[k, fout, fin] = g_eff[fout] * cl.weight[fout, fin*K + k]
      b_ref : (Cout, 1) f32,  b_eff = beta - mean * g_eff
    o_ref : (Cout_last, V) f32
    """
    o_ref = args[-1]
    Tcat = T_ref[...]                                 # (V, (K-1)*V) bf16, all layers
    h = x_ref[...]                                    # (Cin, V) f32, stays resident
    for i in range(num_layers):
        w_ref = args[2 * i]
        b_ref = args[2 * i + 1]

        h_bf = h.astype(jnp.bfloat16)
        # All higher-order Chebyshev taps in ONE lane-dense matmul, contraction
        # depth V = 256 (full MXU depth), output (Cin, (K-1)*V).
        taps = jnp.dot(h_bf, Tcat, preferred_element_type=jnp.float32)

        # Weight application (BN scale pre-folded on host) + bias + ReLU.
        y = jnp.dot(w_ref[0], h_bf, preferred_element_type=jnp.float32)
        for k in range(1, cheb_k):
            tap_bf = taps[:, (k - 1) * v: k * v].astype(jnp.bfloat16)
            y = y + jnp.dot(w_ref[k], tap_bf, preferred_element_type=jnp.float32)
        h = jnp.maximum(y + b_ref[...], 0.0)
        # TODO(synk): nn.Dropout layers are inference-mode identities here; training-mode
        # dropout / batch-statistics BatchNorm are not implemented.
    o_ref[...] = h


def classifier_kernel(f_ref, w_ref, b_ref, o_ref):
    """feats (B, F) x weight (C, F): contract the lane-dense F axis of both."""
    acc = lax.dot_general(
        f_ref[...].astype(jnp.bfloat16), w_ref[...],
        dimension_numbers=(((1,), (1,)), ((), ())),
        preferred_element_type=jnp.float32)
    o_ref[...] = acc + b_ref[...]


# ---------------- pallas_call wrappers -------------------------------------------
def fused_cheb_layers(x_cf, T_bf16, layers):
    """x_cf: (B, Cin0, V) f32 -> (B, Cout_last, V) f32, whole conv stack in one kernel."""
    B, c_in0, _ = x_cf.shape
    c_last = layers[-1]["Wg"].shape[1]

    in_specs = [
        pl.BlockSpec((V, (K - 1) * V), lambda b: (0, 0)),          # Chebyshev polys, shared
        pl.BlockSpec((None, c_in0, V), lambda b: (b, 0, 0)),       # x, per batch (squeezed)
    ]
    operands = [T_bf16, x_cf]
    for p in layers:
        kk, co, ci = p["Wg"].shape
        in_specs.append(pl.BlockSpec((kk, co, ci), lambda b: (0, 0, 0)))
        in_specs.append(pl.BlockSpec((co, 1), lambda b: (0, 0)))
        operands += [p["Wg"], p["b_eff"]]

    # Advisory cost estimate for the XLA scheduler.
    flops = 0
    nbytes = T_bf16.size * 2 + x_cf.size * 4 + B * c_last * V * 4
    for p in layers:
        kk, co, ci = p["Wg"].shape
        flops += B * ((kk - 1) * 2 * ci * V * V + kk * 2 * co * ci * V)
        nbytes += p["Wg"].size * 2 + p["b_eff"].size * 4

    kern = partial(fused_chebnet_kernel, num_layers=len(layers), cheb_k=K, v=V)
    return pl.pallas_call(
        kern,
        out_shape=jax.ShapeDtypeStruct((B, c_last, V), jnp.float32),
        grid_spec=pltpu.PrefetchScalarGridSpec(
            num_scalar_prefetch=0,
            grid=(B,),
            in_specs=in_specs,
            out_specs=pl.BlockSpec((None, c_last, V), lambda b: (b, 0, 0)),
        ),
        compiler_params=pltpu.CompilerParams(
            dimension_semantics=("parallel",),        # B=2 -> both v7x TensorCores
            vmem_limit_bytes=32 * 1024 * 1024,
        ),
        cost_estimate=pl.CostEstimate(flops=int(flops), transcendentals=0,
                                      bytes_accessed=int(nbytes)),
    )(*operands)


def classifier(feats, w, b):
    """feats (B, F) f32, w (C, F) bf16 lane-dense, b (1, C) f32 -> (B, C) f32."""
    B, F = feats.shape
    C = w.shape[0]
    flops = 2 * B * C * F
    nbytes = feats.size * 4 + w.size * 2 + b.size * 4 + B * C * 4
    return pl.pallas_call(
        classifier_kernel,
        out_shape=jax.ShapeDtypeStruct((B, C), jnp.float32),
        grid_spec=pltpu.PrefetchScalarGridSpec(
            num_scalar_prefetch=0,
            grid=(1,),
            in_specs=[
                pl.BlockSpec((B, F), lambda i: (0, 0)),
                pl.BlockSpec((C, F), lambda i: (0, 0)),   # lane-dense (10, 24576)
                pl.BlockSpec((1, C), lambda i: (0, 0)),
            ],
            out_specs=pl.BlockSpec((B, C), lambda i: (0, 0)),
        ),
        compiler_params=pltpu.CompilerParams(
            dimension_semantics=("arbitrary",),
            vmem_limit_bytes=32 * 1024 * 1024,
        ),
        cost_estimate=pl.CostEstimate(flops=int(flops), transcendentals=0,
                                      bytes_accessed=int(nbytes)),
    )(feats, w, b)


def chebnet_forward_pallas(x, params, T_cat):
    B = x.shape[0]
    x_cf = x.reshape(B, 3, V)                      # (B, C, V) channel-first: no transpose
    h = fused_cheb_layers(x_cf, T_cat, params["layers"])
    feats = h.reshape(B, -1)                       # channel-major flatten, as PyTorch
    return classifier(feats, params["cls_w"], params["cls_b"])


# ---------------- parameter init (deterministic, mirrors nn module __init__) ---
def init_params(key):
    layers = []
    for fin, fout in LAYER_DIMS:
        key, k1, k2, k3, k4, k5 = jax.random.split(key, 6)
        scale = float(np.sqrt(2.0 / (fin + fout)))
        Wc = jax.random.uniform(k1, (fout, K * fin), jnp.float32, -scale, scale)
        gamma = jax.random.uniform(k2, (fout,), jnp.float32, 0.5, 1.5)
        beta = 0.1 * jax.random.normal(k3, (fout,), jnp.float32)
        mean = 0.1 * jax.random.normal(k4, (fout,), jnp.float32)
        var = jax.random.uniform(k5, (fout,), jnp.float32, 0.5, 1.5)
        g_eff = gamma / jnp.sqrt(var + EPS)
        b_eff = beta - mean * g_eff
        # cl.weight columns are ordered fin*K + k  ->  Wk[k, fout, fin]  (channel-first)
        Wk = jnp.transpose(Wc.reshape(fout, fin, K), (2, 0, 1))
        # Fold the inference-mode BN scale into the conv weights; bf16 for the MXU.
        Wg = (g_eff[None, :, None] * Wk).astype(jnp.bfloat16)
        layers.append(dict(W=Wc, gamma=gamma, beta=beta, mean=mean, var=var,
                           Wg=Wg, b_eff=b_eff[:, None]))
    key, kc1, kc2 = jax.random.split(key, 3)
    f_cls = V * LAYER_DIMS[-1][1]
    bound = 1.0 / float(np.sqrt(f_cls))
    Wcls = jax.random.uniform(kc1, (NUM_CLASSES, f_cls), jnp.float32, -bound, bound)
    bcls = jax.random.uniform(kc2, (NUM_CLASSES,), jnp.float32, -bound, bound)
    return dict(layers=layers,
                cls_w=Wcls.astype(jnp.bfloat16),    # (10, 24576) lane-dense for the kernel
                cls_b=bcls[None, :],
                cls_W=Wcls, cls_bias=bcls)


# ---------------- pure-JAX reference (mirrors PyTorch forward exactly) ----------
def cheb_conv_ref(x, L, Wc, K):
    B, Fin, Vn = x.shape
    x0 = jnp.transpose(x, (2, 1, 0)).reshape(Vn, Fin * B)  # (V, Fin*B)
    xs = [x0]
    if K > 1:
        x1 = jnp.matmul(L, x0, precision=P_HIGH)
        xs.append(x1)
        for _ in range(2, K):
            x2 = 2.0 * jnp.matmul(L, x1, precision=P_HIGH) - x0
            xs.append(x2)
            x0, x1 = x1, x2
    X = jnp.stack(xs, 0).reshape(K, Vn, Fin, B)
    X = jnp.transpose(X, (3, 1, 2, 0)).reshape(B * Vn, Fin * K)
    y = jnp.matmul(X, Wc.T, precision=P_HIGH)
    return jnp.transpose(y.reshape(B, Vn, -1), (0, 2, 1))  # (B, Fout, V)


def chebnet_forward_ref(x, params, L):
    B = x.shape[0]
    h = x.reshape(B, 3, V)
    for p in params["layers"]:
        y = cheb_conv_ref(h, L, p["W"], K)
        y = (y - p["mean"][None, :, None]) / jnp.sqrt(p["var"][None, :, None] + EPS)
        y = y * p["gamma"][None, :, None] + p["beta"][None, :, None]
        h = jnp.maximum(y, 0.0)
    feats = h.reshape(B, -1)
    return jnp.matmul(feats, params["cls_W"].T, precision=P_HIGH) + params["cls_bias"]


# ---------------- main -----------------------------------------------------------
if __name__ == "__main__":
    key = jax.random.PRNGKey(0)
    kx, kp = jax.random.split(key)
    x = jax.random.normal(kx, (BATCH, 3, H, W), jnp.float32)

    A = grid_adjacency(H, W)
    L_np = rescale_laplacian(A)
    L = jnp.asarray(L_np)
    T_cat = jnp.asarray(cheb_poly_cat(L_np)).astype(jnp.bfloat16)   # (V, (K-1)*V)
    params = init_params(kp)

    out = chebnet_forward_pallas(x, params, T_cat)
    out = jax.block_until_ready(out)

    ref = chebnet_forward_ref(x, params, L)
    err = float(jnp.max(jnp.abs(out - ref)))
    assert out.shape == (BATCH, NUM_CLASSES), out.shape
    # bf16 MXU operands with f32 accumulation vs. f32-HIGHEST reference.
    assert err < 5e-2, f"max abs err {err}"
    print("KERNEL_OK")
</pallas_src>

<mosaic_0001>
module attributes {stable_mosaic.version = 11 : i64} {
  func.func @fused_chebnet_kernel(%arg0: i32, %arg1: memref<256x512xbf16, #tpu.memory_space<vmem>>, %arg2: memref<1x3x256xf32, #tpu.memory_space<vmem>>, %arg3: memref<3x96x3xbf16, #tpu.memory_space<vmem>>, %arg4: memref<96x1xf32, #tpu.memory_space<vmem>>, %arg5: memref<3x96x96xbf16, #tpu.memory_space<vmem>>, %arg6: memref<96x1xf32, #tpu.memory_space<vmem>>, %arg7: memref<3x96x96xbf16, #tpu.memory_space<vmem>>, %arg8: memref<96x1xf32, #tpu.memory_space<vmem>>, %arg9: memref<3x192x96xbf16, #tpu.memory_space<vmem>>, %arg10: memref<192x1xf32, #tpu.memory_space<vmem>>, %arg11: memref<3x192x192xbf16, #tpu.memory_space<vmem>>, %arg12: memref<192x1xf32, #tpu.memory_space<vmem>>, %arg13: memref<3x192x192xbf16, #tpu.memory_space<vmem>>, %arg14: memref<192x1xf32, #tpu.memory_space<vmem>>, %arg15: memref<3x96x192xbf16, #tpu.memory_space<vmem>>, %arg16: memref<96x1xf32, #tpu.memory_space<vmem>>, %arg17: memref<1x96x256xf32, #tpu.memory_space<vmem>>) attributes {dimension_semantics = [#tpu.dimension_semantics<parallel>], iteration_bounds = array<i64: 2>, scalar_prefetch = 0 : i64, scratch_operands = 0 : i64, tpu.core_type = #tpu.core_type<tc>, window_params = [{pipeline_mode = #tpu.pipeline_mode<synchronous>, transform_indices = @transform_0, window_bounds = array<i64: 256, 512>}, {transform_indices = @transform_1, window_bounds = array<i64: 1, 3, 256>}, {pipeline_mode = #tpu.pipeline_mode<synchronous>, transform_indices = @transform_2, window_bounds = array<i64: 3, 96, 3>}, {pipeline_mode = #tpu.pipeline_mode<synchronous>, transform_indices = @transform_3, window_bounds = array<i64: 96, 1>}, {pipeline_mode = #tpu.pipeline_mode<synchronous>, transform_indices = @transform_4, window_bounds = array<i64: 3, 96, 96>}, {pipeline_mode = #tpu.pipeline_mode<synchronous>, transform_indices = @transform_5, window_bounds = array<i64: 96, 1>}, {pipeline_mode = #tpu.pipeline_mode<synchronous>, transform_indices = @transform_6, window_bounds = array<i64: 3, 96, 96>}, {pipeline_mode = #tpu.pipeline_mode<synchronous>, transform_indices = @transform_7, window_bounds = array<i64: 96, 1>}, {pipeline_mode = #tpu.pipeline_mode<synchronous>, transform_indices = @transform_8, window_bounds = array<i64: 3, 192, 96>}, {pipeline_mode = #tpu.pipeline_mode<synchronous>, transform_indices = @transform_9, window_bounds = array<i64: 192, 1>}, {pipeline_mode = #tpu.pipeline_mode<synchronous>, transform_indices = @transform_10, window_bounds = array<i64: 3, 192, 192>}, {pipeline_mode = #tpu.pipeline_mode<synchronous>, transform_indices = @transform_11, window_bounds = array<i64: 192, 1>}, {pipeline_mode = #tpu.pipeline_mode<synchronous>, transform_indices = @transform_12, window_bounds = array<i64: 3, 192, 192>}, {pipeline_mode = #tpu.pipeline_mode<synchronous>, transform_indices = @transform_13, window_bounds = array<i64: 192, 1>}, {pipeline_mode = #tpu.pipeline_mode<synchronous>, transform_indices = @transform_14, window_bounds = array<i64: 3, 96, 192>}, {pipeline_mode = #tpu.pipeline_mode<synchronous>, transform_indices = @transform_15, window_bounds = array<i64: 96, 1>}, {transform_indices = @transform_16, window_bounds = array<i64: 1, 96, 256>}]} {
    %c0 = arith.constant 0 : index
    %c0_0 = arith.constant 0 : index
    %0 = vector.load %arg1[%c0, %c0_0] : memref<256x512xbf16, #tpu.memory_space<vmem>>, vector<256x512xbf16>
    %c0_1 = arith.constant 0 : index
    %c0_2 = arith.constant 0 : index
    %c0_3 = arith.constant 0 : index
    %1 = vector.load %arg2[%c0_1, %c0_2, %c0_3] : memref<1x3x256xf32, #tpu.memory_space<vmem>>, vector<1x3x256xf32>
    %2 = vector.shape_cast %1 : vector<1x3x256xf32> to vector<3x256xf32>
    %3 = arith.truncf %2 : vector<3x256xf32> to vector<3x256xbf16>
    %cst = arith.constant dense<0.000000e+00> : vector<3x512xf32>
    %4 = tpu.matmul %3, %0, %cst {dimension_numbers = #tpu.dot_dimension_numbers<[1], [0], [0], [1], [0, 0, 1, 1], [], []>} : vector<3x256xbf16>, vector<256x512xbf16>, vector<3x512xf32> -> vector<3x512xf32>
    %c0_4 = arith.constant 0 : index
    %c0_5 = arith.constant 0 : index
    %c0_6 = arith.constant 0 : index
    %5 = vector.load %arg3[%c0_4, %c0_5, %c0_6] : memref<3x96x3xbf16, #tpu.memory_space<vmem>>, vector<1x96x3xbf16>
    %6 = vector.shape_cast %5 : vector<1x96x3xbf16> to vector<96x3xbf16>
    %cst_7 = arith.constant dense<0.000000e+00> : vector<96x256xf32>
    %7 = tpu.matmul %6, %3, %cst_7 {dimension_numbers = #tpu.dot_dimension_numbers<[1], [0], [0], [1], [0, 0, 1, 1], [], []>} : vector<96x3xbf16>, vector<3x256xbf16>, vector<96x256xf32> -> vector<96x256xf32>
    %8 = vector.extract_strided_slice %4 {offsets = [0, 0], sizes = [3, 256], strides = [1, 1]} : vector<3x512xf32> to vector<3x256xf32>
    %9 = arith.truncf %8 : vector<3x256xf32> to vector<3x256xbf16>
    %c1 = arith.constant 1 : index
    %c0_8 = arith.constant 0 : index
    %c0_9 = arith.constant 0 : index
    %10 = vector.load %arg3[%c1, %c0_8, %c0_9] : memref<3x96x3xbf16, #tpu.memory_space<vmem>>, vector<1x96x3xbf16>
    %11 = vector.shape_cast %10 : vector<1x96x3xbf16> to vector<96x3xbf16>
    %cst_10 = arith.constant dense<0.000000e+00> : vector<96x256xf32>
    %12 = tpu.matmul %11, %9, %cst_10 {dimension_numbers = #tpu.dot_dimension_numbers<[1], [0], [0], [1], [0, 0, 1, 1], [], []>} : vector<96x3xbf16>, vector<3x256xbf16>, vector<96x256xf32> -> vector<96x256xf32>
    %13 = arith.addf %7, %12 : vector<96x256xf32>
    %14 = vector.extract_strided_slice %4 {offsets = [0, 256], sizes = [3, 256], strides = [1, 1]} : vector<3x512xf32> to vector<3x256xf32>
    %15 = arith.truncf %14 : vector<3x256xf32> to vector<3x256xbf16>
    %c2 = arith.constant 2 : index
    %c0_11 = arith.constant 0 : index
    %c0_12 = arith.constant 0 : index
    %16 = vector.load %arg3[%c2, %c0_11, %c0_12] : memref<3x96x3xbf16, #tpu.memory_space<vmem>>, vector<1x96x3xbf16>
    %17 = vector.shape_cast %16 : vector<1x96x3xbf16> to vector<96x3xbf16>
    %cst_13 = arith.constant dense<0.000000e+00> : vector<96x256xf32>
    %18 = tpu.matmul %17, %15, %cst_13 {dimension_numbers = #tpu.dot_dimension_numbers<[1], [0], [0], [1], [0, 0, 1, 1], [], []>} : vector<96x3xbf16>, vector<3x256xbf16>, vector<96x256xf32> -> vector<96x256xf32>
    %19 = arith.addf %13, %18 : vector<96x256xf32>
    %c0_14 = arith.constant 0 : index
    %c0_15 = arith.constant 0 : index
    %20 = vector.load %arg4[%c0_14, %c0_15] : memref<96x1xf32, #tpu.memory_space<vmem>>, vector<96x1xf32>
    %21 = vector.broadcast %20 : vector<96x1xf32> to vector<96x256xf32>
    %22 = arith.addf %19, %21 : vector<96x256xf32>
    %cst_16 = arith.constant 0.000000e+00 : f32
    %23 = vector.broadcast %cst_16 : f32 to vector<96x256xf32>
    %24 = arith.maximumf %22, %23 : vector<96x256xf32>
    %25 = arith.truncf %24 : vector<96x256xf32> to vector<96x256xbf16>
    %cst_17 = arith.constant dense<0.000000e+00> : vector<96x512xf32>
    %26 = tpu.matmul %25, %0, %cst_17 {dimension_numbers = #tpu.dot_dimension_numbers<[1], [0], [0], [1], [0, 0, 1, 1], [], []>} : vector<96x256xbf16>, vector<256x512xbf16>, vector<96x512xf32> -> vector<96x512xf32>
    %c0_18 = arith.constant 0 : index
    %c0_19 = arith.constant 0 : index
    %c0_20 = arith.constant 0 : index
    %27 = vector.load %arg5[%c0_18, %c0_19, %c0_20] : memref<3x96x96xbf16, #tpu.memory_space<vmem>>, vector<1x96x96xbf16>
    %28 = vector.shape_cast %27 : vector<1x96x96xbf16> to vector<96x96xbf16>
    %cst_21 = arith.constant dense<0.000000e+00> : vector<96x256xf32>
    %29 = tpu.matmul %28, %25, %cst_21 {dimension_numbers = #tpu.dot_dimension_numbers<[1], [0], [0], [1], [0, 0, 1, 1], [], []>} : vector<96x96xbf16>, vector<96x256xbf16>, vector<96x256xf32> -> vector<96x256xf32>
    %30 = vector.extract_strided_slice %26 {offsets = [0, 0], sizes = [96, 256], strides = [1, 1]} : vector<96x512xf32> to vector<96x256xf32>
    %31 = arith.truncf %30 : vector<96x256xf32> to vector<96x256xbf16>
    %c1_22 = arith.constant 1 : index
    %c0_23 = arith.constant 0 : index
    %c0_24 = arith.constant 0 : index
    %32 = vector.load %arg5[%c1_22, %c0_23, %c0_24] : memref<3x96x96xbf16, #tpu.memory_space<vmem>>, vector<1x96x96xbf16>
    %33 = vector.shape_cast %32 : vector<1x96x96xbf16> to vector<96x96xbf16>
    %cst_25 = arith.constant dense<0.000000e+00> : vector<96x256xf32>
    %34 = tpu.matmul %33, %31, %cst_25 {dimension_numbers = #tpu.dot_dimension_numbers<[1], [0], [0], [1], [0, 0, 1, 1], [], []>} : vector<96x96xbf16>, vector<96x256xbf16>, vector<96x256xf32> -> vector<96x256xf32>
    %35 = arith.addf %29, %34 : vector<96x256xf32>
    %36 = vector.extract_strided_slice %26 {offsets = [0, 256], sizes = [96, 256], strides = [1, 1]} : vector<96x512xf32> to vector<96x256xf32>
    %37 = arith.truncf %36 : vector<96x256xf32> to vector<96x256xbf16>
    %c2_26 = arith.constant 2 : index
    %c0_27 = arith.constant 0 : index
    %c0_28 = arith.constant 0 : index
    %38 = vector.load %arg5[%c2_26, %c0_27, %c0_28] : memref<3x96x96xbf16, #tpu.memory_space<vmem>>, vector<1x96x96xbf16>
    %39 = vector.shape_cast %38 : vector<1x96x96xbf16> to vector<96x96xbf16>
    %cst_29 = arith.constant dense<0.000000e+00> : vector<96x256xf32>
    %40 = tpu.matmul %39, %37, %cst_29 {dimension_numbers = #tpu.dot_dimension_numbers<[1], [0], [0], [1], [0, 0, 1, 1], [], []>} : vector<96x96xbf16>, vector<96x256xbf16>, vector<96x256xf32> -> vector<96x256xf32>
    %41 = arith.addf %35, %40 : vector<96x256xf32>
    %c0_30 = arith.constant 0 : index
    %c0_31 = arith.constant 0 : index
    %42 = vector.load %arg6[%c0_30, %c0_31] : memref<96x1xf32, #tpu.memory_space<vmem>>, vector<96x1xf32>
    %43 = vector.broadcast %42 : vector<96x1xf32> to vector<96x256xf32>
    %44 = arith.addf %41, %43 : vector<96x256xf32>
    %cst_32 = arith.constant 0.000000e+00 : f32
    %45 = vector.broadcast %cst_32 : f32 to vector<96x256xf32>
    %46 = arith.maximumf %44, %45 : vector<96x256xf32>
    %47 = arith.truncf %46 : vector<96x256xf32> to vector<96x256xbf16>
    %cst_33 = arith.constant dense<0.000000e+00> : vector<96x512xf32>
    %48 = tpu.matmul %47, %0, %cst_33 {dimension_numbers = #tpu.dot_dimension_numbers<[1], [0], [0], [1], [0, 0, 1, 1], [], []>} : vector<96x256xbf16>, vector<256x512xbf16>, vector<96x512xf32> -> vector<96x512xf32>
    %c0_34 = arith.constant 0 : index
    %c0_35 = arith.constant 0 : index
    %c0_36 = arith.constant 0 : index
    %49 = vector.load %arg7[%c0_34, %c0_35, %c0_36] : memref<3x96x96xbf16, #tpu.memory_space<vmem>>, vector<1x96x96xbf16>
    %50 = vector.shape_cast %49 : vector<1x96x96xbf16> to vector<96x96xbf16>
    %cst_37 = arith.constant dense<0.000000e+00> : vector<96x256xf32>
    %51 = tpu.matmul %50, %47, %cst_37 {dimension_numbers = #tpu.dot_dimension_numbers<[1], [0], [0], [1], [0, 0, 1, 1], [], []>} : vector<96x96xbf16>, vector<96x256xbf16>, vector<96x256xf32> -> vector<96x256xf32>
    %52 = vector.extract_strided_slice %48 {offsets = [0, 0], sizes = [96, 256], strides = [1, 1]} : vector<96x512xf32> to vector<96x256xf32>
    %53 = arith.truncf %52 : vector<96x256xf32> to vector<96x256xbf16>
    %c1_38 = arith.constant 1 : index
    %c0_39 = arith.constant 0 : index
    %c0_40 = arith.constant 0 : index
    %54 = vector.load %arg7[%c1_38, %c0_39, %c0_40] : memref<3x96x96xbf16, #tpu.memory_space<vmem>>, vector<1x96x96xbf16>
    %55 = vector.shape_cast %54 : vector<1x96x96xbf16> to vector<96x96xbf16>
    %cst_41 = arith.constant dense<0.000000e+00> : vector<96x256xf32>
    %56 = tpu.matmul %55, %53, %cst_41 {dimension_numbers = #tpu.dot_dimension_numbers<[1], [0], [0], [1], [0, 0, 1, 1], [], []>} : vector<96x96xbf16>, vector<96x256xbf16>, vector<96x256xf32> -> vector<96x256xf32>
    %57 = arith.addf %51, %56 : vector<96x256xf32>
    %58 = vector.extract_strided_slice %48 {offsets = [0, 256], sizes = [96, 256], strides = [1, 1]} : vector<96x512xf32> to vector<96x256xf32>
    %59 = arith.truncf %58 : vector<96x256xf32> to vector<96x256xbf16>
    %c2_42 = arith.constant 2 : index
    %c0_43 = arith.constant 0 : index
    %c0_44 = arith.constant 0 : index
    %60 = vector.load %arg7[%c2_42, %c0_43, %c0_44] : memref<3x96x96xbf16, #tpu.memory_space<vmem>>, vector<1x96x96xbf16>
    %61 = vector.shape_cast %60 : vector<1x96x96xbf16> to vector<96x96xbf16>
    %cst_45 = arith.constant dense<0.000000e+00> : vector<96x256xf32>
    %62 = tpu.matmul %61, %59, %cst_45 {dimension_numbers = #tpu.dot_dimension_numbers<[1], [0], [0], [1], [0, 0, 1, 1], [], []>} : vector<96x96xbf16>, vector<96x256xbf16>, vector<96x256xf32> -> vector<96x256xf32>
    %63 = arith.addf %57, %62 : vector<96x256xf32>
    %c0_46 = arith.constant 0 : index
    %c0_47 = arith.constant 0 : index
    %64 = vector.load %arg8[%c0_46, %c0_47] : memref<96x1xf32, #tpu.memory_space<vmem>>, vector<96x1xf32>
    %65 = vector.broadcast %64 : vector<96x1xf32> to vector<96x256xf32>
    %66 = arith.addf %63, %65 : vector<96x256xf32>
    %cst_48 = arith.constant 0.000000e+00 : f32
    %67 = vector.broadcast %cst_48 : f32 to vector<96x256xf32>
    %68 = arith.maximumf %66, %67 : vector<96x256xf32>
    %69 = arith.truncf %68 : vector<96x256xf32> to vector<96x256xbf16>
    %cst_49 = arith.constant dense<0.000000e+00> : vector<96x512xf32>
    %70 = tpu.matmul %69, %0, %cst_49 {dimension_numbers = #tpu.dot_dimension_numbers<[1], [0], [0], [1], [0, 0, 1, 1], [], []>} : vector<96x256xbf16>, vector<256x512xbf16>, vector<96x512xf32> -> vector<96x512xf32>
    %c0_50 = arith.constant 0 : index
    %c0_51 = arith.constant 0 : index
    %c0_52 = arith.constant 0 : index
    %71 = vector.load %arg9[%c0_50, %c0_51, %c0_52] : memref<3x192x96xbf16, #tpu.memory_space<vmem>>, vector<1x192x96xbf16>
    %72 = vector.shape_cast %71 : vector<1x192x96xbf16> to vector<192x96xbf16>
    %cst_53 = arith.constant dense<0.000000e+00> : vector<192x256xf32>
    %73 = tpu.matmul %72, %69, %cst_53 {dimension_numbers = #tpu.dot_dimension_numbers<[1], [0], [0], [1], [0, 0, 1, 1], [], []>} : vector<192x96xbf16>, vector<96x256xbf16>, vector<192x256xf32> -> vector<192x256xf32>
    %74 = vector.extract_strided_slice %70 {offsets = [0, 0], sizes = [96, 256], strides = [1, 1]} : vector<96x512xf32> to vector<96x256xf32>
    %75 = arith.truncf %74 : vector<96x256xf32> to vector<96x256xbf16>
    %c1_54 = arith.constant 1 : index
    %c0_55 = arith.constant 0 : index
    %c0_56 = arith.constant 0 : index
    %76 = vector.load %arg9[%c1_54, %c0_55, %c0_56] : memref<3x192x96xbf16, #tpu.memory_space<vmem>>, vector<1x192x96xbf16>
    %77 = vector.shape_cast %76 : vector<1x192x96xbf16> to vector<192x96xbf16>
    %cst_57 = arith.constant dense<0.000000e+00> : vector<192x256xf32>
    %78 = tpu.matmul %77, %75, %cst_57 {dimension_numbers = #tpu.dot_dimension_numbers<[1], [0], [0], [1], [0, 0, 1, 1], [], []>} : vector<192x96xbf16>, vector<96x256xbf16>, vector<192x256xf32> -> vector<192x256xf32>
    %79 = arith.addf %73, %78 : vector<192x256xf32>
    %80 = vector.extract_strided_slice %70 {offsets = [0, 256], sizes = [96, 256], strides = [1, 1]} : vector<96x512xf32> to vector<96x256xf32>
    %81 = arith.truncf %80 : vector<96x256xf32> to vector<96x256xbf16>
    %c2_58 = arith.constant 2 : index
    %c0_59 = arith.constant 0 : index
    %c0_60 = arith.constant 0 : index
    %82 = vector.load %arg9[%c2_58, %c0_59, %c0_60] : memref<3x192x96xbf16, #tpu.memory_space<vmem>>, vector<1x192x96xbf16>
    %83 = vector.shape_cast %82 : vector<1x192x96xbf16> to vector<192x96xbf16>
    %cst_61 = arith.constant dense<0.000000e+00> : vector<192x256xf32>
    %84 = tpu.matmul %83, %81, %cst_61 {dimension_numbers = #tpu.dot_dimension_numbers<[1], [0], [0], [1], [0, 0, 1, 1], [], []>} : vector<192x96xbf16>, vector<96x256xbf16>, vector<192x256xf32> -> vector<192x256xf32>
    %85 = arith.addf %79, %84 : vector<192x256xf32>
    %c0_62 = arith.constant 0 : index
    %c0_63 = arith.constant 0 : index
    %86 = vector.load %arg10[%c0_62, %c0_63] : memref<192x1xf32, #tpu.memory_space<vmem>>, vector<192x1xf32>
    %87 = vector.broadcast %86 : vector<192x1xf32> to vector<192x256xf32>
    %88 = arith.addf %85, %87 : vector<192x256xf32>
    %cst_64 = arith.constant 0.000000e+00 : f32
    %89 = vector.broadcast %cst_64 : f32 to vector<192x256xf32>
    %90 = arith.maximumf %88, %89 : vector<192x256xf32>
    %91 = arith.truncf %90 : vector<192x256xf32> to vector<192x256xbf16>
    %cst_65 = arith.constant dense<0.000000e+00> : vector<192x512xf32>
    %92 = tpu.matmul %91, %0, %cst_65 {dimension_numbers = #tpu.dot_dimension_numbers<[1], [0], [0], [1], [0, 0, 1, 1], [], []>} : vector<192x256xbf16>, vector<256x512xbf16>, vector<192x512xf32> -> vector<192x512xf32>
    %c0_66 = arith.constant 0 : index
    %c0_67 = arith.constant 0 : index
    %c0_68 = arith.constant 0 : index
    %93 = vector.load %arg11[%c0_66, %c0_67, %c0_68] : memref<3x192x192xbf16, #tpu.memory_space<vmem>>, vector<1x192x192xbf16>
    %94 = vector.shape_cast %93 : vector<1x192x192xbf16> to vector<192x192xbf16>
    %cst_69 = arith.constant dense<0.000000e+00> : vector<192x256xf32>
    %95 = tpu.matmul %94, %91, %cst_69 {dimension_numbers = #tpu.dot_dimension_numbers<[1], [0], [0], [1], [0, 0, 1, 1], [], []>} : vector<192x192xbf16>, vector<192x256xbf16>, vector<192x256xf32> -> vector<192x256xf32>
    %96 = vector.extract_strided_slice %92 {offsets = [0, 0], sizes = [192, 256], strides = [1, 1]} : vector<192x512xf32> to vector<192x256xf32>
    %97 = arith.truncf %96 : vector<192x256xf32> to vector<192x256xbf16>
    %c1_70 = arith.constant 1 : index
    %c0_71 = arith.constant 0 : index
    %c0_72 = arith.constant 0 : index
    %98 = vector.load %arg11[%c1_70, %c0_71, %c0_72] : memref<3x192x192xbf16, #tpu.memory_space<vmem>>, vector<1x192x192xbf16>
    %99 = vector.shape_cast %98 : vector<1x192x192xbf16> to vector<192x192xbf16>
    %cst_73 = arith.constant dense<0.000000e+00> : vector<192x256xf32>
    %100 = tpu.matmul %99, %97, %cst_73 {dimension_numbers = #tpu.dot_dimension_numbers<[1], [0], [0], [1], [0, 0, 1, 1], [], []>} : vector<192x192xbf16>, vector<192x256xbf16>, vector<192x256xf32> -> vector<192x256xf32>
    %101 = arith.addf %95, %100 : vector<192x256xf32>
    %102 = vector.extract_strided_slice %92 {offsets = [0, 256], sizes = [192, 256], strides = [1, 1]} : vector<192x512xf32> to vector<192x256xf32>
    %103 = arith.truncf %102 : vector<192x256xf32> to vector<192x256xbf16>
    %c2_74 = arith.constant 2 : index
    %c0_75 = arith.constant 0 : index
    %c0_76 = arith.constant 0 : index
    %104 = vector.load %arg11[%c2_74, %c0_75, %c0_76] : memref<3x192x192xbf16, #tpu.memory_space<vmem>>, vector<1x192x192xbf16>
    %105 = vector.shape_cast %104 : vector<1x192x192xbf16> to vector<192x192xbf16>
    %cst_77 = arith.constant dense<0.000000e+00> : vector<192x256xf32>
    %106 = tpu.matmul %105, %103, %cst_77 {dimension_numbers = #tpu.dot_dimension_numbers<[1], [0], [0], [1], [0, 0, 1, 1], [], []>} : vector<192x192xbf16>, vector<192x256xbf16>, vector<192x256xf32> -> vector<192x256xf32>
    %107 = arith.addf %101, %106 : vector<192x256xf32>
    %c0_78 = arith.constant 0 : index
    %c0_79 = arith.constant 0 : index
    %108 = vector.load %arg12[%c0_78, %c0_79] : memref<192x1xf32, #tpu.memory_space<vmem>>, vector<192x1xf32>
    %109 = vector.broadcast %108 : vector<192x1xf32> to vector<192x256xf32>
    %110 = arith.addf %107, %109 : vector<192x256xf32>
    %cst_80 = arith.constant 0.000000e+00 : f32
    %111 = vector.broadcast %cst_80 : f32 to vector<192x256xf32>
    %112 = arith.maximumf %110, %111 : vector<192x256xf32>
    %113 = arith.truncf %112 : vector<192x256xf32> to vector<192x256xbf16>
    %cst_81 = arith.constant dense<0.000000e+00> : vector<192x512xf32>
    %114 = tpu.matmul %113, %0, %cst_81 {dimension_numbers = #tpu.dot_dimension_numbers<[1], [0], [0], [1], [0, 0, 1, 1], [], []>} : vector<192x256xbf16>, vector<256x512xbf16>, vector<192x512xf32> -> vector<192x512xf32>
    %c0_82 = arith.constant 0 : index
    %c0_83 = arith.constant 0 : index
    %c0_84 = arith.constant 0 : index
    %115 = vector.load %arg13[%c0_82, %c0_83, %c0_84] : memref<3x192x192xbf16, #tpu.memory_space<vmem>>, vector<1x192x192xbf16>
    %116 = vector.shape_cast %115 : vector<1x192x192xbf16> to vector<192x192xbf16>
    %cst_85 = arith.constant dense<0.000000e+00> : vector<192x256xf32>
    %117 = tpu.matmul %116, %113, %cst_85 {dimension_numbers = #tpu.dot_dimension_numbers<[1], [0], [0], [1], [0, 0, 1, 1], [], []>} : vector<192x192xbf16>, vector<192x256xbf16>, vector<192x256xf32> -> vector<192x256xf32>
    %118 = vector.extract_strided_slice %114 {offsets = [0, 0], sizes = [192, 256], strides = [1, 1]} : vector<192x512xf32> to vector<192x256xf32>
    %119 = arith.truncf %118 : vector<192x256xf32> to vector<192x256xbf16>
    %c1_86 = arith.constant 1 : index
    %c0_87 = arith.constant 0 : index
    %c0_88 = arith.constant 0 : index
    %120 = vector.load %arg13[%c1_86, %c0_87, %c0_88] : memref<3x192x192xbf16, #tpu.memory_space<vmem>>, vector<1x192x192xbf16>
    %121 = vector.shape_cast %120 : vector<1x192x192xbf16> to vector<192x192xbf16>
    %cst_89 = arith.constant dense<0.000000e+00> : vector<192x256xf32>
    %122 = tpu.matmul %121, %119, %cst_89 {dimension_numbers = #tpu.dot_dimension_numbers<[1], [0], [0], [1], [0, 0, 1, 1], [], []>} : vector<192x192xbf16>, vector<192x256xbf16>, vector<192x256xf32> -> vector<192x256xf32>
    %123 = arith.addf %117, %122 : vector<192x256xf32>
    %124 = vector.extract_strided_slice %114 {offsets = [0, 256], sizes = [192, 256], strides = [1, 1]} : vector<192x512xf32> to vector<192x256xf32>
    %125 = arith.truncf %124 : vector<192x256xf32> to vector<192x256xbf16>
    %c2_90 = arith.constant 2 : index
    %c0_91 = arith.constant 0 : index
    %c0_92 = arith.constant 0 : index
    %126 = vector.load %arg13[%c2_90, %c0_91, %c0_92] : memref<3x192x192xbf16, #tpu.memory_space<vmem>>, vector<1x192x192xbf16>
    %127 = vector.shape_cast %126 : vector<1x192x192xbf16> to vector<192x192xbf16>
    %cst_93 = arith.constant dense<0.000000e+00> : vector<192x256xf32>
    %128 = tpu.matmul %127, %125, %cst_93 {dimension_numbers = #tpu.dot_dimension_numbers<[1], [0], [0], [1], [0, 0, 1, 1], [], []>} : vector<192x192xbf16>, vector<192x256xbf16>, vector<192x256xf32> -> vector<192x256xf32>
    %129 = arith.addf %123, %128 : vector<192x256xf32>
    %c0_94 = arith.constant 0 : index
    %c0_95 = arith.constant 0 : index
    %130 = vector.load %arg14[%c0_94, %c0_95] : memref<192x1xf32, #tpu.memory_space<vmem>>, vector<192x1xf32>
    %131 = vector.broadcast %130 : vector<192x1xf32> to vector<192x256xf32>
    %132 = arith.addf %129, %131 : vector<192x256xf32>
    %cst_96 = arith.constant 0.000000e+00 : f32
    %133 = vector.broadcast %cst_96 : f32 to vector<192x256xf32>
    %134 = arith.maximumf %132, %133 : vector<192x256xf32>
    %135 = arith.truncf %134 : vector<192x256xf32> to vector<192x256xbf16>
    %cst_97 = arith.constant dense<0.000000e+00> : vector<192x512xf32>
    %136 = tpu.matmul %135, %0, %cst_97 {dimension_numbers = #tpu.dot_dimension_numbers<[1], [0], [0], [1], [0, 0, 1, 1], [], []>} : vector<192x256xbf16>, vector<256x512xbf16>, vector<192x512xf32> -> vector<192x512xf32>
    %c0_98 = arith.constant 0 : index
    %c0_99 = arith.constant 0 : index
    %c0_100 = arith.constant 0 : index
    %137 = vector.load %arg15[%c0_98, %c0_99, %c0_100] : memref<3x96x192xbf16, #tpu.memory_space<vmem>>, vector<1x96x192xbf16>
    %138 = vector.shape_cast %137 : vector<1x96x192xbf16> to vector<96x192xbf16>
    %cst_101 = arith.constant dense<0.000000e+00> : vector<96x256xf32>
    %139 = tpu.matmul %138, %135, %cst_101 {dimension_numbers = #tpu.dot_dimension_numbers<[1], [0], [0], [1], [0, 0, 1, 1], [], []>} : vector<96x192xbf16>, vector<192x256xbf16>, vector<96x256xf32> -> vector<96x256xf32>
    %140 = vector.extract_strided_slice %136 {offsets = [0, 0], sizes = [192, 256], strides = [1, 1]} : vector<192x512xf32> to vector<192x256xf32>
    %141 = arith.truncf %140 : vector<192x256xf32> to vector<192x256xbf16>
    %c1_102 = arith.constant 1 : index
    %c0_103 = arith.constant 0 : index
    %c0_104 = arith.constant 0 : index
    %142 = vector.load %arg15[%c1_102, %c0_103, %c0_104] : memref<3x96x192xbf16, #tpu.memory_space<vmem>>, vector<1x96x192xbf16>
    %143 = vector.shape_cast %142 : vector<1x96x192xbf16> to vector<96x192xbf16>
    %cst_105 = arith.constant dense<0.000000e+00> : vector<96x256xf32>
    %144 = tpu.matmul %143, %141, %cst_105 {dimension_numbers = #tpu.dot_dimension_numbers<[1], [0], [0], [1], [0, 0, 1, 1], [], []>} : vector<96x192xbf16>, vector<192x256xbf16>, vector<96x256xf32> -> vector<96x256xf32>
    %145 = arith.addf %139, %144 : vector<96x256xf32>
    %146 = vector.extract_strided_slice %136 {offsets = [0, 256], sizes = [192, 256], strides = [1, 1]} : vector<192x512xf32> to vector<192x256xf32>
    %147 = arith.truncf %146 : vector<192x256xf32> to vector<192x256xbf16>
    %c2_106 = arith.constant 2 : index
    %c0_107 = arith.constant 0 : index
    %c0_108 = arith.constant 0 : index
    %148 = vector.load %arg15[%c2_106, %c0_107, %c0_108] : memref<3x96x192xbf16, #tpu.memory_space<vmem>>, vector<1x96x192xbf16>
    %149 = vector.shape_cast %148 : vector<1x96x192xbf16> to vector<96x192xbf16>
    %cst_109 = arith.constant dense<0.000000e+00> : vector<96x256xf32>
    %150 = tpu.matmul %149, %147, %cst_109 {dimension_numbers = #tpu.dot_dimension_numbers<[1], [0], [0], [1], [0, 0, 1, 1], [], []>} : vector<96x192xbf16>, vector<192x256xbf16>, vector<96x256xf32> -> vector<96x256xf32>
    %151 = arith.addf %145, %150 : vector<96x256xf32>
    %c0_110 = arith.constant 0 : index
    %c0_111 = arith.constant 0 : index
    %152 = vector.load %arg16[%c0_110, %c0_111] : memref<96x1xf32, #tpu.memory_space<vmem>>, vector<96x1xf32>
    %153 = vector.broadcast %152 : vector<96x1xf32> to vector<96x256xf32>
    %154 = arith.addf %151, %153 : vector<96x256xf32>
    %cst_112 = arith.constant 0.000000e+00 : f32
    %155 = vector.broadcast %cst_112 : f32 to vector<96x256xf32>
    %156 = arith.maximumf %154, %155 : vector<96x256xf32>
    %c0_113 = arith.constant 0 : index
    %c0_114 = arith.constant 0 : index
    %c0_115 = arith.constant 0 : index
    %157 = vector.load %arg17[%c0_113, %c0_114, %c0_115] : memref<1x96x256xf32, #tpu.memory_space<vmem>>, vector<1x96x256xf32>
    %158 = vector.shape_cast %157 : vector<1x96x256xf32> to vector<96x256xf32>
    %159 = vector.shape_cast %156 : vector<96x256xf32> to vector<1x96x256xf32>
    tpu.vector_store %arg17[%c0_113, %c0_114, %c0_115], %159 {strides = array<i32>} : memref<1x96x256xf32, #tpu.memory_space<vmem>>, vector<1x96x256xf32>,
    return
  }
  func.func @transform_0(%arg0: i32) -> (i32, i32) {
    %c0_i32 = arith.constant 0 : i32
    %c0_i32_0 = arith.constant 0 : i32
    %c0_i32_1 = arith.constant 0 : i32
    return %c0_i32, %c0_i32_0 : i32, i32
  }
  func.func @transform_1(%arg0: i32) -> (i32, i32, i32) {
    %c0_i32 = arith.constant 0 : i32
    %c0_i32_0 = arith.constant 0 : i32
    %c0_i32_1 = arith.constant 0 : i32
    return %arg0, %c0_i32, %c0_i32_0 : i32, i32, i32
  }
  func.func @transform_2(%arg0: i32) -> (i32, i32, i32) {
    %c0_i32 = arith.constant 0 : i32
    %c0_i32_0 = arith.constant 0 : i32
    %c0_i32_1 = arith.constant 0 : i32
    %c0_i32_2 = arith.constant 0 : i32
    return %c0_i32, %c0_i32_0, %c0_i32_1 : i32, i32, i32
  }
  func.func @transform_3(%arg0: i32) -> (i32, i32) {
    %c0_i32 = arith.constant 0 : i32
    %c0_i32_0 = arith.constant 0 : i32
    %c0_i32_1 = arith.constant 0 : i32
    return %c0_i32, %c0_i32_0 : i32, i32
  }
  func.func @transform_4(%arg0: i32) -> (i32, i32, i32) {
    %c0_i32 = arith.constant 0 : i32
    %c0_i32_0 = arith.constant 0 : i32
    %c0_i32_1 = arith.constant 0 : i32
    %c0_i32_2 = arith.constant 0 : i32
    return %c0_i32, %c0_i32_0, %c0_i32_1 : i32, i32, i32
  }
  func.func @transform_5(%arg0: i32) -> (i32, i32) {
    %c0_i32 = arith.constant 0 : i32
    %c0_i32_0 = arith.constant 0 : i32
    %c0_i32_1 = arith.constant 0 : i32
    return %c0_i32, %c0_i32_0 : i32, i32
  }
  func.func @transform_6(%arg0: i32) -> (i32, i32, i32) {
    %c0_i32 = arith.constant 0 : i32
    %c0_i32_0 = arith.constant 0 : i32
    %c0_i32_1 = arith.constant 0 : i32
    %c0_i32_2 = arith.constant 0 : i32
    return %c0_i32, %c0_i32_0, %c0_i32_1 : i32, i32, i32
  }
  func.func @transform_7(%arg0: i32) -> (i32, i32) {
    %c0_i32 = arith.constant 0 : i32
    %c0_i32_0 = arith.constant 0 : i32
    %c0_i32_1 = arith.constant 0 : i32
    return %c0_i32, %c0_i32_0 : i32, i32
  }
  func.func @transform_8(%arg0: i32) -> (i32, i32, i32) {
    %c0_i32 = arith.constant 0 : i32
    %c0_i32_0 = arith.constant 0 : i32
    %c0_i32_1 = arith.constant 0 : i32
    %c0_i32_2 = arith.constant 0 : i32
    return %c0_i32, %c0_i32_0, %c0_i32_1 : i32, i32, i32
  }
  func.func @transform_9(%arg0: i32) -> (i32, i32) {
    %c0_i32 = arith.constant 0 : i32
    %c0_i32_0 = arith.constant 0 : i32
    %c0_i32_1 = arith.constant 0 : i32
    return %c0_i32, %c0_i32_0 : i32, i32
  }
  func.func @transform_10(%arg0: i32) -> (i32, i32, i32) {
    %c0_i32 = arith.constant 0 : i32
    %c0_i32_0 = arith.constant 0 : i32
    %c0_i32_1 = arith.constant 0 : i32
    %c0_i32_2 = arith.constant 0 : i32
    return %c0_i32, %c0_i32_0, %c0_i32_1 : i32, i32, i32
  }
  func.func @transform_11(%arg0: i32) -> (i32, i32) {
    %c0_i32 = arith.constant 0 : i32
    %c0_i32_0 = arith.constant 0 : i32
    %c0_i32_1 = arith.constant 0 : i32
    return %c0_i32, %c0_i32_0 : i32, i32
  }
  func.func @transform_12(%arg0: i32) -> (i32, i32, i32) {
    %c0_i32 = arith.constant 0 : i32
    %c0_i32_0 = arith.constant 0 : i32
    %c0_i32_1 = arith.constant 0 : i32
    %c0_i32_2 = arith.constant 0 : i32
    return %c0_i32, %c0_i32_0, %c0_i32_1 : i32, i32, i32
  }
  func.func @transform_13(%arg0: i32) -> (i32, i32) {
    %c0_i32 = arith.constant 0 : i32
    %c0_i32_0 = arith.constant 0 : i32
    %c0_i32_1 = arith.constant 0 : i32
    return %c0_i32, %c0_i32_0 : i32, i32
  }
  func.func @transform_14(%arg0: i32) -> (i32, i32, i32) {
    %c0_i32 = arith.constant 0 : i32
    %c0_i32_0 = arith.constant 0 : i32
    %c0_i32_1 = arith.constant 0 : i32
    %c0_i32_2 = arith.constant 0 : i32
    return %c0_i32, %c0_i32_0, %c0_i32_1 : i32, i32, i32
  }
  func.func @transform_15(%arg0: i32) -> (i32, i32) {
    %c0_i32 = arith.constant 0 : i32
    %c0_i32_0 = arith.constant 0 : i32
    %c0_i32_1 = arith.constant 0 : i32
    return %c0_i32, %c0_i32_0 : i32, i32
  }
  func.func @transform_16(%arg0: i32) -> (i32, i32, i32) {
    %c0_i32 = arith.constant 0 : i32
    %c0_i32_0 = arith.constant 0 : i32
    %c0_i32_1 = arith.constant 0 : i32
    return %arg0, %c0_i32, %c0_i32_0 : i32, i32, i32
  }
}

</mosaic_0001>

<llo_original>
// kernel: tpu_custom_call.1
$region0: #{tpu_custom_call.1}
  #allocation0 [shape = 'u32[]', space=smem, size = 0x4, offset = 0x4, fixed_abs, tag = 'smem constant byte address 0x4 - core index']
  #allocation1 [shape = 'u32[144,128]{1,0:T(1,128)}', space=vmem, size = 0x12000, scoped, tag = 'internal scratch']
  %s0 = inlined_call_operand.hbm [shape: bf16[256,512], index: 0, kind: input, shape index: {}]
  %s1 = inlined_call_operand.vmem [shape: f32[2,3,256], index: 1, kind: input, shape index: {}]
  %s2 = inlined_call_operand.vmem [shape: bf16[3,96,3], index: 2, kind: input, shape index: {}]
  %s3 = inlined_call_operand.vmem [shape: f32[96,1], index: 3, kind: input, shape index: {}]
  %s4 = inlined_call_operand.vmem [shape: bf16[3,96,96], index: 4, kind: input, shape index: {}]
  %s5 = inlined_call_operand.vmem [shape: f32[96,1], index: 5, kind: input, shape index: {}]
  %s6 = inlined_call_operand.vmem [shape: bf16[3,96,96], index: 6, kind: input, shape index: {}]
  %s7 = inlined_call_operand.vmem [shape: f32[96,1], index: 7, kind: input, shape index: {}]
  %s8 = inlined_call_operand.vmem [shape: bf16[3,192,96], index: 8, kind: input, shape index: {}]
  %s9 = inlined_call_operand.vmem [shape: f32[192,1], index: 9, kind: input, shape index: {}]
  %s10 = inlined_call_operand.hbm [shape: bf16[3,192,192], index: 10, kind: input, shape index: {}]
  %s11 = inlined_call_operand.vmem [shape: f32[192,1], index: 11, kind: input, shape index: {}]
  %s12 = inlined_call_operand.hbm [shape: bf16[3,192,192], index: 12, kind: input, shape index: {}]
  %s13 = inlined_call_operand.vmem [shape: f32[192,1], index: 13, kind: input, shape index: {}]
  %s14 = inlined_call_operand.vmem [shape: bf16[3,96,192], index: 14, kind: input, shape index: {}]
  %s15 = inlined_call_operand.vmem [shape: f32[96,1], index: 15, kind: input, shape index: {}]
  %s16 = inlined_call_operand.hbm [shape: f32[2,96,256], index: 16, kind: output, shape index: {}]
  %s17 = sld [smem:[#allocation0]]
  $region109: #{tpu_custom_call.1} parent=0
    _
  %s19 = ssub.s32 1, %s17
  %s20 = scalar_select 0, %s19, %s17
  $region1: #{tpu_custom_call.1} parent=0
    #allocation2 [shape = 'u8[262144]{0}', space=vmem, size = 0x40000, scoped, tag = 'input window, operand 0, single buffered']
    #allocation3 [shape = 's32[2]{0}', space=sflag, size = 0x8, scoped, tag = 'scoped memory for tpu_custom_call.1']
    #allocation4 [shape = 's32[2]{0}', space=sflag, size = 0x8, scoped, tag = 'scoped memory for tpu_custom_call.1']
    #allocation5 [shape = 'u8[294912]{0}', space=vmem, size = 0x48000, scoped, tag = 'input window, operand 10, single buffered']
    #allocation6 [shape = 's32[1]{0}', space=sflag, size = 0x4, scoped, tag = 'scoped memory for tpu_custom_call.1']
    #allocation7 [shape = 'u8[294912]{0}', space=vmem, size = 0x48000, scoped, tag = 'input window, operand 12, single buffered']
    #allocation8 [shape = 'u8[196608]{0}', space=vmem, size = 0x30000, scoped, tag = 'output window, operand 0']
    %21 = vsyncpa [#allocation3], 0
    %22 = vsyncpa [#allocation6], 0
    %23 = vsyncpa [#allocation4], 0
    %s24 = scalar_lea.sflag [#allocation4], 1
    %25 = vsyncpa %s24, 0
    loop: start=0, step=1, limit=4
    $region2: #{tpu_custom_call.1} parent=1 // loop_pre_header
      _
    $region3: #{tpu_custom_call.1} parent=1 // loop_header
      %s27 = sphi 0, %s31
      %p28 = scmp.ge.s32.totalorder %s27, 4
      %s35 = sphi 0, %s35
      %s37 = sphi 0, %s35
      %s38 = sphi 0, %s37
      %s52 = sphi 0, %s38
      %s58 = sphi 0, %s60
      %s61 = sphi 0, %s58
      %s62 = sphi 0, %s61
      %s78 = sphi 0, %s62
      %s82 = sphi 0, %s82
      %s84 = sphi 0, %s82
      %s85 = sphi 0, %s84
      %s99 = sphi 0, %s85
      %s103 = sphi 0, %s103
      %s105 = sphi 0, %s103
      %s106 = sphi 0, %s105
      %s120 = sphi 0, %s106
      %s124 = sphi 0, %s124
      %s126 = sphi 0, %s124
      %s127 = sphi 0, %s126
      %s141 = sphi 0, %s127
      %s145 = sphi 0, %s145
      %s147 = sphi 0, %s145
      %s148 = sphi 0, %s147
      %s162 = sphi 0, %s148
      %s166 = sphi 0, %s166
      %s168 = sphi 0, %s166
      %s169 = sphi 0, %s168
      %s183 = sphi 0, %s169
      %s187 = sphi 0, %s187
      %s189 = sphi 0, %s187
      %s190 = sphi 0, %s189
      %s204 = sphi 0, %s190
      %s208 = sphi 0, %s208
      %s210 = sphi 0, %s208
      %s211 = sphi 0, %s210
      %s225 = sphi 0, %s211
      %s229 = sphi 0, %s229
      %s231 = sphi 0, %s229
      %s232 = sphi 0, %s231
      %s246 = sphi 0, %s232
      %s250 = sphi 0, %s250
      %s252 = sphi 0, %s250
      %s253 = sphi 0, %s252
      %s267 = sphi 0, %s253
      %s271 = sphi 0, %s271
      %s273 = sphi 0, %s271
      %s274 = sphi 0, %s273
      %s288 = sphi 0, %s274
      %s292 = sphi 0, %s292
      %s294 = sphi 0, %s292
      %s295 = sphi 0, %s294
      %s309 = sphi 0, %s295
      %s313 = sphi 0, %s313
      %s315 = sphi 0, %s313
      %s316 = sphi 0, %s315
      %s330 = sphi 0, %s316
      %s334 = sphi 0, %s334
      %s336 = sphi 0, %s334
      %s337 = sphi 0, %s336
      %s351 = sphi 0, %s337
      %s355 = sphi 0, %s355
      %s357 = sphi 0, %s355
      %s358 = sphi 0, %s357
      %s372 = sphi 0, %s358
      %s378 = sphi 0, %s380
      %s381 = sphi 0, %s378
      %s382 = sphi 0, %s381
      %s398 = sphi 0, %s382
    $region4: #{tpu_custom_call.1} parent=1 // loop_header_branch
      %30 = sbr.rel (%p28) target = $region8
    $region5: #{tpu_custom_call.1} parent=1 // loop_body
      %s32 = ssub.s32 %s27, 1
      %s33 = ssub.s32 %s27, 2
      %s34 = sadd.s32 %s27, 1
      %s36 = sadd.s32 %s35, 1
      %p39 = scmp.eq.s32.totalorder %s27, 1
      %p40 = scmp.ne.s32.totalorder %s35, %s37
      %p41 = scmp.eq.s32.totalorder %s27, 0
      %p42 = por %p40, %p41
      %p43 = scmp.ne.s32.totalorder %s35, %s37
      %p44 = scmp.eq.s32.totalorder %s32, 1
      %p45 = por %p43, %p44
      %p46 = scmp.ne.s32.totalorder %s37, %s38
      %p47 = scmp.eq.s32.totalorder %s32, 0
      %p48 = por %p46, %p47
      %p49 = scmp.ne.s32.totalorder %s37, %s38
      %p50 = scmp.eq.s32.totalorder %s33, 1
      %p51 = por %p49, %p50
      %p53 = scmp.ne.s32.totalorder %s38, %s52
      %p54 = scmp.eq.s32.totalorder %s33, 0
      %p55 = por %p53, %p54
      %s56 = ssub.s32 %s27, %s34
      %p57 = scmp.eq.s32.totalorder %s56, 0
      %s59 = sadd.s32 %s58, 1
      %s60 = scalar_select %p57, %s58, %s59
      %p63 = pneg %p57
      %p64 = scmp.eq.s32.totalorder %s27, 1
      %p65 = por %p63, %p64
      %p66 = scmp.ne.s32.totalorder %s58, %s61
      %p67 = scmp.eq.s32.totalorder %s27, 0
      %p68 = por %p66, %p67
      %p69 = scmp.ne.s32.totalorder %s58, %s61
      %p70 = scmp.eq.s32.totalorder %s32, 1
      %p71 = por %p69, %p70
      %p72 = scmp.ne.s32.totalorder %s61, %s62
      %p73 = scmp.eq.s32.totalorder %s32, 0
      %p74 = por %p72, %p73
      %p75 = scmp.ne.s32.totalorder %s61, %s62
      %p76 = scmp.eq.s32.totalorder %s33, 1
      %p77 = por %p75, %p76
      %p79 = scmp.ne.s32.totalorder %s62, %s78
      %p80 = scmp.eq.s32.totalorder %s33, 0
      %p81 = por %p79, %p80
      %s83 = sadd.s32 %s82, 1
      %p86 = scmp.eq.s32.totalorder %s27, 1
      %p87 = scmp.ne.s32.totalorder %s82, %s84
      %p88 = scmp.eq.s32.totalorder %s27, 0
      %p89 = por %p87, %p88
      %p90 = scmp.ne.s32.totalorder %s82, %s84
      %p91 = scmp.eq.s32.totalorder %s32, 1
      %p92 = por %p90, %p91
      %p93 = scmp.ne.s32.totalorder %s84, %s85
      %p94 = scmp.eq.s32.totalorder %s32, 0
      %p95 = por %p93, %p94
      %p96 = scmp.ne.s32.totalorder %s84, %s85
      %p97 = scmp.eq.s32.totalorder %s33, 1
      %p98 = por %p96, %p97
      %p100 = scmp.ne.s32.totalorder %s85, %s99
      %p101 = scmp.eq.s32.totalorder %s33, 0
      %p102 = por %p100, %p101
      %s104 = sadd.s32 %s103, 1
      %p107 = scmp.eq.s32.totalorder %s27, 1
      %p108 = scmp.ne.s32.totalorder %s103, %s105
      %p109 = scmp.eq.s32.totalorder %s27, 0
      %p110 = por %p108, %p109
      %p111 = scmp.ne.s32.totalorder %s103, %s105
      %p112 = scmp.eq.s32.totalorder %s32, 1
      %p113 = por %p111, %p112
      %p114 = scmp.ne.s32.totalorder %s105, %s106
      %p115 = scmp.eq.s32.totalorder %s32, 0
      %p116 = por %p114, %p115
      %p117 = scmp.ne.s32.totalorder %s105, %s106
      %p118 = scmp.eq.s32.totalorder %s33, 1
      %p119 = por %p117, %p118
      %p121 = scmp.ne.s32.totalorder %s106, %s120
      %p122 = scmp.eq.s32.totalorder %s33, 0
      %p123 = por %p121, %p122
      %s125 = sadd.s32 %s124, 1
      %p128 = scmp.eq.s32.totalorder %s27, 1
      %p129 = scmp.ne.s32.totalorder %s124, %s126
      %p130 = scmp.eq.s32.totalorder %s27, 0
      %p131 = por %p129, %p130
      %p132 = scmp.ne.s32.totalorder %s124, %s126
      %p133 = scmp.eq.s32.totalorder %s32, 1
      %p134 = por %p132, %p133
      %p135 = scmp.ne.s32.totalorder %s126, %s127
      %p136 = scmp.eq.s32.totalorder %s32, 0
      %p137 = por %p135, %p136
      %p138 = scmp.ne.s32.totalorder %s126, %s127
      %p139 = scmp.eq.s32.totalorder %s33, 1
      %p140 = por %p138, %p139
      %p142 = scmp.ne.s32.totalorder %s127, %s141
      %p143 = scmp.eq.s32.totalorder %s33, 0
      %p144 = por %p142, %p143
      %s146 = sadd.s32 %s145, 1
      %p149 = scmp.eq.s32.totalorder %s27, 1
      %p150 = scmp.ne.s32.totalorder %s145, %s147
      %p151 = scmp.eq.s32.totalorder %s27, 0
      %p152 = por %p150, %p151
      %p153 = scmp.ne.s32.totalorder %s145, %s147
      %p154 = scmp.eq.s32.totalorder %s32, 1
      %p155 = por %p153, %p154
      %p156 = scmp.ne.s32.totalorder %s147, %s148
      %p157 = scmp.eq.s32.totalorder %s32, 0
      %p158 = por %p156, %p157
      %p159 = scmp.ne.s32.totalorder %s147, %s148
      %p160 = scmp.eq.s32.totalorder %s33, 1
      %p161 = por %p159, %p160
      %p163 = scmp.ne.s32.totalorder %s148, %s162
      %p164 = scmp.eq.s32.totalorder %s33, 0
      %p165 = por %p163, %p164
      %s167 = sadd.s32 %s166, 1
      %p170 = scmp.eq.s32.totalorder %s27, 1
      %p171 = scmp.ne.s32.totalorder %s166, %s168
      %p172 = scmp.eq.s32.totalorder %s27, 0
      %p173 = por %p171, %p172
      %p174 = scmp.ne.s32.totalorder %s166, %s168
      %p175 = scmp.eq.s32.totalorder %s32, 1
      %p176 = por %p174, %p175
      %p177 = scmp.ne.s32.totalorder %s168, %s169
      %p178 = scmp.eq.s32.totalorder %s32, 0
      %p179 = por %p177, %p178
      %p180 = scmp.ne.s32.totalorder %s168, %s169
      %p181 = scmp.eq.s32.totalorder %s33, 1
      %p182 = por %p180, %p181
      %p184 = scmp.ne.s32.totalorder %s169, %s183
      %p185 = scmp.eq.s32.totalorder %s33, 0
      %p186 = por %p184, %p185
      %s188 = sadd.s32 %s187, 1
      %p191 = scmp.eq.s32.totalorder %s27, 1
      %p192 = scmp.ne.s32.totalorder %s187, %s189
      %p193 = scmp.eq.s32.totalorder %s27, 0
      %p194 = por %p192, %p193
      %p195 = scmp.ne.s32.totalorder %s187, %s189
      %p196 = scmp.eq.s32.totalorder %s32, 1
      %p197 = por %p195, %p196
      %p198 = scmp.ne.s32.totalorder %s189, %s190
      %p199 = scmp.eq.s32.totalorder %s32, 0
      %p200 = por %p198, %p199
      %p201 = scmp.ne.s32.totalorder %s189, %s190
      %p202 = scmp.eq.s32.totalorder %s33, 1
      %p203 = por %p201, %p202
      %p205 = scmp.ne.s32.totalorder %s190, %s204
      %p206 = scmp.eq.s32.totalorder %s33, 0
      %p207 = por %p205, %p206
      %s209 = sadd.s32 %s208, 1
      %p212 = scmp.eq.s32.totalorder %s27, 1
      %p213 = scmp.ne.s32.totalorder %s208, %s210
      %p214 = scmp.eq.s32.totalorder %s27, 0
      %p215 = por %p213, %p214
      %p216 = scmp.ne.s32.totalorder %s208, %s210
      %p217 = scmp.eq.s32.totalorder %s32, 1
      %p218 = por %p216, %p217
      %p219 = scmp.ne.s32.totalorder %s210, %s211
      %p220 = scmp.eq.s32.totalorder %s32, 0
      %p221 = por %p219, %p220
      %p222 = scmp.ne.s32.totalorder %s210, %s211
      %p223 = scmp.eq.s32.totalorder %s33, 1
      %p224 = por %p222, %p223
      %p226 = scmp.ne.s32.totalorder %s211, %s225
      %p227 = scmp.eq.s32.totalorder %s33, 0
      %p228 = por %p226, %p227
      %s230 = sadd.s32 %s229, 1
      %p233 = scmp.eq.s32.totalorder %s27, 1
      %p234 = scmp.ne.s32.totalorder %s229, %s231
      %p235 = scmp.eq.s32.totalorder %s27, 0
      %p236 = por %p234, %p235
      %p237 = scmp.ne.s32.totalorder %s229, %s231
      %p238 = scmp.eq.s32.totalorder %s32, 1
      %p239 = por %p237, %p238
      %p240 = scmp.ne.s32.totalorder %s231, %s232
      %p241 = scmp.eq.s32.totalorder %s32, 0
      %p242 = por %p240, %p241
      %p243 = scmp.ne.s32.totalorder %s231, %s232
      %p244 = scmp.eq.s32.totalorder %s33, 1
      %p245 = por %p243, %p244
      %p247 = scmp.ne.s32.totalorder %s232, %s246
      %p248 = scmp.eq.s32.totalorder %s33, 0
      %p249 = por %p247, %p248
      %s251 = sadd.s32 %s250, 1
      %p254 = scmp.eq.s32.totalorder %s27, 1
      %p255 = scmp.ne.s32.totalorder %s250, %s252
      %p256 = scmp.eq.s32.totalorder %s27, 0
      %p257 = por %p255, %p256
      %p258 = scmp.ne.s32.totalorder %s250, %s252
      %p259 = scmp.eq.s32.totalorder %s32, 1
      %p260 = por %p258, %p259
      %p261 = scmp.ne.s32.totalorder %s252, %s253
      %p262 = scmp.eq.s32.totalorder %s32, 0
      %p263 = por %p261, %p262
      %p264 = scmp.ne.s32.totalorder %s252, %s253
      %p265 = scmp.eq.s32.totalorder %s33, 1
      %p266 = por %p264, %p265
      %p268 = scmp.ne.s32.totalorder %s253, %s267
      %p269 = scmp.eq.s32.totalorder %s33, 0
      %p270 = por %p268, %p269
      %s272 = sadd.s32 %s271, 1
      %p275 = scmp.eq.s32.totalorder %s27, 1
      %p276 = scmp.ne.s32.totalorder %s271, %s273
      %p277 = scmp.eq.s32.totalorder %s27, 0
      %p278 = por %p276, %p277
      %p279 = scmp.ne.s32.totalorder %s271, %s273
      %p280 = scmp.eq.s32.totalorder %s32, 1
      %p281 = por %p279, %p280
      %p282 = scmp.ne.s32.totalorder %s273, %s274
      %p283 = scmp.eq.s32.totalorder %s32, 0
      %p284 = por %p282, %p283
      %p285 = scmp.ne.s32.totalorder %s273, %s274
      %p286 = scmp.eq.s32.totalorder %s33, 1
      %p287 = por %p285, %p286
      %p289 = scmp.ne.s32.totalorder %s274, %s288
      %p290 = scmp.eq.s32.totalorder %s33, 0
      %p291 = por %p289, %p290
      %s293 = sadd.s32 %s292, 1
      %p296 = scmp.eq.s32.totalorder %s27, 1
      %p297 = scmp.ne.s32.totalorder %s292, %s294
      %p298 = scmp.eq.s32.totalorder %s27, 0
      %p299 = por %p297, %p298
      %p300 = scmp.ne.s32.totalorder %s292, %s294
      %p301 = scmp.eq.s32.totalorder %s32, 1
      %p302 = por %p300, %p301
      %p303 = scmp.ne.s32.totalorder %s294, %s295
      %p304 = scmp.eq.s32.totalorder %s32, 0
      %p305 = por %p303, %p304
      %p306 = scmp.ne.s32.totalorder %s294, %s295
      %p307 = scmp.eq.s32.totalorder %s33, 1
      %p308 = por %p306, %p307
      %p310 = scmp.ne.s32.totalorder %s295, %s309
      %p311 = scmp.eq.s32.totalorder %s33, 0
      %p312 = por %p310, %p311
      %s314 = sadd.s32 %s313, 1
      %p317 = scmp.eq.s32.totalorder %s27, 1
      %p318 = scmp.ne.s32.totalorder %s313, %s315
      %p319 = scmp.eq.s32.totalorder %s27, 0
      %p320 = por %p318, %p319
      %p321 = scmp.ne.s32.totalorder %s313, %s315
      %p322 = scmp.eq.s32.totalorder %s32, 1
      %p323 = por %p321, %p322
      %p324 = scmp.ne.s32.totalorder %s315, %s316
      %p325 = scmp.eq.s32.totalorder %s32, 0
      %p326 = por %p324, %p325
      %p327 = scmp.ne.s32.totalorder %s315, %s316
      %p328 = scmp.eq.s32.totalorder %s33, 1
      %p329 = por %p327, %p328
      %p331 = scmp.ne.s32.totalorder %s316, %s330
      %p332 = scmp.eq.s32.totalorder %s33, 0
      %p333 = por %p331, %p332
      %s335 = sadd.s32 %s334, 1
      %p338 = scmp.eq.s32.totalorder %s27, 1
      %p339 = scmp.ne.s32.totalorder %s334, %s336
      %p340 = scmp.eq.s32.totalorder %s27, 0
      %p341 = por %p339, %p340
      %p342 = scmp.ne.s32.totalorder %s334, %s336
      %p343 = scmp.eq.s32.totalorder %s32, 1
      %p344 = por %p342, %p343
      %p345 = scmp.ne.s32.totalorder %s336, %s337
      %p346 = scmp.eq.s32.totalorder %s32, 0
      %p347 = por %p345, %p346
      %p348 = scmp.ne.s32.totalorder %s336, %s337
      %p349 = scmp.eq.s32.totalorder %s33, 1
      %p350 = por %p348, %p349
      %p352 = scmp.ne.s32.totalorder %s337, %s351
      %p353 = scmp.eq.s32.totalorder %s33, 0
      %p354 = por %p352, %p353
      %s356 = sadd.s32 %s355, 1
      %p359 = scmp.eq.s32.totalorder %s27, 1
      %p360 = scmp.ne.s32.totalorder %s355, %s357
      %p361 = scmp.eq.s32.totalorder %s27, 0
      %p362 = por %p360, %p361
      %p363 = scmp.ne.s32.totalorder %s355, %s357
      %p364 = scmp.eq.s32.totalorder %s32, 1
      %p365 = por %p363, %p364
      %p366 = scmp.ne.s32.totalorder %s357, %s358
      %p367 = scmp.eq.s32.totalorder %s32, 0
      %p368 = por %p366, %p367
      %p369 = scmp.ne.s32.totalorder %s357, %s358
      %p370 = scmp.eq.s32.totalorder %s33, 1
      %p371 = por %p369, %p370
      %p373 = scmp.ne.s32.totalorder %s358, %s372
      %p374 = scmp.eq.s32.totalorder %s33, 0
      %p375 = por %p373, %p374
      %s376 = ssub.s32 %s27, %s34
      %p377 = scmp.eq.s32.totalorder %s376, 0
      %s379 = sadd.s32 %s378, 1
      %s380 = scalar_select %p377, %s378, %s379
      %p383 = pneg %p377
      %p384 = scmp.eq.s32.totalorder %s27, 1
      %p385 = por %p383, %p384
      %p386 = scmp.ne.s32.totalorder %s378, %s381
      %p387 = scmp.eq.s32.totalorder %s27, 0
      %p388 = por %p386, %p387
      %p389 = scmp.ne.s32.totalorder %s378, %s381
      %p390 = scmp.eq.s32.totalorder %s32, 1
      %p391 = por %p389, %p390
      %p392 = scmp.ne.s32.totalorder %s381, %s382
      %p393 = scmp.eq.s32.totalorder %s32, 0
      %p394 = por %p392, %p393
      %p395 = scmp.ne.s32.totalorder %s381, %s382
      %p396 = scmp.eq.s32.totalorder %s33, 1
      %p397 = por %p395, %p396
      %p399 = scmp.ne.s32.totalorder %s382, %s398
      %p400 = scmp.eq.s32.totalorder %s33, 0
      %p401 = por %p399, %p400
      %p402 = scmp.le.s32.totalorder 1, %s27
      %p403 = scmp.lt.s32.totalorder %s27, 3
      %p404 = pnand %p402, %p403
      %p405 = pneg %p404
      // Predicated region
      $region9: #{tpu_custom_call.1} parent=5 // pred_check
        _
      $region10: #{tpu_custom_call.1} parent=5 // pred_check_branch
        %407 = sbr.rel (%p404) target = $region12
      $region11: #{tpu_custom_call.1} parent=5 // pred_region
        %s408 = ssub.s32 %s27, 1
        // Predicated region
        $region13: #{tpu_custom_call.1} parent=11 // pred_check
          %p409 = pneg %p48
        $region14: #{tpu_custom_call.1} parent=11 // pred_check_branch
          %411 = sbr.rel (%p409) target = $region16
        $region15: #{tpu_custom_call.1} parent=11 // pred_region
          %s413 = ssub.s32 8192, 8192
          %414 = vsyncadd [#allocation3], %s413
          %s415 = sshll.u32 [#allocation2], 4
          %s416 = int_to_ptr.vmem [resolvable:$true] %s415
          %421 = dma.hbm_to_vmem [thread:$0]  %s0, 8192, %s416, [#allocation3], 256, 256, 16
        $region16: #{tpu_custom_call.1} parent=11 // pred_fallthru
          _
        // Predicated region
        $region17: #{tpu_custom_call.1} parent=11 // pred_check
          %p422 = pneg %p95
        $region18: #{tpu_custom_call.1} parent=11 // pred_check_branch
          %424 = sbr.rel (%p422) target = $region20
        $region19: #{tpu_custom_call.1} parent=11 // pred_region
          _
        $region20: #{tpu_custom_call.1} parent=11 // pred_fallthru
          _
        // Predicated region
        $region21: #{tpu_custom_call.1} parent=11 // pred_check
          %p425 = pneg %p116
        $region22: #{tpu_custom_call.1} parent=11 // pred_check_branch
          %427 = sbr.rel (%p425) target = $region24
        $region23: #{tpu_custom_call.1} parent=11 // pred_region
          _
        $region24: #{tpu_custom_call.1} parent=11 // pred_fallthru
          _
        // Predicated region
        $region25: #{tpu_custom_call.1} parent=11 // pred_check
          %p428 = pneg %p137
        $region26: #{tpu_custom_call.1} parent=11 // pred_check_branch
          %430 = sbr.rel (%p428) target = $region28
        $region27: #{tpu_custom_call.1} parent=11 // pred_region
          _
        $region28: #{tpu_custom_call.1} parent=11 // pred_fallthru
          _
        // Predicated region
        $region29: #{tpu_custom_call.1} parent=11 // pred_check
          %p431 = pneg %p158
        $region30: #{tpu_custom_call.1} parent=11 // pred_check_branch
          %433 = sbr.rel (%p431) target = $region32
        $region31: #{tpu_custom_call.1} parent=11 // pred_region
          _
        $region32: #{tpu_custom_call.1} parent=11 // pred_fallthru
          _
        // Predicated region
        $region33: #{tpu_custom_call.1} parent=11 // pred_check
          %p434 = pneg %p179
        $region34: #{tpu_custom_call.1} parent=11 // pred_check_branch
          %436 = sbr.rel (%p434) target = $region36
        $region35: #{tpu_custom_call.1} parent=11 // pred_region
          _
        $region36: #{tpu_custom_call.1} parent=11 // pred_fallthru
          _
        // Predicated region
        $region37: #{tpu_custom_call.1} parent=11 // pred_check
          %p437 = pneg %p200
        $region38: #{tpu_custom_call.1} parent=11 // pred_check_branch
          %439 = sbr.rel (%p437) target = $region40
        $region39: #{tpu_custom_call.1} parent=11 // pred_region
          _
        $region40: #{tpu_custom_call.1} parent=11 // pred_fallthru
          _
        // Predicated region
        $region41: #{tpu_custom_call.1} parent=11 // pred_check
          %p440 = pneg %p221
        $region42: #{tpu_custom_call.1} parent=11 // pred_check_branch
          %442 = sbr.rel (%p440) target = $region44
        $region43: #{tpu_custom_call.1} parent=11 // pred_region
          _
        $region44: #{tpu_custom_call.1} parent=11 // pred_fallthru
          _
        // Predicated region
        $region45: #{tpu_custom_call.1} parent=11 // pred_check
          %p443 = pneg %p242
        $region46: #{tpu_custom_call.1} parent=11 // pred_check_branch
          %445 = sbr.rel (%p443) target = $region48
        $region47: #{tpu_custom_call.1} parent=11 // pred_region
          _
        $region48: #{tpu_custom_call.1} parent=11 // pred_fallthru
          _
        // Predicated region
        $region49: #{tpu_custom_call.1} parent=11 // pred_check
          %p446 = pneg %p263
        $region50: #{tpu_custom_call.1} parent=11 // pred_check_branch
          %448 = sbr.rel (%p446) target = $region52
        $region51: #{tpu_custom_call.1} parent=11 // pred_region
          %s450 = ssub.s32 9216, 9216
          %451 = vsyncadd [#allocation6], %s450
          %s452 = sshll.u32 [#allocation5], 4
          %s453 = int_to_ptr.vmem [resolvable:$true] %s452
          %458 = dma.hbm_to_vmem [thread:$0]  %s10, 9216, %s453, [#allocation6], 128, 128, 8
        $region52: #{tpu_custom_call.1} parent=11 // pred_fallthru
          _
        // Predicated region
        $region53: #{tpu_custom_call.1} parent=11 // pred_check
          %p459 = pneg %p284
        $region54: #{tpu_custom_call.1} parent=11 // pred_check_branch
          %461 = sbr.rel (%p459) target = $region56
        $region55: #{tpu_custom_call.1} parent=11 // pred_region
          _
        $region56: #{tpu_custom_call.1} parent=11 // pred_fallthru
          _
        // Predicated region
        $region57: #{tpu_custom_call.1} parent=11 // pred_check
          %p462 = pneg %p305
        $region58: #{tpu_custom_call.1} parent=11 // pred_check_branch
          %464 = sbr.rel (%p462) target = $region60
        $region59: #{tpu_custom_call.1} parent=11 // pred_region
          %s466 = ssub.s32 9216, 9216
          %467 = vsyncadd [#allocation6], %s466
          %s468 = sshll.u32 [#allocation7], 4
          %s469 = int_to_ptr.vmem [resolvable:$true] %s468
          %474 = dma.hbm_to_vmem [thread:$0]  %s12, 9216, %s469, [#allocation6], 128, 128, 8
        $region60: #{tpu_custom_call.1} parent=11 // pred_fallthru
          _
        // Predicated region
        $region61: #{tpu_custom_call.1} parent=11 // pred_check
          %p475 = pneg %p326
        $region62: #{tpu_custom_call.1} parent=11 // pred_check_branch
          %477 = sbr.rel (%p475) target = $region64
        $region63: #{tpu_custom_call.1} parent=11 // pred_region
          _
        $region64: #{tpu_custom_call.1} parent=11 // pred_fallthru
          _
        // Predicated region
        $region65: #{tpu_custom_call.1} parent=11 // pred_check
          %p478 = pneg %p347
        $region66: #{tpu_custom_call.1} parent=11 // pred_check_branch
          %480 = sbr.rel (%p478) target = $region68
        $region67: #{tpu_custom_call.1} parent=11 // pred_region
          _
        $region68: #{tpu_custom_call.1} parent=11 // pred_fallthru
          _
        // Predicated region
        $region69: #{tpu_custom_call.1} parent=11 // pred_check
          %p481 = pneg %p368
        $region70: #{tpu_custom_call.1} parent=11 // pred_check_branch
          %483 = sbr.rel (%p481) target = $region72
        $region71: #{tpu_custom_call.1} parent=11 // pred_region
          _
        $region72: #{tpu_custom_call.1} parent=11 // pred_fallthru
          _
      $region12: #{tpu_custom_call.1} parent=5 // pred_fallthru
        _
      %p484 = scmp.lt.s32.totalorder %s27, 2
      // Predicated region
      $region73: #{tpu_custom_call.1} parent=5 // pred_check
        %p485 = pneg %p484
      $region74: #{tpu_custom_call.1} parent=5 // pred_check_branch
        %487 = sbr.rel (%p485) target = $region76
      $region75: #{tpu_custom_call.1} parent=5 // pred_region
        // Predicated region
        $region77: #{tpu_custom_call.1} parent=75 // pred_check
          %p488 = pneg %p68
        $region78: #{tpu_custom_call.1} parent=75 // pred_check_branch
          %490 = sbr.rel (%p488) target = $region80
        $region79: #{tpu_custom_call.1} parent=75 // pred_region
          %p491 = scmp.lt.s32.totalorder %s27, 1
          %s492 = scalar_select %p491, %s27, 1
          %s493 = smul.addr %s492, 2
          %s494 = smul.addr %s493, 4
          %s495 = scalar_lea.vmem %s1, %s494
        $region80: #{tpu_custom_call.1} parent=75 // pred_fallthru
          _
      $region76: #{tpu_custom_call.1} parent=5 // pred_fallthru
        _
      %p496 = scmp.le.s32.totalorder 1, %s27
      %p497 = scmp.lt.s32.totalorder %s27, 3
      %p498 = pnand %p496, %p497
      %p499 = pneg %p498
      // Predicated region
      $region81: #{tpu_custom_call.1} parent=5 // pred_check
        _
      $region82: #{tpu_custom_call.1} parent=5 // pred_check_branch
        %501 = sbr.rel (%p498) target = $region84
      $region83: #{tpu_custom_call.1} parent=5 // pred_region
        %s502 = ssub.s32 %s27, 1
        // Predicated region
        $region85: #{tpu_custom_call.1} parent=83 // pred_check
          %p503 = pneg %p48
        $region86: #{tpu_custom_call.1} parent=83 // pred_check_branch
          %505 = sbr.rel (%p503) target = $region88
        $region87: #{tpu_custom_call.1} parent=83 // pred_region
          %506 = dma.done [#allocation3], 8192
        $region88: #{tpu_custom_call.1} parent=83 // pred_fallthru
          _
        // Predicated region
        $region89: #{tpu_custom_call.1} parent=83 // pred_check
          %p507 = pneg %p263
        $region90: #{tpu_custom_call.1} parent=83 // pred_check_branch
          %509 = sbr.rel (%p507) target = $region92
        $region91: #{tpu_custom_call.1} parent=83 // pred_region
          %510 = dma.done [#allocation6], 9216
        $region92: #{tpu_custom_call.1} parent=83 // pred_fallthru
          _
        // Predicated region
        $region93: #{tpu_custom_call.1} parent=83 // pred_check
          %p511 = pneg %p305
        $region94: #{tpu_custom_call.1} parent=83 // pred_check_branch
          %513 = sbr.rel (%p511) target = $region96
        $region95: #{tpu_custom_call.1} parent=83 // pred_region
          %514 = dma.done [#allocation6], 9216
        $region96: #{tpu_custom_call.1} parent=83 // pred_fallthru
          _
        %p515 = pneg %p48
        %p516 = pneg %p45
        %p517 = scmp.lt.s32.totalorder %s32, 1
        %s518 = scalar_select %p517, %s32, 1
        %s519 = smul.addr %s518, 2
        %s520 = smul.addr %s519, 4
        %s521 = scalar_lea.vmem %s1, %s520
        %p522 = pneg %p74
        %p523 = pneg %p71
        %p524 = pneg %p95
        %p525 = pneg %p92
        %p526 = pneg %p116
        %p527 = pneg %p113
        %p528 = pneg %p137
        %p529 = pneg %p134
        %p530 = pneg %p158
        %p531 = pneg %p155
        %p532 = pneg %p179
        %p533 = pneg %p176
        %p534 = pneg %p200
        %p535 = pneg %p197
        %p536 = pneg %p221
        %p537 = pneg %p218
        %p538 = pneg %p242
        %p539 = pneg %p239
        %p540 = pneg %p263
        %p541 = pneg %p260
        %p542 = pneg %p284
        %p543 = pneg %p281
        %p544 = pneg %p305
        %p545 = pneg %p302
        %p546 = pneg %p326
        %p547 = pneg %p323
        %p548 = pneg %p347
        %p549 = pneg %p344
        %p550 = pneg %p368
        %p551 = pneg %p365
        %p552 = pneg %p394
        %p553 = pneg %p391
        %s554 = sand.u32 %s381, 1
        %s555 = scalar_lea.sflag [#allocation4], %s554
        %s556 = sand.u32 %s381, 1
        %s557 = smul.addr %s556, 192
        %s558 = scalar_lea.vmem [#allocation8], %s557
        %p559 = scmp.lt.s32.totalorder %s32, 1
        %s560 = scalar_select %p559, %s32, 1
        %s561 = smul.addr %s560, 2
        %s562 = smul.addr %s561, 4
        %s563 = scalar_lea.vmem %s1, %s562
        %v565 = vld [vmem:[#allocation2] sm:$0xff]
        %v566 = vld [vmem:[#allocation2 + $0x8] sm:$0xff]
        %v567 = vld [vmem:[#allocation2 + $0x10] sm:$0xff]
        %v568 = vld [vmem:[#allocation2 + $0x18] sm:$0xff]
        %v569 = vld [vmem:[#allocation2 + $0x20] sm:$0xff]
        %v570 = vld [vmem:[#allocation2 + $0x28] sm:$0xff]
        %v571 = vld [vmem:[#allocation2 + $0x30] sm:$0xff]
        %v572 = vld [vmem:[#allocation2 + $0x38] sm:$0xff]
        %v573 = vld [vmem:[#allocation2 + $0x40] sm:$0xff]
        %v574 = vld [vmem:[#allocation2 + $0x48] sm:$0xff]
        %v575 = vld [vmem:[#allocation2 + $0x50] sm:$0xff]
        %v576 = vld [vmem:[#allocation2 + $0x58] sm:$0xff]
        %v577 = vld [vmem:[#allocation2 + $0x60] sm:$0xff]
        %v578 = vld [vmem:[#allocation2 + $0x68] sm:$0xff]
        %v579 = vld [vmem:[#allocation2 + $0x70] sm:$0xff]
        %v580 = vld [vmem:[#allocation2 + $0x78] sm:$0xff]
        %v581 = vld [vmem:[#allocation2 + $0x80] sm:$0xff]
        %v582 = vld [vmem:[#allocation2 + $0x88] sm:$0xff]
        %v583 = vld [vmem:[#allocation2 + $0x90] sm:$0xff]
        %v584 = vld [vmem:[#allocation2 + $0x98] sm:$0xff]
        %v585 = vld [vmem:[#allocation2 + $0xa0] sm:$0xff]
        %v586 = vld [vmem:[#allocation2 + $0xa8] sm:$0xff]
        %v587 = vld [vmem:[#allocation2 + $0xb0] sm:$0xff]
        %v588 = vld [vmem:[#allocation2 + $0xb8] sm:$0xff]
        %v589 = vld [vmem:[#allocation2 + $0xc0] sm:$0xff]
        %v590 = vld [vmem:[#allocation2 + $0xc8] sm:$0xff]
        %v591 = vld [vmem:[#allocation2 + $0xd0] sm:$0xff]
        %v592 = vld [vmem:[#allocation2 + $0xd8] sm:$0xff]
        %v593 = vld [vmem:[#allocation2 + $0xe0] sm:$0xff]
        %v594 = vld [vmem:[#allocation2 + $0xe8] sm:$0xff]
        %v595 = vld [vmem:[#allocation2 + $0xf0] sm:$0xff]
        %v596 = vld [vmem:[#allocation2 + $0xf8] sm:$0xff]
        %v597 = vld [vmem:[#allocation2 + $0x100] sm:$0xff]
        %v598 = vld [vmem:[#allocation2 + $0x108] sm:$0xff]
        %v599 = vld [vmem:[#allocation2 + $0x110] sm:$0xff]
        %v600 = vld [vmem:[#allocation2 + $0x118] sm:$0xff]
        %v601 = vld [vmem:[#allocation2 + $0x120] sm:$0xff]
        %v602 = vld [vmem:[#allocation2 + $0x128] sm:$0xff]
        %v603 = vld [vmem:[#allocation2 + $0x130] sm:$0xff]
        %v604 = vld [vmem:[#allocation2 + $0x138] sm:$0xff]
        %v605 = vld [vmem:[#allocation2 + $0x140] sm:$0xff]
        %v606 = vld [vmem:[#allocation2 + $0x148] sm:$0xff]
        %v607 = vld [vmem:[#allocation2 + $0x150] sm:$0xff]
        %v608 = vld [vmem:[#allocation2 + $0x158] sm:$0xff]
        %v609 = vld [vmem:[#allocation2 + $0x160] sm:$0xff]
        %v610 = vld [vmem:[#allocation2 + $0x168] sm:$0xff]
        %v611 = vld [vmem:[#allocation2 + $0x170] sm:$0xff]
        %v612 = vld [vmem:[#allocation2 + $0x178] sm:$0xff]
        %v613 = vld [vmem:[#allocation2 + $0x180] sm:$0xff]
        %v614 = vld [vmem:[#allocation2 + $0x188] sm:$0xff]
        %v615 = vld [vmem:[#allocation2 + $0x190] sm:$0xff]
        %v616 = vld [vmem:[#allocation2 + $0x198] sm:$0xff]
        %v617 = vld [vmem:[#allocation2 + $0x1a0] sm:$0xff]
        %v618 = vld [vmem:[#allocation2 + $0x1a8] sm:$0xff]
        %v619 = vld [vmem:[#allocation2 + $0x1b0] sm:$0xff]
        %v620 = vld [vmem:[#allocation2 + $0x1b8] sm:$0xff]
        %v621 = vld [vmem:[#allocation2 + $0x1c0] sm:$0xff]
        %v622 = vld [vmem:[#allocation2 + $0x1c8] sm:$0xff]
        %v623 = vld [vmem:[#allocation2 + $0x1d0] sm:$0xff]
        %v624 = vld [vmem:[#allocation2 + $0x1d8] sm:$0xff]
        %v625 = vld [vmem:[#allocation2 + $0x1e0] sm:$0xff]
        %v626 = vld [vmem:[#allocation2 + $0x1e8] sm:$0xff]
        %v627 = vld [vmem:[#allocation2 + $0x1f0] sm:$0xff]
        %v628 = vld [vmem:[#allocation2 + $0x1f8] sm:$0xff]
        %v629 = vld [vmem:[%s563] sm:$0x77]
        %v631 = vcombine.high %v629, %v629
        %v633 = vpack.c.bf16 %v629, %v629
        %v634 = vpack.c.bf16 %v631, %v631
        %v699 = vunpack.c.l.b16 %v565
        %v700 = vunpack.c.h.b16 %v565
        %v701 = vunpack.c.l.b16 %v566
        %v702 = vunpack.c.h.b16 %v566
        %v703 = vunpack.c.l.b16 %v567
        %v704 = vunpack.c.h.b16 %v567
        %v705 = vunpack.c.l.b16 %v568
        %v706 = vunpack.c.h.b16 %v568
        %v707 = vunpack.c.l.b16 %v569
        %v708 = vunpack.c.h.b16 %v569
        %v709 = vunpack.c.l.b16 %v570
        %v710 = vunpack.c.h.b16 %v570
        %v711 = vunpack.c.l.b16 %v571
        %v712 = vunpack.c.h.b16 %v571
        %v713 = vunpack.c.l.b16 %v572
        %v714 = vunpack.c.h.b16 %v572
        %v715 = vunpack.c.l.b16 %v573
        %v716 = vunpack.c.h.b16 %v573
        %v717 = vunpack.c.l.b16 %v574
        %v718 = vunpack.c.h.b16 %v574
        %v719 = vunpack.c.l.b16 %v575
        %v720 = vunpack.c.h.b16 %v575
        %v721 = vunpack.c.l.b16 %v576
        %v722 = vunpack.c.h.b16 %v576
        %v723 = vunpack.c.l.b16 %v577
        %v724 = vunpack.c.h.b16 %v577
        %v725 = vunpack.c.l.b16 %v578
        %v726 = vunpack.c.h.b16 %v578
        %v727 = vunpack.c.l.b16 %v579
        %v728 = vunpack.c.h.b16 %v579
        %v729 = vunpack.c.l.b16 %v580
        %v730 = vunpack.c.h.b16 %v580
        %v731 = vunpack.c.l.b16 %v581
        %v732 = vunpack.c.h.b16 %v581
        %v733 = vunpack.c.l.b16 %v582
        %v734 = vunpack.c.h.b16 %v582
        %v735 = vunpack.c.l.b16 %v583
        %v736 = vunpack.c.h.b16 %v583
        %v737 = vunpack.c.l.b16 %v584
        %v738 = vunpack.c.h.b16 %v584
        %v739 = vunpack.c.l.b16 %v585
        %v740 = vunpack.c.h.b16 %v585
        %v741 = vunpack.c.l.b16 %v586
        %v742 = vunpack.c.h.b16 %v586
        %v743 = vunpack.c.l.b16 %v587
        %v744 = vunpack.c.h.b16 %v587
        %v745 = vunpack.c.l.b16 %v588
        %v746 = vunpack.c.h.b16 %v588
        %v747 = vunpack.c.l.b16 %v589
        %v748 = vunpack.c.h.b16 %v589
        %v749 = vunpack.c.l.b16 %v590
        %v750 = vunpack.c.h.b16 %v590
        %v751 = vunpack.c.l.b16 %v591
        %v752 = vunpack.c.h.b16 %v591
        %v753 = vunpack.c.l.b16 %v592
        %v754 = vunpack.c.h.b16 %v592
        %v755 = vunpack.c.l.b16 %v593
        %v756 = vunpack.c.h.b16 %v593
        %v757 = vunpack.c.l.b16 %v594
        %v758 = vunpack.c.h.b16 %v594
        %v759 = vunpack.c.l.b16 %v595
        %v760 = vunpack.c.h.b16 %v595
        %v761 = vunpack.c.l.b16 %v596
        %v762 = vunpack.c.h.b16 %v596
        %v763 = vunpack.c.l.b16 %v597
        %v764 = vunpack.c.h.b16 %v597
        %v765 = vunpack.c.l.b16 %v598
        %v766 = vunpack.c.h.b16 %v598
        %v767 = vunpack.c.l.b16 %v599
        %v768 = vunpack.c.h.b16 %v599
        %v769 = vunpack.c.l.b16 %v600
        %v770 = vunpack.c.h.b16 %v600
        %v771 = vunpack.c.l.b16 %v601
        %v772 = vunpack.c.h.b16 %v601
        %v773 = vunpack.c.l.b16 %v602
        %v774 = vunpack.c.h.b16 %v602
        %v775 = vunpack.c.l.b16 %v603
        %v776 = vunpack.c.h.b16 %v603
        %v777 = vunpack.c.l.b16 %v604
        %v778 = vunpack.c.h.b16 %v604
        %v779 = vunpack.c.l.b16 %v605
        %v780 = vunpack.c.h.b16 %v605
        %v781 = vunpack.c.l.b16 %v606
        %v782 = vunpack.c.h.b16 %v606
        %v783 = vunpack.c.l.b16 %v607
        %v784 = vunpack.c.h.b16 %v607
        %v785 = vunpack.c.l.b16 %v608
        %v786 = vunpack.c.h.b16 %v608
        %v787 = vunpack.c.l.b16 %v609
        %v788 = vunpack.c.h.b16 %v609
        %v789 = vunpack.c.l.b16 %v610
        %v790 = vunpack.c.h.b16 %v610
        %v791 = vunpack.c.l.b16 %v611
        %v792 = vunpack.c.h.b16 %v611
        %v793 = vunpack.c.l.b16 %v612
        %v794 = vunpack.c.h.b16 %v612
        %v795 = vunpack.c.l.b16 %v613
        %v796 = vunpack.c.h.b16 %v613
        %v797 = vunpack.c.l.b16 %v614
        %v798 = vunpack.c.h.b16 %v614
        %v799 = vunpack.c.l.b16 %v615
        %v800 = vunpack.c.h.b16 %v615
        %v801 = vunpack.c.l.b16 %v616
        %v802 = vunpack.c.h.b16 %v616
        %v803 = vunpack.c.l.b16 %v617
        %v804 = vunpack.c.h.b16 %v617
        %v805 = vunpack.c.l.b16 %v618
        %v806 = vunpack.c.h.b16 %v618
        %v807 = vunpack.c.l.b16 %v619
        %v808 = vunpack.c.h.b16 %v619
        %v809 = vunpack.c.l.b16 %v620
        %v810 = vunpack.c.h.b16 %v620
        %v811 = vunpack.c.l.b16 %v621
        %v812 = vunpack.c.h.b16 %v621
        %v813 = vunpack.c.l.b16 %v622
        %v814 = vunpack.c.h.b16 %v622
        %v815 = vunpack.c.l.b16 %v623
        %v816 = vunpack.c.h.b16 %v623
        %v817 = vunpack.c.l.b16 %v624
        %v818 = vunpack.c.h.b16 %v624
        %v819 = vunpack.c.l.b16 %v625
        %v820 = vunpack.c.h.b16 %v625
        %v821 = vunpack.c.l.b16 %v626
        %v822 = vunpack.c.h.b16 %v626
        %v823 = vunpack.c.l.b16 %v627
        %v824 = vunpack.c.h.b16 %v627
        %v825 = vunpack.c.l.b16 %v628
        %v826 = vunpack.c.h.b16 %v628
        %v827 = vpack.c.b16 %v703, %v699
        %v828 = vpack.c.b16 %v704, %v700
        %v829 = vpack.c.b16 %v705, %v701
        %v830 = vpack.c.b16 %v706, %v702
        %v831 = vpack.c.b16 %v711, %v707
        %v832 = vpack.c.b16 %v712, %v708
        %v833 = vpack.c.b16 %v713, %v709
        %v834 = vpack.c.b16 %v714, %v710
        %v835 = vpack.c.b16 %v719, %v715
        %v836 = vpack.c.b16 %v720, %v716
        %v837 = vpack.c.b16 %v721, %v717
        %v838 = vpack.c.b16 %v722, %v718
        %v839 = vpack.c.b16 %v727, %v723
        %v840 = vpack.c.b16 %v728, %v724
        %v841 = vpack.c.b16 %v729, %v725
        %v842 = vpack.c.b16 %v730, %v726
        %v843 = vpack.c.b16 %v735, %v731
        %v844 = vpack.c.b16 %v736, %v732
        %v845 = vpack.c.b16 %v737, %v733
        %v846 = vpack.c.b16 %v738, %v734
        %v847 = vpack.c.b16 %v743, %v739
        %v848 = vpack.c.b16 %v744, %v740
        %v849 = vpack.c.b16 %v745, %v741
        %v850 = vpack.c.b16 %v746, %v742
        %v851 = vpack.c.b16 %v751, %v747
        %v852 = vpack.c.b16 %v752, %v748
        %v853 = vpack.c.b16 %v753, %v749
        %v854 = vpack.c.b16 %v754, %v750
        %v855 = vpack.c.b16 %v759, %v755
        %v856 = vpack.c.b16 %v760, %v756
        %v857 = vpack.c.b16 %v761, %v757
        %v858 = vpack.c.b16 %v762, %v758
        %v859 = vpack.c.b16 %v767, %v763
        %v860 = vpack.c.b16 %v768, %v764
        %v861 = vpack.c.b16 %v769, %v765
        %v862 = vpack.c.b16 %v770, %v766
        %v863 = vpack.c.b16 %v775, %v771
        %v864 = vpack.c.b16 %v776, %v772
        %v865 = vpack.c.b16 %v777, %v773
        %v866 = vpack.c.b16 %v778, %v774
        %v867 = vpack.c.b16 %v783, %v779
        %v868 = vpack.c.b16 %v784, %v780
        %v869 = vpack.c.b16 %v785, %v781
        %v870 = vpack.c.b16 %v786, %v782
        %v871 = vpack.c.b16 %v791, %v787
        %v872 = vpack.c.b16 %v792, %v788
        %v873 = vpack.c.b16 %v793, %v789
        %v874 = vpack.c.b16 %v794, %v790
        %v875 = vpack.c.b16 %v799, %v795
        %v876 = vpack.c.b16 %v800, %v796
        %v877 = vpack.c.b16 %v801, %v797
        %v878 = vpack.c.b16 %v802, %v798
        %v879 = vpack.c.b16 %v807, %v803
        %v880 = vpack.c.b16 %v808, %v804
        %v881 = vpack.c.b16 %v809, %v805
        %v882 = vpack.c.b16 %v810, %v806
        %v883 = vpack.c.b16 %v815, %v811
        %v884 = vpack.c.b16 %v816, %v812
        %v885 = vpack.c.b16 %v817, %v813
        %v886 = vpack.c.b16 %v818, %v814
        %v887 = vpack.c.b16 %v823, %v819
        %v888 = vpack.c.b16 %v824, %v820
        %v889 = vpack.c.b16 %v825, %v821
        %v890 = vpack.c.b16 %v826, %v822
        %955 = vmatprep.subr.bf16.mxu0 %v828
        %956 = vmatpush1.bf16.msra.mxu0 %v827
        %957 = vmatprep.subr.bf16.mxu0 %v832
        %958 = vmatpush1.bf16.msra.mxu0 %v831
        %959 = vmatprep.subr.bf16.mxu0 %v836
        %960 = vmatpush1.bf16.msra.mxu0 %v835
        %961 = vmatprep.subr.bf16.mxu0 %v840
        %962 = vmatpush1.bf16.msra.mxu0 %v839
        %963 = vmatprep.subr.bf16.mxu0 %v844
        %964 = vmatpush1.bf16.msra.mxu0 %v843
        %965 = vmatprep.subr.bf16.mxu0 %v848
        %966 = vmatpush1.bf16.msra.mxu0 %v847
        %967 = vmatprep.subr.bf16.mxu0 %v852
        %968 = vmatpush1.bf16.msra.mxu0 %v851
        %969 = vmatprep.subr.bf16.mxu0 %v856
        %970 = vmatpush1.bf16.msra.mxu0 %v855
        %971 = vmatprep.subr.bf16.mxu0 %v860
        %972 = vmatpush1.bf16.msra.mxu0 %v859
        %973 = vmatprep.subr.bf16.mxu0 %v864
        %974 = vmatpush1.bf16.msra.mxu0 %v863
        %975 = vmatprep.subr.bf16.mxu0 %v868
        %976 = vmatpush1.bf16.msra.mxu0 %v867
        %977 = vmatprep.subr.bf16.mxu0 %v872
        %978 = vmatpush1.bf16.msra.mxu0 %v871
        %979 = vmatprep.subr.bf16.mxu0 %v876
        %980 = vmatpush1.bf16.msra.mxu0 %v875
        %981 = vmatprep.subr.bf16.mxu0 %v880
        %982 = vmatpush1.bf16.msra.mxu0 %v879
        %983 = vmatprep.subr.bf16.mxu0 %v884
        %984 = vmatpush1.bf16.msra.mxu0 %v883
        %985 = vmatprep.subr.bf16.mxu0 %v888
        %986 = vmatpush1.bf16.msra.mxu0 %v887
        %987 = vmatprep.mubr.bf16.mxu0 %v634
        %988 = vmatmul.mubr.bf16.gmra.mrb[0].mxu0 %v633
        %v989 = vpop.f32.mrb[0].mxu0
        %v990 = vadd.f32 0.0, %v989
        %v991 = vpop.f32.mrb[0].mxu0
        %v992 = vadd.f32 0.0, %v991
        %v993 = vpop.f32.mrb[0].mxu0
        %v994 = vpop.f32.mrb[0].mxu0
        %995 = vdwg.mxu0
        %996 = vmatprep.subr.bf16.mxu0 %v830
        %997 = vmatpush1.bf16.msra.mxu0 %v829
        %998 = vmatprep.subr.bf16.mxu0 %v834
        %999 = vmatpush1.bf16.msra.mxu0 %v833
        %1000 = vmatprep.subr.bf16.mxu0 %v838
        %1001 = vmatpush1.bf16.msra.mxu0 %v837
        %1002 = vmatprep.subr.bf16.mxu0 %v842
        %1003 = vmatpush1.bf16.msra.mxu0 %v841
        %1004 = vmatprep.subr.bf16.mxu0 %v846
        %1005 = vmatpush1.bf16.msra.mxu0 %v845
        %1006 = vmatprep.subr.bf16.mxu0 %v850
        %1007 = vmatpush1.bf16.msra.mxu0 %v849
        %1008 = vmatprep.subr.bf16.mxu0 %v854
        %1009 = vmatpush1.bf16.msra.mxu0 %v853
        %1010 = vmatprep.subr.bf16.mxu0 %v858
        %1011 = vmatpush1.bf16.msra.mxu0 %v857
        %1012 = vmatprep.subr.bf16.mxu0 %v862
        %1013 = vmatpush1.bf16.msra.mxu0 %v861
        %1014 = vmatprep.subr.bf16.mxu0 %v866
        %1015 = vmatpush1.bf16.msra.mxu0 %v865
        %1016 = vmatprep.subr.bf16.mxu0 %v870
        %1017 = vmatpush1.bf16.msra.mxu0 %v869
        %1018 = vmatprep.subr.bf16.mxu0 %v874
        %1019 = vmatpush1.bf16.msra.mxu0 %v873
        %1020 = vmatprep.subr.bf16.mxu0 %v878
        %1021 = vmatpush1.bf16.msra.mxu0 %v877
        %1022 = vmatprep.subr.bf16.mxu0 %v882
        %1023 = vmatpush1.bf16.msra.mxu0 %v881
        %1024 = vmatprep.subr.bf16.mxu0 %v886
        %1025 = vmatpush1.bf16.msra.mxu0 %v885
        %1026 = vmatprep.subr.bf16.mxu0 %v890
        %1027 = vmatpush1.bf16.msra.mxu0 %v889
        %1028 = vmatprep.mubr.bf16.mxu0 %v634
        %1029 = vmatmul.mubr.bf16.gmra.mrb[0].mxu0 %v633
        %v1030 = vpop.f32.mrb[0].mxu0
        %v1031 = vadd.f32 0.0, %v1030
        %v1032 = vpop.f32.mrb[0].mxu0
        %v1033 = vadd.f32 0.0, %v1032
        %v1034 = vpop.f32.mrb[0].mxu0
        %v1035 = vpop.f32.mrb[0].mxu0
        %1036 = vdwg.mxu0
        %v1037 = vld [vmem:[%s2] sm:$0xf]
        %v1038 = vld [vmem:[%s2 + $0x4] sm:$0xf]
        %v1039 = vld [vmem:[%s2 + $0x8] sm:$0xf]
        %v1040 = vld [vmem:[%s2 + $0xc] sm:$0xf]
        %v1041 = vld [vmem:[%s2 + $0x10] sm:$0xf]
        %v1042 = vld [vmem:[%s2 + $0x14] sm:$0xf]
        %v1043 = vld [vmem:[%s2 + $0x18] sm:$0xf]
        %v1044 = vld [vmem:[%s2 + $0x1c] sm:$0xf]
        %v1045 = vld [vmem:[%s2 + $0x20] sm:$0xf]
        %v1046 = vld [vmem:[%s2 + $0x24] sm:$0xf]
        %v1047 = vld [vmem:[%s2 + $0x28] sm:$0xf]
        %v1048 = vld [vmem:[%s2 + $0x2c] sm:$0xf]
        %v1049 = vpack.c.bf16 %v990, %v990
        %v1050 = vpack.c.bf16 %v992, %v992
        %s1051 = scalar_lea.vmem %s2, 48
        %v1052 = vld [vmem:[%s1051] sm:$0xf]
        %v1053 = vld [vmem:[%s1051 + $0x4] sm:$0xf]
        %v1054 = vld [vmem:[%s1051 + $0x8] sm:$0xf]
        %v1055 = vld [vmem:[%s1051 + $0xc] sm:$0xf]
        %v1056 = vld [vmem:[%s1051 + $0x10] sm:$0xf]
        %v1057 = vld [vmem:[%s1051 + $0x14] sm:$0xf]
        %v1058 = vld [vmem:[%s1051 + $0x18] sm:$0xf]
        %v1059 = vld [vmem:[%s1051 + $0x1c] sm:$0xf]
        %v1060 = vld [vmem:[%s1051 + $0x20] sm:$0xf]
        %v1061 = vld [vmem:[%s1051 + $0x24] sm:$0xf]
        %v1062 = vld [vmem:[%s1051 + $0x28] sm:$0xf]
        %v1063 = vld [vmem:[%s1051 + $0x2c] sm:$0xf]
        %v1076 = vunpack.c.l.b16 %v1052
        %v1077 = vunpack.c.l.b16 %v1053
        %v1078 = vunpack.c.l.b16 %v1054
        %v1079 = vunpack.c.l.b16 %v1055
        %v1080 = vunpack.c.l.b16 %v1056
        %v1081 = vunpack.c.l.b16 %v1057
        %v1082 = vunpack.c.l.b16 %v1058
        %v1083 = vunpack.c.l.b16 %v1059
        %v1084 = vunpack.c.l.b16 %v1060
        %v1085 = vunpack.c.l.b16 %v1061
        %v1086 = vunpack.c.l.b16 %v1062
        %v1087 = vunpack.c.l.b16 %v1063
        %v1088 = vpack.c.b16 %v1077, %v1076
        %v1089 = vpack.c.b16 %v1079, %v1078
        %v1090 = vpack.c.b16 %v1081, %v1080
        %v1091 = vpack.c.b16 %v1083, %v1082
        %v1092 = vpack.c.b16 %v1085, %v1084
        %v1093 = vpack.c.b16 %v1087, %v1086
        %vm1094 = vcmask 23552
        %v1096 = vsel %vm1094, %v1088, 0
        %v1099 = vsel %vm1094, %v1089, 0
        %v1102 = vsel %vm1094, %v1090, 0
        %v1105 = vsel %vm1094, %v1091, 0
        %v1108 = vsel %vm1094, %v1092, 0
        %v1111 = vsel %vm1094, %v1093, 0
        %vm1113 = vcmask 1040384
        %vm1114 = vcmask 1041408
        %v1115 = vsel %vm1113, 4294967295, 65535
        %v1116 = vsel %vm1114, %v1115, 0
        %v1118 = vand.u32 %v1049, %v1116
        %v1121 = vand.u32 %v1050, %v1116
        %1123 = vmatprep.subr.bf16.mxu0 %v1121
        %1124 = vmatpush1.bf16.msra.mxu0 %v1118
        %1125 = vmatprep.subr.bf16.mxu0 0
        %1126 = vmatpush1.bf16.msra.mxu0 0
        %1127 = vmatprep.subr.bf16.mxu0 0
        %1128 = vmatpush1.bf16.msra.mxu0 0
        %1129 = vmatprep.subr.bf16.mxu0 0
        %1130 = vmatpush1.bf16.msra.mxu0 0
        %1131 = vmatprep.subr.bf16.mxu0 0
        %1132 = vmatpush1.bf16.msra.mxu0 0
        %1133 = vmatprep.subr.bf16.mxu0 0
        %1134 = vmatpush1.bf16.msra.mxu0 0
        %1135 = vmatprep.subr.bf16.mxu0 0
        %1136 = vmatpush1.bf16.msra.mxu0 0
        %1137 = vmatprep.subr.bf16.mxu0 0
        %1138 = vmatpush1.bf16.msra.mxu0 0
        %1139 = vmatprep.subr.bf16.mxu0 0
        %1140 = vmatpush1.bf16.msra.mxu0 0
        %1141 = vmatprep.subr.bf16.mxu0 0
        %1142 = vmatpush1.bf16.msra.mxu0 0
        %1143 = vmatprep.subr.bf16.mxu0 0
        %1144 = vmatpush1.bf16.msra.mxu0 0
        %1145 = vmatprep.subr.bf16.mxu0 0
        %1146 = vmatpush1.bf16.msra.mxu0 0
        %1147 = vmatprep.subr.bf16.mxu0 0
        %1148 = vmatpush1.bf16.msra.mxu0 0
        %1149 = vmatprep.subr.bf16.mxu0 0
        %1150 = vmatpush1.bf16.msra.mxu0 0
        %1151 = vmatprep.subr.bf16.mxu0 0
        %1152 = vmatpush1.bf16.msra.mxu0 0
        %1153 = vmatprep.subr.bf16.mxu0 0
        %1154 = vmatpush1.bf16.msra.mxu0 0
        %1155 = vmatprep.mubr.bf16.mxu0 0
        %1156 = vmatmul.mubr.bf16.gmra.mrb[0].mxu0 %v1096
        %v1157 = vpop.f32.mrb[0].mxu0
        %v1158 = vadd.f32 0.0, %v1157
        %v1159 = vpop.f32.mrb[0].mxu0
        %v1160 = vadd.f32 0.0, %v1159
        %v1161 = vpop.f32.mrb[0].mxu0
        %v1162 = vadd.f32 0.0, %v1161
        %v1163 = vpop.f32.mrb[0].mxu0
        %v1164 = vadd.f32 0.0, %v1163
        %1165 = vmatprep.mubr.bf16.mxu0 0
        %1166 = vmatmul.mubr.bf16.gmra.mrb[0].mxu0 %v1099
        %v1167 = vpop.f32.mrb[0].mxu0
        %v1168 = vadd.f32 0.0, %v1167
        %v1169 = vpop.f32.mrb[0].mxu0
        %v1170 = vadd.f32 0.0, %v1169
        %v1171 = vpop.f32.mrb[0].mxu0
        %v1172 = vadd.f32 0.0, %v1171
        %v1173 = vpop.f32.mrb[0].mxu0
        %v1174 = vadd.f32 0.0, %v1173
        %1175 = vmatprep.mubr.bf16.mxu0 0
        %1176 = vmatmul.mubr.bf16.gmra.mrb[0].mxu0 %v1102
        %v1177 = vpop.f32.mrb[0].mxu0
        %v1178 = vadd.f32 0.0, %v1177
        %v1179 = vpop.f32.mrb[0].mxu0
        %v1180 = vadd.f32 0.0, %v1179
        %v1181 = vpop.f32.mrb[0].mxu0
        %v1182 = vadd.f32 0.0, %v1181
        %v1183 = vpop.f32.mrb[0].mxu0
        %v1184 = vadd.f32 0.0, %v1183
        %1185 = vmatprep.mubr.bf16.mxu0 0
        %1186 = vmatmul.mubr.bf16.gmra.mrb[0].mxu0 %v1105
        %v1187 = vpop.f32.mrb[0].mxu0
        %v1188 = vadd.f32 0.0, %v1187
        %v1189 = vpop.f32.mrb[0].mxu0
        %v1190 = vadd.f32 0.0, %v1189
        %v1191 = vpop.f32.mrb[0].mxu0
        %v1192 = vadd.f32 0.0, %v1191
        %v1193 = vpop.f32.mrb[0].mxu0
        %v1194 = vadd.f32 0.0, %v1193
        %1195 = vmatprep.mubr.bf16.mxu0 0
        %1196 = vmatmul.mubr.bf16.gmra.mrb[0].mxu0 %v1108
        %v1197 = vpop.f32.mrb[0].mxu0
        %v1198 = vadd.f32 0.0, %v1197
        %v1199 = vpop.f32.mrb[0].mxu0
        %v1200 = vadd.f32 0.0, %v1199
        %v1201 = vpop.f32.mrb[0].mxu0
        %v1202 = vadd.f32 0.0, %v1201
        %v1203 = vpop.f32.mrb[0].mxu0
        %v1204 = vadd.f32 0.0, %v1203
        %1205 = vmatprep.mubr.bf16.mxu0 0
        %1206 = vmatmul.mubr.bf16.gmra.mrb[0].mxu0 %v1111
        %v1207 = vpop.f32.mrb[0].mxu0
        %v1208 = vadd.f32 0.0, %v1207
        %v1209 = vpop.f32.mrb[0].mxu0
        %v1210 = vadd.f32 0.0, %v1209
        %v1211 = vpop.f32.mrb[0].mxu0
        %v1212 = vadd.f32 0.0, %v1211
        %v1213 = vpop.f32.mrb[0].mxu0
        %v1214 = vadd.f32 0.0, %v1213
        %1215 = vdwg.mxu0
        %v1228 = vunpack.c.l.b16 %v1037
        %v1229 = vunpack.c.l.b16 %v1038
        %v1230 = vunpack.c.l.b16 %v1039
        %v1231 = vunpack.c.l.b16 %v1040
        %v1232 = vunpack.c.l.b16 %v1041
        %v1233 = vunpack.c.l.b16 %v1042
        %v1234 = vunpack.c.l.b16 %v1043
        %v1235 = vunpack.c.l.b16 %v1044
        %v1236 = vunpack.c.l.b16 %v1045
        %v1237 = vunpack.c.l.b16 %v1046
        %v1238 = vunpack.c.l.b16 %v1047
        %v1239 = vunpack.c.l.b16 %v1048
        %v1240 = vpack.c.b16 %v1229, %v1228
        %v1241 = vpack.c.b16 %v1231, %v1230
        %v1242 = vpack.c.b16 %v1233, %v1232
        %v1243 = vpack.c.b16 %v1235, %v1234
        %v1244 = vpack.c.b16 %v1237, %v1236
        %v1245 = vpack.c.b16 %v1239, %v1238
        %v1247 = vsel %vm1094, %v1240, 0
        %v1250 = vsel %vm1094, %v1241, 0
        %v1253 = vsel %vm1094, %v1242, 0
        %v1256 = vsel %vm1094, %v1243, 0
        %v1259 = vsel %vm1094, %v1244, 0
        %v1262 = vsel %vm1094, %v1245, 0
        %v1265 = vand.u32 %v633, %v1116
        %v1268 = vand.u32 %v634, %v1116
        %1270 = vmatprep.subr.bf16.mxu0 %v1268
        %1271 = vmatpush1.bf16.msra.mxu0 %v1265
        %1272 = vmatprep.subr.bf16.mxu0 0
        %1273 = vmatpush1.bf16.msra.mxu0 0
        %1274 = vmatprep.subr.bf16.mxu0 0
        %1275 = vmatpush1.bf16.msra.mxu0 0
        %1276 = vmatprep.subr.bf16.mxu0 0
        %1277 = vmatpush1.bf16.msra.mxu0 0
        %1278 = vmatprep.subr.bf16.mxu0 0
        %1279 = vmatpush1.bf16.msra.mxu0 0
        %1280 = vmatprep.subr.bf16.mxu0 0
        %1281 = vmatpush1.bf16.msra.mxu0 0
        %1282 = vmatprep.subr.bf16.mxu0 0
        %1283 = vmatpush1.bf16.msra.mxu0 0
        %1284 = vmatprep.subr.bf16.mxu0 0
        %1285 = vmatpush1.bf16.msra.mxu0 0
        %1286 = vmatprep.subr.bf16.mxu0 0
        %1287 = vmatpush1.bf16.msra.mxu0 0
        %1288 = vmatprep.subr.bf16.mxu0 0
        %1289 = vmatpush1.bf16.msra.mxu0 0
        %1290 = vmatprep.subr.bf16.mxu0 0
        %1291 = vmatpush1.bf16.msra.mxu0 0
        %1292 = vmatprep.subr.bf16.mxu0 0
        %1293 = vmatpush1.bf16.msra.mxu0 0
        %1294 = vmatprep.subr.bf16.mxu0 0
        %1295 = vmatpush1.bf16.msra.mxu0 0
        %1296 = vmatprep.subr.bf16.mxu0 0
        %1297 = vmatpush1.bf16.msra.mxu0 0
        %1298 = vmatprep.subr.bf16.mxu0 0
        %1299 = vmatpush1.bf16.msra.mxu0 0
        %1300 = vmatprep.subr.bf16.mxu0 0
        %1301 = vmatpush1.bf16.msra.mxu0 0
        %1302 = vmatprep.mubr.bf16.mxu0 0
        %1303 = vmatmul.mubr.bf16.gmra.mrb[0].mxu0 %v1247
        %v1304 = vpop.f32.mrb[0].mxu0
        %v1305 = vadd.f32 %v1158, %v1304
        %v1306 = vpop.f32.mrb[0].mxu0
        %v1307 = vadd.f32 %v1160, %v1306
        %v1308 = vpop.f32.mrb[0].mxu0
        %v1309 = vadd.f32 %v1162, %v1308
        %v1310 = vpop.f32.mrb[0].mxu0
        %v1311 = vadd.f32 %v1164, %v1310
        %1312 = vmatprep.mubr.bf16.mxu0 0
        %1313 = vmatmul.mubr.bf16.gmra.mrb[0].mxu0 %v1250
        %v1314 = vpop.f32.mrb[0].mxu0
        %v1315 = vadd.f32 %v1168, %v1314
        %v1316 = vpop.f32.mrb[0].mxu0
        %v1317 = vadd.f32 %v1170, %v1316
        %v1318 = vpop.f32.mrb[0].mxu0
        %v1319 = vadd.f32 %v1172, %v1318
        %v1320 = vpop.f32.mrb[0].mxu0
        %v1321 = vadd.f32 %v1174, %v1320
        %1322 = vmatprep.mubr.bf16.mxu0 0
        %1323 = vmatmul.mubr.bf16.gmra.mrb[0].mxu0 %v1253
        %v1324 = vpop.f32.mrb[0].mxu0
        %v1325 = vadd.f32 %v1178, %v1324
        %v1326 = vpop.f32.mrb[0].mxu0
        %v1327 = vadd.f32 %v1180, %v1326
        %v1328 = vpop.f32.mrb[0].mxu0
        %v1329 = vadd.f32 %v1182, %v1328
        %v1330 = vpop.f32.mrb[0].mxu0
        %v1331 = vadd.f32 %v1184, %v1330
        %1332 = vmatprep.mubr.bf16.mxu0 0
        %1333 = vmatmul.mubr.bf16.gmra.mrb[0].mxu0 %v1256
        %v1334 = vpop.f32.mrb[0].mxu0
        %v1335 = vadd.f32 %v1188, %v1334
        %v1336 = vpop.f32.mrb[0].mxu0
        %v1337 = vadd.f32 %v1190, %v1336
        %v1338 = vpop.f32.mrb[0].mxu0
        %v1339 = vadd.f32 %v1192, %v1338
        %v1340 = vpop.f32.mrb[0].mxu0
        %v1341 = vadd.f32 %v1194, %v1340
        %1342 = vmatprep.mubr.bf16.mxu0 0
        %1343 = vmatmul.mubr.bf16.gmra.mrb[0].mxu0 %v1259
        %v1344 = vpop.f32.mrb[0].mxu0
        %v1345 = vadd.f32 %v1198, %v1344
        %v1346 = vpop.f32.mrb[0].mxu0
        %v1347 = vadd.f32 %v1200, %v1346
        %v1348 = vpop.f32.mrb[0].mxu0
        %v1349 = vadd.f32 %v1202, %v1348
        %v1350 = vpop.f32.mrb[0].mxu0
        %v1351 = vadd.f32 %v1204, %v1350
        %1352 = vmatprep.mubr.bf16.mxu0 0
        %1353 = vmatmul.mubr.bf16.gmra.mrb[0].mxu0 %v1262
        %v1354 = vpop.f32.mrb[0].mxu0
        %v1355 = vadd.f32 %v1208, %v1354
        %v1356 = vpop.f32.mrb[0].mxu0
        %v1357 = vadd.f32 %v1210, %v1356
        %v1358 = vpop.f32.mrb[0].mxu0
        %v1359 = vadd.f32 %v1212, %v1358
        %v1360 = vpop.f32.mrb[0].mxu0
        %v1361 = vadd.f32 %v1214, %v1360
        %1362 = vdwg.mxu0
        %v1363 = vpack.c.bf16 %v1031, %v1031
        %v1364 = vpack.c.bf16 %v1033, %v1033
        %s1365 = scalar_lea.vmem %s2, 96
        %v1366 = vld [vmem:[%s1365] sm:$0xf]
        %v1367 = vld [vmem:[%s1365 + $0x4] sm:$0xf]
        %v1368 = vld [vmem:[%s1365 + $0x8] sm:$0xf]
        %v1369 = vld [vmem:[%s1365 + $0xc] sm:$0xf]
        %v1370 = vld [vmem:[%s1365 + $0x10] sm:$0xf]
        %v1371 = vld [vmem:[%s1365 + $0x14] sm:$0xf]
        %v1372 = vld [vmem:[%s1365 + $0x18] sm:$0xf]
        %v1373 = vld [vmem:[%s1365 + $0x1c] sm:$0xf]
        %v1374 = vld [vmem:[%s1365 + $0x20] sm:$0xf]
        %v1375 = vld [vmem:[%s1365 + $0x24] sm:$0xf]
        %v1376 = vld [vmem:[%s1365 + $0x28] sm:$0xf]
        %v1377 = vld [vmem:[%s1365 + $0x2c] sm:$0xf]
        %v1390 = vunpack.c.l.b16 %v1366
        %v1391 = vunpack.c.l.b16 %v1367
        %v1392 = vunpack.c.l.b16 %v1368
        %v1393 = vunpack.c.l.b16 %v1369
        %v1394 = vunpack.c.l.b16 %v1370
        %v1395 = vunpack.c.l.b16 %v1371
        %v1396 = vunpack.c.l.b16 %v1372
        %v1397 = vunpack.c.l.b16 %v1373
        %v1398 = vunpack.c.l.b16 %v1374
        %v1399 = vunpack.c.l.b16 %v1375
        %v1400 = vunpack.c.l.b16 %v1376
        %v1401 = vunpack.c.l.b16 %v1377
        %v1402 = vpack.c.b16 %v1391, %v1390
        %v1403 = vpack.c.b16 %v1393, %v1392
        %v1404 = vpack.c.b16 %v1395, %v1394
        %v1405 = vpack.c.b16 %v1397, %v1396
        %v1406 = vpack.c.b16 %v1399, %v1398
        %v1407 = vpack.c.b16 %v1401, %v1400
        %v1409 = vsel %vm1094, %v1402, 0
        %v1412 = vsel %vm1094, %v1403, 0
        %v1415 = vsel %vm1094, %v1404, 0
        %v1418 = vsel %vm1094, %v1405, 0
        %v1421 = vsel %vm1094, %v1406, 0
        %v1424 = vsel %vm1094, %v1407, 0
        %v1427 = vand.u32 %v1363, %v1116
        %v1430 = vand.u32 %v1364, %v1116
        %1432 = vmatprep.subr.bf16.mxu0 %v1430
        %1433 = vmatpush1.bf16.msra.mxu0 %v1427
        %1434 = vmatprep.subr.bf16.mxu0 0
        %1435 = vmatpush1.bf16.msra.mxu0 0
        %1436 = vmatprep.subr.bf16.mxu0 0
        %1437 = vmatpush1.bf16.msra.mxu0 0
        %1438 = vmatprep.subr.bf16.mxu0 0
        %1439 = vmatpush1.bf16.msra.mxu0 0
        %1440 = vmatprep.subr.bf16.mxu0 0
        %1441 = vmatpush1.bf16.msra.mxu0 0
        %1442 = vmatprep.subr.bf16.mxu0 0
        %1443 = vmatpush1.bf16.msra.mxu0 0
        %1444 = vmatprep.subr.bf16.mxu0 0
        %1445 = vmatpush1.bf16.msra.mxu0 0
        %1446 = vmatprep.subr.bf16.mxu0 0
        %1447 = vmatpush1.bf16.msra.mxu0 0
        %1448 = vmatprep.subr.bf16.mxu0 0
        %1449 = vmatpush1.bf16.msra.mxu0 0
        %1450 = vmatprep.subr.bf16.mxu0 0
        %1451 = vmatpush1.bf16.msra.mxu0 0
        %1452 = vmatprep.subr.bf16.mxu0 0
        %1453 = vmatpush1.bf16.msra.mxu0 0
        %1454 = vmatprep.subr.bf16.mxu0 0
        %1455 = vmatpush1.bf16.msra.mxu0 0
        %1456 = vmatprep.subr.bf16.mxu0 0
        %1457 = vmatpush1.bf16.msra.mxu0 0
        %1458 = vmatprep.subr.bf16.mxu0 0
        %1459 = vmatpush1.bf16.msra.mxu0 0
        %1460 = vmatprep.subr.bf16.mxu0 0
        %1461 = vmatpush1.bf16.msra.mxu0 0
        %1462 = vmatprep.subr.bf16.mxu0 0
        %1463 = vmatpush1.bf16.msra.mxu0 0
        %1464 = vmatprep.mubr.bf16.mxu0 0
        %1465 = vmatmul.mubr.bf16.gmra.mrb[0].mxu0 %v1409
        %v1466 = vpop.f32.mrb[0].mxu0
        %v1467 = vadd.f32 0.0, %v1466
        %v1468 = vpop.f32.mrb[0].mxu0
        %v1469 = vadd.f32 0.0, %v1468
        %v1470 = vpop.f32.mrb[0].mxu0
        %v1471 = vadd.f32 0.0, %v1470
        %v1472 = vpop.f32.mrb[0].mxu0
        %v1473 = vadd.f32 0.0, %v1472
        %1474 = vmatprep.mubr.bf16.mxu0 0
        %1475 = vmatmul.mubr.bf16.gmra.mrb[0].mxu0 %v1412
        %v1476 = vpop.f32.mrb[0].mxu0
        %v1477 = vadd.f32 0.0, %v1476
        %v1478 = vpop.f32.mrb[0].mxu0
        %v1479 = vadd.f32 0.0, %v1478
        %v1480 = vpop.f32.mrb[0].mxu0
        %v1481 = vadd.f32 0.0, %v1480
        %v1482 = vpop.f32.mrb[0].mxu0
        %v1483 = vadd.f32 0.0, %v1482
        %1484 = vmatprep.mubr.bf16.mxu0 0
        %1485 = vmatmul.mubr.bf16.gmra.mrb[0].mxu0 %v1415
        %v1486 = vpop.f32.mrb[0].mxu0
        %v1487 = vadd.f32 0.0, %v1486
        %v1488 = vpop.f32.mrb[0].mxu0
        %v1489 = vadd.f32 0.0, %v1488
        %v1490 = vpop.f32.mrb[0].mxu0
        %v1491 = vadd.f32 0.0, %v1490
        %v1492 = vpop.f32.mrb[0].mxu0
        %v1493 = vadd.f32 0.0, %v1492
        %1494 = vmatprep.mubr.bf16.mxu0 0
        %1495 = vmatmul.mubr.bf16.gmra.mrb[0].mxu0 %v1418
        %v1496 = vpop.f32.mrb[0].mxu0
        %v1497 = vadd.f32 0.0, %v1496
        %v1498 = vpop.f32.mrb[0].mxu0
        %v1499 = vadd.f32 0.0, %v1498
        %v1500 = vpop.f32.mrb[0].mxu0
        %v1501 = vadd.f32 0.0, %v1500
        %v1502 = vpop.f32.mrb[0].mxu0
        %v1503 = vadd.f32 0.0, %v1502
        %1504 = vmatprep.mubr.bf16.mxu0 0
        %1505 = vmatmul.mubr.bf16.gmra.mrb[0].mxu0 %v1421
        %v1506 = vpop.f32.mrb[0].mxu0
        %v1507 = vadd.f32 0.0, %v1506
        %v1508 = vpop.f32.mrb[0].mxu0
        %v1509 = vadd.f32 0.0, %v1508
        %v1510 = vpop.f32.mrb[0].mxu0
        %v1511 = vadd.f32 0.0, %v1510
        %v1512 = vpop.f32.mrb[0].mxu0
        %v1513 = vadd.f32 0.0, %v1512
        %1514 = vmatprep.mubr.bf16.mxu0 0
        %1515 = vmatmul.mubr.bf16.gmra.mrb[0].mxu0 %v1424
        %v1516 = vpop.f32.mrb[0].mxu0
        %v1517 = vadd.f32 0.0, %v1516
        %v1518 = vpop.f32.mrb[0].mxu0
        %v1519 = vadd.f32 0.0, %v1518
        %v1520 = vpop.f32.mrb[0].mxu0
        %v1521 = vadd.f32 0.0, %v1520
        %v1522 = vpop.f32.mrb[0].mxu0
        %v1523 = vadd.f32 0.0, %v1522
        %1524 = vdwg.mxu0
        %v1525 = vadd.f32 %v1305, %v1467
        %v1526 = vadd.f32 %v1307, %v1469
        %v1527 = vadd.f32 %v1309, %v1471
        %v1528 = vadd.f32 %v1311, %v1473
        %v1529 = vadd.f32 %v1315, %v1477
        %v1530 = vadd.f32 %v1317, %v1479
        %v1531 = vadd.f32 %v1319, %v1481
        %v1532 = vadd.f32 %v1321, %v1483
        %v1533 = vadd.f32 %v1325, %v1487
        %v1534 = vadd.f32 %v1327, %v1489
        %v1535 = vadd.f32 %v1329, %v1491
        %v1536 = vadd.f32 %v1331, %v1493
        %v1537 = vadd.f32 %v1335, %v1497
        %v1538 = vadd.f32 %v1337, %v1499
        %v1539 = vadd.f32 %v1339, %v1501
        %v1540 = vadd.f32 %v1341, %v1503
        %v1541 = vadd.f32 %v1345, %v1507
        %v1542 = vadd.f32 %v1347, %v1509
        %v1543 = vadd.f32 %v1349, %v1511
        %v1544 = vadd.f32 %v1351, %v1513
        %v1545 = vadd.f32 %v1355, %v1517
        %v1546 = vadd.f32 %v1357, %v1519
        %v1547 = vadd.f32 %v1359, %v1521
        %v1548 = vadd.f32 %v1361, %v1523
        %v1549 = vld [vmem:[%s3] sm:$0xff]
        %v1550 = vld [vmem:[%s3 + $0x8] sm:$0xff]
        %v1551 = vld [vmem:[%s3 + $0x10] sm:$0xff]
        %v1552 = vld [vmem:[%s3 + $0x18] sm:$0xff]
        %v1553 = vld [vmem:[%s3 + $0x20] sm:$0xff]
        %v1554 = vld [vmem:[%s3 + $0x28] sm:$0xff]
        %v1555 = vld [vmem:[%s3 + $0x30] sm:$0xff]
        %v1556 = vld [vmem:[%s3 + $0x38] sm:$0xff]
        %v1557 = vld [vmem:[%s3 + $0x40] sm:$0xff]
        %v1558 = vld [vmem:[%s3 + $0x48] sm:$0xff]
        %v1559 = vld [vmem:[%s3 + $0x50] sm:$0xff]
        %v1560 = vld [vmem:[%s3 + $0x58] sm:$0xff]
        %1562 = vset.pattern.permute.xlu0 0
        %1563 = vperm.xlu0 %1562, %v1549
        %v1564 = vpop.permute.xlu0 %1563
        %1567 = vset.pattern.permute.xlu0 0
        %1568 = vperm.xlu0 %1567, %v1550
        %v1569 = vpop.permute.xlu0 %1568
        %1572 = vset.pattern.permute.xlu0 0
        %1573 = vperm.xlu0 %1572, %v1551
        %v1574 = vpop.permute.xlu0 %1573
        %1577 = vset.pattern.permute.xlu0 0
        %1578 = vperm.xlu0 %1577, %v1552
        %v1579 = vpop.permute.xlu0 %1578
        %1582 = vset.pattern.permute.xlu0 0
        %1583 = vperm.xlu0 %1582, %v1553
        %v1584 = vpop.permute.xlu0 %1583
        %1587 = vset.pattern.permute.xlu0 0
        %1588 = vperm.xlu0 %1587, %v1554
        %v1589 = vpop.permute.xlu0 %1588
        %1592 = vset.pattern.permute.xlu0 0
        %1593 = vperm.xlu0 %1592, %v1555
        %v1594 = vpop.permute.xlu0 %1593
        %1597 = vset.pattern.permute.xlu0 0
        %1598 = vperm.xlu0 %1597, %v1556
        %v1599 = vpop.permute.xlu0 %1598
        %1602 = vset.pattern.permute.xlu0 0
        %1603 = vperm.xlu0 %1602, %v1557
        %v1604 = vpop.permute.xlu0 %1603
        %1607 = vset.pattern.permute.xlu0 0
        %1608 = vperm.xlu0 %1607, %v1558
        %v1609 = vpop.permute.xlu0 %1608
        %1612 = vset.pattern.permute.xlu0 0
        %1613 = vperm.xlu0 %1612, %v1559
        %v1614 = vpop.permute.xlu0 %1613
        %1617 = vset.pattern.permute.xlu0 0
        %1618 = vperm.xlu0 %1617, %v1560
        %v1619 = vpop.permute.xlu0 %1618
        %v1621 = vadd.f32 %v1525, %v1564
        %v1622 = vadd.f32 %v1526, %v1564
        %v1623 = vadd.f32 %v1527, %v1569
        %v1624 = vadd.f32 %v1528, %v1569
        %v1625 = vadd.f32 %v1529, %v1574
        %v1626 = vadd.f32 %v1530, %v1574
        %v1627 = vadd.f32 %v1531, %v1579
        %v1628 = vadd.f32 %v1532, %v1579
        %v1629 = vadd.f32 %v1533, %v1584
        %v1630 = vadd.f32 %v1534, %v1584
        %v1631 = vadd.f32 %v1535, %v1589
        %v1632 = vadd.f32 %v1536, %v1589
        %v1633 = vadd.f32 %v1537, %v1594
        %v1634 = vadd.f32 %v1538, %v1594
        %v1635 = vadd.f32 %v1539, %v1599
        %v1636 = vadd.f32 %v1540, %v1599
        %v1637 = vadd.f32 %v1541, %v1604
        %v1638 = vadd.f32 %v1542, %v1604
        %v1639 = vadd.f32 %v1543, %v1609
        %v1640 = vadd.f32 %v1544, %v1609
        %v1641 = vadd.f32 %v1545, %v1614
        %v1642 = vadd.f32 %v1546, %v1614
        %v1643 = vadd.f32 %v1547, %v1619
        %v1644 = vadd.f32 %v1548, %v1619
        %v1645 = vmax.f32 %v1621, 0.0
        %v1646 = vmax.f32 %v1622, 0.0
        %v1647 = vmax.f32 %v1623, 0.0
        %v1648 = vmax.f32 %v1624, 0.0
        %v1649 = vmax.f32 %v1625, 0.0
        %v1650 = vmax.f32 %v1626, 0.0
        %v1651 = vmax.f32 %v1627, 0.0
        %v1652 = vmax.f32 %v1628, 0.0
        %v1653 = vmax.f32 %v1629, 0.0
        %v1654 = vmax.f32 %v1630, 0.0
        %v1655 = vmax.f32 %v1631, 0.0
        %v1656 = vmax.f32 %v1632, 0.0
        %v1657 = vmax.f32 %v1633, 0.0
        %v1658 = vmax.f32 %v1634, 0.0
        %v1659 = vmax.f32 %v1635, 0.0
        %v1660 = vmax.f32 %v1636, 0.0
        %v1661 = vmax.f32 %v1637, 0.0
        %v1662 = vmax.f32 %v1638, 0.0
        %v1663 = vmax.f32 %v1639, 0.0
        %v1664 = vmax.f32 %v1640, 0.0
        %v1665 = vmax.f32 %v1641, 0.0
        %v1666 = vmax.f32 %v1642, 0.0
        %v1667 = vmax.f32 %v1643, 0.0
        %v1668 = vmax.f32 %v1644, 0.0
        %v1669 = vpack.c.bf16 %v1647, %v1645
        %v1670 = vpack.c.bf16 %v1648, %v1646
        %v1671 = vpack.c.bf16 %v1651, %v1649
        %v1672 = vpack.c.bf16 %v1652, %v1650
        %v1673 = vpack.c.bf16 %v1655, %v1653
        %v1674 = vpack.c.bf16 %v1656, %v1654
        %v1675 = vpack.c.bf16 %v1659, %v1657
        %v1676 = vpack.c.bf16 %v1660, %v1658
        %v1677 = vpack.c.bf16 %v1663, %v1661
        %v1678 = vpack.c.bf16 %v1664, %v1662
        %v1679 = vpack.c.bf16 %v1667, %v1665
        %v1680 = vpack.c.bf16 %v1668, %v1666
        %1681 = vmatprep.subr.bf16.mxu0 %v828
        %1682 = vmatpush1.bf16.msra.mxu0 %v827
        %1683 = vmatprep.subr.bf16.mxu0 %v832
        %1684 = vmatpush1.bf16.msra.mxu0 %v831
        %1685 = vmatprep.subr.bf16.mxu0 %v836
        %1686 = vmatpush1.bf16.msra.mxu0 %v835
        %1687 = vmatprep.subr.bf16.mxu0 %v840
        %1688 = vmatpush1.bf16.msra.mxu0 %v839
        %1689 = vmatprep.subr.bf16.mxu0 %v844
        %1690 = vmatpush1.bf16.msra.mxu0 %v843
        %1691 = vmatprep.subr.bf16.mxu0 %v848
        %1692 = vmatpush1.bf16.msra.mxu0 %v847
        %1693 = vmatprep.subr.bf16.mxu0 %v852
        %1694 = vmatpush1.bf16.msra.mxu0 %v851
        %1695 = vmatprep.subr.bf16.mxu0 %v856
        %1696 = vmatpush1.bf16.msra.mxu0 %v855
        %1697 = vmatprep.subr.bf16.mxu0 %v860
        %1698 = vmatpush1.bf16.msra.mxu0 %v859
        %1699 = vmatprep.subr.bf16.mxu0 %v864
        %1700 = vmatpush1.bf16.msra.mxu0 %v863
        %1701 = vmatprep.subr.bf16.mxu0 %v868
        %1702 = vmatpush1.bf16.msra.mxu0 %v867
        %1703 = vmatprep.subr.bf16.mxu0 %v872
        %1704 = vmatpush1.bf16.msra.mxu0 %v871
        %1705 = vmatprep.subr.bf16.mxu0 %v876
        %1706 = vmatpush1.bf16.msra.mxu0 %v875
        %1707 = vmatprep.subr.bf16.mxu0 %v880
        %1708 = vmatpush1.bf16.msra.mxu0 %v879
        %1709 = vmatprep.subr.bf16.mxu0 %v884
        %1710 = vmatpush1.bf16.msra.mxu0 %v883
        %1711 = vmatprep.subr.bf16.mxu0 %v888
        %1712 = vmatpush1.bf16.msra.mxu0 %v887
        %1713 = vmatprep.mubr.bf16.mxu0 %v1670
        %1714 = vmatmul.mubr.bf16.gmra.mrb[0].mxu0 %v1669
        %v1715 = vpop.f32.mrb[0].mxu0
        %v1716 = vadd.f32 0.0, %v1715
        %v1717 = vpop.f32.mrb[0].mxu0
        %v1718 = vadd.f32 0.0, %v1717
        %v1719 = vpop.f32.mrb[0].mxu0
        %v1720 = vadd.f32 0.0, %v1719
        %v1721 = vpop.f32.mrb[0].mxu0
        %v1722 = vadd.f32 0.0, %v1721
        %1723 = vmatprep.mubr.bf16.mxu0 %v1672
        %1724 = vmatmul.mubr.bf16.gmra.mrb[0].mxu0 %v1671
        %v1725 = vpop.f32.mrb[0].mxu0
        %v1726 = vadd.f32 0.0, %v1725
        %v1727 = vpop.f32.mrb[0].mxu0
        %v1728 = vadd.f32 0.0, %v1727
        %v1729 = vpop.f32.mrb[0].mxu0
        %v1730 = vadd.f32 0.0, %v1729
        %v1731 = vpop.f32.mrb[0].mxu0
        %v1732 = vadd.f32 0.0, %v1731
        %1733 = vmatprep.mubr.bf16.mxu0 %v1674
        %1734 = vmatmul.mubr.bf16.gmra.mrb[0].mxu0 %v1673
        %v1735 = vpop.f32.mrb[0].mxu0
        %v1736 = vadd.f32 0.0, %v1735
        %v1737 = vpop.f32.mrb[0].mxu0
        %v1738 = vadd.f32 0.0, %v1737
        %v1739 = vpop.f32.mrb[0].mxu0
        %v1740 = vadd.f32 0.0, %v1739
        %v1741 = vpop.f32.mrb[0].mxu0
        %v1742 = vadd.f32 0.0, %v1741
        %1743 = vmatprep.mubr.bf16.mxu0 %v1676
        %1744 = vmatmul.mubr.bf16.gmra.mrb[0].mxu0 %v1675
        %v1745 = vpop.f32.mrb[0].mxu0
        %v1746 = vadd.f32 0.0, %v1745
        %v1747 = vpop.f32.mrb[0].mxu0
        %v1748 = vadd.f32 0.0, %v1747
        %v1749 = vpop.f32.mrb[0].mxu0
        %v1750 = vadd.f32 0.0, %v1749
        %v1751 = vpop.f32.mrb[0].mxu0
        %v1752 = vadd.f32 0.0, %v1751
        %1753 = vmatprep.mubr.bf16.mxu0 %v1678
        %1754 = vmatmul.mubr.bf16.gmra.mrb[0].mxu0 %v1677
        %v1755 = vpop.f32.mrb[0].mxu0
        %v1756 = vadd.f32 0.0, %v1755
        %v1757 = vpop.f32.mrb[0].mxu0
        %v1758 = vadd.f32 0.0, %v1757
        %v1759 = vpop.f32.mrb[0].mxu0
        %v1760 = vadd.f32 0.0, %v1759
        %v1761 = vpop.f32.mrb[0].mxu0
        %v1762 = vadd.f32 0.0, %v1761
        %1763 = vmatprep.mubr.bf16.mxu0 %v1680
        %1764 = vmatmul.mubr.bf16.gmra.mrb[0].mxu0 %v1679
        %v1765 = vpop.f32.mrb[0].mxu0
        %v1766 = vadd.f32 0.0, %v1765
        %v1767 = vpop.f32.mrb[0].mxu0
        %v1768 = vadd.f32 0.0, %v1767
        %v1769 = vpop.f32.mrb[0].mxu0
        %v1770 = vadd.f32 0.0, %v1769
        %v1771 = vpop.f32.mrb[0].mxu0
        %v1772 = vadd.f32 0.0, %v1771
        %1773 = vdwg.mxu0
        %1774 = vmatprep.subr.bf16.mxu0 %v830
        %1775 = vmatpush1.bf16.msra.mxu0 %v829
        %1776 = vmatprep.subr.bf16.mxu0 %v834
        %1777 = vmatpush1.bf16.msra.mxu0 %v833
        %1778 = vmatprep.subr.bf16.mxu0 %v838
        %1779 = vmatpush1.bf16.msra.mxu0 %v837
        %1780 = vmatprep.subr.bf16.mxu0 %v842
        %1781 = vmatpush1.bf16.msra.mxu0 %v841
        %1782 = vmatprep.subr.bf16.mxu0 %v846
        %1783 = vmatpush1.bf16.msra.mxu0 %v845
        %1784 = vmatprep.subr.bf16.mxu0 %v850
        %1785 = vmatpush1.bf16.msra.mxu0 %v849
        %1786 = vmatprep.subr.bf16.mxu0 %v854
        %1787 = vmatpush1.bf16.msra.mxu0 %v853
        %1788 = vmatprep.subr.bf16.mxu0 %v858
        %1789 = vmatpush1.bf16.msra.mxu0 %v857
        %1790 = vmatprep.subr.bf16.mxu0 %v862
        %1791 = vmatpush1.bf16.msra.mxu0 %v861
        %1792 = vmatprep.subr.bf16.mxu0 %v866
        %1793 = vmatpush1.bf16.msra.mxu0 %v865
        %1794 = vmatprep.subr.bf16.mxu0 %v870
        %1795 = vmatpush1.bf16.msra.mxu0 %v869
        %1796 = vmatprep.subr.bf16.mxu0 %v874
        %1797 = vmatpush1.bf16.msra.mxu0 %v873
        %1798 = vmatprep.subr.bf16.mxu0 %v878
        %1799 = vmatpush1.bf16.msra.mxu0 %v877
        %1800 = vmatprep.subr.bf16.mxu0 %v882
        %1801 = vmatpush1.bf16.msra.mxu0 %v881
        %1802 = vmatprep.subr.bf16.mxu0 %v886
        %1803 = vmatpush1.bf16.msra.mxu0 %v885
        %1804 = vmatprep.subr.bf16.mxu0 %v890
        %1805 = vmatpush1.bf16.msra.mxu0 %v889
        %1806 = vmatprep.mubr.bf16.mxu0 %v1670
        %1807 = vmatmul.mubr.bf16.gmra.mrb[0].mxu0 %v1669
        %v1808 = vpop.f32.mrb[0].mxu0
        %v1809 = vadd.f32 0.0, %v1808
        %v1810 = vpop.f32.mrb[0].mxu0
        %v1811 = vadd.f32 0.0, %v1810
        %v1812 = vpop.f32.mrb[0].mxu0
        %v1813 = vadd.f32 0.0, %v1812
        %v1814 = vpop.f32.mrb[0].mxu0
        %v1815 = vadd.f32 0.0, %v1814
        %1816 = vmatprep.mubr.bf16.mxu0 %v1672
        %1817 = vmatmul.mubr.bf16.gmra.mrb[0].mxu0 %v1671
        %v1818 = vpop.f32.mrb[0].mxu0
        %v1819 = vadd.f32 0.0, %v1818
        %v1820 = vpop.f32.mrb[0].mxu0
        %v1821 = vadd.f32 0.0, %v1820
        %v1822 = vpop.f32.mrb[0].mxu0
        %v1823 = vadd.f32 0.0, %v1822
        %v1824 = vpop.f32.mrb[0].mxu0
        %v1825 = vadd.f32 0.0, %v1824
        %1826 = vmatprep.mubr.bf16.mxu0 %v1674
        %1827 = vmatmul.mubr.bf16.gmra.mrb[0].mxu0 %v1673
        %v1828 = vpop.f32.mrb[0].mxu0
        %v1829 = vadd.f32 0.0, %v1828
        %v1830 = vpop.f32.mrb[0].mxu0
        %v1831 = vadd.f32 0.0, %v1830
        %v1832 = vpop.f32.mrb[0].mxu0
        %v1833 = vadd.f32 0.0, %v1832
        %v1834 = vpop.f32.mrb[0].mxu0
        %v1835 = vadd.f32 0.0, %v1834
        %1836 = vmatprep.mubr.bf16.mxu0 %v1676
        %1837 = vmatmul.mubr.bf16.gmra.mrb[0].mxu0 %v1675
        %v1838 = vpop.f32.mrb[0].mxu0
        %v1839 = vadd.f32 0.0, %v1838
        %v1840 = vpop.f32.mrb[0].mxu0
        %v1841 = vadd.f32 0.0, %v1840
        %v1842 = vpop.f32.mrb[0].mxu0
        %v1843 = vadd.f32 0.0, %v1842
        %v1844 = vpop.f32.mrb[0].mxu0
        %v1845 = vadd.f32 0.0, %v1844
        %1846 = vmatprep.mubr.bf16.mxu0 %v1678
        %1847 = vmatmul.mubr.bf16.gmra.mrb[0].mxu0 %v1677
        %v1848 = vpop.f32.mrb[0].mxu0
        %v1849 = vadd.f32 0.0, %v1848
        %v1850 = vpop.f32.mrb[0].mxu0
        %v1851 = vadd.f32 0.0, %v1850
        %v1852 = vpop.f32.mrb[0].mxu0
        %v1853 = vadd.f32 0.0, %v1852
        %v1854 = vpop.f32.mrb[0].mxu0
        %v1855 = vadd.f32 0.0, %v1854
        %1856 = vmatprep.mubr.bf16.mxu0 %v1680
        %1857 = vmatmul.mubr.bf16.gmra.mrb[0].mxu0 %v1679
        %v1858 = vpop.f32.mrb[0].mxu0
        %v1859 = vadd.f32 0.0, %v1858
        %v1860 = vpop.f32.mrb[0].mxu0
        %v1861 = vadd.f32 0.0, %v1860
        %v1862 = vpop.f32.mrb[0].mxu0
        %v1863 = vadd.f32 0.0, %v1862
        %v1864 = vpop.f32.mrb[0].mxu0
        %v1865 = vadd.f32 0.0, %v1864
        %1866 = vdwg.mxu0
        %v1867 = vld [vmem:[%s4] sm:$0xf]
        %v1868 = vld [vmem:[%s4 + $0x4] sm:$0xf]
        %v1869 = vld [vmem:[%s4 + $0x8] sm:$0xf]
        %v1870 = vld [vmem:[%s4 + $0xc] sm:$0xf]
        %v1871 = vld [vmem:[%s4 + $0x10] sm:$0xf]
        %v1872 = vld [vmem:[%s4 + $0x14] sm:$0xf]
        %v1873 = vld [vmem:[%s4 + $0x18] sm:$0xf]
        %v1874 = vld [vmem:[%s4 + $0x1c] sm:$0xf]
        %v1875 = vld [vmem:[%s4 + $0x20] sm:$0xf]
        %v1876 = vld [vmem:[%s4 + $0x24] sm:$0xf]
        %v1877 = vld [vmem:[%s4 + $0x28] sm:$0xf]
        %v1878 = vld [vmem:[%s4 + $0x2c] sm:$0xf]
        %v1879 = vpack.c.bf16 %v1720, %v1716
        %v1880 = vpack.c.bf16 %v1722, %v1718
        %v1881 = vpack.c.bf16 %v1730, %v1726
        %v1882 = vpack.c.bf16 %v1732, %v1728
        %v1883 = vpack.c.bf16 %v1740, %v1736
        %v1884 = vpack.c.bf16 %v1742, %v1738
        %v1885 = vpack.c.bf16 %v1750, %v1746
        %v1886 = vpack.c.bf16 %v1752, %v1748
        %v1887 = vpack.c.bf16 %v1760, %v1756
        %v1888 = vpack.c.bf16 %v1762, %v1758
        %v1889 = vpack.c.bf16 %v1770, %v1766
        %v1890 = vpack.c.bf16 %v1772, %v1768
        %s1891 = scalar_lea.vmem %s4, 48
        %v1892 = vld [vmem:[%s1891] sm:$0xf]
        %v1893 = vld [vmem:[%s1891 + $0x4] sm:$0xf]
        %v1894 = vld [vmem:[%s1891 + $0x8] sm:$0xf]
        %v1895 = vld [vmem:[%s1891 + $0xc] sm:$0xf]
        %v1896 = vld [vmem:[%s1891 + $0x10] sm:$0xf]
        %v1897 = vld [vmem:[%s1891 + $0x14] sm:$0xf]
        %v1898 = vld [vmem:[%s1891 + $0x18] sm:$0xf]
        %v1899 = vld [vmem:[%s1891 + $0x1c] sm:$0xf]
        %v1900 = vld [vmem:[%s1891 + $0x20] sm:$0xf]
        %v1901 = vld [vmem:[%s1891 + $0x24] sm:$0xf]
        %v1902 = vld [vmem:[%s1891 + $0x28] sm:$0xf]
        %v1903 = vld [vmem:[%s1891 + $0x2c] sm:$0xf]
        %v1916 = vunpack.c.l.b16 %v1892
        %v1917 = vunpack.c.l.b16 %v1893
        %v1918 = vunpack.c.l.b16 %v1894
        %v1919 = vunpack.c.l.b16 %v1895
        %v1920 = vunpack.c.l.b16 %v1896
        %v1921 = vunpack.c.l.b16 %v1897
        %v1922 = vunpack.c.l.b16 %v1898
        %v1923 = vunpack.c.l.b16 %v1899
        %v1924 = vunpack.c.l.b16 %v1900
        %v1925 = vunpack.c.l.b16 %v1901
        %v1926 = vunpack.c.l.b16 %v1902
        %v1927 = vunpack.c.l.b16 %v1903
        %v1928 = vpack.c.b16 %v1917, %v1916
        %v1929 = vpack.c.b16 %v1919, %v1918
        %v1930 = vpack.c.b16 %v1921, %v1920
        %v1931 = vpack.c.b16 %v1923, %v1922
        %v1932 = vpack.c.b16 %v1925, %v1924
        %v1933 = vpack.c.b16 %v1927, %v1926
        %vm1934 = vcmask 785408
        %v1936 = vsel %vm1934, %v1928, 0
        %v1939 = vsel %vm1934, %v1929, 0
        %v1942 = vsel %vm1934, %v1930, 0
        %v1945 = vsel %vm1934, %v1931, 0
        %v1948 = vsel %vm1934, %v1932, 0
        %v1951 = vsel %vm1934, %v1933, 0
        %1953 = vmatprep.subr.bf16.mxu0 %v1880
        %1954 = vmatpush1.bf16.msra.mxu0 %v1879
        %1955 = vmatprep.subr.bf16.mxu0 %v1882
        %1956 = vmatpush1.bf16.msra.mxu0 %v1881
        %1957 = vmatprep.subr.bf16.mxu0 %v1884
        %1958 = vmatpush1.bf16.msra.mxu0 %v1883
        %1959 = vmatprep.subr.bf16.mxu0 %v1886
        %1960 = vmatpush1.bf16.msra.mxu0 %v1885
        %1961 = vmatprep.subr.bf16.mxu0 %v1888
        %1962 = vmatpush1.bf16.msra.mxu0 %v1887
        %1963 = vmatprep.subr.bf16.mxu0 %v1890
        %1964 = vmatpush1.bf16.msra.mxu0 %v1889
        %1965 = vmatprep.subr.bf16.mxu0 0
        %1966 = vmatpush1.bf16.msra.mxu0 0
        %1967 = vmatprep.subr.bf16.mxu0 0
        %1968 = vmatpush1.bf16.msra.mxu0 0
        %1969 = vmatprep.subr.bf16.mxu0 0
        %1970 = vmatpush1.bf16.msra.mxu0 0
        %1971 = vmatprep.subr.bf16.mxu0 0
        %1972 = vmatpush1.bf16.msra.mxu0 0
        %1973 = vmatprep.subr.bf16.mxu0 0
        %1974 = vmatpush1.bf16.msra.mxu0 0
        %1975 = vmatprep.subr.bf16.mxu0 0
        %1976 = vmatpush1.bf16.msra.mxu0 0
        %1977 = vmatprep.subr.bf16.mxu0 0
        %1978 = vmatpush1.bf16.msra.mxu0 0
        %1979 = vmatprep.subr.bf16.mxu0 0
        %1980 = vmatpush1.bf16.msra.mxu0 0
        %1981 = vmatprep.subr.bf16.mxu0 0
        %1982 = vmatpush1.bf16.msra.mxu0 0
        %1983 = vmatprep.subr.bf16.mxu0 0
        %1984 = vmatpush1.bf16.msra.mxu0 0
        %1985 = vmatprep.mubr.bf16.mxu0 0
        %1986 = vmatmul.mubr.bf16.gmra.mrb[0].mxu0 %v1936
        %v1987 = vpop.f32.mrb[0].mxu0
        %v1988 = vadd.f32 0.0, %v1987
        %v1989 = vpop.f32.mrb[0].mxu0
        %v1990 = vadd.f32 0.0, %v1989
        %v1991 = vpop.f32.mrb[0].mxu0
        %v1992 = vadd.f32 0.0, %v1991
        %v1993 = vpop.f32.mrb[0].mxu0
        %v1994 = vadd.f32 0.0, %v1993
        %1995 = vmatprep.mubr.bf16.mxu0 0
        %1996 = vmatmul.mubr.bf16.gmra.mrb[0].mxu0 %v1939
        %v1997 = vpop.f32.mrb[0].mxu0
        %v1998 = vadd.f32 0.0, %v1997
        %v1999 = vpop.f32.mrb[0].mxu0
        %v2000 = vadd.f32 0.0, %v1999
        %v2001 = vpop.f32.mrb[0].mxu0
        %v2002 = vadd.f32 0.0, %v2001
        %v2003 = vpop.f32.mrb[0].mxu0
        %v2004 = vadd.f32 0.0, %v2003
        %2005 = vmatprep.mubr.bf16.mxu0 0
        %2006 = vmatmul.mubr.bf16.gmra.mrb[0].mxu0 %v1942
        %v2007 = vpop.f32.mrb[0].mxu0
        %v2008 = vadd.f32 0.0, %v2007
        %v2009 = vpop.f32.mrb[0].mxu0
        %v2010 = vadd.f32 0.0, %v2009
        %v2011 = vpop.f32.mrb[0].mxu0
        %v2012 = vadd.f32 0.0, %v2011
        %v2013 = vpop.f32.mrb[0].mxu0
        %v2014 = vadd.f32 0.0, %v2013
        %2015 = vmatprep.mubr.bf16.mxu0 0
        %2016 = vmatmul.mubr.bf16.gmra.mrb[0].mxu0 %v1945
        %v2017 = vpop.f32.mrb[0].mxu0
        %v2018 = vadd.f32 0.0, %v2017
        %v2019 = vpop.f32.mrb[0].mxu0
        %v2020 = vadd.f32 0.0, %v2019
        %v2021 = vpop.f32.mrb[0].mxu0
        %v2022 = vadd.f32 0.0, %v2021
        %v2023 = vpop.f32.mrb[0].mxu0
        %v2024 = vadd.f32 0.0, %v2023
        %2025 = vmatprep.mubr.bf16.mxu0 0
        %2026 = vmatmul.mubr.bf16.gmra.mrb[0].mxu0 %v1948
        %v2027 = vpop.f32.mrb[0].mxu0
        %v2028 = vadd.f32 0.0, %v2027
        %v2029 = vpop.f32.mrb[0].mxu0
        %v2030 = vadd.f32 0.0, %v2029
        %v2031 = vpop.f32.mrb[0].mxu0
        %v2032 = vadd.f32 0.0, %v2031
        %v2033 = vpop.f32.mrb[0].mxu0
        %v2034 = vadd.f32 0.0, %v2033
        %2035 = vmatprep.mubr.bf16.mxu0 0
        %2036 = vmatmul.mubr.bf16.gmra.mrb[0].mxu0 %v1951
        %v2037 = vpop.f32.mrb[0].mxu0
        %v2038 = vadd.f32 0.0, %v2037
        %v2039 = vpop.f32.mrb[0].mxu0
        %v2040 = vadd.f32 0.0, %v2039
        %v2041 = vpop.f32.mrb[0].mxu0
        %v2042 = vadd.f32 0.0, %v2041
        %v2043 = vpop.f32.mrb[0].mxu0
        %v2044 = vadd.f32 0.0, %v2043
        %2045 = vdwg.mxu0
        %v2058 = vunpack.c.l.b16 %v1867
        %v2059 = vunpack.c.l.b16 %v1868
        %v2060 = vunpack.c.l.b16 %v1869
        %v2061 = vunpack.c.l.b16 %v1870
        %v2062 = vunpack.c.l.b16 %v1871
        %v2063 = vunpack.c.l.b16 %v1872
        %v2064 = vunpack.c.l.b16 %v1873
        %v2065 = vunpack.c.l.b16 %v1874
        %v2066 = vunpack.c.l.b16 %v1875
        %v2067 = vunpack.c.l.b16 %v1876
        %v2068 = vunpack.c.l.b16 %v1877
        %v2069 = vunpack.c.l.b16 %v1878
        %v2070 = vpack.c.b16 %v2059, %v2058
        %v2071 = vpack.c.b16 %v2061, %v2060
        %v2072 = vpack.c.b16 %v2063, %v2062
        %v2073 = vpack.c.b16 %v2065, %v2064
        %v2074 = vpack.c.b16 %v2067, %v2066
        %v2075 = vpack.c.b16 %v2069, %v2068
        %v2077 = vsel %vm1934, %v2070, 0
        %v2080 = vsel %vm1934, %v2071, 0
        %v2083 = vsel %vm1934, %v2072, 0
        %v2086 = vsel %vm1934, %v2073, 0
        %v2089 = vsel %vm1934, %v2074, 0
        %v2092 = vsel %vm1934, %v2075, 0
        %2094 = vmatprep.subr.bf16.mxu0 %v1670
        %2095 = vmatpush1.bf16.msra.mxu0 %v1669
        %2096 = vmatprep.subr.bf16.mxu0 %v1672
        %2097 = vmatpush1.bf16.msra.mxu0 %v1671
        %2098 = vmatprep.subr.bf16.mxu0 %v1674
        %2099 = vmatpush1.bf16.msra.mxu0 %v1673
        %2100 = vmatprep.subr.bf16.mxu0 %v1676
        %2101 = vmatpush1.bf16.msra.mxu0 %v1675
        %2102 = vmatprep.subr.bf16.mxu0 %v1678
        %2103 = vmatpush1.bf16.msra.mxu0 %v1677
        %2104 = vmatprep.subr.bf16.mxu0 %v1680
        %2105 = vmatpush1.bf16.msra.mxu0 %v1679
        %2106 = vmatprep.subr.bf16.mxu0 0
        %2107 = vmatpush1.bf16.msra.mxu0 0
        %2108 = vmatprep.subr.bf16.mxu0 0
        %2109 = vmatpush1.bf16.msra.mxu0 0
        %2110 = vmatprep.subr.bf16.mxu0 0
        %2111 = vmatpush1.bf16.msra.mxu0 0
        %2112 = vmatprep.subr.bf16.mxu0 0
        %2113 = vmatpush1.bf16.msra.mxu0 0
        %2114 = vmatprep.subr.bf16.mxu0 0
        %2115 = vmatpush1.bf16.msra.mxu0 0
        %2116 = vmatprep.subr.bf16.mxu0 0
        %2117 = vmatpush1.bf16.msra.mxu0 0
        %2118 = vmatprep.subr.bf16.mxu0 0
        %2119 = vmatpush1.bf16.msra.mxu0 0
        %2120 = vmatprep.subr.bf16.mxu0 0
        %2121 = vmatpush1.bf16.msra.mxu0 0
        %2122 = vmatprep.subr.bf16.mxu0 0
        %2123 = vmatpush1.bf16.msra.mxu0 0
        %2124 = vmatprep.subr.bf16.mxu0 0
        %2125 = vmatpush1.bf16.msra.mxu0 0
        %2126 = vmatprep.mubr.bf16.mxu0 0
        %2127 = vmatmul.mubr.bf16.gmra.mrb[0].mxu0 %v2077
        %v2128 = vpop.f32.mrb[0].mxu0
        %v2129 = vadd.f32 %v1988, %v2128
        %v2130 = vpop.f32.mrb[0].mxu0
        %v2131 = vadd.f32 %v1990, %v2130
        %v2132 = vpop.f32.mrb[0].mxu0
        %v2133 = vadd.f32 %v1992, %v2132
        %v2134 = vpop.f32.mrb[0].mxu0
        %v2135 = vadd.f32 %v1994, %v2134
        %2136 = vmatprep.mubr.bf16.mxu0 0
        %2137 = vmatmul.mubr.bf16.gmra.mrb[0].mxu0 %v2080
        %v2138 = vpop.f32.mrb[0].mxu0
        %v2139 = vadd.f32 %v1998, %v2138
        %v2140 = vpop.f32.mrb[0].mxu0
        %v2141 = vadd.f32 %v2000, %v2140
        %v2142 = vpop.f32.mrb[0].mxu0
        %v2143 = vadd.f32 %v2002, %v2142
        %v2144 = vpop.f32.mrb[0].mxu0
        %v2145 = vadd.f32 %v2004, %v2144
        %2146 = vmatprep.mubr.bf16.mxu0 0
        %2147 = vmatmul.mubr.bf16.gmra.mrb[0].mxu0 %v2083
        %v2148 = vpop.f32.mrb[0].mxu0
        %v2149 = vadd.f32 %v2008, %v2148
        %v2150 = vpop.f32.mrb[0].mxu0
        %v2151 = vadd.f32 %v2010, %v2150
        %v2152 = vpop.f32.mrb[0].mxu0
        %v2153 = vadd.f32 %v2012, %v2152
        %v2154 = vpop.f32.mrb[0].mxu0
        %v2155 = vadd.f32 %v2014, %v2154
        %2156 = vmatprep.mubr.bf16.mxu0 0
        %2157 = vmatmul.mubr.bf16.gmra.mrb[0].mxu0 %v2086
        %v2158 = vpop.f32.mrb[0].mxu0
        %v2159 = vadd.f32 %v2018, %v2158
        %v2160 = vpop.f32.mrb[0].mxu0
        %v2161 = vadd.f32 %v2020, %v2160
        %v2162 = vpop.f32.mrb[0].mxu0
        %v2163 = vadd.f32 %v2022, %v2162
        %v2164 = vpop.f32.mrb[0].mxu0
        %v2165 = vadd.f32 %v2024, %v2164
        %2166 = vmatprep.mubr.bf16.mxu0 0
        %2167 = vmatmul.mubr.bf16.gmra.mrb[0].mxu0 %v2089
        %v2168 = vpop.f32.mrb[0].mxu0
        %v2169 = vadd.f32 %v2028, %v2168
        %v2170 = vpop.f32.mrb[0].mxu0
        %v2171 = vadd.f32 %v2030, %v2170
        %v2172 = vpop.f32.mrb[0].mxu0
        %v2173 = vadd.f32 %v2032, %v2172
        %v2174 = vpop.f32.mrb[0].mxu0
        %v2175 = vadd.f32 %v2034, %v2174
        %2176 = vmatprep.mubr.bf16.mxu0 0
        %2177 = vmatmul.mubr.bf16.gmra.mrb[0].mxu0 %v2092
        %v2178 = vpop.f32.mrb[0].mxu0
        %v2179 = vadd.f32 %v2038, %v2178
        %v2180 = vpop.f32.mrb[0].mxu0
        %v2181 = vadd.f32 %v2040, %v2180
        %v2182 = vpop.f32.mrb[0].mxu0
        %v2183 = vadd.f32 %v2042, %v2182
        %v2184 = vpop.f32.mrb[0].mxu0
        %v2185 = vadd.f32 %v2044, %v2184
        %2186 = vdwg.mxu0
        %v2187 = vpack.c.bf16 %v1813, %v1809
        %v2188 = vpack.c.bf16 %v1815, %v1811
        %v2189 = vpack.c.bf16 %v1823, %v1819
        %v2190 = vpack.c.bf16 %v1825, %v1821
        %v2191 = vpack.c.bf16 %v1833, %v1829
        %v2192 = vpack.c.bf16 %v1835, %v1831
        %v2193 = vpack.c.bf16 %v1843, %v1839
        %v2194 = vpack.c.bf16 %v1845, %v1841
        %v2195 = vpack.c.bf16 %v1853, %v1849
        %v2196 = vpack.c.bf16 %v1855, %v1851
        %v2197 = vpack.c.bf16 %v1863, %v1859
        %v2198 = vpack.c.bf16 %v1865, %v1861
        %s2199 = scalar_lea.vmem %s4, 96
        %v2200 = vld [vmem:[%s2199] sm:$0xf]
        %v2201 = vld [vmem:[%s2199 + $0x4] sm:$0xf]
        %v2202 = vld [vmem:[%s2199 + $0x8] sm:$0xf]
        %v2203 = vld [vmem:[%s2199 + $0xc] sm:$0xf]
        %v2204 = vld [vmem:[%s2199 + $0x10] sm:$0xf]
        %v2205 = vld [vmem:[%s2199 + $0x14] sm:$0xf]
        %v2206 = vld [vmem:[%s2199 + $0x18] sm:$0xf]
        %v2207 = vld [vmem:[%s2199 + $0x1c] sm:$0xf]
        %v2208 = vld [vmem:[%s2199 + $0x20] sm:$0xf]
        %v2209 = vld [vmem:[%s2199 + $0x24] sm:$0xf]
        %v2210 = vld [vmem:[%s2199 + $0x28] sm:$0xf]
        %v2211 = vld [vmem:[%s2199 + $0x2c] sm:$0xf]
        %v2224 = vunpack.c.l.b16 %v2200
        %v2225 = vunpack.c.l.b16 %v2201
        %v2226 = vunpack.c.l.b16 %v2202
        %v2227 = vunpack.c.l.b16 %v2203
        %v2228 = vunpack.c.l.b16 %v2204
        %v2229 = vunpack.c.l.b16 %v2205
        %v2230 = vunpack.c.l.b16 %v2206
        %v2231 = vunpack.c.l.b16 %v2207
        %v2232 = vunpack.c.l.b16 %v2208
        %v2233 = vunpack.c.l.b16 %v2209
        %v2234 = vunpack.c.l.b16 %v2210
        %v2235 = vunpack.c.l.b16 %v2211
        %v2236 = vpack.c.b16 %v2225, %v2224
        %v2237 = vpack.c.b16 %v2227, %v2226
        %v2238 = vpack.c.b16 %v2229, %v2228
        %v2239 = vpack.c.b16 %v2231, %v2230
        %v2240 = vpack.c.b16 %v2233, %v2232
        %v2241 = vpack.c.b16 %v2235, %v2234
        %v2243 = vsel %vm1934, %v2236, 0
        %v2246 = vsel %vm1934, %v2237, 0
        %v2249 = vsel %vm1934, %v2238, 0
        %v2252 = vsel %vm1934, %v2239, 0
        %v2255 = vsel %vm1934, %v2240, 0
        %v2258 = vsel %vm1934, %v2241, 0
        %2260 = vmatprep.subr.bf16.mxu0 %v2188
        %2261 = vmatpush1.bf16.msra.mxu0 %v2187
        %2262 = vmatprep.subr.bf16.mxu0 %v2190
        %2263 = vmatpush1.bf16.msra.mxu0 %v2189
        %2264 = vmatprep.subr.bf16.mxu0 %v2192
        %2265 = vmatpush1.bf16.msra.mxu0 %v2191
        %2266 = vmatprep.subr.bf16.mxu0 %v2194
        %2267 = vmatpush1.bf16.msra.mxu0 %v2193
        %2268 = vmatprep.subr.bf16.mxu0 %v2196
        %2269 = vmatpush1.bf16.msra.mxu0 %v2195
        %2270 = vmatprep.subr.bf16.mxu0 %v2198
        %2271 = vmatpush1.bf16.msra.mxu0 %v2197
        %2272 = vmatprep.subr.bf16.mxu0 0
        %2273 = vmatpush1.bf16.msra.mxu0 0
        %2274 = vmatprep.subr.bf16.mxu0 0
        %2275 = vmatpush1.bf16.msra.mxu0 0
        %2276 = vmatprep.subr.bf16.mxu0 0
        %2277 = vmatpush1.bf16.msra.mxu0 0
        %2278 = vmatprep.subr.bf16.mxu0 0
        %2279 = vmatpush1.bf16.msra.mxu0 0
        %2280 = vmatprep.subr.bf16.mxu0 0
        %2281 = vmatpush1.bf16.msra.mxu0 0
        %2282 = vmatprep.subr.bf16.mxu0 0
        %2283 = vmatpush1.bf16.msra.mxu0 0
        %2284 = vmatprep.subr.bf16.mxu0 0
        %2285 = vmatpush1.bf16.msra.mxu0 0
        %2286 = vmatprep.subr.bf16.mxu0 0
        %2287 = vmatpush1.bf16.msra.mxu0 0
        %2288 = vmatprep.subr.bf16.mxu0 0
        %2289 = vmatpush1.bf16.msra.mxu0 0
        %2290 = vmatprep.subr.bf16.mxu0 0
        %2291 = vmatpush1.bf16.msra.mxu0 0
        %2292 = vmatprep.mubr.bf16.mxu0 0
        %2293 = vmatmul.mubr.bf16.gmra.mrb[0].mxu0 %v2243
        %v2294 = vpop.f32.mrb[0].mxu0
        %v2295 = vadd.f32 0.0, %v2294
        %v2296 = vpop.f32.mrb[0].mxu0
        %v2297 = vadd.f32 0.0, %v2296
        %v2298 = vpop.f32.mrb[0].mxu0
        %v2299 = vadd.f32 0.0, %v2298
        %v2300 = vpop.f32.mrb[0].mxu0
        %v2301 = vadd.f32 0.0, %v2300
        %2302 = vmatprep.mubr.bf16.mxu0 0
        %2303 = vmatmul.mubr.bf16.gmra.mrb[0].mxu0 %v2246
        %v2304 = vpop.f32.mrb[0].mxu0
        %v2305 = vadd.f32 0.0, %v2304
        %v2306 = vpop.f32.mrb[0].mxu0
        %v2307 = vadd.f32 0.0, %v2306
        %v2308 = vpop.f32.mrb[0].mxu0
        %v2309 = vadd.f32 0.0, %v2308
        %v2310 = vpop.f32.mrb[0].mxu0
        %v2311 = vadd.f32 0.0, %v2310
        %2312 = vmatprep.mubr.bf16.mxu0 0
        %2313 = vmatmul.mubr.bf16.gmra.mrb[0].mxu0 %v2249
        %v2314 = vpop.f32.mrb[0].mxu0
        %v2315 = vadd.f32 0.0, %v2314
        %v2316 = vpop.f32.mrb[0].mxu0
        %v2317 = vadd.f32 0.0, %v2316
        %v2318 = vpop.f32.mrb[0].mxu0
        %v2319 = vadd.f32 0.0, %v2318
        %v2320 = vpop.f32.mrb[0].mxu0
        %v2321 = vadd.f32 0.0, %v2320
        %2322 = vmatprep.mubr.bf16.mxu0 0
        %2323 = vmatmul.mubr.bf16.gmra.mrb[0].mxu0 %v2252
        %v2324 = vpop.f32.mrb[0].mxu0
        %v2325 = vadd.f32 0.0, %v2324
        %v2326 = vpop.f32.mrb[0].mxu0
        %v2327 = vadd.f32 0.0, %v2326
        %v2328 = vpop.f32.mrb[0].mxu0
        %v2329 = vadd.f32 0.0, %v2328
        %v2330 = vpop.f32.mrb[0].mxu0
        %v2331 = vadd.f32 0.0, %v2330
        %2332 = vmatprep.mubr.bf16.mxu0 0
        %2333 = vmatmul.mubr.bf16.gmra.mrb[0].mxu0 %v2255
        %v2334 = vpop.f32.mrb[0].mxu0
        %v2335 = vadd.f32 0.0, %v2334
        %v2336 = vpop.f32.mrb[0].mxu0
        %v2337 = vadd.f32 0.0, %v2336
        %v2338 = vpop.f32.mrb[0].mxu0
        %v2339 = vadd.f32 0.0, %v2338
        %v2340 = vpop.f32.mrb[0].mxu0
        %v2341 = vadd.f32 0.0, %v2340
        %2342 = vmatprep.mubr.bf16.mxu0 0
        %2343 = vmatmul.mubr.bf16.gmra.mrb[0].mxu0 %v2258
        %v2344 = vpop.f32.mrb[0].mxu0
        %v2345 = vadd.f32 0.0, %v2344
        %v2346 = vpop.f32.mrb[0].mxu0
        %v2347 = vadd.f32 0.0, %v2346
        %v2348 = vpop.f32.mrb[0].mxu0
        %v2349 = vadd.f32 0.0, %v2348
        %v2350 = vpop.f32.mrb[0].mxu0
        %v2351 = vadd.f32 0.0, %v2350
        %2352 = vdwg.mxu0
        %v2353 = vadd.f32 %v2129, %v2295
        %v2354 = vadd.f32 %v2131, %v2297
        %v2355 = vadd.f32 %v2133, %v2299
        %v2356 = vadd.f32 %v2135, %v2301
        %v2357 = vadd.f32 %v2139, %v2305
        %v2358 = vadd.f32 %v2141, %v2307
        %v2359 = vadd.f32 %v2143, %v2309
        %v2360 = vadd.f32 %v2145, %v2311
        %v2361 = vadd.f32 %v2149, %v2315
        %v2362 = vadd.f32 %v2151, %v2317
        %v2363 = vadd.f32 %v2153, %v2319
        %v2364 = vadd.f32 %v2155, %v2321
        %v2365 = vadd.f32 %v2159, %v2325
        %v2366 = vadd.f32 %v2161, %v2327
        %v2367 = vadd.f32 %v2163, %v2329
        %v2368 = vadd.f32 %v2165, %v2331
        %v2369 = vadd.f32 %v2169, %v2335
        %v2370 = vadd.f32 %v2171, %v2337
        %v2371 = vadd.f32 %v2173, %v2339
        %v2372 = vadd.f32 %v2175, %v2341
        %v2373 = vadd.f32 %v2179, %v2345
        %v2374 = vadd.f32 %v2181, %v2347
        %v2375 = vadd.f32 %v2183, %v2349
        %v2376 = vadd.f32 %v2185, %v2351
        %v2377 = vld [vmem:[%s5] sm:$0xff]
        %v2378 = vld [vmem:[%s5 + $0x8] sm:$0xff]
        %v2379 = vld [vmem:[%s5 + $0x10] sm:$0xff]
        %v2380 = vld [vmem:[%s5 + $0x18] sm:$0xff]
        %v2381 = vld [vmem:[%s5 + $0x20] sm:$0xff]
        %v2382 = vld [vmem:[%s5 + $0x28] sm:$0xff]
        %v2383 = vld [vmem:[%s5 + $0x30] sm:$0xff]
        %v2384 = vld [vmem:[%s5 + $0x38] sm:$0xff]
        %v2385 = vld [vmem:[%s5 + $0x40] sm:$0xff]
        %v2386 = vld [vmem:[%s5 + $0x48] sm:$0xff]
        %v2387 = vld [vmem:[%s5 + $0x50] sm:$0xff]
        %v2388 = vld [vmem:[%s5 + $0x58] sm:$0xff]
        %2390 = vset.pattern.permute.xlu0 0
        %2391 = vperm.xlu0 %2390, %v2377
        %v2392 = vpop.permute.xlu0 %2391
        %2395 = vset.pattern.permute.xlu0 0
        %2396 = vperm.xlu0 %2395, %v2378
        %v2397 = vpop.permute.xlu0 %2396
        %2400 = vset.pattern.permute.xlu0 0
        %2401 = vperm.xlu0 %2400, %v2379
        %v2402 = vpop.permute.xlu0 %2401
        %2405 = vset.pattern.permute.xlu0 0
        %2406 = vperm.xlu0 %2405, %v2380
        %v2407 = vpop.permute.xlu0 %2406
        %2410 = vset.pattern.permute.xlu0 0
        %2411 = vperm.xlu0 %2410, %v2381
        %v2412 = vpop.permute.xlu0 %2411
        %2415 = vset.pattern.permute.xlu0 0
        %2416 = vperm.xlu0 %2415, %v2382
        %v2417 = vpop.permute.xlu0 %2416
        %2420 = vset.pattern.permute.xlu0 0
        %2421 = vperm.xlu0 %2420, %v2383
        %v2422 = vpop.permute.xlu0 %2421
        %2425 = vset.pattern.permute.xlu0 0
        %2426 = vperm.xlu0 %2425, %v2384
        %v2427 = vpop.permute.xlu0 %2426
        %2430 = vset.pattern.permute.xlu0 0
        %2431 = vperm.xlu0 %2430, %v2385
        %v2432 = vpop.permute.xlu0 %2431
        %2435 = vset.pattern.permute.xlu0 0
        %2436 = vperm.xlu0 %2435, %v2386
        %v2437 = vpop.permute.xlu0 %2436
        %2440 = vset.pattern.permute.xlu0 0
        %2441 = vperm.xlu0 %2440, %v2387
        %v2442 = vpop.permute.xlu0 %2441
        %2445 = vset.pattern.permute.xlu0 0
        %2446 = vperm.xlu0 %2445, %v2388
        %v2447 = vpop.permute.xlu0 %2446
        %v2449 = vadd.f32 %v2353, %v2392
        %v2450 = vadd.f32 %v2354, %v2392
        %v2451 = vadd.f32 %v2355, %v2397
        %v2452 = vadd.f32 %v2356, %v2397
        %v2453 = vadd.f32 %v2357, %v2402
        %v2454 = vadd.f32 %v2358, %v2402
        %v2455 = vadd.f32 %v2359, %v2407
        %v2456 = vadd.f32 %v2360, %v2407
        %v2457 = vadd.f32 %v2361, %v2412
        %v2458 = vadd.f32 %v2362, %v2412
        %v2459 = vadd.f32 %v2363, %v2417
        %v2460 = vadd.f32 %v2364, %v2417
        %v2461 = vadd.f32 %v2365, %v2422
        %v2462 = vadd.f32 %v2366, %v2422
        %v2463 = vadd.f32 %v2367, %v2427
        %v2464 = vadd.f32 %v2368, %v2427
        %v2465 = vadd.f32 %v2369, %v2432
        %v2466 = vadd.f32 %v2370, %v2432
        %v2467 = vadd.f32 %v2371, %v2437
        %v2468 = vadd.f32 %v2372, %v2437
        %v2469 = vadd.f32 %v2373, %v2442
        %v2470 = vadd.f32 %v2374, %v2442
        %v2471 = vadd.f32 %v2375, %v2447
        %v2472 = vadd.f32 %v2376, %v2447
        %v2473 = vmax.f32 %v2449, 0.0
        %v2474 = vmax.f32 %v2450, 0.0
        %v2475 = vmax.f32 %v2451, 0.0
        %v2476 = vmax.f32 %v2452, 0.0
        %v2477 = vmax.f32 %v2453, 0.0
        %v2478 = vmax.f32 %v2454, 0.0
        %v2479 = vmax.f32 %v2455, 0.0
        %v2480 = vmax.f32 %v2456, 0.0
        %v2481 = vmax.f32 %v2457, 0.0
        %v2482 = vmax.f32 %v2458, 0.0
        %v2483 = vmax.f32 %v2459, 0.0
        %v2484 = vmax.f32 %v2460, 0.0
        %v2485 = vmax.f32 %v2461, 0.0
        %v2486 = vmax.f32 %v2462, 0.0
        %v2487 = vmax.f32 %v2463, 0.0
        %v2488 = vmax.f32 %v2464, 0.0
        %v2489 = vmax.f32 %v2465, 0.0
        %v2490 = vmax.f32 %v2466, 0.0
        %v2491 = vmax.f32 %v2467, 0.0
        %v2492 = vmax.f32 %v2468, 0.0
        %v2493 = vmax.f32 %v2469, 0.0
        %v2494 = vmax.f32 %v2470, 0.0
        %v2495 = vmax.f32 %v2471, 0.0
        %v2496 = vmax.f32 %v2472, 0.0
        %v2497 = vpack.c.bf16 %v2475, %v2473
        %v2498 = vpack.c.bf16 %v2476, %v2474
        %v2499 = vpack.c.bf16 %v2479, %v2477
        %v2500 = vpack.c.bf16 %v2480, %v2478
        %v2501 = vpack.c.bf16 %v2483, %v2481
        %v2502 = vpack.c.bf16 %v2484, %v2482
        %v2503 = vpack.c.bf16 %v2487, %v2485
        %v2504 = vpack.c.bf16 %v2488, %v2486
        %v2505 = vpack.c.bf16 %v2491, %v2489
        %v2506 = vpack.c.bf16 %v2492, %v2490
        %v2507 = vpack.c.bf16 %v2495, %v2493
        %v2508 = vpack.c.bf16 %v2496, %v2494
        %2509 = vmatprep.subr.bf16.mxu0 %v828
        %2510 = vmatpush1.bf16.msra.mxu0 %v827
        %2511 = vmatprep.subr.bf16.mxu0 %v832
        %2512 = vmatpush1.bf16.msra.mxu0 %v831
        %2513 = vmatprep.subr.bf16.mxu0 %v836
        %2514 = vmatpush1.bf16.msra.mxu0 %v835
        %2515 = vmatprep.subr.bf16.mxu0 %v840
        %2516 = vmatpush1.bf16.msra.mxu0 %v839
        %2517 = vmatprep.subr.bf16.mxu0 %v844
        %2518 = vmatpush1.bf16.msra.mxu0 %v843
        %2519 = vmatprep.subr.bf16.mxu0 %v848
        %2520 = vmatpush1.bf16.msra.mxu0 %v847
        %2521 = vmatprep.subr.bf16.mxu0 %v852
        %2522 = vmatpush1.bf16.msra.mxu0 %v851
        %2523 = vmatprep.subr.bf16.mxu0 %v856
        %2524 = vmatpush1.bf16.msra.mxu0 %v855
        %2525 = vmatprep.subr.bf16.mxu0 %v860
        %2526 = vmatpush1.bf16.msra.mxu0 %v859
        %2527 = vmatprep.subr.bf16.mxu0 %v864
        %2528 = vmatpush1.bf16.msra.mxu0 %v863
        %2529 = vmatprep.subr.bf16.mxu0 %v868
        %2530 = vmatpush1.bf16.msra.mxu0 %v867
        %2531 = vmatprep.subr.bf16.mxu0 %v872
        %2532 = vmatpush1.bf16.msra.mxu0 %v871
        %2533 = vmatprep.subr.bf16.mxu0 %v876
        %2534 = vmatpush1.bf16.msra.mxu0 %v875
        %2535 = vmatprep.subr.bf16.mxu0 %v880
        %2536 = vmatpush1.bf16.msra.mxu0 %v879
        %2537 = vmatprep.subr.bf16.mxu0 %v884
        %2538 = vmatpush1.bf16.msra.mxu0 %v883
        %2539 = vmatprep.subr.bf16.mxu0 %v888
        %2540 = vmatpush1.bf16.msra.mxu0 %v887
        %2541 = vmatprep.mubr.bf16.mxu0 %v2498
        %2542 = vmatmul.mubr.bf16.gmra.mrb[0].mxu0 %v2497
        %v2543 = vpop.f32.mrb[0].mxu0
        %v2544 = vadd.f32 0.0, %v2543
        %v2545 = vpop.f32.mrb[0].mxu0
        %v2546 = vadd.f32 0.0, %v2545
        %v2547 = vpop.f32.mrb[0].mxu0
        %v2548 = vadd.f32 0.0, %v2547
        %v2549 = vpop.f32.mrb[0].mxu0
        %v2550 = vadd.f32 0.0, %v2549
        %2551 = vmatprep.mubr.bf16.mxu0 %v2500
        %2552 = vmatmul.mubr.bf16.gmra.mrb[0].mxu0 %v2499
        %v2553 = vpop.f32.mrb[0].mxu0
        %v2554 = vadd.f32 0.0, %v2553
        %v2555 = vpop.f32.mrb[0].mxu0
        %v2556 = vadd.f32 0.0, %v2555
        %v2557 = vpop.f32.mrb[0].mxu0
        %v2558 = vadd.f32 0.0, %v2557
        %v2559 = vpop.f32.mrb[0].mxu0
        %v2560 = vadd.f32 0.0, %v2559
        %2561 = vmatprep.mubr.bf16.mxu0 %v2502
        %2562 = vmatmul.mubr.bf16.gmra.mrb[0].mxu0 %v2501
        %v2563 = vpop.f32.mrb[0].mxu0
        %v2564 = vadd.f32 0.0, %v2563
        %v2565 = vpop.f32.mrb[0].mxu0
        %v2566 = vadd.f32 0.0, %v2565
        %v2567 = vpop.f32.mrb[0].mxu0
        %v2568 = vadd.f32 0.0, %v2567
        %v2569 = vpop.f32.mrb[0].mxu0
        %v2570 = vadd.f32 0.0, %v2569
        %2571 = vmatprep.mubr.bf16.mxu0 %v2504
        %2572 = vmatmul.mubr.bf16.gmra.mrb[0].mxu0 %v2503
        %v2573 = vpop.f32.mrb[0].mxu0
        %v2574 = vadd.f32 0.0, %v2573
        %v2575 = vpop.f32.mrb[0].mxu0
        %v2576 = vadd.f32 0.0, %v2575
        %v2577 = vpop.f32.mrb[0].mxu0
        %v2578 = vadd.f32 0.0, %v2577
        %v2579 = vpop.f32.mrb[0].mxu0
        %v2580 = vadd.f32 0.0, %v2579
        %2581 = vmatprep.mubr.bf16.mxu0 %v2506
        %2582 = vmatmul.mubr.bf16.gmra.mrb[0].mxu0 %v2505
        %v2583 = vpop.f32.mrb[0].mxu0
        %v2584 = vadd.f32 0.0, %v2583
        %v2585 = vpop.f32.mrb[0].mxu0
        %v2586 = vadd.f32 0.0, %v2585
        %v2587 = vpop.f32.mrb[0].mxu0
        %v2588 = vadd.f32 0.0, %v2587
        %v2589 = vpop.f32.mrb[0].mxu0
        %v2590 = vadd.f32 0.0, %v2589
        %2591 = vmatprep.mubr.bf16.mxu0 %v2508
        %2592 = vmatmul.mubr.bf16.gmra.mrb[0].mxu0 %v2507
        %v2593 = vpop.f32.mrb[0].mxu0
        %v2594 = vadd.f32 0.0, %v2593
        %v2595 = vpop.f32.mrb[0].mxu0
        %v2596 = vadd.f32 0.0, %v2595
        %v2597 = vpop.f32.mrb[0].mxu0
        %v2598 = vadd.f32 0.0, %v2597
        %v2599 = vpop.f32.mrb[0].mxu0
        %v2600 = vadd.f32 0.0, %v2599
        %2601 = vdwg.mxu0
        %2602 = vmatprep.subr.bf16.mxu0 %v830
        %2603 = vmatpush1.bf16.msra.mxu0 %v829
        %2604 = vmatprep.subr.bf16.mxu0 %v834
        %2605 = vmatpush1.bf16.msra.mxu0 %v833
        %2606 = vmatprep.subr.bf16.mxu0 %v838
        %2607 = vmatpush1.bf16.msra.mxu0 %v837
        %2608 = vmatprep.subr.bf16.mxu0 %v842
        %2609 = vmatpush1.bf16.msra.mxu0 %v841
        %2610 = vmatprep.subr.bf16.mxu0 %v846
        %2611 = vmatpush1.bf16.msra.mxu0 %v845
        %2612 = vmatprep.subr.bf16.mxu0 %v850
        %2613 = vmatpush1.bf16.msra.mxu0 %v849
        %2614 = vmatprep.subr.bf16.mxu0 %v854
        %2615 = vmatpush1.bf16.msra.mxu0 %v853
        %2616 = vmatprep.subr.bf16.mxu0 %v858
        %2617 = vmatpush1.bf16.msra.mxu0 %v857
        %2618 = vmatprep.subr.bf16.mxu0 %v862
        %2619 = vmatpush1.bf16.msra.mxu0 %v861
        %2620 = vmatprep.subr.bf16.mxu0 %v866
        %2621 = vmatpush1.bf16.msra.mxu0 %v865
        %2622 = vmatprep.subr.bf16.mxu0 %v870
        %2623 = vmatpush1.bf16.msra.mxu0 %v869
        %2624 = vmatprep.subr.bf16.mxu0 %v874
        %2625 = vmatpush1.bf16.msra.mxu0 %v873
        %2626 = vmatprep.subr.bf16.mxu0 %v878
        %2627 = vmatpush1.bf16.msra.mxu0 %v877
        %2628 = vmatprep.subr.bf16.mxu0 %v882
        %2629 = vmatpush1.bf16.msra.mxu0 %v881
        %2630 = vmatprep.subr.bf16.mxu0 %v886
        %2631 = vmatpush1.bf16.msra.mxu0 %v885
        %2632 = vmatprep.subr.bf16.mxu0 %v890
        %2633 = vmatpush1.bf16.msra.mxu0 %v889
        %2634 = vmatprep.mubr.bf16.mxu0 %v2498
        %2635 = vmatmul.mubr.bf16.gmra.mrb[0].mxu0 %v2497
        %v2636 = vpop.f32.mrb[0].mxu0
        %v2637 = vadd.f32 0.0, %v2636
        %v2638 = vpop.f32.mrb[0].mxu0
        %v2639 = vadd.f32 0.0, %v2638
        %v2640 = vpop.f32.mrb[0].mxu0
        %v2641 = vadd.f32 0.0, %v2640
        %v2642 = vpop.f32.mrb[0].mxu0
        %v2643 = vadd.f32 0.0, %v2642
        %2644 = vmatprep.mubr.bf16.mxu0 %v2500
        %2645 = vmatmul.mubr.bf16.gmra.mrb[0].mxu0 %v2499
        %v2646 = vpop.f32.mrb[0].mxu0
        %v2647 = vadd.f32 0.0, %v2646
        %v2648 = vpop.f32.mrb[0].mxu0
        %v2649 = vadd.f32 0.0, %v2648
        %v2650 = vpop.f32.mrb[0].mxu0
        %v2651 = vadd.f32 0.0, %v2650
        %v2652 = vpop.f32.mrb[0].mxu0
        %v2653 = vadd.f32 0.0, %v2652
        %2654 = vmatprep.mubr.bf16.mxu0 %v2502
        %2655 = vmatmul.mubr.bf16.gmra.mrb[0].mxu0 %v2501
        %v2656 = vpop.f32.mrb[0].mxu0
        %v2657 = vadd.f32 0.0, %v2656
        %v2658 = vpop.f32.mrb[0].mxu0
        %v2659 = vadd.f32 0.0, %v2658
        %v2660 = vpop.f32.mrb[0].mxu0
        %v2661 = vadd.f32 0.0, %v2660
        %v2662 = vpop.f32.mrb[0].mxu0
        %v2663 = vadd.f32 0.0, %v2662
        %2664 = vmatprep.mubr.bf16.mxu0 %v2504
        %2665 = vmatmul.mubr.bf16.gmra.mrb[0].mxu0 %v2503
        %v2666 = vpop.f32.mrb[0].mxu0
        %v2667 = vadd.f32 0.0, %v2666
        %v2668 = vpop.f32.mrb[0].mxu0
        %v2669 = vadd.f32 0.0, %v2668
        %v2670 = vpop.f32.mrb[0].mxu0
        %v2671 = vadd.f32 0.0, %v2670
        %v2672 = vpop.f32.mrb[0].mxu0
        %v2673 = vadd.f32 0.0, %v2672
        %2674 = vmatprep.mubr.bf16.mxu0 %v2506
        %2675 = vmatmul.mubr.bf16.gmra.mrb[0].mxu0 %v2505
        %v2676 = vpop.f32.mrb[0].mxu0
        %v2677 = vadd.f32 0.0, %v2676
        %v2678 = vpop.f32.mrb[0].mxu0
        %v2679 = vadd.f32 0.0, %v2678
        %v2680 = vpop.f32.mrb[0].mxu0
        %v2681 = vadd.f32 0.0, %v2680
        %v2682 = vpop.f32.mrb[0].mxu0
        %v2683 = vadd.f32 0.0, %v2682
        %2684 = vmatprep.mubr.bf16.mxu0 %v2508
        %2685 = vmatmul.mubr.bf16.gmra.mrb[0].mxu0 %v2507
        %v2686 = vpop.f32.mrb[0].mxu0
        %v2687 = vadd.f32 0.0, %v2686
        %v2688 = vpop.f32.mrb[0].mxu0
        %v2689 = vadd.f32 0.0, %v2688
        %v2690 = vpop.f32.mrb[0].mxu0
        %v2691 = vadd.f32 0.0, %v2690
        %v2692 = vpop.f32.mrb[0].mxu0
        %v2693 = vadd.f32 0.0, %v2692
        %2694 = vdwg.mxu0
        %v2695 = vld [vmem:[%s6] sm:$0xf]
        %v2696 = vld [vmem:[%s6 + $0x4] sm:$0xf]
        %v2697 = vld [vmem:[%s6 + $0x8] sm:$0xf]
        %v2698 = vld [vmem:[%s6 + $0xc] sm:$0xf]
        %v2699 = vld [vmem:[%s6 + $0x10] sm:$0xf]
        %v2700 = vld [vmem:[%s6 + $0x14] sm:$0xf]
        %v2701 = vld [vmem:[%s6 + $0x18] sm:$0xf]
        %v2702 = vld [vmem:[%s6 + $0x1c] sm:$0xf]
        %v2703 = vld [vmem:[%s6 + $0x20] sm:$0xf]
        %v2704 = vld [vmem:[%s6 + $0x24] sm:$0xf]
        %v2705 = vld [vmem:[%s6 + $0x28] sm:$0xf]
        %v2706 = vld [vmem:[%s6 + $0x2c] sm:$0xf]
        %v2707 = vpack.c.bf16 %v2548, %v2544
        %v2708 = vpack.c.bf16 %v2550, %v2546
        %v2709 = vpack.c.bf16 %v2558, %v2554
        %v2710 = vpack.c.bf16 %v2560, %v2556
        %v2711 = vpack.c.bf16 %v2568, %v2564
        %v2712 = vpack.c.bf16 %v2570, %v2566
        %v2713 = vpack.c.bf16 %v2578, %v2574
        %v2714 = vpack.c.bf16 %v2580, %v2576
        %v2715 = vpack.c.bf16 %v2588, %v2584
        %v2716 = vpack.c.bf16 %v2590, %v2586
        %v2717 = vpack.c.bf16 %v2598, %v2594
        %v2718 = vpack.c.bf16 %v2600, %v2596
        %s2719 = scalar_lea.vmem %s6, 48
        %v2720 = vld [vmem:[%s2719] sm:$0xf]
        %v2721 = vld [vmem:[%s2719 + $0x4] sm:$0xf]
        %v2722 = vld [vmem:[%s2719 + $0x8] sm:$0xf]
        %v2723 = vld [vmem:[%s2719 + $0xc] sm:$0xf]
        %v2724 = vld [vmem:[%s2719 + $0x10] sm:$0xf]
        %v2725 = vld [vmem:[%s2719 + $0x14] sm:$0xf]
        %v2726 = vld [vmem:[%s2719 + $0x18] sm:$0xf]
        %v2727 = vld [vmem:[%s2719 + $0x1c] sm:$0xf]
        %v2728 = vld [vmem:[%s2719 + $0x20] sm:$0xf]
        %v2729 = vld [vmem:[%s2719 + $0x24] sm:$0xf]
        %v2730 = vld [vmem:[%s2719 + $0x28] sm:$0xf]
        %v2731 = vld [vmem:[%s2719 + $0x2c] sm:$0xf]
        %v2744 = vunpack.c.l.b16 %v2720
        %v2745 = vunpack.c.l.b16 %v2721
        %v2746 = vunpack.c.l.b16 %v2722
        %v2747 = vunpack.c.l.b16 %v2723
        %v2748 = vunpack.c.l.b16 %v2724
        %v2749 = vunpack.c.l.b16 %v2725
        %v2750 = vunpack.c.l.b16 %v2726
        %v2751 = vunpack.c.l.b16 %v2727
        %v2752 = vunpack.c.l.b16 %v2728
        %v2753 = vunpack.c.l.b16 %v2729
        %v2754 = vunpack.c.l.b16 %v2730
        %v2755 = vunpack.c.l.b16 %v2731
        %v2756 = vpack.c.b16 %v2745, %v2744
        %v2757 = vpack.c.b16 %v2747, %v2746
        %v2758 = vpack.c.b16 %v2749, %v2748
        %v2759 = vpack.c.b16 %v2751, %v2750
        %v2760 = vpack.c.b16 %v2753, %v2752
        %v2761 = vpack.c.b16 %v2755, %v2754
        %v2763 = vsel %vm1934, %v2756, 0
        %v2766 = vsel %vm1934, %v2757, 0
        %v2769 = vsel %vm1934, %v2758, 0
        %v2772 = vsel %vm1934, %v2759, 0
        %v2775 = vsel %vm1934, %v2760, 0
        %v2778 = vsel %vm1934, %v2761, 0
        %2780 = vmatprep.subr.bf16.mxu0 %v2708
        %2781 = vmatpush1.bf16.msra.mxu0 %v2707
        %2782 = vmatprep.subr.bf16.mxu0 %v2710
        %2783 = vmatpush1.bf16.msra.mxu0 %v2709
        %2784 = vmatprep.subr.bf16.mxu0 %v2712
        %2785 = vmatpush1.bf16.msra.mxu0 %v2711
        %2786 = vmatprep.subr.bf16.mxu0 %v2714
        %2787 = vmatpush1.bf16.msra.mxu0 %v2713
        %2788 = vmatprep.subr.bf16.mxu0 %v2716
        %2789 = vmatpush1.bf16.msra.mxu0 %v2715
        %2790 = vmatprep.subr.bf16.mxu0 %v2718
        %2791 = vmatpush1.bf16.msra.mxu0 %v2717
        %2792 = vmatprep.subr.bf16.mxu0 0
        %2793 = vmatpush1.bf16.msra.mxu0 0
        %2794 = vmatprep.subr.bf16.mxu0 0
        %2795 = vmatpush1.bf16.msra.mxu0 0
        %2796 = vmatprep.subr.bf16.mxu0 0
        %2797 = vmatpush1.bf16.msra.mxu0 0
        %2798 = vmatprep.subr.bf16.mxu0 0
        %2799 = vmatpush1.bf16.msra.mxu0 0
        %2800 = vmatprep.subr.bf16.mxu0 0
        %2801 = vmatpush1.bf16.msra.mxu0 0
        %2802 = vmatprep.subr.bf16.mxu0 0
        %2803 = vmatpush1.bf16.msra.mxu0 0
        %2804 = vmatprep.subr.bf16.mxu0 0
        %2805 = vmatpush1.bf16.msra.mxu0 0
        %2806 = vmatprep.subr.bf16.mxu0 0
        %2807 = vmatpush1.bf16.msra.mxu0 0
        %2808 = vmatprep.subr.bf16.mxu0 0
        %2809 = vmatpush1.bf16.msra.mxu0 0
        %2810 = vmatprep.subr.bf16.mxu0 0
        %2811 = vmatpush1.bf16.msra.mxu0 0
        %2812 = vmatprep.mubr.bf16.mxu0 0
        %2813 = vmatmul.mubr.bf16.gmra.mrb[0].mxu0 %v2763
        %v2814 = vpop.f32.mrb[0].mxu0
        %v2815 = vadd.f32 0.0, %v2814
        %v2816 = vpop.f32.mrb[0].mxu0
        %v2817 = vadd.f32 0.0, %v2816
        %v2818 = vpop.f32.mrb[0].mxu0
        %v2819 = vadd.f32 0.0, %v2818
        %v2820 = vpop.f32.mrb[0].mxu0
        %v2821 = vadd.f32 0.0, %v2820
        %2822 = vmatprep.mubr.bf16.mxu0 0
        %2823 = vmatmul.mubr.bf16.gmra.mrb[0].mxu0 %v2766
        %v2824 = vpop.f32.mrb[0].mxu0
        %v2825 = vadd.f32 0.0, %v2824
        %v2826 = vpop.f32.mrb[0].mxu0
        %v2827 = vadd.f32 0.0, %v2826
        %v2828 = vpop.f32.mrb[0].mxu0
        %v2829 = vadd.f32 0.0, %v2828
        %v2830 = vpop.f32.mrb[0].mxu0
        %v2831 = vadd.f32 0.0, %v2830
        %2832 = vmatprep.mubr.bf16.mxu0 0
        %2833 = vmatmul.mubr.bf16.gmra.mrb[0].mxu0 %v2769
        %v2834 = vpop.f32.mrb[0].mxu0
        %v2835 = vadd.f32 0.0, %v2834
        %v2836 = vpop.f32.mrb[0].mxu0
        %v2837 = vadd.f32 0.0, %v2836
        %v2838 = vpop.f32.mrb[0].mxu0
        %v2839 = vadd.f32 0.0, %v2838
        %v2840 = vpop.f32.mrb[0].mxu0
        %v2841 = vadd.f32 0.0, %v2840
        %2842 = vmatprep.mubr.bf16.mxu0 0
        %2843 = vmatmul.mubr.bf16.gmra.mrb[0].mxu0 %v2772
        %v2844 = vpop.f32.mrb[0].mxu0
        %v2845 = vadd.f32 0.0, %v2844
        %v2846 = vpop.f32.mrb[0].mxu0
        %v2847 = vadd.f32 0.0, %v2846
        %v2848 = vpop.f32.mrb[0].mxu0
        %v2849 = vadd.f32 0.0, %v2848
        %v2850 = vpop.f32.mrb[0].mxu0
        %v2851 = vadd.f32 0.0, %v2850
        %2852 = vmatprep.mubr.bf16.mxu0 0
        %2853 = vmatmul.mubr.bf16.gmra.mrb[0].mxu0 %v2775
        %v2854 = vpop.f32.mrb[0].mxu0
        %v2855 = vadd.f32 0.0, %v2854
        %v2856 = vpop.f32.mrb[0].mxu0
        %v2857 = vadd.f32 0.0, %v2856
        %v2858 = vpop.f32.mrb[0].mxu0
        %v2859 = vadd.f32 0.0, %v2858
        %v2860 = vpop.f32.mrb[0].mxu0
        %v2861 = vadd.f32 0.0, %v2860
        %2862 = vmatprep.mubr.bf16.mxu0 0
        %2863 = vmatmul.mubr.bf16.gmra.mrb[0].mxu0 %v2778
        %v2864 = vpop.f32.mrb[0].mxu0
        %v2865 = vadd.f32 0.0, %v2864
        %v2866 = vpop.f32.mrb[0].mxu0
        %v2867 = vadd.f32 0.0, %v2866
        %v2868 = vpop.f32.mrb[0].mxu0
        %v2869 = vadd.f32 0.0, %v2868
        %v2870 = vpop.f32.mrb[0].mxu0
        %v2871 = vadd.f32 0.0, %v2870
        %2872 = vdwg.mxu0
        %v2885 = vunpack.c.l.b16 %v2695
        %v2886 = vunpack.c.l.b16 %v2696
        %v2887 = vunpack.c.l.b16 %v2697
        %v2888 = vunpack.c.l.b16 %v2698
        %v2889 = vunpack.c.l.b16 %v2699
        %v2890 = vunpack.c.l.b16 %v2700
        %v2891 = vunpack.c.l.b16 %v2701
        %v2892 = vunpack.c.l.b16 %v2702
        %v2893 = vunpack.c.l.b16 %v2703
        %v2894 = vunpack.c.l.b16 %v2704
        %v2895 = vunpack.c.l.b16 %v2705
        %v2896 = vunpack.c.l.b16 %v2706
        %v2897 = vpack.c.b16 %v2886, %v2885
        %v2898 = vpack.c.b16 %v2888, %v2887
        %v2899 = vpack.c.b16 %v2890, %v2889
        %v2900 = vpack.c.b16 %v2892, %v2891
        %v2901 = vpack.c.b16 %v2894, %v2893
        %v2902 = vpack.c.b16 %v2896, %v2895
        %v2904 = vsel %vm1934, %v2897, 0
        %v2907 = vsel %vm1934, %v2898, 0
        %v2910 = vsel %vm1934, %v2899, 0
        %v2913 = vsel %vm1934, %v2900, 0
        %v2916 = vsel %vm1934, %v2901, 0
        %v2919 = vsel %vm1934, %v2902, 0
        %2921 = vmatprep.subr.bf16.mxu0 %v2498
        %2922 = vmatpush1.bf16.msra.mxu0 %v2497
        %2923 = vmatprep.subr.bf16.mxu0 %v2500
        %2924 = vmatpush1.bf16.msra.mxu0 %v2499
        %2925 = vmatprep.subr.bf16.mxu0 %v2502
        %2926 = vmatpush1.bf16.msra.mxu0 %v2501
        %2927 = vmatprep.subr.bf16.mxu0 %v2504
        %2928 = vmatpush1.bf16.msra.mxu0 %v2503
        %2929 = vmatprep.subr.bf16.mxu0 %v2506
        %2930 = vmatpush1.bf16.msra.mxu0 %v2505
        %2931 = vmatprep.subr.bf16.mxu0 %v2508
        %2932 = vmatpush1.bf16.msra.mxu0 %v2507
        %2933 = vmatprep.subr.bf16.mxu0 0
        %2934 = vmatpush1.bf16.msra.mxu0 0
        %2935 = vmatprep.subr.bf16.mxu0 0
        %2936 = vmatpush1.bf16.msra.mxu0 0
        %2937 = vmatprep.subr.bf16.mxu0 0
        %2938 = vmatpush1.bf16.msra.mxu0 0
        %2939 = vmatprep.subr.bf16.mxu0 0
        %2940 = vmatpush1.bf16.msra.mxu0 0
        %2941 = vmatprep.subr.bf16.mxu0 0
        %2942 = vmatpush1.bf16.msra.mxu0 0
        %2943 = vmatprep.subr.bf16.mxu0 0
        %2944 = vmatpush1.bf16.msra.mxu0 0
        %2945 = vmatprep.subr.bf16.mxu0 0
        %2946 = vmatpush1.bf16.msra.mxu0 0
        %2947 = vmatprep.subr.bf16.mxu0 0
        %2948 = vmatpush1.bf16.msra.mxu0 0
        %2949 = vmatprep.subr.bf16.mxu0 0
        %2950 = vmatpush1.bf16.msra.mxu0 0
        %2951 = vmatprep.subr.bf16.mxu0 0
        %2952 = vmatpush1.bf16.msra.mxu0 0
        %2953 = vmatprep.mubr.bf16.mxu0 0
        %2954 = vmatmul.mubr.bf16.gmra.mrb[0].mxu0 %v2904
        %v2955 = vpop.f32.mrb[0].mxu0
        %v2956 = vadd.f32 %v2815, %v2955
        %v2957 = vpop.f32.mrb[0].mxu0
        %v2958 = vadd.f32 %v2817, %v2957
        %v2959 = vpop.f32.mrb[0].mxu0
        %v2960 = vadd.f32 %v2819, %v2959
        %v2961 = vpop.f32.mrb[0].mxu0
        %v2962 = vadd.f32 %v2821, %v2961
        %2963 = vmatprep.mubr.bf16.mxu0 0
        %2964 = vmatmul.mubr.bf16.gmra.mrb[0].mxu0 %v2907
        %v2965 = vpop.f32.mrb[0].mxu0
        %v2966 = vadd.f32 %v2825, %v2965
        %v2967 = vpop.f32.mrb[0].mxu0
        %v2968 = vadd.f32 %v2827, %v2967
        %v2969 = vpop.f32.mrb[0].mxu0
        %v2970 = vadd.f32 %v2829, %v2969
        %v2971 = vpop.f32.mrb[0].mxu0
        %v2972 = vadd.f32 %v2831, %v2971
        %2973 = vmatprep.mubr.bf16.mxu0 0
        %2974 = vmatmul.mubr.bf16.gmra.mrb[0].mxu0 %v2910
        %v2975 = vpop.f32.mrb[0].mxu0
        %v2976 = vadd.f32 %v2835, %v2975
        %v2977 = vpop.f32.mrb[0].mxu0
        %v2978 = vadd.f32 %v2837, %v2977
        %v2979 = vpop.f32.mrb[0].mxu0
        %v2980 = vadd.f32 %v2839, %v2979
        %v2981 = vpop.f32.mrb[0].mxu0
        %v2982 = vadd.f32 %v2841, %v2981
        %2983 = vmatprep.mubr.bf16.mxu0 0
        %2984 = vmatmul.mubr.bf16.gmra.mrb[0].mxu0 %v2913
        %v2985 = vpop.f32.mrb[0].mxu0
        %v2986 = vadd.f32 %v2845, %v2985
        %v2987 = vpop.f32.mrb[0].mxu0
        %v2988 = vadd.f32 %v2847, %v2987
        %v2989 = vpop.f32.mrb[0].mxu0
        %v2990 = vadd.f32 %v2849, %v2989
        %v2991 = vpop.f32.mrb[0].mxu0
        %v2992 = vadd.f32 %v2851, %v2991
        %2993 = vmatprep.mubr.bf16.mxu0 0
        %2994 = vmatmul.mubr.bf16.gmra.mrb[0].mxu0 %v2916
        %v2995 = vpop.f32.mrb[0].mxu0
        %v2996 = vadd.f32 %v2855, %v2995
        %v2997 = vpop.f32.mrb[0].mxu0
        %v2998 = vadd.f32 %v2857, %v2997
        %v2999 = vpop.f32.mrb[0].mxu0
        %v3000 = vadd.f32 %v2859, %v2999
        %v3001 = vpop.f32.mrb[0].mxu0
        %v3002 = vadd.f32 %v2861, %v3001
        %3003 = vmatprep.mubr.bf16.mxu0 0
        %3004 = vmatmul.mubr.bf16.gmra.mrb[0].mxu0 %v2919
        %v3005 = vpop.f32.mrb[0].mxu0
        %v3006 = vadd.f32 %v2865, %v3005
        %v3007 = vpop.f32.mrb[0].mxu0
        %v3008 = vadd.f32 %v2867, %v3007
        %v3009 = vpop.f32.mrb[0].mxu0
        %v3010 = vadd.f32 %v2869, %v3009
        %v3011 = vpop.f32.mrb[0].mxu0
        %v3012 = vadd.f32 %v2871, %v3011
        %3013 = vdwg.mxu0
        %v3014 = vpack.c.bf16 %v2641, %v2637
        %v3015 = vpack.c.bf16 %v2643, %v2639
        %v3016 = vpack.c.bf16 %v2651, %v2647
        %v3017 = vpack.c.bf16 %v2653, %v2649
        %v3018 = vpack.c.bf16 %v2661, %v2657
        %v3019 = vpack.c.bf16 %v2663, %v2659
        %v3020 = vpack.c.bf16 %v2671, %v2667
        %v3021 = vpack.c.bf16 %v2673, %v2669
        %v3022 = vpack.c.bf16 %v2681, %v2677
        %v3023 = vpack.c.bf16 %v2683, %v2679
        %v3024 = vpack.c.bf16 %v2691, %v2687
        %v3025 = vpack.c.bf16 %v2693, %v2689
        %s3026 = scalar_lea.vmem %s6, 96
        %v3027 = vld [vmem:[%s3026] sm:$0xf]
        %v3028 = vld [vmem:[%s3026 + $0x4] sm:$0xf]
        %v3029 = vld [vmem:[%s3026 + $0x8] sm:$0xf]
        %v3030 = vld [vmem:[%s3026 + $0xc] sm:$0xf]
        %v3031 = vld [vmem:[%s3026 + $0x10] sm:$0xf]
        %v3032 = vld [vmem:[%s3026 + $0x14] sm:$0xf]
        %v3033 = vld [vmem:[%s3026 + $0x18] sm:$0xf]
        %v3034 = vld [vmem:[%s3026 + $0x1c] sm:$0xf]
        %v3035 = vld [vmem:[%s3026 + $0x20] sm:$0xf]
        %v3036 = vld [vmem:[%s3026 + $0x24] sm:$0xf]
        %v3037 = vld [vmem:[%s3026 + $0x28] sm:$0xf]
        %v3038 = vld [vmem:[%s3026 + $0x2c] sm:$0xf]
        %v3051 = vunpack.c.l.b16 %v3027
        %v3052 = vunpack.c.l.b16 %v3028
        %v3053 = vunpack.c.l.b16 %v3029
        %v3054 = vunpack.c.l.b16 %v3030
        %v3055 = vunpack.c.l.b16 %v3031
        %v3056 = vunpack.c.l.b16 %v3032
        %v3057 = vunpack.c.l.b16 %v3033
        %v3058 = vunpack.c.l.b16 %v3034
        %v3059 = vunpack.c.l.b16 %v3035
        %v3060 = vunpack.c.l.b16 %v3036
        %v3061 = vunpack.c.l.b16 %v3037
        %v3062 = vunpack.c.l.b16 %v3038
        %v3063 = vpack.c.b16 %v3052, %v3051
        %v3064 = vpack.c.b16 %v3054, %v3053
        %v3065 = vpack.c.b16 %v3056, %v3055
        %v3066 = vpack.c.b16 %v3058, %v3057
        %v3067 = vpack.c.b16 %v3060, %v3059
        %v3068 = vpack.c.b16 %v3062, %v3061
        %v3070 = vsel %vm1934, %v3063, 0
        %v3073 = vsel %vm1934, %v3064, 0
        %v3076 = vsel %vm1934, %v3065, 0
        %v3079 = vsel %vm1934, %v3066, 0
        %v3082 = vsel %vm1934, %v3067, 0
        %v3085 = vsel %vm1934, %v3068, 0
        %3087 = vmatprep.subr.bf16.mxu0 %v3015
        %3088 = vmatpush1.bf16.msra.mxu0 %v3014
        %3089 = vmatprep.subr.bf16.mxu0 %v3017
        %3090 = vmatpush1.bf16.msra.mxu0 %v3016
        %3091 = vmatprep.subr.bf16.mxu0 %v3019
        %3092 = vmatpush1.bf16.msra.mxu0 %v3018
        %3093 = vmatprep.subr.bf16.mxu0 %v3021
        %3094 = vmatpush1.bf16.msra.mxu0 %v3020
        %3095 = vmatprep.subr.bf16.mxu0 %v3023
        %3096 = vmatpush1.bf16.msra.mxu0 %v3022
        %3097 = vmatprep.subr.bf16.mxu0 %v3025
        %3098 = vmatpush1.bf16.msra.mxu0 %v3024
        %3099 = vmatprep.subr.bf16.mxu0 0
        %3100 = vmatpush1.bf16.msra.mxu0 0
        %3101 = vmatprep.subr.bf16.mxu0 0
        %3102 = vmatpush1.bf16.msra.mxu0 0
        %3103 = vmatprep.subr.bf16.mxu0 0
        %3104 = vmatpush1.bf16.msra.mxu0 0
        %3105 = vmatprep.subr.bf16.mxu0 0
        %3106 = vmatpush1.bf16.msra.mxu0 0
        %3107 = vmatprep.subr.bf16.mxu0 0
        %3108 = vmatpush1.bf16.msra.mxu0 0
        %3109 = vmatprep.subr.bf16.mxu0 0
        %3110 = vmatpush1.bf16.msra.mxu0 0
        %3111 = vmatprep.subr.bf16.mxu0 0
        %3112 = vmatpush1.bf16.msra.mxu0 0
        %3113 = vmatprep.subr.bf16.mxu0 0
        %3114 = vmatpush1.bf16.msra.mxu0 0
        %3115 = vmatprep.subr.bf16.mxu0 0
        %3116 = vmatpush1.bf16.msra.mxu0 0
        %3117 = vmatprep.subr.bf16.mxu0 0
        %3118 = vmatpush1.bf16.msra.mxu0 0
        %3119 = vmatprep.mubr.bf16.mxu0 0
        %3120 = vmatmul.mubr.bf16.gmra.mrb[0].mxu0 %v3070
        %v3121 = vpop.f32.mrb[0].mxu0
        %v3122 = vadd.f32 0.0, %v3121
        %v3123 = vpop.f32.mrb[0].mxu0
        %v3124 = vadd.f32 0.0, %v3123
        %v3125 = vpop.f32.mrb[0].mxu0
        %v3126 = vadd.f32 0.0, %v3125
        %v3127 = vpop.f32.mrb[0].mxu0
        %v3128 = vadd.f32 0.0, %v3127
        %3129 = vmatprep.mubr.bf16.mxu0 0
        %3130 = vmatmul.mubr.bf16.gmra.mrb[0].mxu0 %v3073
        %v3131 = vpop.f32.mrb[0].mxu0
        %v3132 = vadd.f32 0.0, %v3131
        %v3133 = vpop.f32.mrb[0].mxu0
        %v3134 = vadd.f32 0.0, %v3133
        %v3135 = vpop.f32.mrb[0].mxu0
        %v3136 = vadd.f32 0.0, %v3135
        %v3137 = vpop.f32.mrb[0].mxu0
        %v3138 = vadd.f32 0.0, %v3137
        %3139 = vmatprep.mubr.bf16.mxu0 0
        %3140 = vmatmul.mubr.bf16.gmra.mrb[0].mxu0 %v3076
        %v3141 = vpop.f32.mrb[0].mxu0
        %v3142 = vadd.f32 0.0, %v3141
        %v3143 = vpop.f32.mrb[0].mxu0
        %v3144 = vadd.f32 0.0, %v3143
        %v3145 = vpop.f32.mrb[0].mxu0
        %v3146 = vadd.f32 0.0, %v3145
        %v3147 = vpop.f32.mrb[0].mxu0
        %v3148 = vadd.f32 0.0, %v3147
        %3149 = vmatprep.mubr.bf16.mxu0 0
        %3150 = vmatmul.mubr.bf16.gmra.mrb[0].mxu0 %v3079
        %v3151 = vpop.f32.mrb[0].mxu0
        %v3152 = vadd.f32 0.0, %v3151
        %v3153 = vpop.f32.mrb[0].mxu0
        %v3154 = vadd.f32 0.0, %v3153
        %v3155 = vpop.f32.mrb[0].mxu0
        %v3156 = vadd.f32 0.0, %v3155
        %v3157 = vpop.f32.mrb[0].mxu0
        %v3158 = vadd.f32 0.0, %v3157
        %3159 = vmatprep.mubr.bf16.mxu0 0
        %3160 = vmatmul.mubr.bf16.gmra.mrb[0].mxu0 %v3082
        %v3161 = vpop.f32.mrb[0].mxu0
        %v3162 = vadd.f32 0.0, %v3161
        %v3163 = vpop.f32.mrb[0].mxu0
        %v3164 = vadd.f32 0.0, %v3163
        %v3165 = vpop.f32.mrb[0].mxu0
        %v3166 = vadd.f32 0.0, %v3165
        %v3167 = vpop.f32.mrb[0].mxu0
        %v3168 = vadd.f32 0.0, %v3167
        %3169 = vmatprep.mubr.bf16.mxu0 0
        %3170 = vmatmul.mubr.bf16.gmra.mrb[0].mxu0 %v3085
        %v3171 = vpop.f32.mrb[0].mxu0
        %v3172 = vadd.f32 0.0, %v3171
        %v3173 = vpop.f32.mrb[0].mxu0
        %v3174 = vadd.f32 0.0, %v3173
        %v3175 = vpop.f32.mrb[0].mxu0
        %v3176 = vadd.f32 0.0, %v3175
        %v3177 = vpop.f32.mrb[0].mxu0
        %v3178 = vadd.f32 0.0, %v3177
        %3179 = vdwg.mxu0
        %v3180 = vadd.f32 %v2956, %v3122
        %v3181 = vadd.f32 %v2958, %v3124
        %v3182 = vadd.f32 %v2960, %v3126
        %v3183 = vadd.f32 %v2962, %v3128
        %v3184 = vadd.f32 %v2966, %v3132
        %v3185 = vadd.f32 %v2968, %v3134
        %v3186 = vadd.f32 %v2970, %v3136
        %v3187 = vadd.f32 %v2972, %v3138
        %v3188 = vadd.f32 %v2976, %v3142
        %v3189 = vadd.f32 %v2978, %v3144
        %v3190 = vadd.f32 %v2980, %v3146
        %v3191 = vadd.f32 %v2982, %v3148
        %v3192 = vadd.f32 %v2986, %v3152
        %v3193 = vadd.f32 %v2988, %v3154
        %v3194 = vadd.f32 %v2990, %v3156
        %v3195 = vadd.f32 %v2992, %v3158
        %v3196 = vadd.f32 %v2996, %v3162
        %v3197 = vadd.f32 %v2998, %v3164
        %v3198 = vadd.f32 %v3000, %v3166
        %v3199 = vadd.f32 %v3002, %v3168
        %v3200 = vadd.f32 %v3006, %v3172
        %v3201 = vadd.f32 %v3008, %v3174
        %v3202 = vadd.f32 %v3010, %v3176
        %v3203 = vadd.f32 %v3012, %v3178
        %v3204 = vld [vmem:[%s7] sm:$0xff]
        %v3205 = vld [vmem:[%s7 + $0x8] sm:$0xff]
        %v3206 = vld [vmem:[%s7 + $0x10] sm:$0xff]
        %v3207 = vld [vmem:[%s7 + $0x18] sm:$0xff]
        %v3208 = vld [vmem:[%s7 + $0x20] sm:$0xff]
        %v3209 = vld [vmem:[%s7 + $0x28] sm:$0xff]
        %v3210 = vld [vmem:[%s7 + $0x30] sm:$0xff]
        %v3211 = vld [vmem:[%s7 + $0x38] sm:$0xff]
        %v3212 = vld [vmem:[%s7 + $0x40] sm:$0xff]
        %v3213 = vld [vmem:[%s7 + $0x48] sm:$0xff]
        %v3214 = vld [vmem:[%s7 + $0x50] sm:$0xff]
        %v3215 = vld [vmem:[%s7 + $0x58] sm:$0xff]
        %3217 = vset.pattern.permute.xlu0 0
        %3218 = vperm.xlu0 %3217, %v3204
        %v3219 = vpop.permute.xlu0 %3218
        %3222 = vset.pattern.permute.xlu0 0
        %3223 = vperm.xlu0 %3222, %v3205
        %v3224 = vpop.permute.xlu0 %3223
        %3227 = vset.pattern.permute.xlu0 0
        %3228 = vperm.xlu0 %3227, %v3206
        %v3229 = vpop.permute.xlu0 %3228
        %3232 = vset.pattern.permute.xlu0 0
        %3233 = vperm.xlu0 %3232, %v3207
        %v3234 = vpop.permute.xlu0 %3233
        %3237 = vset.pattern.permute.xlu0 0
        %3238 = vperm.xlu0 %3237, %v3208
        %v3239 = vpop.permute.xlu0 %3238
        %3242 = vset.pattern.permute.xlu0 0
        %3243 = vperm.xlu0 %3242, %v3209
        %v3244 = vpop.permute.xlu0 %3243
        %3247 = vset.pattern.permute.xlu0 0
        %3248 = vperm.xlu0 %3247, %v3210
        %v3249 = vpop.permute.xlu0 %3248
        %3252 = vset.pattern.permute.xlu0 0
        %3253 = vperm.xlu0 %3252, %v3211
        %v3254 = vpop.permute.xlu0 %3253
        %3257 = vset.pattern.permute.xlu0 0
        %3258 = vperm.xlu0 %3257, %v3212
        %v3259 = vpop.permute.xlu0 %3258
        %3262 = vset.pattern.permute.xlu0 0
        %3263 = vperm.xlu0 %3262, %v3213
        %v3264 = vpop.permute.xlu0 %3263
        %3267 = vset.pattern.permute.xlu0 0
        %3268 = vperm.xlu0 %3267, %v3214
        %v3269 = vpop.permute.xlu0 %3268
        %3272 = vset.pattern.permute.xlu0 0
        %3273 = vperm.xlu0 %3272, %v3215
        %v3274 = vpop.permute.xlu0 %3273
        %v3276 = vadd.f32 %v3180, %v3219
        %v3277 = vadd.f32 %v3181, %v3219
        %v3278 = vadd.f32 %v3182, %v3224
        %v3279 = vadd.f32 %v3183, %v3224
        %v3280 = vadd.f32 %v3184, %v3229
        %v3281 = vadd.f32 %v3185, %v3229
        %v3282 = vadd.f32 %v3186, %v3234
        %v3283 = vadd.f32 %v3187, %v3234
        %v3284 = vadd.f32 %v3188, %v3239
        %v3285 = vadd.f32 %v3189, %v3239
        %v3286 = vadd.f32 %v3190, %v3244
        %v3287 = vadd.f32 %v3191, %v3244
        %v3288 = vadd.f32 %v3192, %v3249
        %v3289 = vadd.f32 %v3193, %v3249
        %v3290 = vadd.f32 %v3194, %v3254
        %v3291 = vadd.f32 %v3195, %v3254
        %v3292 = vadd.f32 %v3196, %v3259
        %v3293 = vadd.f32 %v3197, %v3259
        %v3294 = vadd.f32 %v3198, %v3264
        %v3295 = vadd.f32 %v3199, %v3264
        %v3296 = vadd.f32 %v3200, %v3269
        %v3297 = vadd.f32 %v3201, %v3269
        %v3298 = vadd.f32 %v3202, %v3274
        %v3299 = vadd.f32 %v3203, %v3274
        %v3300 = vmax.f32 %v3276, 0.0
        %v3301 = vmax.f32 %v3277, 0.0
        %v3302 = vmax.f32 %v3278, 0.0
        %v3303 = vmax.f32 %v3279, 0.0
        %v3304 = vmax.f32 %v3280, 0.0
        %v3305 = vmax.f32 %v3281, 0.0
        %v3306 = vmax.f32 %v3282, 0.0
        %v3307 = vmax.f32 %v3283, 0.0
        %v3308 = vmax.f32 %v3284, 0.0
        %v3309 = vmax.f32 %v3285, 0.0
        %v3310 = vmax.f32 %v3286, 0.0
        %v3311 = vmax.f32 %v3287, 0.0
        %v3312 = vmax.f32 %v3288, 0.0
        %v3313 = vmax.f32 %v3289, 0.0
        %v3314 = vmax.f32 %v3290, 0.0
        %v3315 = vmax.f32 %v3291, 0.0
        %v3316 = vmax.f32 %v3292, 0.0
        %v3317 = vmax.f32 %v3293, 0.0
        %v3318 = vmax.f32 %v3294, 0.0
        %v3319 = vmax.f32 %v3295, 0.0
        %v3320 = vmax.f32 %v3296, 0.0
        %v3321 = vmax.f32 %v3297, 0.0
        %v3322 = vmax.f32 %v3298, 0.0
        %v3323 = vmax.f32 %v3299, 0.0
        %v3324 = vpack.c.bf16 %v3302, %v3300
        %v3325 = vpack.c.bf16 %v3303, %v3301
        %v3326 = vpack.c.bf16 %v3306, %v3304
        %v3327 = vpack.c.bf16 %v3307, %v3305
        %v3328 = vpack.c.bf16 %v3310, %v3308
        %v3329 = vpack.c.bf16 %v3311, %v3309
        %v3330 = vpack.c.bf16 %v3314, %v3312
        %v3331 = vpack.c.bf16 %v3315, %v3313
        %v3332 = vpack.c.bf16 %v3318, %v3316
        %v3333 = vpack.c.bf16 %v3319, %v3317
        %v3334 = vpack.c.bf16 %v3322, %v3320
        %v3335 = vpack.c.bf16 %v3323, %v3321
        %3336 = vmatprep.subr.bf16.mxu0 %v828
        %3337 = vmatpush1.bf16.msra.mxu0 %v827
        %3338 = vmatprep.subr.bf16.mxu0 %v832
        %3339 = vmatpush1.bf16.msra.mxu0 %v831
        %3340 = vmatprep.subr.bf16.mxu0 %v836
        %3341 = vmatpush1.bf16.msra.mxu0 %v835
        %3342 = vmatprep.subr.bf16.mxu0 %v840
        %3343 = vmatpush1.bf16.msra.mxu0 %v839
        %3344 = vmatprep.subr.bf16.mxu0 %v844
        %3345 = vmatpush1.bf16.msra.mxu0 %v843
        %3346 = vmatprep.subr.bf16.mxu0 %v848
        %3347 = vmatpush1.bf16.msra.mxu0 %v847
        %3348 = vmatprep.subr.bf16.mxu0 %v852
        %3349 = vmatpush1.bf16.msra.mxu0 %v851
        %3350 = vmatprep.subr.bf16.mxu0 %v856
        %3351 = vmatpush1.bf16.msra.mxu0 %v855
        %3352 = vmatprep.subr.bf16.mxu0 %v860
        %3353 = vmatpush1.bf16.msra.mxu0 %v859
        %3354 = vmatprep.subr.bf16.mxu0 %v864
        %3355 = vmatpush1.bf16.msra.mxu0 %v863
        %3356 = vmatprep.subr.bf16.mxu0 %v868
        %3357 = vmatpush1.bf16.msra.mxu0 %v867
        %3358 = vmatprep.subr.bf16.mxu0 %v872
        %3359 = vmatpush1.bf16.msra.mxu0 %v871
        %3360 = vmatprep.subr.bf16.mxu0 %v876
        %3361 = vmatpush1.bf16.msra.mxu0 %v875
        %3362 = vmatprep.subr.bf16.mxu0 %v880
        %3363 = vmatpush1.bf16.msra.mxu0 %v879
        %3364 = vmatprep.subr.bf16.mxu0 %v884
        %3365 = vmatpush1.bf16.msra.mxu0 %v883
        %3366 = vmatprep.subr.bf16.mxu0 %v888
        %3367 = vmatpush1.bf16.msra.mxu0 %v887
        %3368 = vmatprep.mubr.bf16.mxu0 %v3325
        %3369 = vmatmul.mubr.bf16.gmra.mrb[0].mxu0 %v3324
        %v3370 = vpop.f32.mrb[0].mxu0
        %v3371 = vadd.f32 0.0, %v3370
        %v3372 = vpop.f32.mrb[0].mxu0
        %v3373 = vadd.f32 0.0, %v3372
        %v3374 = vpop.f32.mrb[0].mxu0
        %v3375 = vadd.f32 0.0, %v3374
        %v3376 = vpop.f32.mrb[0].mxu0
        %v3377 = vadd.f32 0.0, %v3376
        %3378 = vmatprep.mubr.bf16.mxu0 %v3327
        %3379 = vmatmul.mubr.bf16.gmra.mrb[0].mxu0 %v3326
        %v3380 = vpop.f32.mrb[0].mxu0
        %v3381 = vadd.f32 0.0, %v3380
        %v3382 = vpop.f32.mrb[0].mxu0
        %v3383 = vadd.f32 0.0, %v3382
        %v3384 = vpop.f32.mrb[0].mxu0
        %v3385 = vadd.f32 0.0, %v3384
        %v3386 = vpop.f32.mrb[0].mxu0
        %v3387 = vadd.f32 0.0, %v3386
        %3388 = vmatprep.mubr.bf16.mxu0 %v3329
        %3389 = vmatmul.mubr.bf16.gmra.mrb[0].mxu0 %v3328
        %v3390 = vpop.f32.mrb[0].mxu0
        %v3391 = vadd.f32 0.0, %v3390
        %v3392 = vpop.f32.mrb[0].mxu0
        %v3393 = vadd.f32 0.0, %v3392
        %v3394 = vpop.f32.mrb[0].mxu0
        %v3395 = vadd.f32 0.0, %v3394
        %v3396 = vpop.f32.mrb[0].mxu0
        %v3397 = vadd.f32 0.0, %v3396
        %3398 = vmatprep.mubr.bf16.mxu0 %v3331
        %3399 = vmatmul.mubr.bf16.gmra.mrb[0].mxu0 %v3330
        %v3400 = vpop.f32.mrb[0].mxu0
        %v3401 = vadd.f32 0.0, %v3400
        %v3402 = vpop.f32.mrb[0].mxu0
        %v3403 = vadd.f32 0.0, %v3402
        %v3404 = vpop.f32.mrb[0].mxu0
        %v3405 = vadd.f32 0.0, %v3404
        %v3406 = vpop.f32.mrb[0].mxu0
        %v3407 = vadd.f32 0.0, %v3406
        %3408 = vmatprep.mubr.bf16.mxu0 %v3333
        %3409 = vmatmul.mubr.bf16.gmra.mrb[0].mxu0 %v3332
        %v3410 = vpop.f32.mrb[0].mxu0
        %v3411 = vadd.f32 0.0, %v3410
        %v3412 = vpop.f32.mrb[0].mxu0
        %v3413 = vadd.f32 0.0, %v3412
        %v3414 = vpop.f32.mrb[0].mxu0
        %v3415 = vadd.f32 0.0, %v3414
        %v3416 = vpop.f32.mrb[0].mxu0
        %v3417 = vadd.f32 0.0, %v3416
        %3418 = vmatprep.mubr.bf16.mxu0 %v3335
        %3419 = vmatmul.mubr.bf16.gmra.mrb[0].mxu0 %v3334
        %v3420 = vpop.f32.mrb[0].mxu0
        %v3421 = vadd.f32 0.0, %v3420
        %v3422 = vpop.f32.mrb[0].mxu0
        %v3423 = vadd.f32 0.0, %v3422
        %v3424 = vpop.f32.mrb[0].mxu0
        %v3425 = vadd.f32 0.0, %v3424
        %v3426 = vpop.f32.mrb[0].mxu0
        %v3427 = vadd.f32 0.0, %v3426
        %3428 = vdwg.mxu0
        %3429 = vmatprep.subr.bf16.mxu0 %v830
        %3430 = vmatpush1.bf16.msra.mxu0 %v829
        %3431 = vmatprep.subr.bf16.mxu0 %v834
        %3432 = vmatpush1.bf16.msra.mxu0 %v833
        %3433 = vmatprep.subr.bf16.mxu0 %v838
        %3434 = vmatpush1.bf16.msra.mxu0 %v837
        %3435 = vmatprep.subr.bf16.mxu0 %v842
        %3436 = vmatpush1.bf16.msra.mxu0 %v841
        %3437 = vmatprep.subr.bf16.mxu0 %v846
        %3438 = vmatpush1.bf16.msra.mxu0 %v845
        %3439 = vmatprep.subr.bf16.mxu0 %v850
        %3440 = vmatpush1.bf16.msra.mxu0 %v849
        %3441 = vmatprep.subr.bf16.mxu0 %v854
        %3442 = vmatpush1.bf16.msra.mxu0 %v853
        %3443 = vmatprep.subr.bf16.mxu0 %v858
        %3444 = vmatpush1.bf16.msra.mxu0 %v857
        %3445 = vmatprep.subr.bf16.mxu0 %v862
        %3446 = vmatpush1.bf16.msra.mxu0 %v861
        %3447 = vmatprep.subr.bf16.mxu0 %v866
        %3448 = vmatpush1.bf16.msra.mxu0 %v865
        %3449 = vmatprep.subr.bf16.mxu0 %v870
        %3450 = vmatpush1.bf16.msra.mxu0 %v869
        %3451 = vmatprep.subr.bf16.mxu0 %v874
        %3452 = vmatpush1.bf16.msra.mxu0 %v873
        %3453 = vmatprep.subr.bf16.mxu0 %v878
        %3454 = vmatpush1.bf16.msra.mxu0 %v877
        %3455 = vmatprep.subr.bf16.mxu0 %v882
        %3456 = vmatpush1.bf16.msra.mxu0 %v881
        %3457 = vmatprep.subr.bf16.mxu0 %v886
        %3458 = vmatpush1.bf16.msra.mxu0 %v885
        %3459 = vmatprep.subr.bf16.mxu0 %v890
        %3460 = vmatpush1.bf16.msra.mxu0 %v889
        %3461 = vmatprep.mubr.bf16.mxu0 %v3325
        %3462 = vmatmul.mubr.bf16.gmra.mrb[0].mxu0 %v3324
        %v3463 = vpop.f32.mrb[0].mxu0
        %v3464 = vadd.f32 0.0, %v3463
        %v3465 = vpop.f32.mrb[0].mxu0
        %v3466 = vadd.f32 0.0, %v3465
        %v3467 = vpop.f32.mrb[0].mxu0
        %v3468 = vadd.f32 0.0, %v3467
        %v3469 = vpop.f32.mrb[0].mxu0
        %v3470 = vadd.f32 0.0, %v3469
        %3471 = vmatprep.mubr.bf16.mxu0 %v3327
        %3472 = vmatmul.mubr.bf16.gmra.mrb[0].mxu0 %v3326
        %v3473 = vpop.f32.mrb[0].mxu0
        %v3474 = vadd.f32 0.0, %v3473
        %v3475 = vpop.f32.mrb[0].mxu0
        %v3476 = vadd.f32 0.0, %v3475
        %v3477 = vpop.f32.mrb[0].mxu0
        %v3478 = vadd.f32 0.0, %v3477
        %v3479 = vpop.f32.mrb[0].mxu0
        %v3480 = vadd.f32 0.0, %v3479
        %3481 = vmatprep.mubr.bf16.mxu0 %v3329
        %3482 = vmatmul.mubr.bf16.gmra.mrb[0].mxu0 %v3328
        %v3483 = vpop.f32.mrb[0].mxu0
        %v3484 = vadd.f32 0.0, %v3483
        %v3485 = vpop.f32.mrb[0].mxu0
        %v3486 = vadd.f32 0.0, %v3485
        %v3487 = vpop.f32.mrb[0].mxu0
        %v3488 = vadd.f32 0.0, %v3487
        %v3489 = vpop.f32.mrb[0].mxu0
        %v3490 = vadd.f32 0.0, %v3489
        %3491 = vmatprep.mubr.bf16.mxu0 %v3331
        %3492 = vmatmul.mubr.bf16.gmra.mrb[0].mxu0 %v3330
        %v3493 = vpop.f32.mrb[0].mxu0
        %v3494 = vadd.f32 0.0, %v3493
        %v3495 = vpop.f32.mrb[0].mxu0
        %v3496 = vadd.f32 0.0, %v3495
        %v3497 = vpop.f32.mrb[0].mxu0
        %v3498 = vadd.f32 0.0, %v3497
        %v3499 = vpop.f32.mrb[0].mxu0
        %v3500 = vadd.f32 0.0, %v3499
        %3501 = vmatprep.mubr.bf16.mxu0 %v3333
        %3502 = vmatmul.mubr.bf16.gmra.mrb[0].mxu0 %v3332
        %v3503 = vpop.f32.mrb[0].mxu0
        %v3504 = vadd.f32 0.0, %v3503
        %v3505 = vpop.f32.mrb[0].mxu0
        %v3506 = vadd.f32 0.0, %v3505
        %v3507 = vpop.f32.mrb[0].mxu0
        %v3508 = vadd.f32 0.0, %v3507
        %v3509 = vpop.f32.mrb[0].mxu0
        %v3510 = vadd.f32 0.0, %v3509
        %3511 = vmatprep.mubr.bf16.mxu0 %v3335
        %3512 = vmatmul.mubr.bf16.gmra.mrb[0].mxu0 %v3334
        %v3513 = vpop.f32.mrb[0].mxu0
        %v3514 = vadd.f32 0.0, %v3513
        %v3515 = vpop.f32.mrb[0].mxu0
        %v3516 = vadd.f32 0.0, %v3515
        %v3517 = vpop.f32.mrb[0].mxu0
        %v3518 = vadd.f32 0.0, %v3517
        %v3519 = vpop.f32.mrb[0].mxu0
        %v3520 = vadd.f32 0.0, %v3519
        %3521 = vdwg.mxu0
        %v3522 = vld [vmem:[%s8] sm:$0xf]
        %v3523 = vld [vmem:[%s8 + $0x4] sm:$0xf]
        %v3524 = vld [vmem:[%s8 + $0x8] sm:$0xf]
        %v3525 = vld [vmem:[%s8 + $0xc] sm:$0xf]
        %v3526 = vld [vmem:[%s8 + $0x10] sm:$0xf]
        %v3527 = vld [vmem:[%s8 + $0x14] sm:$0xf]
        %v3528 = vld [vmem:[%s8 + $0x18] sm:$0xf]
        %v3529 = vld [vmem:[%s8 + $0x1c] sm:$0xf]
        %v3530 = vld [vmem:[%s8 + $0x20] sm:$0xf]
        %v3531 = vld [vmem:[%s8 + $0x24] sm:$0xf]
        %v3532 = vld [vmem:[%s8 + $0x28] sm:$0xf]
        %v3533 = vld [vmem:[%s8 + $0x2c] sm:$0xf]
        %v3534 = vld [vmem:[%s8 + $0x30] sm:$0xf]
        %v3535 = vld [vmem:[%s8 + $0x34] sm:$0xf]
        %v3536 = vld [vmem:[%s8 + $0x38] sm:$0xf]
        %v3537 = vld [vmem:[%s8 + $0x3c] sm:$0xf]
        %v3538 = vld [vmem:[%s8 + $0x40] sm:$0xf]
        %v3539 = vld [vmem:[%s8 + $0x44] sm:$0xf]
        %v3540 = vld [vmem:[%s8 + $0x48] sm:$0xf]
        %v3541 = vld [vmem:[%s8 + $0x4c] sm:$0xf]
        %v3542 = vld [vmem:[%s8 + $0x50] sm:$0xf]
        %v3543 = vld [vmem:[%s8 + $0x54] sm:$0xf]
        %v3544 = vld [vmem:[%s8 + $0x58] sm:$0xf]
        %v3545 = vld [vmem:[%s8 + $0x5c] sm:$0xf]
        %v3546 = vpack.c.bf16 %v3375, %v3371
        %v3547 = vpack.c.bf16 %v3377, %v3373
        %v3548 = vpack.c.bf16 %v3385, %v3381
        %v3549 = vpack.c.bf16 %v3387, %v3383
        %v3550 = vpack.c.bf16 %v3395, %v3391
        %v3551 = vpack.c.bf16 %v3397, %v3393
        %v3552 = vpack.c.bf16 %v3405, %v3401
        %v3553 = vpack.c.bf16 %v3407, %v3403
        %v3554 = vpack.c.bf16 %v3415, %v3411
        %v3555 = vpack.c.bf16 %v3417, %v3413
        %v3556 = vpack.c.bf16 %v3425, %v3421
        %v3557 = vpack.c.bf16 %v3427, %v3423
        %s3558 = scalar_lea.vmem %s8, 96
        %v3559 = vld [vmem:[%s3558] sm:$0xf]
        %v3560 = vld [vmem:[%s3558 + $0x4] sm:$0xf]
        %v3561 = vld [vmem:[%s3558 + $0x8] sm:$0xf]
        %v3562 = vld [vmem:[%s3558 + $0xc] sm:$0xf]
        %v3563 = vld [vmem:[%s3558 + $0x10] sm:$0xf]
        %v3564 = vld [vmem:[%s3558 + $0x14] sm:$0xf]
        %v3565 = vld [vmem:[%s3558 + $0x18] sm:$0xf]
        %v3566 = vld [vmem:[%s3558 + $0x1c] sm:$0xf]
        %v3567 = vld [vmem:[%s3558 + $0x20] sm:$0xf]
        %v3568 = vld [vmem:[%s3558 + $0x24] sm:$0xf]
        %v3569 = vld [vmem:[%s3558 + $0x28] sm:$0xf]
        %v3570 = vld [vmem:[%s3558 + $0x2c] sm:$0xf]
        %v3571 = vld [vmem:[%s3558 + $0x30] sm:$0xf]
        %v3572 = vld [vmem:[%s3558 + $0x34] sm:$0xf]
        %v3573 = vld [vmem:[%s3558 + $0x38] sm:$0xf]
        %v3574 = vld [vmem:[%s3558 + $0x3c] sm:$0xf]
        %v3575 = vld [vmem:[%s3558 + $0x40] sm:$0xf]
        %v3576 = vld [vmem:[%s3558 + $0x44] sm:$0xf]
        %v3577 = vld [vmem:[%s3558 + $0x48] sm:$0xf]
        %v3578 = vld [vmem:[%s3558 + $0x4c] sm:$0xf]
        %v3579 = vld [vmem:[%s3558 + $0x50] sm:$0xf]
        %v3580 = vld [vmem:[%s3558 + $0x54] sm:$0xf]
        %v3581 = vld [vmem:[%s3558 + $0x58] sm:$0xf]
        %v3582 = vld [vmem:[%s3558 + $0x5c] sm:$0xf]
        %v3607 = vunpack.c.l.b16 %v3559
        %v3608 = vunpack.c.l.b16 %v3560
        %v3609 = vunpack.c.l.b16 %v3561
        %v3610 = vunpack.c.l.b16 %v3562
        %v3611 = vunpack.c.l.b16 %v3563
        %v3612 = vunpack.c.l.b16 %v3564
        %v3613 = vunpack.c.l.b16 %v3565
        %v3614 = vunpack.c.l.b16 %v3566
        %v3615 = vunpack.c.l.b16 %v3567
        %v3616 = vunpack.c.l.b16 %v3568
        %v3617 = vunpack.c.l.b16 %v3569
        %v3618 = vunpack.c.l.b16 %v3570
        %v3619 = vunpack.c.l.b16 %v3571
        %v3620 = vunpack.c.l.b16 %v3572
        %v3621 = vunpack.c.l.b16 %v3573
        %v3622 = vunpack.c.l.b16 %v3574
        %v3623 = vunpack.c.l.b16 %v3575
        %v3624 = vunpack.c.l.b16 %v3576
        %v3625 = vunpack.c.l.b16 %v3577
        %v3626 = vunpack.c.l.b16 %v3578
        %v3627 = vunpack.c.l.b16 %v3579
        %v3628 = vunpack.c.l.b16 %v3580
        %v3629 = vunpack.c.l.b16 %v3581
        %v3630 = vunpack.c.l.b16 %v3582
        %v3631 = vpack.c.b16 %v3608, %v3607
        %v3632 = vpack.c.b16 %v3610, %v3609
        %v3633 = vpack.c.b16 %v3612, %v3611
        %v3634 = vpack.c.b16 %v3614, %v3613
        %v3635 = vpack.c.b16 %v3616, %v3615
        %v3636 = vpack.c.b16 %v3618, %v3617
        %v3637 = vpack.c.b16 %v3620, %v3619
        %v3638 = vpack.c.b16 %v3622, %v3621
        %v3639 = vpack.c.b16 %v3624, %v3623
        %v3640 = vpack.c.b16 %v3626, %v3625
        %v3641 = vpack.c.b16 %v3628, %v3627
        %v3642 = vpack.c.b16 %v3630, %v3629
        %v3644 = vsel %vm1934, %v3631, 0
        %v3647 = vsel %vm1934, %v3632, 0
        %v3650 = vsel %vm1934, %v3633, 0
        %v3653 = vsel %vm1934, %v3634, 0
        %v3656 = vsel %vm1934, %v3635, 0
        %v3659 = vsel %vm1934, %v3636, 0
        %v3662 = vsel %vm1934, %v3637, 0
        %v3665 = vsel %vm1934, %v3638, 0
        %v3668 = vsel %vm1934, %v3639, 0
        %v3671 = vsel %vm1934, %v3640, 0
        %v3674 = vsel %vm1934, %v3641, 0
        %v3677 = vsel %vm1934, %v3642, 0
        %3679 = vmatprep.subr.bf16.mxu0 %v3547
        %3680 = vmatpush1.bf16.msra.mxu0 %v3546
        %3681 = vmatprep.subr.bf16.mxu0 %v3549
        %3682 = vmatpush1.bf16.msra.mxu0 %v3548
        %3683 = vmatprep.subr.bf16.mxu0 %v3551
        %3684 = vmatpush1.bf16.msra.mxu0 %v3550
        %3685 = vmatprep.subr.bf16.mxu0 %v3553
        %3686 = vmatpush1.bf16.msra.mxu0 %v3552
        %3687 = vmatprep.subr.bf16.mxu0 %v3555
        %3688 = vmatpush1.bf16.msra.mxu0 %v3554
        %3689 = vmatprep.subr.bf16.mxu0 %v3557
        %3690 = vmatpush1.bf16.msra.mxu0 %v3556
        %3691 = vmatprep.subr.bf16.mxu0 0
        %3692 = vmatpush1.bf16.msra.mxu0 0
        %3693 = vmatprep.subr.bf16.mxu0 0
        %3694 = vmatpush1.bf16.msra.mxu0 0
        %3695 = vmatprep.subr.bf16.mxu0 0
        %3696 = vmatpush1.bf16.msra.mxu0 0
        %3697 = vmatprep.subr.bf16.mxu0 0
        %3698 = vmatpush1.bf16.msra.mxu0 0
        %3699 = vmatprep.subr.bf16.mxu0 0
        %3700 = vmatpush1.bf16.msra.mxu0 0
        %3701 = vmatprep.subr.bf16.mxu0 0
        %3702 = vmatpush1.bf16.msra.mxu0 0
        %3703 = vmatprep.subr.bf16.mxu0 0
        %3704 = vmatpush1.bf16.msra.mxu0 0
        %3705 = vmatprep.subr.bf16.mxu0 0
        %3706 = vmatpush1.bf16.msra.mxu0 0
        %3707 = vmatprep.subr.bf16.mxu0 0
        %3708 = vmatpush1.bf16.msra.mxu0 0
        %3709 = vmatprep.subr.bf16.mxu0 0
        %3710 = vmatpush1.bf16.msra.mxu0 0
        %3711 = vmatprep.mubr.bf16.mxu0 0
        %3712 = vmatmul.mubr.bf16.gmra.mrb[0].mxu0 %v3644
        %v3713 = vpop.f32.mrb[0].mxu0
        %v3714 = vadd.f32 0.0, %v3713
        %v3715 = vpop.f32.mrb[0].mxu0
        %v3716 = vadd.f32 0.0, %v3715
        %v3717 = vpop.f32.mrb[0].mxu0
        %v3718 = vadd.f32 0.0, %v3717
        %v3719 = vpop.f32.mrb[0].mxu0
        %v3720 = vadd.f32 0.0, %v3719
        %3721 = vmatprep.mubr.bf16.mxu0 0
        %3722 = vmatmul.mubr.bf16.gmra.mrb[0].mxu0 %v3647
        %v3723 = vpop.f32.mrb[0].mxu0
        %v3724 = vadd.f32 0.0, %v3723
        %v3725 = vpop.f32.mrb[0].mxu0
        %v3726 = vadd.f32 0.0, %v3725
        %v3727 = vpop.f32.mrb[0].mxu0
        %v3728 = vadd.f32 0.0, %v3727
        %v3729 = vpop.f32.mrb[0].mxu0
        %v3730 = vadd.f32 0.0, %v3729
        %3731 = vmatprep.mubr.bf16.mxu0 0
        %3732 = vmatmul.mubr.bf16.gmra.mrb[0].mxu0 %v3650
        %v3733 = vpop.f32.mrb[0].mxu0
        %v3734 = vadd.f32 0.0, %v3733
        %v3735 = vpop.f32.mrb[0].mxu0
        %v3736 = vadd.f32 0.0, %v3735
        %v3737 = vpop.f32.mrb[0].mxu0
        %v3738 = vadd.f32 0.0, %v3737
        %v3739 = vpop.f32.mrb[0].mxu0
        %v3740 = vadd.f32 0.0, %v3739
        %3741 = vmatprep.mubr.bf16.mxu0 0
        %3742 = vmatmul.mubr.bf16.gmra.mrb[0].mxu0 %v3653
        %v3743 = vpop.f32.mrb[0].mxu0
        %v3744 = vadd.f32 0.0, %v3743
        %v3745 = vpop.f32.mrb[0].mxu0
        %v3746 = vadd.f32 0.0, %v3745
        %v3747 = vpop.f32.mrb[0].mxu0
        %v3748 = vadd.f32 0.0, %v3747
        %v3749 = vpop.f32.mrb[0].mxu0
        %v3750 = vadd.f32 0.0, %v3749
        %3751 = vmatprep.mubr.bf16.mxu0 0
        %3752 = vmatmul.mubr.bf16.gmra.mrb[0].mxu0 %v3656
        %v3753 = vpop.f32.mrb[0].mxu0
        %v3754 = vadd.f32 0.0, %v3753
        %v3755 = vpop.f32.mrb[0].mxu0
        %v3756 = vadd.f32 0.0, %v3755
        %v3757 = vpop.f32.mrb[0].mxu0
        %v3758 = vadd.f32 0.0, %v3757
        %v3759 = vpop.f32.mrb[0].mxu0
        %v3760 = vadd.f32 0.0, %v3759
        %3761 = vmatprep.mubr.bf16.mxu0 0
        %3762 = vmatmul.mubr.bf16.gmra.mrb[0].mxu0 %v3659
        %v3763 = vpop.f32.mrb[0].mxu0
        %v3764 = vadd.f32 0.0, %v3763
        %v3765 = vpop.f32.mrb[0].mxu0
        %v3766 = vadd.f32 0.0, %v3765
        %v3767 = vpop.f32.mrb[0].mxu0
        %v3768 = vadd.f32 0.0, %v3767
        %v3769 = vpop.f32.mrb[0].mxu0
        %v3770 = vadd.f32 0.0, %v3769
        %3771 = vmatprep.mubr.bf16.mxu0 0
        %3772 = vmatmul.mubr.bf16.gmra.mrb[0].mxu0 %v3662
        %v3773 = vpop.f32.mrb[0].mxu0
        %v3774 = vadd.f32 0.0, %v3773
        %v3775 = vpop.f32.mrb[0].mxu0
        %v3776 = vadd.f32 0.0, %v3775
        %v3777 = vpop.f32.mrb[0].mxu0
        %v3778 = vadd.f32 0.0, %v3777
        %v3779 = vpop.f32.mrb[0].mxu0
        %v3780 = vadd.f32 0.0, %v3779
        %3781 = vmatprep.mubr.bf16.mxu0 0
        %3782 = vmatmul.mubr.bf16.gmra.mrb[0].mxu0 %v3665
        %v3783 = vpop.f32.mrb[0].mxu0
        %v3784 = vadd.f32 0.0, %v3783
        %v3785 = vpop.f32.mrb[0].mxu0
        %v3786 = vadd.f32 0.0, %v3785
        %v3787 = vpop.f32.mrb[0].mxu0
        %v3788 = vadd.f32 0.0, %v3787
        %v3789 = vpop.f32.mrb[0].mxu0
        %v3790 = vadd.f32 0.0, %v3789
        %3791 = vmatprep.mubr.bf16.mxu0 0
        %3792 = vmatmul.mubr.bf16.gmra.mrb[0].mxu0 %v3668
        %v3793 = vpop.f32.mrb[0].mxu0
        %v3794 = vadd.f32 0.0, %v3793
        %v3795 = vpop.f32.mrb[0].mxu0
        %v3796 = vadd.f32 0.0, %v3795
        %v3797 = vpop.f32.mrb[0].mxu0
        %v3798 = vadd.f32 0.0, %v3797
        %v3799 = vpop.f32.mrb[0].mxu0
        %v3800 = vadd.f32 0.0, %v3799
        %3801 = vmatprep.mubr.bf16.mxu0 0
        %3802 = vmatmul.mubr.bf16.gmra.mrb[0].mxu0 %v3671
        %v3803 = vpop.f32.mrb[0].mxu0
        %v3804 = vadd.f32 0.0, %v3803
        %v3805 = vpop.f32.mrb[0].mxu0
        %v3806 = vadd.f32 0.0, %v3805
        %v3807 = vpop.f32.mrb[0].mxu0
        %v3808 = vadd.f32 0.0, %v3807
        %v3809 = vpop.f32.mrb[0].mxu0
        %v3810 = vadd.f32 0.0, %v3809
        %3811 = vmatprep.mubr.bf16.mxu0 0
        %3812 = vmatmul.mubr.bf16.gmra.mrb[0].mxu0 %v3674
        %v3813 = vpop.f32.mrb[0].mxu0
        %v3814 = vadd.f32 0.0, %v3813
        %v3815 = vpop.f32.mrb[0].mxu0
        %v3816 = vadd.f32 0.0, %v3815
        %v3817 = vpop.f32.mrb[0].mxu0
        %v3818 = vadd.f32 0.0, %v3817
        %v3819 = vpop.f32.mrb[0].mxu0
        %v3820 = vadd.f32 0.0, %v3819
        %3821 = vmatprep.mubr.bf16.mxu0 0
        %3822 = vmatmul.mubr.bf16.gmra.mrb[0].mxu0 %v3677
        %v3823 = vpop.f32.mrb[0].mxu0
        %v3824 = vadd.f32 0.0, %v3823
        %v3825 = vpop.f32.mrb[0].mxu0
        %v3826 = vadd.f32 0.0, %v3825
        %v3827 = vpop.f32.mrb[0].mxu0
        %v3828 = vadd.f32 0.0, %v3827
        %v3829 = vpop.f32.mrb[0].mxu0
        %v3830 = vadd.f32 0.0, %v3829
        %3831 = vdwg.mxu0
        %v3856 = vunpack.c.l.b16 %v3522
        %v3857 = vunpack.c.l.b16 %v3523
        %v3858 = vunpack.c.l.b16 %v3524
        %v3859 = vunpack.c.l.b16 %v3525
        %v3860 = vunpack.c.l.b16 %v3526
        %v3861 = vunpack.c.l.b16 %v3527
        %v3862 = vunpack.c.l.b16 %v3528
        %v3863 = vunpack.c.l.b16 %v3529
        %v3864 = vunpack.c.l.b16 %v3530
        %v3865 = vunpack.c.l.b16 %v3531
        %v3866 = vunpack.c.l.b16 %v3532
        %v3867 = vunpack.c.l.b16 %v3533
        %v3868 = vunpack.c.l.b16 %v3534
        %v3869 = vunpack.c.l.b16 %v3535
        %v3870 = vunpack.c.l.b16 %v3536
        %v3871 = vunpack.c.l.b16 %v3537
        %v3872 = vunpack.c.l.b16 %v3538
        %v3873 = vunpack.c.l.b16 %v3539
        %v3874 = vunpack.c.l.b16 %v3540
        %v3875 = vunpack.c.l.b16 %v3541
        %v3876 = vunpack.c.l.b16 %v3542
        %v3877 = vunpack.c.l.b16 %v3543
        %v3878 = vunpack.c.l.b16 %v3544
        %v3879 = vunpack.c.l.b16 %v3545
        %v3880 = vpack.c.b16 %v3857, %v3856
        %v3881 = vpack.c.b16 %v3859, %v3858
        %v3882 = vpack.c.b16 %v3861, %v3860
        %v3883 = vpack.c.b16 %v3863, %v3862
        %v3884 = vpack.c.b16 %v3865, %v3864
        %v3885 = vpack.c.b16 %v3867, %v3866
        %v3886 = vpack.c.b16 %v3869, %v3868
        %v3887 = vpack.c.b16 %v3871, %v3870
        %v3888 = vpack.c.b16 %v3873, %v3872
        %v3889 = vpack.c.b16 %v3875, %v3874
        %v3890 = vpack.c.b16 %v3877, %v3876
        %v3891 = vpack.c.b16 %v3879, %v3878
        %v3893 = vsel %vm1934, %v3880, 0
        %v3896 = vsel %vm1934, %v3881, 0
        %v3899 = vsel %vm1934, %v3882, 0
        %v3902 = vsel %vm1934, %v3883, 0
        %v3905 = vsel %vm1934, %v3884, 0
        %v3908 = vsel %vm1934, %v3885, 0
        %v3911 = vsel %vm1934, %v3886, 0
        %v3914 = vsel %vm1934, %v3887, 0
        %v3917 = vsel %vm1934, %v3888, 0
        %v3920 = vsel %vm1934, %v3889, 0
        %v3923 = vsel %vm1934, %v3890, 0
        %v3926 = vsel %vm1934, %v3891, 0
        %3928 = vmatprep.subr.bf16.mxu0 %v3325
        %3929 = vmatpush1.bf16.msra.mxu0 %v3324
        %3930 = vmatprep.subr.bf16.mxu0 %v3327
        %3931 = vmatpush1.bf16.msra.mxu0 %v3326
        %3932 = vmatprep.subr.bf16.mxu0 %v3329
        %3933 = vmatpush1.bf16.msra.mxu0 %v3328
        %3934 = vmatprep.subr.bf16.mxu0 %v3331
        %3935 = vmatpush1.bf16.msra.mxu0 %v3330
        %3936 = vmatprep.subr.bf16.mxu0 %v3333
        %3937 = vmatpush1.bf16.msra.mxu0 %v3332
        %3938 = vmatprep.subr.bf16.mxu0 %v3335
        %3939 = vmatpush1.bf16.msra.mxu0 %v3334
        %3940 = vmatprep.subr.bf16.mxu0 0
        %3941 = vmatpush1.bf16.msra.mxu0 0
        %3942 = vmatprep.subr.bf16.mxu0 0
        %3943 = vmatpush1.bf16.msra.mxu0 0
        %3944 = vmatprep.subr.bf16.mxu0 0
        %3945 = vmatpush1.bf16.msra.mxu0 0
        %3946 = vmatprep.subr.bf16.mxu0 0
        %3947 = vmatpush1.bf16.msra.mxu0 0
        %3948 = vmatprep.subr.bf16.mxu0 0
        %3949 = vmatpush1.bf16.msra.mxu0 0
        %3950 = vmatprep.subr.bf16.mxu0 0
        %3951 = vmatpush1.bf16.msra.mxu0 0
        %3952 = vmatprep.subr.bf16.mxu0 0
        %3953 = vmatpush1.bf16.msra.mxu0 0
        %3954 = vmatprep.subr.bf16.mxu0 0
        %3955 = vmatpush1.bf16.msra.mxu0 0
        %3956 = vmatprep.subr.bf16.mxu0 0
        %3957 = vmatpush1.bf16.msra.mxu0 0
        %3958 = vmatprep.subr.bf16.mxu0 0
        %3959 = vmatpush1.bf16.msra.mxu0 0
        %3960 = vmatprep.mubr.bf16.mxu0 0
        %3961 = vmatmul.mubr.bf16.gmra.mrb[0].mxu0 %v3893
        %v3962 = vpop.f32.mrb[0].mxu0
        %v3963 = vadd.f32 %v3714, %v3962
        %v3964 = vpop.f32.mrb[0].mxu0
        %v3965 = vadd.f32 %v3716, %v3964
        %v3966 = vpop.f32.mrb[0].mxu0
        %v3967 = vadd.f32 %v3718, %v3966
        %v3968 = vpop.f32.mrb[0].mxu0
        %v3969 = vadd.f32 %v3720, %v3968
        %3970 = vmatprep.mubr.bf16.mxu0 0
        %3971 = vmatmul.mubr.bf16.gmra.mrb[0].mxu0 %v3896
        %v3972 = vpop.f32.mrb[0].mxu0
        %v3973 = vadd.f32 %v3724, %v3972
        %v3974 = vpop.f32.mrb[0].mxu0
        %v3975 = vadd.f32 %v3726, %v3974
        %v3976 = vpop.f32.mrb[0].mxu0
        %v3977 = vadd.f32 %v3728, %v3976
        %v3978 = vpop.f32.mrb[0].mxu0
        %v3979 = vadd.f32 %v3730, %v3978
        %3980 = vmatprep.mubr.bf16.mxu0 0
        %3981 = vmatmul.mubr.bf16.gmra.mrb[0].mxu0 %v3899
        %v3982 = vpop.f32.mrb[0].mxu0
        %v3983 = vadd.f32 %v3734, %v3982
        %v3984 = vpop.f32.mrb[0].mxu0
        %v3985 = vadd.f32 %v3736, %v3984
        %v3986 = vpop.f32.mrb[0].mxu0
        %v3987 = vadd.f32 %v3738, %v3986
        %v3988 = vpop.f32.mrb[0].mxu0
        %v3989 = vadd.f32 %v3740, %v3988
        %3990 = vmatprep.mubr.bf16.mxu0 0
        %3991 = vmatmul.mubr.bf16.gmra.mrb[0].mxu0 %v3902
        %v3992 = vpop.f32.mrb[0].mxu0
        %v3993 = vadd.f32 %v3744, %v3992
        %v3994 = vpop.f32.mrb[0].mxu0
        %v3995 = vadd.f32 %v3746, %v3994
        %v3996 = vpop.f32.mrb[0].mxu0
        %v3997 = vadd.f32 %v3748, %v3996
        %v3998 = vpop.f32.mrb[0].mxu0
        %v3999 = vadd.f32 %v3750, %v3998
        %4000 = vmatprep.mubr.bf16.mxu0 0
        %4001 = vmatmul.mubr.bf16.gmra.mrb[0].mxu0 %v3905
        %v4002 = vpop.f32.mrb[0].mxu0
        %v4003 = vadd.f32 %v3754, %v4002
        %v4004 = vpop.f32.mrb[0].mxu0
        %v4005 = vadd.f32 %v3756, %v4004
        %v4006 = vpop.f32.mrb[0].mxu0
        %v4007 = vadd.f32 %v3758, %v4006
        %v4008 = vpop.f32.mrb[0].mxu0
        %v4009 = vadd.f32 %v3760, %v4008
        %4010 = vmatprep.mubr.bf16.mxu0 0
        %4011 = vmatmul.mubr.bf16.gmra.mrb[0].mxu0 %v3908
        %v4012 = vpop.f32.mrb[0].mxu0
        %v4013 = vadd.f32 %v3764, %v4012
        %v4014 = vpop.f32.mrb[0].mxu0
        %v4015 = vadd.f32 %v3766, %v4014
        %v4016 = vpop.f32.mrb[0].mxu0
        %v4017 = vadd.f32 %v3768, %v4016
        %v4018 = vpop.f32.mrb[0].mxu0
        %v4019 = vadd.f32 %v3770, %v4018
        %4020 = vmatprep.mubr.bf16.mxu0 0
        %4021 = vmatmul.mubr.bf16.gmra.mrb[0].mxu0 %v3911
        %v4022 = vpop.f32.mrb[0].mxu0
        %v4023 = vadd.f32 %v3774, %v4022
        %v4024 = vpop.f32.mrb[0].mxu0
        %v4025 = vadd.f32 %v3776, %v4024
        %v4026 = vpop.f32.mrb[0].mxu0
        %v4027 = vadd.f32 %v3778, %v4026
        %v4028 = vpop.f32.mrb[0].mxu0
        %v4029 = vadd.f32 %v3780, %v4028
        %4030 = vmatprep.mubr.bf16.mxu0 0
        %4031 = vmatmul.mubr.bf16.gmra.mrb[0].mxu0 %v3914
        %v4032 = vpop.f32.mrb[0].mxu0
        %v4033 = vadd.f32 %v3784, %v4032
        %v4034 = vpop.f32.mrb[0].mxu0
        %v4035 = vadd.f32 %v3786, %v4034
        %v4036 = vpop.f32.mrb[0].mxu0
        %v4037 = vadd.f32 %v3788, %v4036
        %v4038 = vpop.f32.mrb[0].mxu0
        %v4039 = vadd.f32 %v3790, %v4038
        %4040 = vmatprep.mubr.bf16.mxu0 0
        %4041 = vmatmul.mubr.bf16.gmra.mrb[0].mxu0 %v3917
        %v4042 = vpop.f32.mrb[0].mxu0
        %v4043 = vadd.f32 %v3794, %v4042
        %v4044 = vpop.f32.mrb[0].mxu0
        %v4045 = vadd.f32 %v3796, %v4044
        %v4046 = vpop.f32.mrb[0].mxu0
        %v4047 = vadd.f32 %v3798, %v4046
        %v4048 = vpop.f32.mrb[0].mxu0
        %v4049 = vadd.f32 %v3800, %v4048
        %4050 = vmatprep.mubr.bf16.mxu0 0
        %4051 = vmatmul.mubr.bf16.gmra.mrb[0].mxu0 %v3920
        %v4052 = vpop.f32.mrb[0].mxu0
        %v4053 = vadd.f32 %v3804, %v4052
        %v4054 = vpop.f32.mrb[0].mxu0
        %v4055 = vadd.f32 %v3806, %v4054
        %v4056 = vpop.f32.mrb[0].mxu0
        %v4057 = vadd.f32 %v3808, %v4056
        %v4058 = vpop.f32.mrb[0].mxu0
        %v4059 = vadd.f32 %v3810, %v4058
        %4060 = vmatprep.mubr.bf16.mxu0 0
        %4061 = vmatmul.mubr.bf16.gmra.mrb[0].mxu0 %v3923
        %v4062 = vpop.f32.mrb[0].mxu0
        %v4063 = vadd.f32 %v3814, %v4062
        %v4064 = vpop.f32.mrb[0].mxu0
        %v4065 = vadd.f32 %v3816, %v4064
        %v4066 = vpop.f32.mrb[0].mxu0
        %v4067 = vadd.f32 %v3818, %v4066
        %v4068 = vpop.f32.mrb[0].mxu0
        %v4069 = vadd.f32 %v3820, %v4068
        %4070 = vmatprep.mubr.bf16.mxu0 0
        %4071 = vmatmul.mubr.bf16.gmra.mrb[0].mxu0 %v3926
        %v4072 = vpop.f32.mrb[0].mxu0
        %v4073 = vadd.f32 %v3824, %v4072
        %v4074 = vpop.f32.mrb[0].mxu0
        %v4075 = vadd.f32 %v3826, %v4074
        %v4076 = vpop.f32.mrb[0].mxu0
        %v4077 = vadd.f32 %v3828, %v4076
        %v4078 = vpop.f32.mrb[0].mxu0
        %v4079 = vadd.f32 %v3830, %v4078
        %4080 = vdwg.mxu0
        %v4081 = vpack.c.bf16 %v3468, %v3464
        %v4082 = vpack.c.bf16 %v3470, %v3466
        %v4083 = vpack.c.bf16 %v3478, %v3474
        %v4084 = vpack.c.bf16 %v3480, %v3476
        %v4085 = vpack.c.bf16 %v3488, %v3484
        %v4086 = vpack.c.bf16 %v3490, %v3486
        %v4087 = vpack.c.bf16 %v3498, %v3494
        %v4088 = vpack.c.bf16 %v3500, %v3496
        %v4089 = vpack.c.bf16 %v3508, %v3504
        %v4090 = vpack.c.bf16 %v3510, %v3506
        %v4091 = vpack.c.bf16 %v3518, %v3514
        %v4092 = vpack.c.bf16 %v3520, %v3516
        %s4093 = scalar_lea.vmem %s8, 192
        %v4094 = vld [vmem:[%s4093] sm:$0xf]
        %v4095 = vld [vmem:[%s4093 + $0x4] sm:$0xf]
        %v4096 = vld [vmem:[%s4093 + $0x8] sm:$0xf]
        %v4097 = vld [vmem:[%s4093 + $0xc] sm:$0xf]
        %v4098 = vld [vmem:[%s4093 + $0x10] sm:$0xf]
        %v4099 = vld [vmem:[%s4093 + $0x14] sm:$0xf]
        %v4100 = vld [vmem:[%s4093 + $0x18] sm:$0xf]
        %v4101 = vld [vmem:[%s4093 + $0x1c] sm:$0xf]
        %v4102 = vld [vmem:[%s4093 + $0x20] sm:$0xf]
        %v4103 = vld [vmem:[%s4093 + $0x24] sm:$0xf]
        %v4104 = vld [vmem:[%s4093 + $0x28] sm:$0xf]
        %v4105 = vld [vmem:[%s4093 + $0x2c] sm:$0xf]
        %v4106 = vld [vmem:[%s4093 + $0x30] sm:$0xf]
        %v4107 = vld [vmem:[%s4093 + $0x34] sm:$0xf]
        %v4108 = vld [vmem:[%s4093 + $0x38] sm:$0xf]
        %v4109 = vld [vmem:[%s4093 + $0x3c] sm:$0xf]
        %v4110 = vld [vmem:[%s4093 + $0x40] sm:$0xf]
        %v4111 = vld [vmem:[%s4093 + $0x44] sm:$0xf]
        %v4112 = vld [vmem:[%s4093 + $0x48] sm:$0xf]
        %v4113 = vld [vmem:[%s4093 + $0x4c] sm:$0xf]
        %v4114 = vld [vmem:[%s4093 + $0x50] sm:$0xf]
        %v4115 = vld [vmem:[%s4093 + $0x54] sm:$0xf]
        %v4116 = vld [vmem:[%s4093 + $0x58] sm:$0xf]
        %v4117 = vld [vmem:[%s4093 + $0x5c] sm:$0xf]
        %v4142 = vunpack.c.l.b16 %v4094
        %v4143 = vunpack.c.l.b16 %v4095
        %v4144 = vunpack.c.l.b16 %v4096
        %v4145 = vunpack.c.l.b16 %v4097
        %v4146 = vunpack.c.l.b16 %v4098
        %v4147 = vunpack.c.l.b16 %v4099
        %v4148 = vunpack.c.l.b16 %v4100
        %v4149 = vunpack.c.l.b16 %v4101
        %v4150 = vunpack.c.l.b16 %v4102
        %v4151 = vunpack.c.l.b16 %v4103
        %v4152 = vunpack.c.l.b16 %v4104
        %v4153 = vunpack.c.l.b16 %v4105
        %v4154 = vunpack.c.l.b16 %v4106
        %v4155 = vunpack.c.l.b16 %v4107
        %v4156 = vunpack.c.l.b16 %v4108
        %v4157 = vunpack.c.l.b16 %v4109
        %v4158 = vunpack.c.l.b16 %v4110
        %v4159 = vunpack.c.l.b16 %v4111
        %v4160 = vunpack.c.l.b16 %v4112
        %v4161 = vunpack.c.l.b16 %v4113
        %v4162 = vunpack.c.l.b16 %v4114
        %v4163 = vunpack.c.l.b16 %v4115
        %v4164 = vunpack.c.l.b16 %v4116
        %v4165 = vunpack.c.l.b16 %v4117
        %v4166 = vpack.c.b16 %v4143, %v4142
        %v4167 = vpack.c.b16 %v4145, %v4144
        %v4168 = vpack.c.b16 %v4147, %v4146
        %v4169 = vpack.c.b16 %v4149, %v4148
        %v4170 = vpack.c.b16 %v4151, %v4150
        %v4171 = vpack.c.b16 %v4153, %v4152
        %v4172 = vpack.c.b16 %v4155, %v4154
        %v4173 = vpack.c.b16 %v4157, %v4156
        %v4174 = vpack.c.b16 %v4159, %v4158
        %v4175 = vpack.c.b16 %v4161, %v4160
        %v4176 = vpack.c.b16 %v4163, %v4162
        %v4177 = vpack.c.b16 %v4165, %v4164
        %v4179 = vsel %vm1934, %v4166, 0
        %v4182 = vsel %vm1934, %v4167, 0
        %v4185 = vsel %vm1934, %v4168, 0
        %v4188 = vsel %vm1934, %v4169, 0
        %v4191 = vsel %vm1934, %v4170, 0
        %v4194 = vsel %vm1934, %v4171, 0
        %v4197 = vsel %vm1934, %v4172, 0
        %v4200 = vsel %vm1934, %v4173, 0
        %v4203 = vsel %vm1934, %v4174, 0
        %v4206 = vsel %vm1934, %v4175, 0
        %v4209 = vsel %vm1934, %v4176, 0
        %v4212 = vsel %vm1934, %v4177, 0
        %4214 = vmatprep.subr.bf16.mxu0 %v4082
        %4215 = vmatpush1.bf16.msra.mxu0 %v4081
        %4216 = vmatprep.subr.bf16.mxu0 %v4084
        %4217 = vmatpush1.bf16.msra.mxu0 %v4083
        %4218 = vmatprep.subr.bf16.mxu0 %v4086
        %4219 = vmatpush1.bf16.msra.mxu0 %v4085
        %4220 = vmatprep.subr.bf16.mxu0 %v4088
        %4221 = vmatpush1.bf16.msra.mxu0 %v4087
        %4222 = vmatprep.subr.bf16.mxu0 %v4090
        %4223 = vmatpush1.bf16.msra.mxu0 %v4089
        %4224 = vmatprep.subr.bf16.mxu0 %v4092
        %4225 = vmatpush1.bf16.msra.mxu0 %v4091
        %4226 = vmatprep.subr.bf16.mxu0 0
        %4227 = vmatpush1.bf16.msra.mxu0 0
        %4228 = vmatprep.subr.bf16.mxu0 0
        %4229 = vmatpush1.bf16.msra.mxu0 0
        %4230 = vmatprep.subr.bf16.mxu0 0
        %4231 = vmatpush1.bf16.msra.mxu0 0
        %4232 = vmatprep.subr.bf16.mxu0 0
        %4233 = vmatpush1.bf16.msra.mxu0 0
        %4234 = vmatprep.subr.bf16.mxu0 0
        %4235 = vmatpush1.bf16.msra.mxu0 0
        %4236 = vmatprep.subr.bf16.mxu0 0
        %4237 = vmatpush1.bf16.msra.mxu0 0
        %4238 = vmatprep.subr.bf16.mxu0 0
        %4239 = vmatpush1.bf16.msra.mxu0 0
        %4240 = vmatprep.subr.bf16.mxu0 0
        %4241 = vmatpush1.bf16.msra.mxu0 0
        %4242 = vmatprep.subr.bf16.mxu0 0
        %4243 = vmatpush1.bf16.msra.mxu0 0
        %4244 = vmatprep.subr.bf16.mxu0 0
        %4245 = vmatpush1.bf16.msra.mxu0 0
        %4246 = vmatprep.mubr.bf16.mxu0 0
        %4247 = vmatmul.mubr.bf16.gmra.mrb[0].mxu0 %v4179
        %v4248 = vpop.f32.mrb[0].mxu0
        %v4249 = vadd.f32 0.0, %v4248
        %v4250 = vpop.f32.mrb[0].mxu0
        %v4251 = vadd.f32 0.0, %v4250
        %v4252 = vpop.f32.mrb[0].mxu0
        %v4253 = vadd.f32 0.0, %v4252
        %v4254 = vpop.f32.mrb[0].mxu0
        %v4255 = vadd.f32 0.0, %v4254
        %4256 = vmatprep.mubr.bf16.mxu0 0
        %4257 = vmatmul.mubr.bf16.gmra.mrb[0].mxu0 %v4182
        %v4258 = vpop.f32.mrb[0].mxu0
        %v4259 = vadd.f32 0.0, %v4258
        %v4260 = vpop.f32.mrb[0].mxu0
        %v4261 = vadd.f32 0.0, %v4260
        %v4262 = vpop.f32.mrb[0].mxu0
        %v4263 = vadd.f32 0.0, %v4262
        %v4264 = vpop.f32.mrb[0].mxu0
        %v4265 = vadd.f32 0.0, %v4264
        %4266 = vmatprep.mubr.bf16.mxu0 0
        %4267 = vmatmul.mubr.bf16.gmra.mrb[0].mxu0 %v4185
        %v4268 = vpop.f32.mrb[0].mxu0
        %v4269 = vadd.f32 0.0, %v4268
        %v4270 = vpop.f32.mrb[0].mxu0
        %v4271 = vadd.f32 0.0, %v4270
        %v4272 = vpop.f32.mrb[0].mxu0
        %v4273 = vadd.f32 0.0, %v4272
        %v4274 = vpop.f32.mrb[0].mxu0
        %v4275 = vadd.f32 0.0, %v4274
        %4276 = vmatprep.mubr.bf16.mxu0 0
        %4277 = vmatmul.mubr.bf16.gmra.mrb[0].mxu0 %v4188
        %v4278 = vpop.f32.mrb[0].mxu0
        %v4279 = vadd.f32 0.0, %v4278
        %v4280 = vpop.f32.mrb[0].mxu0
        %v4281 = vadd.f32 0.0, %v4280
        %v4282 = vpop.f32.mrb[0].mxu0
        %v4283 = vadd.f32 0.0, %v4282
        %v4284 = vpop.f32.mrb[0].mxu0
        %v4285 = vadd.f32 0.0, %v4284
        %4286 = vmatprep.mubr.bf16.mxu0 0
        %4287 = vmatmul.mubr.bf16.gmra.mrb[0].mxu0 %v4191
        %v4288 = vpop.f32.mrb[0].mxu0
        %v4289 = vadd.f32 0.0, %v4288
        %v4290 = vpop.f32.mrb[0].mxu0
        %v4291 = vadd.f32 0.0, %v4290
        %v4292 = vpop.f32.mrb[0].mxu0
        %v4293 = vadd.f32 0.0, %v4292
        %v4294 = vpop.f32.mrb[0].mxu0
        %v4295 = vadd.f32 0.0, %v4294
        %4296 = vmatprep.mubr.bf16.mxu0 0
        %4297 = vmatmul.mubr.bf16.gmra.mrb[0].mxu0 %v4194
        %v4298 = vpop.f32.mrb[0].mxu0
        %v4299 = vadd.f32 0.0, %v4298
        %v4300 = vpop.f32.mrb[0].mxu0
        %v4301 = vadd.f32 0.0, %v4300
        %v4302 = vpop.f32.mrb[0].mxu0
        %v4303 = vadd.f32 0.0, %v4302
        %v4304 = vpop.f32.mrb[0].mxu0
        %v4305 = vadd.f32 0.0, %v4304
        %4306 = vmatprep.mubr.bf16.mxu0 0
        %4307 = vmatmul.mubr.bf16.gmra.mrb[0].mxu0 %v4197
        %v4308 = vpop.f32.mrb[0].mxu0
        %v4309 = vadd.f32 0.0, %v4308
        %v4310 = vpop.f32.mrb[0].mxu0
        %v4311 = vadd.f32 0.0, %v4310
        %v4312 = vpop.f32.mrb[0].mxu0
        %v4313 = vadd.f32 0.0, %v4312
        %v4314 = vpop.f32.mrb[0].mxu0
        %v4315 = vadd.f32 0.0, %v4314
        %4316 = vmatprep.mubr.bf16.mxu0 0
        %4317 = vmatmul.mubr.bf16.gmra.mrb[0].mxu0 %v4200
        %v4318 = vpop.f32.mrb[0].mxu0
        %v4319 = vadd.f32 0.0, %v4318
        %v4320 = vpop.f32.mrb[0].mxu0
        %v4321 = vadd.f32 0.0, %v4320
        %v4322 = vpop.f32.mrb[0].mxu0
        %v4323 = vadd.f32 0.0, %v4322
        %v4324 = vpop.f32.mrb[0].mxu0
        %v4325 = vadd.f32 0.0, %v4324
        %4326 = vmatprep.mubr.bf16.mxu0 0
        %4327 = vmatmul.mubr.bf16.gmra.mrb[0].mxu0 %v4203
        %v4328 = vpop.f32.mrb[0].mxu0
        %v4329 = vadd.f32 0.0, %v4328
        %v4330 = vpop.f32.mrb[0].mxu0
        %v4331 = vadd.f32 0.0, %v4330
        %v4332 = vpop.f32.mrb[0].mxu0
        %v4333 = vadd.f32 0.0, %v4332
        %v4334 = vpop.f32.mrb[0].mxu0
        %v4335 = vadd.f32 0.0, %v4334
        %4336 = vmatprep.mubr.bf16.mxu0 0
        %4337 = vmatmul.mubr.bf16.gmra.mrb[0].mxu0 %v4206
        %v4338 = vpop.f32.mrb[0].mxu0
        %v4339 = vadd.f32 0.0, %v4338
        %v4340 = vpop.f32.mrb[0].mxu0
        %v4341 = vadd.f32 0.0, %v4340
        %v4342 = vpop.f32.mrb[0].mxu0
        %v4343 = vadd.f32 0.0, %v4342
        %v4344 = vpop.f32.mrb[0].mxu0
        %v4345 = vadd.f32 0.0, %v4344
        %4346 = vmatprep.mubr.bf16.mxu0 0
        %4347 = vmatmul.mubr.bf16.gmra.mrb[0].mxu0 %v4209
        %v4348 = vpop.f32.mrb[0].mxu0
        %v4349 = vadd.f32 0.0, %v4348
        %v4350 = vpop.f32.mrb[0].mxu0
        %v4351 = vadd.f32 0.0, %v4350
        %v4352 = vpop.f32.mrb[0].mxu0
        %v4353 = vadd.f32 0.0, %v4352
        %v4354 = vpop.f32.mrb[0].mxu0
        %v4355 = vadd.f32 0.0, %v4354
        %4356 = vmatprep.mubr.bf16.mxu0 0
        %4357 = vmatmul.mubr.bf16.gmra.mrb[0].mxu0 %v4212
        %v4358 = vpop.f32.mrb[0].mxu0
        %v4359 = vadd.f32 0.0, %v4358
        %v4360 = vpop.f32.mrb[0].mxu0
        %v4361 = vadd.f32 0.0, %v4360
        %v4362 = vpop.f32.mrb[0].mxu0
        %v4363 = vadd.f32 0.0, %v4362
        %v4364 = vpop.f32.mrb[0].mxu0
        %v4365 = vadd.f32 0.0, %v4364
        %4366 = vdwg.mxu0
        %v4367 = vadd.f32 %v3963, %v4249
        %v4368 = vadd.f32 %v3965, %v4251
        %v4369 = vadd.f32 %v3967, %v4253
        %v4370 = vadd.f32 %v3969, %v4255
        %v4371 = vadd.f32 %v3973, %v4259
        %v4372 = vadd.f32 %v3975, %v4261
        %v4373 = vadd.f32 %v3977, %v4263
        %v4374 = vadd.f32 %v3979, %v4265
        %v4375 = vadd.f32 %v3983, %v4269
        %v4376 = vadd.f32 %v3985, %v4271
        %v4377 = vadd.f32 %v3987, %v4273
        %v4378 = vadd.f32 %v3989, %v4275
        %v4379 = vadd.f32 %v3993, %v4279
        %v4380 = vadd.f32 %v3995, %v4281
        %v4381 = vadd.f32 %v3997, %v4283
        %v4382 = vadd.f32 %v3999, %v4285
        %v4383 = vadd.f32 %v4003, %v4289
        %v4384 = vadd.f32 %v4005, %v4291
        %v4385 = vadd.f32 %v4007, %v4293
        %v4386 = vadd.f32 %v4009, %v4295
        %v4387 = vadd.f32 %v4013, %v4299
        %v4388 = vadd.f32 %v4015, %v4301
        %v4389 = vadd.f32 %v4017, %v4303
        %v4390 = vadd.f32 %v4019, %v4305
        %v4391 = vadd.f32 %v4023, %v4309
        %v4392 = vadd.f32 %v4025, %v4311
        %v4393 = vadd.f32 %v4027, %v4313
        %v4394 = vadd.f32 %v4029, %v4315
        %v4395 = vadd.f32 %v4033, %v4319
        %v4396 = vadd.f32 %v4035, %v4321
        %v4397 = vadd.f32 %v4037, %v4323
        %v4398 = vadd.f32 %v4039, %v4325
        %v4399 = vadd.f32 %v4043, %v4329
        %v4400 = vadd.f32 %v4045, %v4331
        %v4401 = vadd.f32 %v4047, %v4333
        %v4402 = vadd.f32 %v4049, %v4335
        %v4403 = vadd.f32 %v4053, %v4339
        %v4404 = vadd.f32 %v4055, %v4341
        %v4405 = vadd.f32 %v4057, %v4343
        %v4406 = vadd.f32 %v4059, %v4345
        %v4407 = vadd.f32 %v4063, %v4349
        %v4408 = vadd.f32 %v4065, %v4351
        %v4409 = vadd.f32 %v4067, %v4353
        %v4410 = vadd.f32 %v4069, %v4355
        %v4411 = vadd.f32 %v4073, %v4359
        %v4412 = vadd.f32 %v4075, %v4361
        %v4413 = vadd.f32 %v4077, %v4363
        %v4414 = vadd.f32 %v4079, %v4365
        %v4415 = vld [vmem:[%s9] sm:$0xff]
        %v4416 = vld [vmem:[%s9 + $0x8] sm:$0xff]
        %v4417 = vld [vmem:[%s9 + $0x10] sm:$0xff]
        %v4418 = vld [vmem:[%s9 + $0x18] sm:$0xff]
        %v4419 = vld [vmem:[%s9 + $0x20] sm:$0xff]
        %v4420 = vld [vmem:[%s9 + $0x28] sm:$0xff]
        %v4421 = vld [vmem:[%s9 + $0x30] sm:$0xff]
        %v4422 = vld [vmem:[%s9 + $0x38] sm:$0xff]
        %v4423 = vld [vmem:[%s9 + $0x40] sm:$0xff]
        %v4424 = vld [vmem:[%s9 + $0x48] sm:$0xff]
        %v4425 = vld [vmem:[%s9 + $0x50] sm:$0xff]
        %v4426 = vld [vmem:[%s9 + $0x58] sm:$0xff]
        %v4427 = vld [vmem:[%s9 + $0x60] sm:$0xff]
        %v4428 = vld [vmem:[%s9 + $0x68] sm:$0xff]
        %v4429 = vld [vmem:[%s9 + $0x70] sm:$0xff]
        %v4430 = vld [vmem:[%s9 + $0x78] sm:$0xff]
        %v4431 = vld [vmem:[%s9 + $0x80] sm:$0xff]
        %v4432 = vld [vmem:[%s9 + $0x88] sm:$0xff]
        %v4433 = vld [vmem:[%s9 + $0x90] sm:$0xff]
        %v4434 = vld [vmem:[%s9 + $0x98] sm:$0xff]
        %v4435 = vld [vmem:[%s9 + $0xa0] sm:$0xff]
        %v4436 = vld [vmem:[%s9 + $0xa8] sm:$0xff]
        %v4437 = vld [vmem:[%s9 + $0xb0] sm:$0xff]
        %v4438 = vld [vmem:[%s9 + $0xb8] sm:$0xff]
        %4440 = vset.pattern.permute.xlu0 0
        %4441 = vperm.xlu0 %4440, %v4415
        %v4442 = vpop.permute.xlu0 %4441
        %4445 = vset.pattern.permute.xlu0 0
        %4446 = vperm.xlu0 %4445, %v4416
        %v4447 = vpop.permute.xlu0 %4446
        %4450 = vset.pattern.permute.xlu0 0
        %4451 = vperm.xlu0 %4450, %v4417
        %v4452 = vpop.permute.xlu0 %4451
        %4455 = vset.pattern.permute.xlu0 0
        %4456 = vperm.xlu0 %4455, %v4418
        %v4457 = vpop.permute.xlu0 %4456
        %4460 = vset.pattern.permute.xlu0 0
        %4461 = vperm.xlu0 %4460, %v4419
        %v4462 = vpop.permute.xlu0 %4461
        %4465 = vset.pattern.permute.xlu0 0
        %4466 = vperm.xlu0 %4465, %v4420
        %v4467 = vpop.permute.xlu0 %4466
        %4470 = vset.pattern.permute.xlu0 0
        %4471 = vperm.xlu0 %4470, %v4421
        %v4472 = vpop.permute.xlu0 %4471
        %4475 = vset.pattern.permute.xlu0 0
        %4476 = vperm.xlu0 %4475, %v4422
        %v4477 = vpop.permute.xlu0 %4476
        %4480 = vset.pattern.permute.xlu0 0
        %4481 = vperm.xlu0 %4480, %v4423
        %v4482 = vpop.permute.xlu0 %4481
        %4485 = vset.pattern.permute.xlu0 0
        %4486 = vperm.xlu0 %4485, %v4424
        %v4487 = vpop.permute.xlu0 %4486
        %4490 = vset.pattern.permute.xlu0 0
        %4491 = vperm.xlu0 %4490, %v4425
        %v4492 = vpop.permute.xlu0 %4491
        %4495 = vset.pattern.permute.xlu0 0
        %4496 = vperm.xlu0 %4495, %v4426
        %v4497 = vpop.permute.xlu0 %4496
        %4500 = vset.pattern.permute.xlu0 0
        %4501 = vperm.xlu0 %4500, %v4427
        %v4502 = vpop.permute.xlu0 %4501
        %4505 = vset.pattern.permute.xlu0 0
        %4506 = vperm.xlu0 %4505, %v4428
        %v4507 = vpop.permute.xlu0 %4506
        %4510 = vset.pattern.permute.xlu0 0
        %4511 = vperm.xlu0 %4510, %v4429
        %v4512 = vpop.permute.xlu0 %4511
        %4515 = vset.pattern.permute.xlu0 0
        %4516 = vperm.xlu0 %4515, %v4430
        %v4517 = vpop.permute.xlu0 %4516
        %4520 = vset.pattern.permute.xlu0 0
        %4521 = vperm.xlu0 %4520, %v4431
        %v4522 = vpop.permute.xlu0 %4521
        %4525 = vset.pattern.permute.xlu0 0
        %4526 = vperm.xlu0 %4525, %v4432
        %v4527 = vpop.permute.xlu0 %4526
        %4530 = vset.pattern.permute.xlu0 0
        %4531 = vperm.xlu0 %4530, %v4433
        %v4532 = vpop.permute.xlu0 %4531
        %4535 = vset.pattern.permute.xlu0 0
        %4536 = vperm.xlu0 %4535, %v4434
        %v4537 = vpop.permute.xlu0 %4536
        %4540 = vset.pattern.permute.xlu0 0
        %4541 = vperm.xlu0 %4540, %v4435
        %v4542 = vpop.permute.xlu0 %4541
        %4545 = vset.pattern.permute.xlu0 0
        %4546 = vperm.xlu0 %4545, %v4436
        %v4547 = vpop.permute.xlu0 %4546
        %4550 = vset.pattern.permute.xlu0 0
        %4551 = vperm.xlu0 %4550, %v4437
        %v4552 = vpop.permute.xlu0 %4551
        %4555 = vset.pattern.permute.xlu0 0
        %4556 = vperm.xlu0 %4555, %v4438
        %v4557 = vpop.permute.xlu0 %4556
        %v4559 = vadd.f32 %v4367, %v4442
        %v4560 = vadd.f32 %v4368, %v4442
        %v4561 = vadd.f32 %v4369, %v4447
        %v4562 = vadd.f32 %v4370, %v4447
        %v4563 = vadd.f32 %v4371, %v4452
        %v4564 = vadd.f32 %v4372, %v4452
        %v4565 = vadd.f32 %v4373, %v4457
        %v4566 = vadd.f32 %v4374, %v4457
        %v4567 = vadd.f32 %v4375, %v4462
        %v4568 = vadd.f32 %v4376, %v4462
        %v4569 = vadd.f32 %v4377, %v4467
        %v4570 = vadd.f32 %v4378, %v4467
        %v4571 = vadd.f32 %v4379, %v4472
        %v4572 = vadd.f32 %v4380, %v4472
        %v4573 = vadd.f32 %v4381, %v4477
        %v4574 = vadd.f32 %v4382, %v4477
        %v4575 = vadd.f32 %v4383, %v4482
        %v4576 = vadd.f32 %v4384, %v4482
        %v4577 = vadd.f32 %v4385, %v4487
        %v4578 = vadd.f32 %v4386, %v4487
        %v4579 = vadd.f32 %v4387, %v4492
        %v4580 = vadd.f32 %v4388, %v4492
        %v4581 = vadd.f32 %v4389, %v4497
        %v4582 = vadd.f32 %v4390, %v4497
        %v4583 = vadd.f32 %v4391, %v4502
        %v4584 = vadd.f32 %v4392, %v4502
        %v4585 = vadd.f32 %v4393, %v4507
        %v4586 = vadd.f32 %v4394, %v4507
        %v4587 = vadd.f32 %v4395, %v4512
        %v4588 = vadd.f32 %v4396, %v4512
        %v4589 = vadd.f32 %v4397, %v4517
        %v4590 = vadd.f32 %v4398, %v4517
        %v4591 = vadd.f32 %v4399, %v4522
        %v4592 = vadd.f32 %v4400, %v4522
        %v4593 = vadd.f32 %v4401, %v4527
        %v4594 = vadd.f32 %v4402, %v4527
        %v4595 = vadd.f32 %v4403, %v4532
        %v4596 = vadd.f32 %v4404, %v4532
        %v4597 = vadd.f32 %v4405, %v4537
        %v4598 = vadd.f32 %v4406, %v4537
        %v4599 = vadd.f32 %v4407, %v4542
        %v4600 = vadd.f32 %v4408, %v4542
        %v4601 = vadd.f32 %v4409, %v4547
        %v4602 = vadd.f32 %v4410, %v4547
        %v4603 = vadd.f32 %v4411, %v4552
        %v4604 = vadd.f32 %v4412, %v4552
        %v4605 = vadd.f32 %v4413, %v4557
        %v4606 = vadd.f32 %v4414, %v4557
        %v4607 = vmax.f32 %v4559, 0.0
        %v4608 = vmax.f32 %v4560, 0.0
        %v4609 = vmax.f32 %v4561, 0.0
        %v4610 = vmax.f32 %v4562, 0.0
        %v4611 = vmax.f32 %v4563, 0.0
        %v4612 = vmax.f32 %v4564, 0.0
        %v4613 = vmax.f32 %v4565, 0.0
        %v4614 = vmax.f32 %v4566, 0.0
        %v4615 = vmax.f32 %v4567, 0.0
        %v4616 = vmax.f32 %v4568, 0.0
        %v4617 = vmax.f32 %v4569, 0.0
        %v4618 = vmax.f32 %v4570, 0.0
        %v4619 = vmax.f32 %v4571, 0.0
        %v4620 = vmax.f32 %v4572, 0.0
        %v4621 = vmax.f32 %v4573, 0.0
        %v4622 = vmax.f32 %v4574, 0.0
        %v4623 = vmax.f32 %v4575, 0.0
        %v4624 = vmax.f32 %v4576, 0.0
        %v4625 = vmax.f32 %v4577, 0.0
        %v4626 = vmax.f32 %v4578, 0.0
        %v4627 = vmax.f32 %v4579, 0.0
        %v4628 = vmax.f32 %v4580, 0.0
        %v4629 = vmax.f32 %v4581, 0.0
        %v4630 = vmax.f32 %v4582, 0.0
        %v4631 = vmax.f32 %v4583, 0.0
        %v4632 = vmax.f32 %v4584, 0.0
        %v4633 = vmax.f32 %v4585, 0.0
        %v4634 = vmax.f32 %v4586, 0.0
        %v4635 = vmax.f32 %v4587, 0.0
        %v4636 = vmax.f32 %v4588, 0.0
        %v4637 = vmax.f32 %v4589, 0.0
        %v4638 = vmax.f32 %v4590, 0.0
        %v4639 = vmax.f32 %v4591, 0.0
        %v4640 = vmax.f32 %v4592, 0.0
        %v4641 = vmax.f32 %v4593, 0.0
        %v4642 = vmax.f32 %v4594, 0.0
        %v4643 = vmax.f32 %v4595, 0.0
        %v4644 = vmax.f32 %v4596, 0.0
        %v4645 = vmax.f32 %v4597, 0.0
        %v4646 = vmax.f32 %v4598, 0.0
        %v4647 = vmax.f32 %v4599, 0.0
        %v4648 = vmax.f32 %v4600, 0.0
        %v4649 = vmax.f32 %v4601, 0.0
        %v4650 = vmax.f32 %v4602, 0.0
        %v4651 = vmax.f32 %v4603, 0.0
        %v4652 = vmax.f32 %v4604, 0.0
        %v4653 = vmax.f32 %v4605, 0.0
        %v4654 = vmax.f32 %v4606, 0.0
        %v4655 = vpack.c.bf16 %v4609, %v4607
        %v4656 = vpack.c.bf16 %v4610, %v4608
        %v4657 = vpack.c.bf16 %v4613, %v4611
        %v4658 = vpack.c.bf16 %v4614, %v4612
        %v4659 = vpack.c.bf16 %v4617, %v4615
        %v4660 = vpack.c.bf16 %v4618, %v4616
        %v4661 = vpack.c.bf16 %v4621, %v4619
        %v4662 = vpack.c.bf16 %v4622, %v4620
        %v4663 = vpack.c.bf16 %v4625, %v4623
        %v4664 = vpack.c.bf16 %v4626, %v4624
        %v4665 = vpack.c.bf16 %v4629, %v4627
        %v4666 = vpack.c.bf16 %v4630, %v4628
        %v4667 = vpack.c.bf16 %v4633, %v4631
        %v4668 = vpack.c.bf16 %v4634, %v4632
        %v4669 = vpack.c.bf16 %v4637, %v4635
        %v4670 = vpack.c.bf16 %v4638, %v4636
        %v4671 = vpack.c.bf16 %v4641, %v4639
        %v4672 = vpack.c.bf16 %v4642, %v4640
        %v4673 = vpack.c.bf16 %v4645, %v4643
        %v4674 = vpack.c.bf16 %v4646, %v4644
        %v4675 = vpack.c.bf16 %v4649, %v4647
        %v4676 = vpack.c.bf16 %v4650, %v4648
        %v4677 = vpack.c.bf16 %v4653, %v4651
        %v4678 = vpack.c.bf16 %v4654, %v4652
        %4679 = vmatprep.subr.bf16.mxu0 %v828
        %4680 = vmatpush1.bf16.msra.mxu0 %v827
        %4681 = vmatprep.subr.bf16.mxu0 %v832
        %4682 = vmatpush1.bf16.msra.mxu0 %v831
        %4683 = vmatprep.subr.bf16.mxu0 %v836
        %4684 = vmatpush1.bf16.msra.mxu0 %v835
        %4685 = vmatprep.subr.bf16.mxu0 %v840
        %4686 = vmatpush1.bf16.msra.mxu0 %v839
        %4687 = vmatprep.subr.bf16.mxu0 %v844
        %4688 = vmatpush1.bf16.msra.mxu0 %v843
        %4689 = vmatprep.subr.bf16.mxu0 %v848
        %4690 = vmatpush1.bf16.msra.mxu0 %v847
        %4691 = vmatprep.subr.bf16.mxu0 %v852
        %4692 = vmatpush1.bf16.msra.mxu0 %v851
        %4693 = vmatprep.subr.bf16.mxu0 %v856
        %4694 = vmatpush1.bf16.msra.mxu0 %v855
        %4695 = vmatprep.subr.bf16.mxu0 %v860
        %4696 = vmatpush1.bf16.msra.mxu0 %v859
        %4697 = vmatprep.subr.bf16.mxu0 %v864
        %4698 = vmatpush1.bf16.msra.mxu0 %v863
        %4699 = vmatprep.subr.bf16.mxu0 %v868
        %4700 = vmatpush1.bf16.msra.mxu0 %v867
        %4701 = vmatprep.subr.bf16.mxu0 %v872
        %4702 = vmatpush1.bf16.msra.mxu0 %v871
        %4703 = vmatprep.subr.bf16.mxu0 %v876
        %4704 = vmatpush1.bf16.msra.mxu0 %v875
        %4705 = vmatprep.subr.bf16.mxu0 %v880
        %4706 = vmatpush1.bf16.msra.mxu0 %v879
        %4707 = vmatprep.subr.bf16.mxu0 %v884
        %4708 = vmatpush1.bf16.msra.mxu0 %v883
        %4709 = vmatprep.subr.bf16.mxu0 %v888
        %4710 = vmatpush1.bf16.msra.mxu0 %v887
        %4711 = vmatprep.mubr.bf16.mxu0 %v4656
        %4712 = vmatmul.mubr.bf16.gmra.mrb[0].mxu0 %v4655
        %v4713 = vpop.f32.mrb[0].mxu0
        %v4714 = vadd.f32 0.0, %v4713
        %v4715 = vpop.f32.mrb[0].mxu0
        %v4716 = vadd.f32 0.0, %v4715
        %v4717 = vpop.f32.mrb[0].mxu0
        %v4718 = vadd.f32 0.0, %v4717
        %v4719 = vpop.f32.mrb[0].mxu0
        %v4720 = vadd.f32 0.0, %v4719
        %4721 = vmatprep.mubr.bf16.mxu0 %v4658
        %4722 = vmatmul.mubr.bf16.gmra.mrb[0].mxu0 %v4657
        %v4723 = vpop.f32.mrb[0].mxu0
        %v4724 = vadd.f32 0.0, %v4723
        %v4725 = vpop.f32.mrb[0].mxu0
        %v4726 = vadd.f32 0.0, %v4725
        %v4727 = vpop.f32.mrb[0].mxu0
        %v4728 = vadd.f32 0.0, %v4727
        %v4729 = vpop.f32.mrb[0].mxu0
        %v4730 = vadd.f32 0.0, %v4729
        %4731 = vmatprep.mubr.bf16.mxu0 %v4660
        %4732 = vmatmul.mubr.bf16.gmra.mrb[0].mxu0 %v4659
        %v4733 = vpop.f32.mrb[0].mxu0
        %v4734 = vadd.f32 0.0, %v4733
        %v4735 = vpop.f32.mrb[0].mxu0
        %v4736 = vadd.f32 0.0, %v4735
        %v4737 = vpop.f32.mrb[0].mxu0
        %v4738 = vadd.f32 0.0, %v4737
        %v4739 = vpop.f32.mrb[0].mxu0
        %v4740 = vadd.f32 0.0, %v4739
        %4741 = vmatprep.mubr.bf16.mxu0 %v4662
        %4742 = vmatmul.mubr.bf16.gmra.mrb[0].mxu0 %v4661
        %v4743 = vpop.f32.mrb[0].mxu0
        %v4744 = vadd.f32 0.0, %v4743
        %v4745 = vpop.f32.mrb[0].mxu0
        %v4746 = vadd.f32 0.0, %v4745
        %v4747 = vpop.f32.mrb[0].mxu0
        %v4748 = vadd.f32 0.0, %v4747
        %v4749 = vpop.f32.mrb[0].mxu0
        %v4750 = vadd.f32 0.0, %v4749
        %4751 = vmatprep.mubr.bf16.mxu0 %v4664
        %4752 = vmatmul.mubr.bf16.gmra.mrb[0].mxu0 %v4663
        %v4753 = vpop.f32.mrb[0].mxu0
        %v4754 = vadd.f32 0.0, %v4753
        %v4755 = vpop.f32.mrb[0].mxu0
        %v4756 = vadd.f32 0.0, %v4755
        %v4757 = vpop.f32.mrb[0].mxu0
        %v4758 = vadd.f32 0.0, %v4757
        %v4759 = vpop.f32.mrb[0].mxu0
        %v4760 = vadd.f32 0.0, %v4759
        %4761 = vmatprep.mubr.bf16.mxu0 %v4666
        %4762 = vmatmul.mubr.bf16.gmra.mrb[0].mxu0 %v4665
        %v4763 = vpop.f32.mrb[0].mxu0
        %v4764 = vadd.f32 0.0, %v4763
        %v4765 = vpop.f32.mrb[0].mxu0
        %v4766 = vadd.f32 0.0, %v4765
        %v4767 = vpop.f32.mrb[0].mxu0
        %v4768 = vadd.f32 0.0, %v4767
        %v4769 = vpop.f32.mrb[0].mxu0
        %v4770 = vadd.f32 0.0, %v4769
        %4771 = vmatprep.mubr.bf16.mxu0 %v4668
        %4772 = vmatmul.mubr.bf16.gmra.mrb[0].mxu0 %v4667
        %v4773 = vpop.f32.mrb[0].mxu0
        %v4774 = vadd.f32 0.0, %v4773
        %v4775 = vpop.f32.mrb[0].mxu0
        %v4776 = vadd.f32 0.0, %v4775
        %v4777 = vpop.f32.mrb[0].mxu0
        %v4778 = vadd.f32 0.0, %v4777
        %v4779 = vpop.f32.mrb[0].mxu0
        %v4780 = vadd.f32 0.0, %v4779
        %4781 = vmatprep.mubr.bf16.mxu0 %v4670
        %4782 = vmatmul.mubr.bf16.gmra.mrb[0].mxu0 %v4669
        %v4783 = vpop.f32.mrb[0].mxu0
        %v4784 = vadd.f32 0.0, %v4783
        %v4785 = vpop.f32.mrb[0].mxu0
        %v4786 = vadd.f32 0.0, %v4785
        %v4787 = vpop.f32.mrb[0].mxu0
        %v4788 = vadd.f32 0.0, %v4787
        %v4789 = vpop.f32.mrb[0].mxu0
        %v4790 = vadd.f32 0.0, %v4789
        %4791 = vmatprep.mubr.bf16.mxu0 %v4672
        %4792 = vmatmul.mubr.bf16.gmra.mrb[0].mxu0 %v4671
        %v4793 = vpop.f32.mrb[0].mxu0
        %v4794 = vadd.f32 0.0, %v4793
        %v4795 = vpop.f32.mrb[0].mxu0
        %v4796 = vadd.f32 0.0, %v4795
        %v4797 = vpop.f32.mrb[0].mxu0
        %v4798 = vadd.f32 0.0, %v4797
        %v4799 = vpop.f32.mrb[0].mxu0
        %v4800 = vadd.f32 0.0, %v4799
        %4801 = vmatprep.mubr.bf16.mxu0 %v4674
        %4802 = vmatmul.mubr.bf16.gmra.mrb[0].mxu0 %v4673
        %v4803 = vpop.f32.mrb[0].mxu0
        %v4804 = vadd.f32 0.0, %v4803
        %v4805 = vpop.f32.mrb[0].mxu0
        %v4806 = vadd.f32 0.0, %v4805
        %v4807 = vpop.f32.mrb[0].mxu0
        %v4808 = vadd.f32 0.0, %v4807
        %v4809 = vpop.f32.mrb[0].mxu0
        %v4810 = vadd.f32 0.0, %v4809
        %4811 = vmatprep.mubr.bf16.mxu0 %v4676
        %4812 = vmatmul.mubr.bf16.gmra.mrb[0].mxu0 %v4675
        %v4813 = vpop.f32.mrb[0].mxu0
        %v4814 = vadd.f32 0.0, %v4813
        %v4815 = vpop.f32.mrb[0].mxu0
        %v4816 = vadd.f32 0.0, %v4815
        %v4817 = vpop.f32.mrb[0].mxu0
        %v4818 = vadd.f32 0.0, %v4817
        %v4819 = vpop.f32.mrb[0].mxu0
        %v4820 = vadd.f32 0.0, %v4819
        %4821 = vmatprep.mubr.bf16.mxu0 %v4678
        %4822 = vmatmul.mubr.bf16.gmra.mrb[0].mxu0 %v4677
        %v4823 = vpop.f32.mrb[0].mxu0
        %v4824 = vadd.f32 0.0, %v4823
        %v4825 = vpop.f32.mrb[0].mxu0
        %v4826 = vadd.f32 0.0, %v4825
        %v4827 = vpop.f32.mrb[0].mxu0
        %v4828 = vadd.f32 0.0, %v4827
        %v4829 = vpop.f32.mrb[0].mxu0
        %v4830 = vadd.f32 0.0, %v4829
        %4831 = vdwg.mxu0
        %4832 = vmatprep.subr.bf16.mxu0 %v830
        %4833 = vmatpush1.bf16.msra.mxu0 %v829
        %4834 = vmatprep.subr.bf16.mxu0 %v834
        %4835 = vmatpush1.bf16.msra.mxu0 %v833
        %4836 = vmatprep.subr.bf16.mxu0 %v838
        %4837 = vmatpush1.bf16.msra.mxu0 %v837
        %4838 = vmatprep.subr.bf16.mxu0 %v842
        %4839 = vmatpush1.bf16.msra.mxu0 %v841
        %4840 = vmatprep.subr.bf16.mxu0 %v846
        %4841 = vmatpush1.bf16.msra.mxu0 %v845
        %4842 = vmatprep.subr.bf16.mxu0 %v850
        %4843 = vmatpush1.bf16.msra.mxu0 %v849
        %4844 = vmatprep.subr.bf16.mxu0 %v854
        %4845 = vmatpush1.bf16.msra.mxu0 %v853
        %4846 = vmatprep.subr.bf16.mxu0 %v858
        %4847 = vmatpush1.bf16.msra.mxu0 %v857
        %4848 = vmatprep.subr.bf16.mxu0 %v862
        %4849 = vmatpush1.bf16.msra.mxu0 %v861
        %4850 = vmatprep.subr.bf16.mxu0 %v866
        %4851 = vmatpush1.bf16.msra.mxu0 %v865
        %4852 = vmatprep.subr.bf16.mxu0 %v870
        %4853 = vmatpush1.bf16.msra.mxu0 %v869
        %4854 = vmatprep.subr.bf16.mxu0 %v874
        %4855 = vmatpush1.bf16.msra.mxu0 %v873
        %4856 = vmatprep.subr.bf16.mxu0 %v878
        %4857 = vmatpush1.bf16.msra.mxu0 %v877
        %4858 = vmatprep.subr.bf16.mxu0 %v882
        %4859 = vmatpush1.bf16.msra.mxu0 %v881
        %4860 = vmatprep.subr.bf16.mxu0 %v886
        %4861 = vmatpush1.bf16.msra.mxu0 %v885
        %4862 = vmatprep.subr.bf16.mxu0 %v890
        %4863 = vmatpush1.bf16.msra.mxu0 %v889
        %4864 = vmatprep.mubr.bf16.mxu0 %v4656
        %4865 = vmatmul.mubr.bf16.gmra.mrb[0].mxu0 %v4655
        %v4866 = vpop.f32.mrb[0].mxu0
        %v4867 = vadd.f32 0.0, %v4866
        %v4868 = vpop.f32.mrb[0].mxu0
        %v4869 = vadd.f32 0.0, %v4868
        %v4870 = vpop.f32.mrb[0].mxu0
        %v4871 = vadd.f32 0.0, %v4870
        %v4872 = vpop.f32.mrb[0].mxu0
        %v4873 = vadd.f32 0.0, %v4872
        %4874 = vmatprep.mubr.bf16.mxu0 %v4658
        %4875 = vmatmul.mubr.bf16.gmra.mrb[0].mxu0 %v4657
        %v4876 = vpop.f32.mrb[0].mxu0
        %v4877 = vadd.f32 0.0, %v4876
        %v4878 = vpop.f32.mrb[0].mxu0
        %v4879 = vadd.f32 0.0, %v4878
        %v4880 = vpop.f32.mrb[0].mxu0
        %v4881 = vadd.f32 0.0, %v4880
        %v4882 = vpop.f32.mrb[0].mxu0
        %v4883 = vadd.f32 0.0, %v4882
        %4884 = vmatprep.mubr.bf16.mxu0 %v4660
        %4885 = vmatmul.mubr.bf16.gmra.mrb[0].mxu0 %v4659
        %v4886 = vpop.f32.mrb[0].mxu0
        %v4887 = vadd.f32 0.0, %v4886
        %v4888 = vpop.f32.mrb[0].mxu0
        %v4889 = vadd.f32 0.0, %v4888
        %v4890 = vpop.f32.mrb[0].mxu0
        %v4891 = vadd.f32 0.0, %v4890
        %v4892 = vpop.f32.mrb[0].mxu0
        %v4893 = vadd.f32 0.0, %v4892
        %4894 = vmatprep.mubr.bf16.mxu0 %v4662
        %4895 = vmatmul.mubr.bf16.gmra.mrb[0].mxu0 %v4661
        %v4896 = vpop.f32.mrb[0].mxu0
        %v4897 = vadd.f32 0.0, %v4896
        %v4898 = vpop.f32.mrb[0].mxu0
        %v4899 = vadd.f32 0.0, %v4898
        %v4900 = vpop.f32.mrb[0].mxu0
        %v4901 = vadd.f32 0.0, %v4900
        %v4902 = vpop.f32.mrb[0].mxu0
        %v4903 = vadd.f32 0.0, %v4902
        %4904 = vmatprep.mubr.bf16.mxu0 %v4664
        %4905 = vmatmul.mubr.bf16.gmra.mrb[0].mxu0 %v4663
        %v4906 = vpop.f32.mrb[0].mxu0
        %v4907 = vadd.f32 0.0, %v4906
        %v4908 = vpop.f32.mrb[0].mxu0
        %v4909 = vadd.f32 0.0, %v4908
        %v4910 = vpop.f32.mrb[0].mxu0
        %v4911 = vadd.f32 0.0, %v4910
        %v4912 = vpop.f32.mrb[0].mxu0
        %v4913 = vadd.f32 0.0, %v4912
        %4914 = vmatprep.mubr.bf16.mxu0 %v4666
        %4915 = vmatmul.mubr.bf16.gmra.mrb[0].mxu0 %v4665
        %v4916 = vpop.f32.mrb[0].mxu0
        %v4917 = vadd.f32 0.0, %v4916
        %v4918 = vpop.f32.mrb[0].mxu0
        %v4919 = vadd.f32 0.0, %v4918
        %v4920 = vpop.f32.mrb[0].mxu0
        %v4921 = vadd.f32 0.0, %v4920
        %v4922 = vpop.f32.mrb[0].mxu0
        %v4923 = vadd.f32 0.0, %v4922
        %4924 = vmatprep.mubr.bf16.mxu0 %v4668
        %4925 = vmatmul.mubr.bf16.gmra.mrb[0].mxu0 %v4667
        %v4926 = vpop.f32.mrb[0].mxu0
        %v4927 = vadd.f32 0.0, %v4926
        %v4928 = vpop.f32.mrb[0].mxu0
        %v4929 = vadd.f32 0.0, %v4928
        %v4930 = vpop.f32.mrb[0].mxu0
        %v4931 = vadd.f32 0.0, %v4930
        %v4932 = vpop.f32.mrb[0].mxu0
        %v4933 = vadd.f32 0.0, %v4932
        %4934 = vmatprep.mubr.bf16.mxu0 %v4670
        %4935 = vmatmul.mubr.bf16.gmra.mrb[0].mxu0 %v4669
        %v4936 = vpop.f32.mrb[0].mxu0
        %v4937 = vadd.f32 0.0, %v4936
        %v4938 = vpop.f32.mrb[0].mxu0
        %v4939 = vadd.f32 0.0, %v4938
        %v4940 = vpop.f32.mrb[0].mxu0
        %v4941 = vadd.f32 0.0, %v4940
        %v4942 = vpop.f32.mrb[0].mxu0
        %v4943 = vadd.f32 0.0, %v4942
        %4944 = vmatprep.mubr.bf16.mxu0 %v4672
        %4945 = vmatmul.mubr.bf16.gmra.mrb[0].mxu0 %v4671
        %v4946 = vpop.f32.mrb[0].mxu0
        %v4947 = vadd.f32 0.0, %v4946
        %v4948 = vpop.f32.mrb[0].mxu0
        %v4949 = vadd.f32 0.0, %v4948
        %v4950 = vpop.f32.mrb[0].mxu0
        %v4951 = vadd.f32 0.0, %v4950
        %v4952 = vpop.f32.mrb[0].mxu0
        %v4953 = vadd.f32 0.0, %v4952
        %4954 = vmatprep.mubr.bf16.mxu0 %v4674
        %4955 = vmatmul.mubr.bf16.gmra.mrb[0].mxu0 %v4673
        %v4956 = vpop.f32.mrb[0].mxu0
        %v4957 = vadd.f32 0.0, %v4956
        %v4958 = vpop.f32.mrb[0].mxu0
        %v4959 = vadd.f32 0.0, %v4958
        %v4960 = vpop.f32.mrb[0].mxu0
        %v4961 = vadd.f32 0.0, %v4960
        %v4962 = vpop.f32.mrb[0].mxu0
        %v4963 = vadd.f32 0.0, %v4962
        %4964 = vmatprep.mubr.bf16.mxu0 %v4676
        %4965 = vmatmul.mubr.bf16.gmra.mrb[0].mxu0 %v4675
        %v4966 = vpop.f32.mrb[0].mxu0
        %v4967 = vadd.f32 0.0, %v4966
        %v4968 = vpop.f32.mrb[0].mxu0
        %v4969 = vadd.f32 0.0, %v4968
        %v4970 = vpop.f32.mrb[0].mxu0
        %v4971 = vadd.f32 0.0, %v4970
        %v4972 = vpop.f32.mrb[0].mxu0
        %v4973 = vadd.f32 0.0, %v4972
        %4974 = vmatprep.mubr.bf16.mxu0 %v4678
        %4975 = vmatmul.mubr.bf16.gmra.mrb[0].mxu0 %v4677
        %v4976 = vpop.f32.mrb[0].mxu0
        %v4977 = vadd.f32 0.0, %v4976
        %v4978 = vpop.f32.mrb[0].mxu0
        %v4979 = vadd.f32 0.0, %v4978
        %v4980 = vpop.f32.mrb[0].mxu0
        %v4981 = vadd.f32 0.0, %v4980
        %v4982 = vpop.f32.mrb[0].mxu0
        %v4983 = vadd.f32 0.0, %v4982
        %4984 = vdwg.mxu0
        %v4985 = vld [vmem:[#allocation5] sm:$0xff]
        %v4986 = vld [vmem:[#allocation5 + $0x8] sm:$0xff]
        %v4987 = vld [vmem:[#allocation5 + $0x10] sm:$0xff]
        %v4988 = vld [vmem:[#allocation5 + $0x18] sm:$0xff]
        %v4989 = vld [vmem:[#allocation5 + $0x20] sm:$0xff]
        %v4990 = vld [vmem:[#allocation5 + $0x28] sm:$0xff]
        %v4991 = vld [vmem:[#allocation5 + $0x30] sm:$0xff]
        %v4992 = vld [vmem:[#allocation5 + $0x38] sm:$0xff]
        %v4993 = vld [vmem:[#allocation5 + $0x40] sm:$0xff]
        %v4994 = vld [vmem:[#allocation5 + $0x48] sm:$0xff]
        %v4995 = vld [vmem:[#allocation5 + $0x50] sm:$0xff]
        %v4996 = vld [vmem:[#allocation5 + $0x58] sm:$0xff]
        %v4997 = vld [vmem:[#allocation5 + $0x60] sm:$0xff]
        %v4998 = vld [vmem:[#allocation5 + $0x68] sm:$0xff]
        %v4999 = vld [vmem:[#allocation5 + $0x70] sm:$0xff]
        %v5000 = vld [vmem:[#allocation5 + $0x78] sm:$0xff]
        %v5001 = vld [vmem:[#allocation5 + $0x80] sm:$0xff]
        %v5002 = vld [vmem:[#allocation5 + $0x88] sm:$0xff]
        %v5003 = vld [vmem:[#allocation5 + $0x90] sm:$0xff]
        %v5004 = vld [vmem:[#allocation5 + $0x98] sm:$0xff]
        %v5005 = vld [vmem:[#allocation5 + $0xa0] sm:$0xff]
        %v5006 = vld [vmem:[#allocation5 + $0xa8] sm:$0xff]
        %v5007 = vld [vmem:[#allocation5 + $0xb0] sm:$0xff]
        %v5008 = vld [vmem:[#allocation5 + $0xb8] sm:$0xff]
        %v5009 = vpack.c.bf16 %v4718, %v4714
        %v5010 = vpack.c.bf16 %v4720, %v4716
        %v5011 = vpack.c.bf16 %v4728, %v4724
        %v5012 = vpack.c.bf16 %v4730, %v4726
        %v5013 = vpack.c.bf16 %v4738, %v4734
        %v5014 = vpack.c.bf16 %v4740, %v4736
        %v5015 = vpack.c.bf16 %v4748, %v4744
        %v5016 = vpack.c.bf16 %v4750, %v4746
        %v5017 = vpack.c.bf16 %v4758, %v4754
        %v5018 = vpack.c.bf16 %v4760, %v4756
        %v5019 = vpack.c.bf16 %v4768, %v4764
        %v5020 = vpack.c.bf16 %v4770, %v4766
        %v5021 = vpack.c.bf16 %v4778, %v4774
        %v5022 = vpack.c.bf16 %v4780, %v4776
        %v5023 = vpack.c.bf16 %v4788, %v4784
        %v5024 = vpack.c.bf16 %v4790, %v4786
        %v5025 = vpack.c.bf16 %v4798, %v4794
        %v5026 = vpack.c.bf16 %v4800, %v4796
        %v5027 = vpack.c.bf16 %v4808, %v4804
        %v5028 = vpack.c.bf16 %v4810, %v4806
        %v5029 = vpack.c.bf16 %v4818, %v4814
        %v5030 = vpack.c.bf16 %v4820, %v4816
        %v5031 = vpack.c.bf16 %v4828, %v4824
        %v5032 = vpack.c.bf16 %v4830, %v4826
        %s5033 = scalar_lea.vmem [#allocation5], 192
        %v5034 = vld [vmem:[%s5033] sm:$0xff]
        %v5035 = vld [vmem:[%s5033 + $0x8] sm:$0xff]
        %v5036 = vld [vmem:[%s5033 + $0x10] sm:$0xff]
        %v5037 = vld [vmem:[%s5033 + $0x18] sm:$0xff]
        %v5038 = vld [vmem:[%s5033 + $0x20] sm:$0xff]
        %v5039 = vld [vmem:[%s5033 + $0x28] sm:$0xff]
        %v5040 = vld [vmem:[%s5033 + $0x30] sm:$0xff]
        %v5041 = vld [vmem:[%s5033 + $0x38] sm:$0xff]
        %v5042 = vld [vmem:[%s5033 + $0x40] sm:$0xff]
        %v5043 = vld [vmem:[%s5033 + $0x48] sm:$0xff]
        %v5044 = vld [vmem:[%s5033 + $0x50] sm:$0xff]
        %v5045 = vld [vmem:[%s5033 + $0x58] sm:$0xff]
        %v5046 = vld [vmem:[%s5033 + $0x60] sm:$0xff]
        %v5047 = vld [vmem:[%s5033 + $0x68] sm:$0xff]
        %v5048 = vld [vmem:[%s5033 + $0x70] sm:$0xff]
        %v5049 = vld [vmem:[%s5033 + $0x78] sm:$0xff]
        %v5050 = vld [vmem:[%s5033 + $0x80] sm:$0xff]
        %v5051 = vld [vmem:[%s5033 + $0x88] sm:$0xff]
        %v5052 = vld [vmem:[%s5033 + $0x90] sm:$0xff]
        %v5053 = vld [vmem:[%s5033 + $0x98] sm:$0xff]
        %v5054 = vld [vmem:[%s5033 + $0xa0] sm:$0xff]
        %v5055 = vld [vmem:[%s5033 + $0xa8] sm:$0xff]
        %v5056 = vld [vmem:[%s5033 + $0xb0] sm:$0xff]
        %v5057 = vld [vmem:[%s5033 + $0xb8] sm:$0xff]
        %v5082 = vunpack.c.l.b16 %v5034
        %v5083 = vunpack.c.h.b16 %v5034
        %v5084 = vunpack.c.l.b16 %v5035
        %v5085 = vunpack.c.h.b16 %v5035
        %v5086 = vunpack.c.l.b16 %v5036
        %v5087 = vunpack.c.h.b16 %v5036
        %v5088 = vunpack.c.l.b16 %v5037
        %v5089 = vunpack.c.h.b16 %v5037
        %v5090 = vunpack.c.l.b16 %v5038
        %v5091 = vunpack.c.h.b16 %v5038
        %v5092 = vunpack.c.l.b16 %v5039
        %v5093 = vunpack.c.h.b16 %v5039
        %v5094 = vunpack.c.l.b16 %v5040
        %v5095 = vunpack.c.h.b16 %v5040
        %v5096 = vunpack.c.l.b16 %v5041
        %v5097 = vunpack.c.h.b16 %v5041
        %v5098 = vunpack.c.l.b16 %v5042
        %v5099 = vunpack.c.h.b16 %v5042
        %v5100 = vunpack.c.l.b16 %v5043
        %v5101 = vunpack.c.h.b16 %v5043
        %v5102 = vunpack.c.l.b16 %v5044
        %v5103 = vunpack.c.h.b16 %v5044
        %v5104 = vunpack.c.l.b16 %v5045
        %v5105 = vunpack.c.h.b16 %v5045
        %v5106 = vunpack.c.l.b16 %v5046
        %v5107 = vunpack.c.h.b16 %v5046
        %v5108 = vunpack.c.l.b16 %v5047
        %v5109 = vunpack.c.h.b16 %v5047
        %v5110 = vunpack.c.l.b16 %v5048
        %v5111 = vunpack.c.h.b16 %v5048
        %v5112 = vunpack.c.l.b16 %v5049
        %v5113 = vunpack.c.h.b16 %v5049
        %v5114 = vunpack.c.l.b16 %v5050
        %v5115 = vunpack.c.h.b16 %v5050
        %v5116 = vunpack.c.l.b16 %v5051
        %v5117 = vunpack.c.h.b16 %v5051
        %v5118 = vunpack.c.l.b16 %v5052
        %v5119 = vunpack.c.h.b16 %v5052
        %v5120 = vunpack.c.l.b16 %v5053
        %v5121 = vunpack.c.h.b16 %v5053
        %v5122 = vunpack.c.l.b16 %v5054
        %v5123 = vunpack.c.h.b16 %v5054
        %v5124 = vunpack.c.l.b16 %v5055
        %v5125 = vunpack.c.h.b16 %v5055
        %v5126 = vunpack.c.l.b16 %v5056
        %v5127 = vunpack.c.h.b16 %v5056
        %v5128 = vunpack.c.l.b16 %v5057
        %v5129 = vunpack.c.h.b16 %v5057
        %v5130 = vpack.c.b16 %v5084, %v5082
        %v5131 = vpack.c.b16 %v5085, %v5083
        %v5132 = vpack.c.b16 %v5088, %v5086
        %v5133 = vpack.c.b16 %v5089, %v5087
        %v5134 = vpack.c.b16 %v5092, %v5090
        %v5135 = vpack.c.b16 %v5093, %v5091
        %v5136 = vpack.c.b16 %v5096, %v5094
        %v5137 = vpack.c.b16 %v5097, %v5095
        %v5138 = vpack.c.b16 %v5100, %v5098
        %v5139 = vpack.c.b16 %v5101, %v5099
        %v5140 = vpack.c.b16 %v5104, %v5102
        %v5141 = vpack.c.b16 %v5105, %v5103
        %v5142 = vpack.c.b16 %v5108, %v5106
        %v5143 = vpack.c.b16 %v5109, %v5107
        %v5144 = vpack.c.b16 %v5112, %v5110
        %v5145 = vpack.c.b16 %v5113, %v5111
        %v5146 = vpack.c.b16 %v5116, %v5114
        %v5147 = vpack.c.b16 %v5117, %v5115
        %v5148 = vpack.c.b16 %v5120, %v5118
        %v5149 = vpack.c.b16 %v5121, %v5119
        %v5150 = vpack.c.b16 %v5124, %v5122
        %v5151 = vpack.c.b16 %v5125, %v5123
        %v5152 = vpack.c.b16 %v5128, %v5126
        %v5153 = vpack.c.b16 %v5129, %v5127
        %vm5166 = vcmask 523264
        %v5168 = vsel %vm5166, %v5131, 0
        %v5171 = vsel %vm5166, %v5133, 0
        %v5174 = vsel %vm5166, %v5135, 0
        %v5177 = vsel %vm5166, %v5137, 0
        %v5180 = vsel %vm5166, %v5139, 0
        %v5183 = vsel %vm5166, %v5141, 0
        %v5186 = vsel %vm5166, %v5143, 0
        %v5189 = vsel %vm5166, %v5145, 0
        %v5192 = vsel %vm5166, %v5147, 0
        %v5195 = vsel %vm5166, %v5149, 0
        %v5198 = vsel %vm5166, %v5151, 0
        %v5201 = vsel %vm5166, %v5153, 0
        %5203 = vmatprep.subr.bf16.mxu0 %v5010
        %5204 = vmatpush1.bf16.msra.mxu0 %v5009
        %5205 = vmatprep.subr.bf16.mxu0 %v5012
        %5206 = vmatpush1.bf16.msra.mxu0 %v5011
        %5207 = vmatprep.subr.bf16.mxu0 %v5014
        %5208 = vmatpush1.bf16.msra.mxu0 %v5013
        %5209 = vmatprep.subr.bf16.mxu0 %v5016
        %5210 = vmatpush1.bf16.msra.mxu0 %v5015
        %5211 = vmatprep.subr.bf16.mxu0 %v5018
        %5212 = vmatpush1.bf16.msra.mxu0 %v5017
        %5213 = vmatprep.subr.bf16.mxu0 %v5020
        %5214 = vmatpush1.bf16.msra.mxu0 %v5019
        %5215 = vmatprep.subr.bf16.mxu0 %v5022
        %5216 = vmatpush1.bf16.msra.mxu0 %v5021
        %5217 = vmatprep.subr.bf16.mxu0 %v5024
        %5218 = vmatpush1.bf16.msra.mxu0 %v5023
        %5219 = vmatprep.subr.bf16.mxu0 %v5026
        %5220 = vmatpush1.bf16.msra.mxu0 %v5025
        %5221 = vmatprep.subr.bf16.mxu0 %v5028
        %5222 = vmatpush1.bf16.msra.mxu0 %v5027
        %5223 = vmatprep.subr.bf16.mxu0 %v5030
        %5224 = vmatpush1.bf16.msra.mxu0 %v5029
        %5225 = vmatprep.subr.bf16.mxu0 %v5032
        %5226 = vmatpush1.bf16.msra.mxu0 %v5031
        %5227 = vmatprep.subr.bf16.mxu0 0
        %5228 = vmatpush1.bf16.msra.mxu0 0
        %5229 = vmatprep.subr.bf16.mxu0 0
        %5230 = vmatpush1.bf16.msra.mxu0 0
        %5231 = vmatprep.subr.bf16.mxu0 0
        %5232 = vmatpush1.bf16.msra.mxu0 0
        %5233 = vmatprep.subr.bf16.mxu0 0
        %5234 = vmatpush1.bf16.msra.mxu0 0
        %5235 = vmatprep.mubr.bf16.mxu0 %v5168
        %5236 = vmatmul.mubr.bf16.gmra.mrb[0].mxu0 %v5130
        %v5237 = vpop.f32.mrb[0].mxu0
        %v5238 = vadd.f32 0.0, %v5237
        %v5239 = vpop.f32.mrb[0].mxu0
        %v5240 = vadd.f32 0.0, %v5239
        %v5241 = vpop.f32.mrb[0].mxu0
        %v5242 = vadd.f32 0.0, %v5241
        %v5243 = vpop.f32.mrb[0].mxu0
        %v5244 = vadd.f32 0.0, %v5243
        %5245 = vmatprep.mubr.bf16.mxu0 %v5171
        %5246 = vmatmul.mubr.bf16.gmra.mrb[0].mxu0 %v5132
        %v5247 = vpop.f32.mrb[0].mxu0
        %v5248 = vadd.f32 0.0, %v5247
        %v5249 = vpop.f32.mrb[0].mxu0
        %v5250 = vadd.f32 0.0, %v5249
        %v5251 = vpop.f32.mrb[0].mxu0
        %v5252 = vadd.f32 0.0, %v5251
        %v5253 = vpop.f32.mrb[0].mxu0
        %v5254 = vadd.f32 0.0, %v5253
        %5255 = vmatprep.mubr.bf16.mxu0 %v5174
        %5256 = vmatmul.mubr.bf16.gmra.mrb[0].mxu0 %v5134
        %v5257 = vpop.f32.mrb[0].mxu0
        %v5258 = vadd.f32 0.0, %v5257
        %v5259 = vpop.f32.mrb[0].mxu0
        %v5260 = vadd.f32 0.0, %v5259
        %v5261 = vpop.f32.mrb[0].mxu0
        %v5262 = vadd.f32 0.0, %v5261
        %v5263 = vpop.f32.mrb[0].mxu0
        %v5264 = vadd.f32 0.0, %v5263
        %5265 = vmatprep.mubr.bf16.mxu0 %v5177
        %5266 = vmatmul.mubr.bf16.gmra.mrb[0].mxu0 %v5136
        %v5267 = vpop.f32.mrb[0].mxu0
        %v5268 = vadd.f32 0.0, %v5267
        %v5269 = vpop.f32.mrb[0].mxu0
        %v5270 = vadd.f32 0.0, %v5269
        %v5271 = vpop.f32.mrb[0].mxu0
        %v5272 = vadd.f32 0.0, %v5271
        %v5273 = vpop.f32.mrb[0].mxu0
        %v5274 = vadd.f32 0.0, %v5273
        %5275 = vmatprep.mubr.bf16.mxu0 %v5180
        %5276 = vmatmul.mubr.bf16.gmra.mrb[0].mxu0 %v5138
        %v5277 = vpop.f32.mrb[0].mxu0
        %v5278 = vadd.f32 0.0, %v5277
        %v5279 = vpop.f32.mrb[0].mxu0
        %v5280 = vadd.f32 0.0, %v5279
        %v5281 = vpop.f32.mrb[0].mxu0
        %v5282 = vadd.f32 0.0, %v5281
        %v5283 = vpop.f32.mrb[0].mxu0
        %v5284 = vadd.f32 0.0, %v5283
        %5285 = vmatprep.mubr.bf16.mxu0 %v5183
        %5286 = vmatmul.mubr.bf16.gmra.mrb[0].mxu0 %v5140
        %v5287 = vpop.f32.mrb[0].mxu0
        %v5288 = vadd.f32 0.0, %v5287
        %v5289 = vpop.f32.mrb[0].mxu0
        %v5290 = vadd.f32 0.0, %v5289
        %v5291 = vpop.f32.mrb[0].mxu0
        %v5292 = vadd.f32 0.0, %v5291
        %v5293 = vpop.f32.mrb[0].mxu0
        %v5294 = vadd.f32 0.0, %v5293
        %5295 = vmatprep.mubr.bf16.mxu0 %v5186
        %5296 = vmatmul.mubr.bf16.gmra.mrb[0].mxu0 %v5142
        %v5297 = vpop.f32.mrb[0].mxu0
        %v5298 = vadd.f32 0.0, %v5297
        %v5299 = vpop.f32.mrb[0].mxu0
        %v5300 = vadd.f32 0.0, %v5299
        %v5301 = vpop.f32.mrb[0].mxu0
        %v5302 = vadd.f32 0.0, %v5301
        %v5303 = vpop.f32.mrb[0].mxu0
        %v5304 = vadd.f32 0.0, %v5303
        %5305 = vmatprep.mubr.bf16.mxu0 %v5189
        %5306 = vmatmul.mubr.bf16.gmra.mrb[0].mxu0 %v5144
        %v5307 = vpop.f32.mrb[0].mxu0
        %v5308 = vadd.f32 0.0, %v5307
        %v5309 = vpop.f32.mrb[0].mxu0
        %v5310 = vadd.f32 0.0, %v5309
        %v5311 = vpop.f32.mrb[0].mxu0
        %v5312 = vadd.f32 0.0, %v5311
        %v5313 = vpop.f32.mrb[0].mxu0
        %v5314 = vadd.f32 0.0, %v5313
        %5315 = vmatprep.mubr.bf16.mxu0 %v5192
        %5316 = vmatmul.mubr.bf16.gmra.mrb[0].mxu0 %v5146
        %v5317 = vpop.f32.mrb[0].mxu0
        %v5318 = vadd.f32 0.0, %v5317
        %v5319 = vpop.f32.mrb[0].mxu0
        %v5320 = vadd.f32 0.0, %v5319
        %v5321 = vpop.f32.mrb[0].mxu0
        %v5322 = vadd.f32 0.0, %v5321
        %v5323 = vpop.f32.mrb[0].mxu0
        %v5324 = vadd.f32 0.0, %v5323
        %5325 = vmatprep.mubr.bf16.mxu0 %v5195
        %5326 = vmatmul.mubr.bf16.gmra.mrb[0].mxu0 %v5148
        %v5327 = vpop.f32.mrb[0].mxu0
        %v5328 = vadd.f32 0.0, %v5327
        %v5329 = vpop.f32.mrb[0].mxu0
        %v5330 = vadd.f32 0.0, %v5329
        %v5331 = vpop.f32.mrb[0].mxu0
        %v5332 = vadd.f32 0.0, %v5331
        %v5333 = vpop.f32.mrb[0].mxu0
        %v5334 = vadd.f32 0.0, %v5333
        %5335 = vmatprep.mubr.bf16.mxu0 %v5198
        %5336 = vmatmul.mubr.bf16.gmra.mrb[0].mxu0 %v5150
        %v5337 = vpop.f32.mrb[0].mxu0
        %v5338 = vadd.f32 0.0, %v5337
        %v5339 = vpop.f32.mrb[0].mxu0
        %v5340 = vadd.f32 0.0, %v5339
        %v5341 = vpop.f32.mrb[0].mxu0
        %v5342 = vadd.f32 0.0, %v5341
        %v5343 = vpop.f32.mrb[0].mxu0
        %v5344 = vadd.f32 0.0, %v5343
        %5345 = vmatprep.mubr.bf16.mxu0 %v5201
        %5346 = vmatmul.mubr.bf16.gmra.mrb[0].mxu0 %v5152
        %v5347 = vpop.f32.mrb[0].mxu0
        %v5348 = vadd.f32 0.0, %v5347
        %v5349 = vpop.f32.mrb[0].mxu0
        %v5350 = vadd.f32 0.0, %v5349
        %v5351 = vpop.f32.mrb[0].mxu0
        %v5352 = vadd.f32 0.0, %v5351
        %v5353 = vpop.f32.mrb[0].mxu0
        %v5354 = vadd.f32 0.0, %v5353
        %5355 = vdwg.mxu0
        %v5380 = vunpack.c.l.b16 %v4985
        %v5381 = vunpack.c.h.b16 %v4985
        %v5382 = vunpack.c.l.b16 %v4986
        %v5383 = vunpack.c.h.b16 %v4986
        %v5384 = vunpack.c.l.b16 %v4987
        %v5385 = vunpack.c.h.b16 %v4987
        %v5386 = vunpack.c.l.b16 %v4988
        %v5387 = vunpack.c.h.b16 %v4988
        %v5388 = vunpack.c.l.b16 %v4989
        %v5389 = vunpack.c.h.b16 %v4989
        %v5390 = vunpack.c.l.b16 %v4990
        %v5391 = vunpack.c.h.b16 %v4990
        %v5392 = vunpack.c.l.b16 %v4991
        %v5393 = vunpack.c.h.b16 %v4991
        %v5394 = vunpack.c.l.b16 %v4992
        %v5395 = vunpack.c.h.b16 %v4992
        %v5396 = vunpack.c.l.b16 %v4993
        %v5397 = vunpack.c.h.b16 %v4993
        %v5398 = vunpack.c.l.b16 %v4994
        %v5399 = vunpack.c.h.b16 %v4994
        %v5400 = vunpack.c.l.b16 %v4995
        %v5401 = vunpack.c.h.b16 %v4995
        %v5402 = vunpack.c.l.b16 %v4996
        %v5403 = vunpack.c.h.b16 %v4996
        %v5404 = vunpack.c.l.b16 %v4997
        %v5405 = vunpack.c.h.b16 %v4997
        %v5406 = vunpack.c.l.b16 %v4998
        %v5407 = vunpack.c.h.b16 %v4998
        %v5408 = vunpack.c.l.b16 %v4999
        %v5409 = vunpack.c.h.b16 %v4999
        %v5410 = vunpack.c.l.b16 %v5000
        %v5411 = vunpack.c.h.b16 %v5000
        %v5412 = vunpack.c.l.b16 %v5001
        %v5413 = vunpack.c.h.b16 %v5001
        %v5414 = vunpack.c.l.b16 %v5002
        %v5415 = vunpack.c.h.b16 %v5002
        %v5416 = vunpack.c.l.b16 %v5003
        %v5417 = vunpack.c.h.b16 %v5003
        %v5418 = vunpack.c.l.b16 %v5004
        %v5419 = vunpack.c.h.b16 %v5004
        %v5420 = vunpack.c.l.b16 %v5005
        %v5421 = vunpack.c.h.b16 %v5005
        %v5422 = vunpack.c.l.b16 %v5006
        %v5423 = vunpack.c.h.b16 %v5006
        %v5424 = vunpack.c.l.b16 %v5007
        %v5425 = vunpack.c.h.b16 %v5007
        %v5426 = vunpack.c.l.b16 %v5008
        %v5427 = vunpack.c.h.b16 %v5008
        %v5428 = vpack.c.b16 %v5382, %v5380
        %v5429 = vpack.c.b16 %v5383, %v5381
        %v5430 = vpack.c.b16 %v5386, %v5384
        %v5431 = vpack.c.b16 %v5387, %v5385
        %v5432 = vpack.c.b16 %v5390, %v5388
        %v5433 = vpack.c.b16 %v5391, %v5389
        %v5434 = vpack.c.b16 %v5394, %v5392
        %v5435 = vpack.c.b16 %v5395, %v5393
        %v5436 = vpack.c.b16 %v5398, %v5396
        %v5437 = vpack.c.b16 %v5399, %v5397
        %v5438 = vpack.c.b16 %v5402, %v5400
        %v5439 = vpack.c.b16 %v5403, %v5401
        %v5440 = vpack.c.b16 %v5406, %v5404
        %v5441 = vpack.c.b16 %v5407, %v5405
        %v5442 = vpack.c.b16 %v5410, %v5408
        %v5443 = vpack.c.b16 %v5411, %v5409
        %v5444 = vpack.c.b16 %v5414, %v5412
        %v5445 = vpack.c.b16 %v5415, %v5413
        %v5446 = vpack.c.b16 %v5418, %v5416
        %v5447 = vpack.c.b16 %v5419, %v5417
        %v5448 = vpack.c.b16 %v5422, %v5420
        %v5449 = vpack.c.b16 %v5423, %v5421
        %v5450 = vpack.c.b16 %v5426, %v5424
        %v5451 = vpack.c.b16 %v5427, %v5425
        %v5465 = vsel %vm5166, %v5429, 0
        %v5468 = vsel %vm5166, %v5431, 0
        %v5471 = vsel %vm5166, %v5433, 0
        %v5474 = vsel %vm5166, %v5435, 0
        %v5477 = vsel %vm5166, %v5437, 0
        %v5480 = vsel %vm5166, %v5439, 0
        %v5483 = vsel %vm5166, %v5441, 0
        %v5486 = vsel %vm5166, %v5443, 0
        %v5489 = vsel %vm5166, %v5445, 0
        %v5492 = vsel %vm5166, %v5447, 0
        %v5495 = vsel %vm5166, %v5449, 0
        %v5498 = vsel %vm5166, %v5451, 0
        %5500 = vmatprep.subr.bf16.mxu0 %v4656
        %5501 = vmatpush1.bf16.msra.mxu0 %v4655
        %5502 = vmatprep.subr.bf16.mxu0 %v4658
        %5503 = vmatpush1.bf16.msra.mxu0 %v4657
        %5504 = vmatprep.subr.bf16.mxu0 %v4660
        %5505 = vmatpush1.bf16.msra.mxu0 %v4659
        %5506 = vmatprep.subr.bf16.mxu0 %v4662
        %5507 = vmatpush1.bf16.msra.mxu0 %v4661
        %5508 = vmatprep.subr.bf16.mxu0 %v4664
        %5509 = vmatpush1.bf16.msra.mxu0 %v4663
        %5510 = vmatprep.subr.bf16.mxu0 %v4666
        %5511 = vmatpush1.bf16.msra.mxu0 %v4665
        %5512 = vmatprep.subr.bf16.mxu0 %v4668
        %5513 = vmatpush1.bf16.msra.mxu0 %v4667
        %5514 = vmatprep.subr.bf16.mxu0 %v4670
        %5515 = vmatpush1.bf16.msra.mxu0 %v4669
        %5516 = vmatprep.subr.bf16.mxu0 %v4672
        %5517 = vmatpush1.bf16.msra.mxu0 %v4671
        %5518 = vmatprep.subr.bf16.mxu0 %v4674
        %5519 = vmatpush1.bf16.msra.mxu0 %v4673
        %5520 = vmatprep.subr.bf16.mxu0 %v4676
        %5521 = vmatpush1.bf16.msra.mxu0 %v4675
        %5522 = vmatprep.subr.bf16.mxu0 %v4678
        %5523 = vmatpush1.bf16.msra.mxu0 %v4677
        %5524 = vmatprep.subr.bf16.mxu0 0
        %5525 = vmatpush1.bf16.msra.mxu0 0
        %5526 = vmatprep.subr.bf16.mxu0 0
        %5527 = vmatpush1.bf16.msra.mxu0 0
        %5528 = vmatprep.subr.bf16.mxu0 0
        %5529 = vmatpush1.bf16.msra.mxu0 0
        %5530 = vmatprep.subr.bf16.mxu0 0
        %5531 = vmatpush1.bf16.msra.mxu0 0
        %5532 = vmatprep.mubr.bf16.mxu0 %v5465
        %5533 = vmatmul.mubr.bf16.gmra.mrb[0].mxu0 %v5428
        %v5534 = vpop.f32.mrb[0].mxu0
        %v5535 = vadd.f32 %v5238, %v5534
        %v5536 = vpop.f32.mrb[0].mxu0
        %v5537 = vadd.f32 %v5240, %v5536
        %v5538 = vpop.f32.mrb[0].mxu0
        %v5539 = vadd.f32 %v5242, %v5538
        %v5540 = vpop.f32.mrb[0].mxu0
        %v5541 = vadd.f32 %v5244, %v5540
        %5542 = vmatprep.mubr.bf16.mxu0 %v5468
        %5543 = vmatmul.mubr.bf16.gmra.mrb[0].mxu0 %v5430
        %v5544 = vpop.f32.mrb[0].mxu0
        %v5545 = vadd.f32 %v5248, %v5544
        %v5546 = vpop.f32.mrb[0].mxu0
        %v5547 = vadd.f32 %v5250, %v5546
        %v5548 = vpop.f32.mrb[0].mxu0
        %v5549 = vadd.f32 %v5252, %v5548
        %v5550 = vpop.f32.mrb[0].mxu0
        %v5551 = vadd.f32 %v5254, %v5550
        %5552 = vmatprep.mubr.bf16.mxu0 %v5471
        %5553 = vmatmul.mubr.bf16.gmra.mrb[0].mxu0 %v5432
        %v5554 = vpop.f32.mrb[0].mxu0
        %v5555 = vadd.f32 %v5258, %v5554
        %v5556 = vpop.f32.mrb[0].mxu0
        %v5557 = vadd.f32 %v5260, %v5556
        %v5558 = vpop.f32.mrb[0].mxu0
        %v5559 = vadd.f32 %v5262, %v5558
        %v5560 = vpop.f32.mrb[0].mxu0
        %v5561 = vadd.f32 %v5264, %v5560
        %5562 = vmatprep.mubr.bf16.mxu0 %v5474
        %5563 = vmatmul.mubr.bf16.gmra.mrb[0].mxu0 %v5434
        %v5564 = vpop.f32.mrb[0].mxu0
        %v5565 = vadd.f32 %v5268, %v5564
        %v5566 = vpop.f32.mrb[0].mxu0
        %v5567 = vadd.f32 %v5270, %v5566
        %v5568 = vpop.f32.mrb[0].mxu0
        %v5569 = vadd.f32 %v5272, %v5568
        %v5570 = vpop.f32.mrb[0].mxu0
        %v5571 = vadd.f32 %v5274, %v5570
        %5572 = vmatprep.mubr.bf16.mxu0 %v5477
        %5573 = vmatmul.mubr.bf16.gmra.mrb[0].mxu0 %v5436
        %v5574 = vpop.f32.mrb[0].mxu0
        %v5575 = vadd.f32 %v5278, %v5574
        %v5576 = vpop.f32.mrb[0].mxu0
        %v5577 = vadd.f32 %v5280, %v5576
        %v5578 = vpop.f32.mrb[0].mxu0
        %v5579 = vadd.f32 %v5282, %v5578
        %v5580 = vpop.f32.mrb[0].mxu0
        %v5581 = vadd.f32 %v5284, %v5580
        %5582 = vmatprep.mubr.bf16.mxu0 %v5480
        %5583 = vmatmul.mubr.bf16.gmra.mrb[0].mxu0 %v5438
        %v5584 = vpop.f32.mrb[0].mxu0
        %v5585 = vadd.f32 %v5288, %v5584
        %v5586 = vpop.f32.mrb[0].mxu0
        %v5587 = vadd.f32 %v5290, %v5586
        %v5588 = vpop.f32.mrb[0].mxu0
        %v5589 = vadd.f32 %v5292, %v5588
        %v5590 = vpop.f32.mrb[0].mxu0
        %v5591 = vadd.f32 %v5294, %v5590
        %5592 = vmatprep.mubr.bf16.mxu0 %v5483
        %5593 = vmatmul.mubr.bf16.gmra.mrb[0].mxu0 %v5440
        %v5594 = vpop.f32.mrb[0].mxu0
        %v5595 = vadd.f32 %v5298, %v5594
        %v5596 = vpop.f32.mrb[0].mxu0
        %v5597 = vadd.f32 %v5300, %v5596
        %v5598 = vpop.f32.mrb[0].mxu0
        %v5599 = vadd.f32 %v5302, %v5598
        %v5600 = vpop.f32.mrb[0].mxu0
        %v5601 = vadd.f32 %v5304, %v5600
        %5602 = vmatprep.mubr.bf16.mxu0 %v5486
        %5603 = vmatmul.mubr.bf16.gmra.mrb[0].mxu0 %v5442
        %v5604 = vpop.f32.mrb[0].mxu0
        %v5605 = vadd.f32 %v5308, %v5604
        %v5606 = vpop.f32.mrb[0].mxu0
        %v5607 = vadd.f32 %v5310, %v5606
        %v5608 = vpop.f32.mrb[0].mxu0
        %v5609 = vadd.f32 %v5312, %v5608
        %v5610 = vpop.f32.mrb[0].mxu0
        %v5611 = vadd.f32 %v5314, %v5610
        %5612 = vmatprep.mubr.bf16.mxu0 %v5489
        %5613 = vmatmul.mubr.bf16.gmra.mrb[0].mxu0 %v5444
        %v5614 = vpop.f32.mrb[0].mxu0
        %v5615 = vadd.f32 %v5318, %v5614
        %v5616 = vpop.f32.mrb[0].mxu0
        %v5617 = vadd.f32 %v5320, %v5616
        %v5618 = vpop.f32.mrb[0].mxu0
        %v5619 = vadd.f32 %v5322, %v5618
        %v5620 = vpop.f32.mrb[0].mxu0
        %v5621 = vadd.f32 %v5324, %v5620
        %5622 = vmatprep.mubr.bf16.mxu0 %v5492
        %5623 = vmatmul.mubr.bf16.gmra.mrb[0].mxu0 %v5446
        %v5624 = vpop.f32.mrb[0].mxu0
        %v5625 = vadd.f32 %v5328, %v5624
        %v5626 = vpop.f32.mrb[0].mxu0
        %v5627 = vadd.f32 %v5330, %v5626
        %v5628 = vpop.f32.mrb[0].mxu0
        %v5629 = vadd.f32 %v5332, %v5628
        %v5630 = vpop.f32.mrb[0].mxu0
        %v5631 = vadd.f32 %v5334, %v5630
        %5632 = vmatprep.mubr.bf16.mxu0 %v5495
        %5633 = vmatmul.mubr.bf16.gmra.mrb[0].mxu0 %v5448
        %v5634 = vpop.f32.mrb[0].mxu0
        %v5635 = vadd.f32 %v5338, %v5634
        %v5636 = vpop.f32.mrb[0].mxu0
        %v5637 = vadd.f32 %v5340, %v5636
        %v5638 = vpop.f32.mrb[0].mxu0
        %v5639 = vadd.f32 %v5342, %v5638
        %v5640 = vpop.f32.mrb[0].mxu0
        %v5641 = vadd.f32 %v5344, %v5640
        %5642 = vmatprep.mubr.bf16.mxu0 %v5498
        %5643 = vmatmul.mubr.bf16.gmra.mrb[0].mxu0 %v5450
        %v5644 = vpop.f32.mrb[0].mxu0
        %v5645 = vadd.f32 %v5348, %v5644
        %v5646 = vpop.f32.mrb[0].mxu0
        %v5647 = vadd.f32 %v5350, %v5646
        %v5648 = vpop.f32.mrb[0].mxu0
        %v5649 = vadd.f32 %v5352, %v5648
        %v5650 = vpop.f32.mrb[0].mxu0
        %v5651 = vadd.f32 %v5354, %v5650
        %5652 = vdwg.mxu0
        %v5653 = vpack.c.bf16 %v4871, %v4867
        %v5654 = vpack.c.bf16 %v4873, %v4869
        %v5655 = vpack.c.bf16 %v4881, %v4877
        %v5656 = vpack.c.bf16 %v4883, %v4879
        %v5657 = vpack.c.bf16 %v4891, %v4887
        %v5658 = vpack.c.bf16 %v4893, %v4889
        %v5659 = vpack.c.bf16 %v4901, %v4897
        %v5660 = vpack.c.bf16 %v4903, %v4899
        %v5661 = vpack.c.bf16 %v4911, %v4907
        %v5662 = vpack.c.bf16 %v4913, %v4909
        %v5663 = vpack.c.bf16 %v4921, %v4917
        %v5664 = vpack.c.bf16 %v4923, %v4919
        %v5665 = vpack.c.bf16 %v4931, %v4927
        %v5666 = vpack.c.bf16 %v4933, %v4929
        %v5667 = vpack.c.bf16 %v4941, %v4937
        %v5668 = vpack.c.bf16 %v4943, %v4939
        %v5669 = vpack.c.bf16 %v4951, %v4947
        %v5670 = vpack.c.bf16 %v4953, %v4949
        %v5671 = vpack.c.bf16 %v4961, %v4957
        %v5672 = vpack.c.bf16 %v4963, %v4959
        %v5673 = vpack.c.bf16 %v4971, %v4967
        %v5674 = vpack.c.bf16 %v4973, %v4969
        %v5675 = vpack.c.bf16 %v4981, %v4977
        %v5676 = vpack.c.bf16 %v4983, %v4979
        %s5677 = scalar_lea.vmem [#allocation5], 384
        %v5678 = vld [vmem:[%s5677] sm:$0xff]
        %v5679 = vld [vmem:[%s5677 + $0x8] sm:$0xff]
        %v5680 = vld [vmem:[%s5677 + $0x10] sm:$0xff]
        %v5681 = vld [vmem:[%s5677 + $0x18] sm:$0xff]
        %v5682 = vld [vmem:[%s5677 + $0x20] sm:$0xff]
        %v5683 = vld [vmem:[%s5677 + $0x28] sm:$0xff]
        %v5684 = vld [vmem:[%s5677 + $0x30] sm:$0xff]
        %v5685 = vld [vmem:[%s5677 + $0x38] sm:$0xff]
        %v5686 = vld [vmem:[%s5677 + $0x40] sm:$0xff]
        %v5687 = vld [vmem:[%s5677 + $0x48] sm:$0xff]
        %v5688 = vld [vmem:[%s5677 + $0x50] sm:$0xff]
        %v5689 = vld [vmem:[%s5677 + $0x58] sm:$0xff]
        %v5690 = vld [vmem:[%s5677 + $0x60] sm:$0xff]
        %v5691 = vld [vmem:[%s5677 + $0x68] sm:$0xff]
        %v5692 = vld [vmem:[%s5677 + $0x70] sm:$0xff]
        %v5693 = vld [vmem:[%s5677 + $0x78] sm:$0xff]
        %v5694 = vld [vmem:[%s5677 + $0x80] sm:$0xff]
        %v5695 = vld [vmem:[%s5677 + $0x88] sm:$0xff]
        %v5696 = vld [vmem:[%s5677 + $0x90] sm:$0xff]
        %v5697 = vld [vmem:[%s5677 + $0x98] sm:$0xff]
        %v5698 = vld [vmem:[%s5677 + $0xa0] sm:$0xff]
        %v5699 = vld [vmem:[%s5677 + $0xa8] sm:$0xff]
        %v5700 = vld [vmem:[%s5677 + $0xb0] sm:$0xff]
        %v5701 = vld [vmem:[%s5677 + $0xb8] sm:$0xff]
        %v5726 = vunpack.c.l.b16 %v5678
        %v5727 = vunpack.c.h.b16 %v5678
        %v5728 = vunpack.c.l.b16 %v5679
        %v5729 = vunpack.c.h.b16 %v5679
        %v5730 = vunpack.c.l.b16 %v5680
        %v5731 = vunpack.c.h.b16 %v5680
        %v5732 = vunpack.c.l.b16 %v5681
        %v5733 = vunpack.c.h.b16 %v5681
        %v5734 = vunpack.c.l.b16 %v5682
        %v5735 = vunpack.c.h.b16 %v5682
        %v5736 = vunpack.c.l.b16 %v5683
        %v5737 = vunpack.c.h.b16 %v5683
        %v5738 = vunpack.c.l.b16 %v5684
        %v5739 = vunpack.c.h.b16 %v5684
        %v5740 = vunpack.c.l.b16 %v5685
        %v5741 = vunpack.c.h.b16 %v5685
        %v5742 = vunpack.c.l.b16 %v5686
        %v5743 = vunpack.c.h.b16 %v5686
        %v5744 = vunpack.c.l.b16 %v5687
        %v5745 = vunpack.c.h.b16 %v5687
        %v5746 = vunpack.c.l.b16 %v5688
        %v5747 = vunpack.c.h.b16 %v5688
        %v5748 = vunpack.c.l.b16 %v5689
        %v5749 = vunpack.c.h.b16 %v5689
        %v5750 = vunpack.c.l.b16 %v5690
        %v5751 = vunpack.c.h.b16 %v5690
        %v5752 = vunpack.c.l.b16 %v5691
        %v5753 = vunpack.c.h.b16 %v5691
        %v5754 = vunpack.c.l.b16 %v5692
        %v5755 = vunpack.c.h.b16 %v5692
        %v5756 = vunpack.c.l.b16 %v5693
        %v5757 = vunpack.c.h.b16 %v5693
        %v5758 = vunpack.c.l.b16 %v5694
        %v5759 = vunpack.c.h.b16 %v5694
        %v5760 = vunpack.c.l.b16 %v5695
        %v5761 = vunpack.c.h.b16 %v5695
        %v5762 = vunpack.c.l.b16 %v5696
        %v5763 = vunpack.c.h.b16 %v5696
        %v5764 = vunpack.c.l.b16 %v5697
        %v5765 = vunpack.c.h.b16 %v5697
        %v5766 = vunpack.c.l.b16 %v5698
        %v5767 = vunpack.c.h.b16 %v5698
        %v5768 = vunpack.c.l.b16 %v5699
        %v5769 = vunpack.c.h.b16 %v5699
        %v5770 = vunpack.c.l.b16 %v5700
        %v5771 = vunpack.c.h.b16 %v5700
        %v5772 = vunpack.c.l.b16 %v5701
        %v5773 = vunpack.c.h.b16 %v5701
        %v5774 = vpack.c.b16 %v5728, %v5726
        %v5775 = vpack.c.b16 %v5729, %v5727
        %v5776 = vpack.c.b16 %v5732, %v5730
        %v5777 = vpack.c.b16 %v5733, %v5731
        %v5778 = vpack.c.b16 %v5736, %v5734
        %v5779 = vpack.c.b16 %v5737, %v5735
        %v5780 = vpack.c.b16 %v5740, %v5738
        %v5781 = vpack.c.b16 %v5741, %v5739
        %v5782 = vpack.c.b16 %v5744, %v5742
        %v5783 = vpack.c.b16 %v5745, %v5743
        %v5784 = vpack.c.b16 %v5748, %v5746
        %v5785 = vpack.c.b16 %v5749, %v5747
        %v5786 = vpack.c.b16 %v5752, %v5750
        %v5787 = vpack.c.b16 %v5753, %v5751
        %v5788 = vpack.c.b16 %v5756, %v5754
        %v5789 = vpack.c.b16 %v5757, %v5755
        %v5790 = vpack.c.b16 %v5760, %v5758
        %v5791 = vpack.c.b16 %v5761, %v5759
        %v5792 = vpack.c.b16 %v5764, %v5762
        %v5793 = vpack.c.b16 %v5765, %v5763
        %v5794 = vpack.c.b16 %v5768, %v5766
        %v5795 = vpack.c.b16 %v5769, %v5767
        %v5796 = vpack.c.b16 %v5772, %v5770
        %v5797 = vpack.c.b16 %v5773, %v5771
        %v5811 = vsel %vm5166, %v5775, 0
        %v5814 = vsel %vm5166, %v5777, 0
        %v5817 = vsel %vm5166, %v5779, 0
        %v5820 = vsel %vm5166, %v5781, 0
        %v5823 = vsel %vm5166, %v5783, 0
        %v5826 = vsel %vm5166, %v5785, 0
        %v5829 = vsel %vm5166, %v5787, 0
        %v5832 = vsel %vm5166, %v5789, 0
        %v5835 = vsel %vm5166, %v5791, 0
        %v5838 = vsel %vm5166, %v5793, 0
        %v5841 = vsel %vm5166, %v5795, 0
        %v5844 = vsel %vm5166, %v5797, 0
        %5846 = vmatprep.subr.bf16.mxu0 %v5654
        %5847 = vmatpush1.bf16.msra.mxu0 %v5653
        %5848 = vmatprep.subr.bf16.mxu0 %v5656
        %5849 = vmatpush1.bf16.msra.mxu0 %v5655
        %5850 = vmatprep.subr.bf16.mxu0 %v5658
        %5851 = vmatpush1.bf16.msra.mxu0 %v5657
        %5852 = vmatprep.subr.bf16.mxu0 %v5660
        %5853 = vmatpush1.bf16.msra.mxu0 %v5659
        %5854 = vmatprep.subr.bf16.mxu0 %v5662
        %5855 = vmatpush1.bf16.msra.mxu0 %v5661
        %5856 = vmatprep.subr.bf16.mxu0 %v5664
        %5857 = vmatpush1.bf16.msra.mxu0 %v5663
        %5858 = vmatprep.subr.bf16.mxu0 %v5666
        %5859 = vmatpush1.bf16.msra.mxu0 %v5665
        %5860 = vmatprep.subr.bf16.mxu0 %v5668
        %5861 = vmatpush1.bf16.msra.mxu0 %v5667
        %5862 = vmatprep.subr.bf16.mxu0 %v5670
        %5863 = vmatpush1.bf16.msra.mxu0 %v5669
        %5864 = vmatprep.subr.bf16.mxu0 %v5672
        %5865 = vmatpush1.bf16.msra.mxu0 %v5671
        %5866 = vmatprep.subr.bf16.mxu0 %v5674
        %5867 = vmatpush1.bf16.msra.mxu0 %v5673
        %5868 = vmatprep.subr.bf16.mxu0 %v5676
        %5869 = vmatpush1.bf16.msra.mxu0 %v5675
        %5870 = vmatprep.subr.bf16.mxu0 0
        %5871 = vmatpush1.bf16.msra.mxu0 0
        %5872 = vmatprep.subr.bf16.mxu0 0
        %5873 = vmatpush1.bf16.msra.mxu0 0
        %5874 = vmatprep.subr.bf16.mxu0 0
        %5875 = vmatpush1.bf16.msra.mxu0 0
        %5876 = vmatprep.subr.bf16.mxu0 0
        %5877 = vmatpush1.bf16.msra.mxu0 0
        %5878 = vmatprep.mubr.bf16.mxu0 %v5811
        %5879 = vmatmul.mubr.bf16.gmra.mrb[0].mxu0 %v5774
        %v5880 = vpop.f32.mrb[0].mxu0
        %v5881 = vadd.f32 0.0, %v5880
        %v5882 = vpop.f32.mrb[0].mxu0
        %v5883 = vadd.f32 0.0, %v5882
        %v5884 = vpop.f32.mrb[0].mxu0
        %v5885 = vadd.f32 0.0, %v5884
        %v5886 = vpop.f32.mrb[0].mxu0
        %v5887 = vadd.f32 0.0, %v5886
        %5888 = vmatprep.mubr.bf16.mxu0 %v5814
        %5889 = vmatmul.mubr.bf16.gmra.mrb[0].mxu0 %v5776
        %v5890 = vpop.f32.mrb[0].mxu0
        %v5891 = vadd.f32 0.0, %v5890
        %v5892 = vpop.f32.mrb[0].mxu0
        %v5893 = vadd.f32 0.0, %v5892
        %v5894 = vpop.f32.mrb[0].mxu0
        %v5895 = vadd.f32 0.0, %v5894
        %v5896 = vpop.f32.mrb[0].mxu0
        %v5897 = vadd.f32 0.0, %v5896
        %5898 = vmatprep.mubr.bf16.mxu0 %v5817
        %5899 = vmatmul.mubr.bf16.gmra.mrb[0].mxu0 %v5778
        %v5900 = vpop.f32.mrb[0].mxu0
        %v5901 = vadd.f32 0.0, %v5900
        %v5902 = vpop.f32.mrb[0].mxu0
        %v5903 = vadd.f32 0.0, %v5902
        %v5904 = vpop.f32.mrb[0].mxu0
        %v5905 = vadd.f32 0.0, %v5904
        %v5906 = vpop.f32.mrb[0].mxu0
        %v5907 = vadd.f32 0.0, %v5906
        %5908 = vmatprep.mubr.bf16.mxu0 %v5820
        %5909 = vmatmul.mubr.bf16.gmra.mrb[0].mxu0 %v5780
        %v5910 = vpop.f32.mrb[0].mxu0
        %v5911 = vadd.f32 0.0, %v5910
        %v5912 = vpop.f32.mrb[0].mxu0
        %v5913 = vadd.f32 0.0, %v5912
        %v5914 = vpop.f32.mrb[0].mxu0
        %v5915 = vadd.f32 0.0, %v5914
        %v5916 = vpop.f32.mrb[0].mxu0
        %v5917 = vadd.f32 0.0, %v5916
        %5918 = vmatprep.mubr.bf16.mxu0 %v5823
        %5919 = vmatmul.mubr.bf16.gmra.mrb[0].mxu0 %v5782
        %v5920 = vpop.f32.mrb[0].mxu0
        %v5921 = vadd.f32 0.0, %v5920
        %v5922 = vpop.f32.mrb[0].mxu0
        %v5923 = vadd.f32 0.0, %v5922
        %v5924 = vpop.f32.mrb[0].mxu0
        %v5925 = vadd.f32 0.0, %v5924
        %v5926 = vpop.f32.mrb[0].mxu0
        %v5927 = vadd.f32 0.0, %v5926
        %5928 = vmatprep.mubr.bf16.mxu0 %v5826
        %5929 = vmatmul.mubr.bf16.gmra.mrb[0].mxu0 %v5784
        %v5930 = vpop.f32.mrb[0].mxu0
        %v5931 = vadd.f32 0.0, %v5930
        %v5932 = vpop.f32.mrb[0].mxu0
        %v5933 = vadd.f32 0.0, %v5932
        %v5934 = vpop.f32.mrb[0].mxu0
        %v5935 = vadd.f32 0.0, %v5934
        %v5936 = vpop.f32.mrb[0].mxu0
        %v5937 = vadd.f32 0.0, %v5936
        %5938 = vmatprep.mubr.bf16.mxu0 %v5829
        %5939 = vmatmul.mubr.bf16.gmra.mrb[0].mxu0 %v5786
        %v5940 = vpop.f32.mrb[0].mxu0
        %v5941 = vadd.f32 0.0, %v5940
        %v5942 = vpop.f32.mrb[0].mxu0
        %v5943 = vadd.f32 0.0, %v5942
        %v5944 = vpop.f32.mrb[0].mxu0
        %v5945 = vadd.f32 0.0, %v5944
        %v5946 = vpop.f32.mrb[0].mxu0
        %v5947 = vadd.f32 0.0, %v5946
        %5948 = vmatprep.mubr.bf16.mxu0 %v5832
        %5949 = vmatmul.mubr.bf16.gmra.mrb[0].mxu0 %v5788
        %v5950 = vpop.f32.mrb[0].mxu0
        %v5951 = vadd.f32 0.0, %v5950
        %v5952 = vpop.f32.mrb[0].mxu0
        %v5953 = vadd.f32 0.0, %v5952
        %v5954 = vpop.f32.mrb[0].mxu0
        %v5955 = vadd.f32 0.0, %v5954
        %v5956 = vpop.f32.mrb[0].mxu0
        %v5957 = vadd.f32 0.0, %v5956
        %5958 = vmatprep.mubr.bf16.mxu0 %v5835
        %5959 = vmatmul.mubr.bf16.gmra.mrb[0].mxu0 %v5790
        %v5960 = vpop.f32.mrb[0].mxu0
        %v5961 = vadd.f32 0.0, %v5960
        %v5962 = vpop.f32.mrb[0].mxu0
        %v5963 = vadd.f32 0.0, %v5962
        %v5964 = vpop.f32.mrb[0].mxu0
        %v5965 = vadd.f32 0.0, %v5964
        %v5966 = vpop.f32.mrb[0].mxu0
        %v5967 = vadd.f32 0.0, %v5966
        %5968 = vmatprep.mubr.bf16.mxu0 %v5838
        %5969 = vmatmul.mubr.bf16.gmra.mrb[0].mxu0 %v5792
        %v5970 = vpop.f32.mrb[0].mxu0
        %v5971 = vadd.f32 0.0, %v5970
        %v5972 = vpop.f32.mrb[0].mxu0
        %v5973 = vadd.f32 0.0, %v5972
        %v5974 = vpop.f32.mrb[0].mxu0
        %v5975 = vadd.f32 0.0, %v5974
        %v5976 = vpop.f32.mrb[0].mxu0
        %v5977 = vadd.f32 0.0, %v5976
        %5978 = vmatprep.mubr.bf16.mxu0 %v5841
        %5979 = vmatmul.mubr.bf16.gmra.mrb[0].mxu0 %v5794
        %v5980 = vpop.f32.mrb[0].mxu0
        %v5981 = vadd.f32 0.0, %v5980
        %v5982 = vpop.f32.mrb[0].mxu0
        %v5983 = vadd.f32 0.0, %v5982
        %v5984 = vpop.f32.mrb[0].mxu0
        %v5985 = vadd.f32 0.0, %v5984
        %v5986 = vpop.f32.mrb[0].mxu0
        %v5987 = vadd.f32 0.0, %v5986
        %5988 = vmatprep.mubr.bf16.mxu0 %v5844
        %5989 = vmatmul.mubr.bf16.gmra.mrb[0].mxu0 %v5796
        %v5990 = vpop.f32.mrb[0].mxu0
        %v5991 = vadd.f32 0.0, %v5990
        %v5992 = vpop.f32.mrb[0].mxu0
        %v5993 = vadd.f32 0.0, %v5992
        %v5994 = vpop.f32.mrb[0].mxu0
        %v5995 = vadd.f32 0.0, %v5994
        %v5996 = vpop.f32.mrb[0].mxu0
        %v5997 = vadd.f32 0.0, %v5996
        %5998 = vdwg.mxu0
        %v5999 = vadd.f32 %v5535, %v5881
        %v6000 = vadd.f32 %v5537, %v5883
        %v6001 = vadd.f32 %v5539, %v5885
        %v6002 = vadd.f32 %v5541, %v5887
        %v6003 = vadd.f32 %v5545, %v5891
        %v6004 = vadd.f32 %v5547, %v5893
        %v6005 = vadd.f32 %v5549, %v5895
        %v6006 = vadd.f32 %v5551, %v5897
        %v6007 = vadd.f32 %v5555, %v5901
        %v6008 = vadd.f32 %v5557, %v5903
        %v6009 = vadd.f32 %v5559, %v5905
        %v6010 = vadd.f32 %v5561, %v5907
        %v6011 = vadd.f32 %v5565, %v5911
        %v6012 = vadd.f32 %v5567, %v5913
        %v6013 = vadd.f32 %v5569, %v5915
        %v6014 = vadd.f32 %v5571, %v5917
        %v6015 = vadd.f32 %v5575, %v5921
        %v6016 = vadd.f32 %v5577, %v5923
        %v6017 = vadd.f32 %v5579, %v5925
        %v6018 = vadd.f32 %v5581, %v5927
        %v6019 = vadd.f32 %v5585, %v5931
        %v6020 = vadd.f32 %v5587, %v5933
        %v6021 = vadd.f32 %v5589, %v5935
        %v6022 = vadd.f32 %v5591, %v5937
        %v6023 = vadd.f32 %v5595, %v5941
        %v6024 = vadd.f32 %v5597, %v5943
        %v6025 = vadd.f32 %v5599, %v5945
        %v6026 = vadd.f32 %v5601, %v5947
        %v6027 = vadd.f32 %v5605, %v5951
        %v6028 = vadd.f32 %v5607, %v5953
        %v6029 = vadd.f32 %v5609, %v5955
        %v6030 = vadd.f32 %v5611, %v5957
        %v6031 = vadd.f32 %v5615, %v5961
        %v6032 = vadd.f32 %v5617, %v5963
        %v6033 = vadd.f32 %v5619, %v5965
        %v6034 = vadd.f32 %v5621, %v5967
        %v6035 = vadd.f32 %v5625, %v5971
        %v6036 = vadd.f32 %v5627, %v5973
        %v6037 = vadd.f32 %v5629, %v5975
        %v6038 = vadd.f32 %v5631, %v5977
        %v6039 = vadd.f32 %v5635, %v5981
        %v6040 = vadd.f32 %v5637, %v5983
        %v6041 = vadd.f32 %v5639, %v5985
        %v6042 = vadd.f32 %v5641, %v5987
        %v6043 = vadd.f32 %v5645, %v5991
        %v6044 = vadd.f32 %v5647, %v5993
        %v6045 = vadd.f32 %v5649, %v5995
        %v6046 = vadd.f32 %v5651, %v5997
        %v6047 = vld [vmem:[%s11] sm:$0xff]
        %v6048 = vld [vmem:[%s11 + $0x8] sm:$0xff]
        %v6049 = vld [vmem:[%s11 + $0x10] sm:$0xff]
        %v6050 = vld [vmem:[%s11 + $0x18] sm:$0xff]
        %v6051 = vld [vmem:[%s11 + $0x20] sm:$0xff]
        %v6052 = vld [vmem:[%s11 + $0x28] sm:$0xff]
        %v6053 = vld [vmem:[%s11 + $0x30] sm:$0xff]
        %v6054 = vld [vmem:[%s11 + $0x38] sm:$0xff]
        %v6055 = vld [vmem:[%s11 + $0x40] sm:$0xff]
        %v6056 = vld [vmem:[%s11 + $0x48] sm:$0xff]
        %v6057 = vld [vmem:[%s11 + $0x50] sm:$0xff]
        %v6058 = vld [vmem:[%s11 + $0x58] sm:$0xff]
        %v6059 = vld [vmem:[%s11 + $0x60] sm:$0xff]
        %v6060 = vld [vmem:[%s11 + $0x68] sm:$0xff]
        %v6061 = vld [vmem:[%s11 + $0x70] sm:$0xff]
        %v6062 = vld [vmem:[%s11 + $0x78] sm:$0xff]
        %v6063 = vld [vmem:[%s11 + $0x80] sm:$0xff]
        %v6064 = vld [vmem:[%s11 + $0x88] sm:$0xff]
        %v6065 = vld [vmem:[%s11 + $0x90] sm:$0xff]
        %v6066 = vld [vmem:[%s11 + $0x98] sm:$0xff]
        %v6067 = vld [vmem:[%s11 + $0xa0] sm:$0xff]
        %v6068 = vld [vmem:[%s11 + $0xa8] sm:$0xff]
        %v6069 = vld [vmem:[%s11 + $0xb0] sm:$0xff]
        %v6070 = vld [vmem:[%s11 + $0xb8] sm:$0xff]
        %6072 = vset.pattern.permute.xlu0 0
        %6073 = vperm.xlu0 %6072, %v6047
        %v6074 = vpop.permute.xlu0 %6073
        %6077 = vset.pattern.permute.xlu0 0
        %6078 = vperm.xlu0 %6077, %v6048
        %v6079 = vpop.permute.xlu0 %6078
        %6082 = vset.pattern.permute.xlu0 0
        %6083 = vperm.xlu0 %6082, %v6049
        %v6084 = vpop.permute.xlu0 %6083
        %6087 = vset.pattern.permute.xlu0 0
        %6088 = vperm.xlu0 %6087, %v6050
        %v6089 = vpop.permute.xlu0 %6088
        %6092 = vset.pattern.permute.xlu0 0
        %6093 = vperm.xlu0 %6092, %v6051
        %v6094 = vpop.permute.xlu0 %6093
        %6097 = vset.pattern.permute.xlu0 0
        %6098 = vperm.xlu0 %6097, %v6052
        %v6099 = vpop.permute.xlu0 %6098
        %6102 = vset.pattern.permute.xlu0 0
        %6103 = vperm.xlu0 %6102, %v6053
        %v6104 = vpop.permute.xlu0 %6103
        %6107 = vset.pattern.permute.xlu0 0
        %6108 = vperm.xlu0 %6107, %v6054
        %v6109 = vpop.permute.xlu0 %6108
        %6112 = vset.pattern.permute.xlu0 0
        %6113 = vperm.xlu0 %6112, %v6055
        %v6114 = vpop.permute.xlu0 %6113
        %6117 = vset.pattern.permute.xlu0 0
        %6118 = vperm.xlu0 %6117, %v6056
        %v6119 = vpop.permute.xlu0 %6118
        %6122 = vset.pattern.permute.xlu0 0
        %6123 = vperm.xlu0 %6122, %v6057
        %v6124 = vpop.permute.xlu0 %6123
        %6127 = vset.pattern.permute.xlu0 0
        %6128 = vperm.xlu0 %6127, %v6058
        %v6129 = vpop.permute.xlu0 %6128
        %6132 = vset.pattern.permute.xlu0 0
        %6133 = vperm.xlu0 %6132, %v6059
        %v6134 = vpop.permute.xlu0 %6133
        %6137 = vset.pattern.permute.xlu0 0
        %6138 = vperm.xlu0 %6137, %v6060
        %v6139 = vpop.permute.xlu0 %6138
        %6142 = vset.pattern.permute.xlu0 0
        %6143 = vperm.xlu0 %6142, %v6061
        %v6144 = vpop.permute.xlu0 %6143
        %6147 = vset.pattern.permute.xlu0 0
        %6148 = vperm.xlu0 %6147, %v6062
        %v6149 = vpop.permute.xlu0 %6148
        %6152 = vset.pattern.permute.xlu0 0
        %6153 = vperm.xlu0 %6152, %v6063
        %v6154 = vpop.permute.xlu0 %6153
        %6157 = vset.pattern.permute.xlu0 0
        %6158 = vperm.xlu0 %6157, %v6064
        %v6159 = vpop.permute.xlu0 %6158
        %6162 = vset.pattern.permute.xlu0 0
        %6163 = vperm.xlu0 %6162, %v6065
        %v6164 = vpop.permute.xlu0 %6163
        %6167 = vset.pattern.permute.xlu0 0
        %6168 = vperm.xlu0 %6167, %v6066
        %v6169 = vpop.permute.xlu0 %6168
        %6172 = vset.pattern.permute.xlu0 0
        %6173 = vperm.xlu0 %6172, %v6067
        %v6174 = vpop.permute.xlu0 %6173
        %6177 = vset.pattern.permute.xlu0 0
        %6178 = vperm.xlu0 %6177, %v6068
        %v6179 = vpop.permute.xlu0 %6178
        %6182 = vset.pattern.permute.xlu0 0
        %6183 = vperm.xlu0 %6182, %v6069
        %v6184 = vpop.permute.xlu0 %6183
        %6187 = vset.pattern.permute.xlu0 0
        %6188 = vperm.xlu0 %6187, %v6070
        %v6189 = vpop.permute.xlu0 %6188
        %v6191 = vadd.f32 %v5999, %v6074
        %v6192 = vadd.f32 %v6000, %v6074
        %v6193 = vadd.f32 %v6001, %v6079
        %v6194 = vadd.f32 %v6002, %v6079
        %v6195 = vadd.f32 %v6003, %v6084
        %v6196 = vadd.f32 %v6004, %v6084
        %v6197 = vadd.f32 %v6005, %v6089
        %v6198 = vadd.f32 %v6006, %v6089
        %v6199 = vadd.f32 %v6007, %v6094
        %v6200 = vadd.f32 %v6008, %v6094
        %v6201 = vadd.f32 %v6009, %v6099
        %v6202 = vadd.f32 %v6010, %v6099
        %v6203 = vadd.f32 %v6011, %v6104
        %v6204 = vadd.f32 %v6012, %v6104
        %v6205 = vadd.f32 %v6013, %v6109
        %v6206 = vadd.f32 %v6014, %v6109
        %v6207 = vadd.f32 %v6015, %v6114
        %v6208 = vadd.f32 %v6016, %v6114
        %v6209 = vadd.f32 %v6017, %v6119
        %v6210 = vadd.f32 %v6018, %v6119
        %v6211 = vadd.f32 %v6019, %v6124
        %v6212 = vadd.f32 %v6020, %v6124
        %v6213 = vadd.f32 %v6021, %v6129
        %v6214 = vadd.f32 %v6022, %v6129
        %v6215 = vadd.f32 %v6023, %v6134
        %v6216 = vadd.f32 %v6024, %v6134
        %v6217 = vadd.f32 %v6025, %v6139
        %v6218 = vadd.f32 %v6026, %v6139
        %v6219 = vadd.f32 %v6027, %v6144
        %v6220 = vadd.f32 %v6028, %v6144
        %v6221 = vadd.f32 %v6029, %v6149
        %v6222 = vadd.f32 %v6030, %v6149
        %v6223 = vadd.f32 %v6031, %v6154
        %v6224 = vadd.f32 %v6032, %v6154
        %v6225 = vadd.f32 %v6033, %v6159
        %v6226 = vadd.f32 %v6034, %v6159
        %v6227 = vadd.f32 %v6035, %v6164
        %v6228 = vadd.f32 %v6036, %v6164
        %v6229 = vadd.f32 %v6037, %v6169
        %v6230 = vadd.f32 %v6038, %v6169
        %v6231 = vadd.f32 %v6039, %v6174
        %v6232 = vadd.f32 %v6040, %v6174
        %v6233 = vadd.f32 %v6041, %v6179
        %v6234 = vadd.f32 %v6042, %v6179
        %v6235 = vadd.f32 %v6043, %v6184
        %v6236 = vadd.f32 %v6044, %v6184
        %v6237 = vadd.f32 %v6045, %v6189
        %v6238 = vadd.f32 %v6046, %v6189
        %v6239 = vmax.f32 %v6191, 0.0
        %v6240 = vmax.f32 %v6192, 0.0
        %v6241 = vmax.f32 %v6193, 0.0
        %v6242 = vmax.f32 %v6194, 0.0
        %v6243 = vmax.f32 %v6195, 0.0
        %v6244 = vmax.f32 %v6196, 0.0
        %v6245 = vmax.f32 %v6197, 0.0
        %v6246 = vmax.f32 %v6198, 0.0
        %v6247 = vmax.f32 %v6199, 0.0
        %v6248 = vmax.f32 %v6200, 0.0
        %v6249 = vmax.f32 %v6201, 0.0
        %v6250 = vmax.f32 %v6202, 0.0
        %v6251 = vmax.f32 %v6203, 0.0
        %v6252 = vmax.f32 %v6204, 0.0
        %v6253 = vmax.f32 %v6205, 0.0
        %v6254 = vmax.f32 %v6206, 0.0
        %v6255 = vmax.f32 %v6207, 0.0
        %v6256 = vmax.f32 %v6208, 0.0
        %v6257 = vmax.f32 %v6209, 0.0
        %v6258 = vmax.f32 %v6210, 0.0
        %v6259 = vmax.f32 %v6211, 0.0
        %v6260 = vmax.f32 %v6212, 0.0
        %v6261 = vmax.f32 %v6213, 0.0
        %v6262 = vmax.f32 %v6214, 0.0
        %v6263 = vmax.f32 %v6215, 0.0
        %v6264 = vmax.f32 %v6216, 0.0
        %v6265 = vmax.f32 %v6217, 0.0
        %v6266 = vmax.f32 %v6218, 0.0
        %v6267 = vmax.f32 %v6219, 0.0
        %v6268 = vmax.f32 %v6220, 0.0
        %v6269 = vmax.f32 %v6221, 0.0
        %v6270 = vmax.f32 %v6222, 0.0
        %v6271 = vmax.f32 %v6223, 0.0
        %v6272 = vmax.f32 %v6224, 0.0
        %v6273 = vmax.f32 %v6225, 0.0
        %v6274 = vmax.f32 %v6226, 0.0
        %v6275 = vmax.f32 %v6227, 0.0
        %v6276 = vmax.f32 %v6228, 0.0
        %v6277 = vmax.f32 %v6229, 0.0
        %v6278 = vmax.f32 %v6230, 0.0
        %v6279 = vmax.f32 %v6231, 0.0
        %v6280 = vmax.f32 %v6232, 0.0
        %v6281 = vmax.f32 %v6233, 0.0
        %v6282 = vmax.f32 %v6234, 0.0
        %v6283 = vmax.f32 %v6235, 0.0
        %v6284 = vmax.f32 %v6236, 0.0
        %v6285 = vmax.f32 %v6237, 0.0
        %v6286 = vmax.f32 %v6238, 0.0
        %v6287 = vpack.c.bf16 %v6241, %v6239
        %v6288 = vpack.c.bf16 %v6242, %v6240
        %v6289 = vpack.c.bf16 %v6245, %v6243
        %v6290 = vpack.c.bf16 %v6246, %v6244
        %v6291 = vpack.c.bf16 %v6249, %v6247
        %v6292 = vpack.c.bf16 %v6250, %v6248
        %v6293 = vpack.c.bf16 %v6253, %v6251
        %v6294 = vpack.c.bf16 %v6254, %v6252
        %v6295 = vpack.c.bf16 %v6257, %v6255
        %v6296 = vpack.c.bf16 %v6258, %v6256
        %v6297 = vpack.c.bf16 %v6261, %v6259
        %v6298 = vpack.c.bf16 %v6262, %v6260
        %v6299 = vpack.c.bf16 %v6265, %v6263
        %v6300 = vpack.c.bf16 %v6266, %v6264
        %v6301 = vpack.c.bf16 %v6269, %v6267
        %v6302 = vpack.c.bf16 %v6270, %v6268
        %v6303 = vpack.c.bf16 %v6273, %v6271
        %v6304 = vpack.c.bf16 %v6274, %v6272
        %v6305 = vpack.c.bf16 %v6277, %v6275
        %v6306 = vpack.c.bf16 %v6278, %v6276
        %v6307 = vpack.c.bf16 %v6281, %v6279
        %v6308 = vpack.c.bf16 %v6282, %v6280
        %v6309 = vpack.c.bf16 %v6285, %v6283
        %v6310 = vpack.c.bf16 %v6286, %v6284
        %6311 = vmatprep.subr.bf16.mxu0 %v828
        %6312 = vmatpush1.bf16.msra.mxu0 %v827
        %6313 = vmatprep.subr.bf16.mxu0 %v832
        %6314 = vmatpush1.bf16.msra.mxu0 %v831
        %6315 = vmatprep.subr.bf16.mxu0 %v836
        %6316 = vmatpush1.bf16.msra.mxu0 %v835
        %6317 = vmatprep.subr.bf16.mxu0 %v840
        %6318 = vmatpush1.bf16.msra.mxu0 %v839
        %6319 = vmatprep.subr.bf16.mxu0 %v844
        %6320 = vmatpush1.bf16.msra.mxu0 %v843
        %6321 = vmatprep.subr.bf16.mxu0 %v848
        %6322 = vmatpush1.bf16.msra.mxu0 %v847
        %6323 = vmatprep.subr.bf16.mxu0 %v852
        %6324 = vmatpush1.bf16.msra.mxu0 %v851
        %6325 = vmatprep.subr.bf16.mxu0 %v856
        %6326 = vmatpush1.bf16.msra.mxu0 %v855
        %6327 = vmatprep.subr.bf16.mxu0 %v860
        %6328 = vmatpush1.bf16.msra.mxu0 %v859
        %6329 = vmatprep.subr.bf16.mxu0 %v864
        %6330 = vmatpush1.bf16.msra.mxu0 %v863
        %6331 = vmatprep.subr.bf16.mxu0 %v868
        %6332 = vmatpush1.bf16.msra.mxu0 %v867
        %6333 = vmatprep.subr.bf16.mxu0 %v872
        %6334 = vmatpush1.bf16.msra.mxu0 %v871
        %6335 = vmatprep.subr.bf16.mxu0 %v876
        %6336 = vmatpush1.bf16.msra.mxu0 %v875
        %6337 = vmatprep.subr.bf16.mxu0 %v880
        %6338 = vmatpush1.bf16.msra.mxu0 %v879
        %6339 = vmatprep.subr.bf16.mxu0 %v884
        %6340 = vmatpush1.bf16.msra.mxu0 %v883
        %6341 = vmatprep.subr.bf16.mxu0 %v888
        %6342 = vmatpush1.bf16.msra.mxu0 %v887
        %6343 = vmatprep.mubr.bf16.mxu0 %v6288
        %6344 = vmatmul.mubr.bf16.gmra.mrb[0].mxu0 %v6287
        %v6345 = vpop.f32.mrb[0].mxu0
        %v6346 = vadd.f32 0.0, %v6345
        %v6347 = vpop.f32.mrb[0].mxu0
        %v6348 = vadd.f32 0.0, %v6347
        %v6349 = vpop.f32.mrb[0].mxu0
        %v6350 = vadd.f32 0.0, %v6349
        %v6351 = vpop.f32.mrb[0].mxu0
        %v6352 = vadd.f32 0.0, %v6351
        %6353 = vmatprep.mubr.bf16.mxu0 %v6290
        %6354 = vmatmul.mubr.bf16.gmra.mrb[0].mxu0 %v6289
        %v6355 = vpop.f32.mrb[0].mxu0
        %v6356 = vadd.f32 0.0, %v6355
        %v6357 = vpop.f32.mrb[0].mxu0
        %v6358 = vadd.f32 0.0, %v6357
        %v6359 = vpop.f32.mrb[0].mxu0
        %v6360 = vadd.f32 0.0, %v6359
        %v6361 = vpop.f32.mrb[0].mxu0
        %v6362 = vadd.f32 0.0, %v6361
        %6363 = vmatprep.mubr.bf16.mxu0 %v6292
        %6364 = vmatmul.mubr.bf16.gmra.mrb[0].mxu0 %v6291
        %v6365 = vpop.f32.mrb[0].mxu0
        %v6366 = vadd.f32 0.0, %v6365
        %v6367 = vpop.f32.mrb[0].mxu0
        %v6368 = vadd.f32 0.0, %v6367
        %v6369 = vpop.f32.mrb[0].mxu0
        %v6370 = vadd.f32 0.0, %v6369
        %v6371 = vpop.f32.mrb[0].mxu0
        %v6372 = vadd.f32 0.0, %v6371
        %6373 = vmatprep.mubr.bf16.mxu0 %v6294
        %6374 = vmatmul.mubr.bf16.gmra.mrb[0].mxu0 %v6293
        %v6375 = vpop.f32.mrb[0].mxu0
        %v6376 = vadd.f32 0.0, %v6375
        %v6377 = vpop.f32.mrb[0].mxu0
        %v6378 = vadd.f32 0.0, %v6377
        %v6379 = vpop.f32.mrb[0].mxu0
        %v6380 = vadd.f32 0.0, %v6379
        %v6381 = vpop.f32.mrb[0].mxu0
        %v6382 = vadd.f32 0.0, %v6381
        %6383 = vmatprep.mubr.bf16.mxu0 %v6296
        %6384 = vmatmul.mubr.bf16.gmra.mrb[0].mxu0 %v6295
        %v6385 = vpop.f32.mrb[0].mxu0
        %v6386 = vadd.f32 0.0, %v6385
        %v6387 = vpop.f32.mrb[0].mxu0
        %v6388 = vadd.f32 0.0, %v6387
        %v6389 = vpop.f32.mrb[0].mxu0
        %v6390 = vadd.f32 0.0, %v6389
        %v6391 = vpop.f32.mrb[0].mxu0
        %v6392 = vadd.f32 0.0, %v6391
        %6393 = vmatprep.mubr.bf16.mxu0 %v6298
        %6394 = vmatmul.mubr.bf16.gmra.mrb[0].mxu0 %v6297
        %v6395 = vpop.f32.mrb[0].mxu0
        %v6396 = vadd.f32 0.0, %v6395
        %v6397 = vpop.f32.mrb[0].mxu0
        %v6398 = vadd.f32 0.0, %v6397
        %v6399 = vpop.f32.mrb[0].mxu0
        %v6400 = vadd.f32 0.0, %v6399
        %v6401 = vpop.f32.mrb[0].mxu0
        %v6402 = vadd.f32 0.0, %v6401
        %6403 = vmatprep.mubr.bf16.mxu0 %v6300
        %6404 = vmatmul.mubr.bf16.gmra.mrb[0].mxu0 %v6299
        %v6405 = vpop.f32.mrb[0].mxu0
        %v6406 = vadd.f32 0.0, %v6405
        %v6407 = vpop.f32.mrb[0].mxu0
        %v6408 = vadd.f32 0.0, %v6407
        %v6409 = vpop.f32.mrb[0].mxu0
        %v6410 = vadd.f32 0.0, %v6409
        %v6411 = vpop.f32.mrb[0].mxu0
        %v6412 = vadd.f32 0.0, %v6411
        %6413 = vmatprep.mubr.bf16.mxu0 %v6302
        %6414 = vmatmul.mubr.bf16.gmra.mrb[0].mxu0 %v6301
        %v6415 = vpop.f32.mrb[0].mxu0
        %v6416 = vadd.f32 0.0, %v6415
        %v6417 = vpop.f32.mrb[0].mxu0
        %v6418 = vadd.f32 0.0, %v6417
        %v6419 = vpop.f32.mrb[0].mxu0
        %v6420 = vadd.f32 0.0, %v6419
        %v6421 = vpop.f32.mrb[0].mxu0
        %v6422 = vadd.f32 0.0, %v6421
        %6423 = vmatprep.mubr.bf16.mxu0 %v6304
        %6424 = vmatmul.mubr.bf16.gmra.mrb[0].mxu0 %v6303
        %v6425 = vpop.f32.mrb[0].mxu0
        %v6426 = vadd.f32 0.0, %v6425
        %v6427 = vpop.f32.mrb[0].mxu0
        %v6428 = vadd.f32 0.0, %v6427
        %v6429 = vpop.f32.mrb[0].mxu0
        %v6430 = vadd.f32 0.0, %v6429
        %v6431 = vpop.f32.mrb[0].mxu0
        %v6432 = vadd.f32 0.0, %v6431
        %6433 = vmatprep.mubr.bf16.mxu0 %v6306
        %6434 = vmatmul.mubr.bf16.gmra.mrb[0].mxu0 %v6305
        %v6435 = vpop.f32.mrb[0].mxu0
        %v6436 = vadd.f32 0.0, %v6435
        %v6437 = vpop.f32.mrb[0].mxu0
        %v6438 = vadd.f32 0.0, %v6437
        %v6439 = vpop.f32.mrb[0].mxu0
        %v6440 = vadd.f32 0.0, %v6439
        %v6441 = vpop.f32.mrb[0].mxu0
        %v6442 = vadd.f32 0.0, %v6441
        %6443 = vmatprep.mubr.bf16.mxu0 %v6308
        %6444 = vmatmul.mubr.bf16.gmra.mrb[0].mxu0 %v6307
        %v6445 = vpop.f32.mrb[0].mxu0
        %v6446 = vadd.f32 0.0, %v6445
        %v6447 = vpop.f32.mrb[0].mxu0
        %v6448 = vadd.f32 0.0, %v6447
        %v6449 = vpop.f32.mrb[0].mxu0
        %v6450 = vadd.f32 0.0, %v6449
        %v6451 = vpop.f32.mrb[0].mxu0
        %v6452 = vadd.f32 0.0, %v6451
        %6453 = vmatprep.mubr.bf16.mxu0 %v6310
        %6454 = vmatmul.mubr.bf16.gmra.mrb[0].mxu0 %v6309
        %v6455 = vpop.f32.mrb[0].mxu0
        %v6456 = vadd.f32 0.0, %v6455
        %v6457 = vpop.f32.mrb[0].mxu0
        %v6458 = vadd.f32 0.0, %v6457
        %v6459 = vpop.f32.mrb[0].mxu0
        %v6460 = vadd.f32 0.0, %v6459
        %v6461 = vpop.f32.mrb[0].mxu0
        %v6462 = vadd.f32 0.0, %v6461
        %6463 = vdwg.mxu0
        %6464 = vmatprep.subr.bf16.mxu0 %v830
        %6465 = vmatpush1.bf16.msra.mxu0 %v829
        %6466 = vmatprep.subr.bf16.mxu0 %v834
        %6467 = vmatpush1.bf16.msra.mxu0 %v833
        %6468 = vmatprep.subr.bf16.mxu0 %v838
        %6469 = vmatpush1.bf16.msra.mxu0 %v837
        %6470 = vmatprep.subr.bf16.mxu0 %v842
        %6471 = vmatpush1.bf16.msra.mxu0 %v841
        %6472 = vmatprep.subr.bf16.mxu0 %v846
        %6473 = vmatpush1.bf16.msra.mxu0 %v845
        %6474 = vmatprep.subr.bf16.mxu0 %v850
        %6475 = vmatpush1.bf16.msra.mxu0 %v849
        %6476 = vmatprep.subr.bf16.mxu0 %v854
        %6477 = vmatpush1.bf16.msra.mxu0 %v853
        %6478 = vmatprep.subr.bf16.mxu0 %v858
        %6479 = vmatpush1.bf16.msra.mxu0 %v857
        %6480 = vmatprep.subr.bf16.mxu0 %v862
        %6481 = vmatpush1.bf16.msra.mxu0 %v861
        %6482 = vmatprep.subr.bf16.mxu0 %v866
        %6483 = vmatpush1.bf16.msra.mxu0 %v865
        %6484 = vmatprep.subr.bf16.mxu0 %v870
        %6485 = vmatpush1.bf16.msra.mxu0 %v869
        %6486 = vmatprep.subr.bf16.mxu0 %v874
        %6487 = vmatpush1.bf16.msra.mxu0 %v873
        %6488 = vmatprep.subr.bf16.mxu0 %v878
        %6489 = vmatpush1.bf16.msra.mxu0 %v877
        %6490 = vmatprep.subr.bf16.mxu0 %v882
        %6491 = vmatpush1.bf16.msra.mxu0 %v881
        %6492 = vmatprep.subr.bf16.mxu0 %v886
        %6493 = vmatpush1.bf16.msra.mxu0 %v885
        %6494 = vmatprep.subr.bf16.mxu0 %v890
        %6495 = vmatpush1.bf16.msra.mxu0 %v889
        %6496 = vmatprep.mubr.bf16.mxu0 %v6288
        %6497 = vmatmul.mubr.bf16.gmra.mrb[0].mxu0 %v6287
        %v6498 = vpop.f32.mrb[0].mxu0
        %v6499 = vadd.f32 0.0, %v6498
        %v6500 = vpop.f32.mrb[0].mxu0
        %v6501 = vadd.f32 0.0, %v6500
        %v6502 = vpop.f32.mrb[0].mxu0
        %v6503 = vadd.f32 0.0, %v6502
        %v6504 = vpop.f32.mrb[0].mxu0
        %v6505 = vadd.f32 0.0, %v6504
        %6506 = vmatprep.mubr.bf16.mxu0 %v6290
        %6507 = vmatmul.mubr.bf16.gmra.mrb[0].mxu0 %v6289
        %v6508 = vpop.f32.mrb[0].mxu0
        %v6509 = vadd.f32 0.0, %v6508
        %v6510 = vpop.f32.mrb[0].mxu0
        %v6511 = vadd.f32 0.0, %v6510
        %v6512 = vpop.f32.mrb[0].mxu0
        %v6513 = vadd.f32 0.0, %v6512
        %v6514 = vpop.f32.mrb[0].mxu0
        %v6515 = vadd.f32 0.0, %v6514
        %6516 = vmatprep.mubr.bf16.mxu0 %v6292
        %6517 = vmatmul.mubr.bf16.gmra.mrb[0].mxu0 %v6291
        %v6518 = vpop.f32.mrb[0].mxu0
        %v6519 = vadd.f32 0.0, %v6518
        %v6520 = vpop.f32.mrb[0].mxu0
        %v6521 = vadd.f32 0.0, %v6520
        %v6522 = vpop.f32.mrb[0].mxu0
        %v6523 = vadd.f32 0.0, %v6522
        %v6524 = vpop.f32.mrb[0].mxu0
        %v6525 = vadd.f32 0.0, %v6524
        %6526 = vmatprep.mubr.bf16.mxu0 %v6294
        %6527 = vmatmul.mubr.bf16.gmra.mrb[0].mxu0 %v6293
        %v6528 = vpop.f32.mrb[0].mxu0
        %v6529 = vadd.f32 0.0, %v6528
        %v6530 = vpop.f32.mrb[0].mxu0
        %v6531 = vadd.f32 0.0, %v6530
        %v6532 = vpop.f32.mrb[0].mxu0
        %v6533 = vadd.f32 0.0, %v6532
        %v6534 = vpop.f32.mrb[0].mxu0
        %v6535 = vadd.f32 0.0, %v6534
        %6536 = vmatprep.mubr.bf16.mxu0 %v6296
        %6537 = vmatmul.mubr.bf16.gmra.mrb[0].mxu0 %v6295
        %v6538 = vpop.f32.mrb[0].mxu0
        %v6539 = vadd.f32 0.0, %v6538
        %v6540 = vpop.f32.mrb[0].mxu0
        %v6541 = vadd.f32 0.0, %v6540
        %v6542 = vpop.f32.mrb[0].mxu0
        %v6543 = vadd.f32 0.0, %v6542
        %v6544 = vpop.f32.mrb[0].mxu0
        %v6545 = vadd.f32 0.0, %v6544
        %6546 = vmatprep.mubr.bf16.mxu0 %v6298
        %6547 = vmatmul.mubr.bf16.gmra.mrb[0].mxu0 %v6297
        %v6548 = vpop.f32.mrb[0].mxu0
        %v6549 = vadd.f32 0.0, %v6548
        %v6550 = vpop.f32.mrb[0].mxu0
        %v6551 = vadd.f32 0.0, %v6550
        %v6552 = vpop.f32.mrb[0].mxu0
        %v6553 = vadd.f32 0.0, %v6552
        %v6554 = vpop.f32.mrb[0].mxu0
        %v6555 = vadd.f32 0.0, %v6554
        %6556 = vmatprep.mubr.bf16.mxu0 %v6300
        %6557 = vmatmul.mubr.bf16.gmra.mrb[0].mxu0 %v6299
        %v6558 = vpop.f32.mrb[0].mxu0
        %v6559 = vadd.f32 0.0, %v6558
        %v6560 = vpop.f32.mrb[0].mxu0
        %v6561 = vadd.f32 0.0, %v6560
        %v6562 = vpop.f32.mrb[0].mxu0
        %v6563 = vadd.f32 0.0, %v6562
        %v6564 = vpop.f32.mrb[0].mxu0
        %v6565 = vadd.f32 0.0, %v6564
        %6566 = vmatprep.mubr.bf16.mxu0 %v6302
        %6567 = vmatmul.mubr.bf16.gmra.mrb[0].mxu0 %v6301
        %v6568 = vpop.f32.mrb[0].mxu0
        %v6569 = vadd.f32 0.0, %v6568
        %v6570 = vpop.f32.mrb[0].mxu0
        %v6571 = vadd.f32 0.0, %v6570
        %v6572 = vpop.f32.mrb[0].mxu0
        %v6573 = vadd.f32 0.0, %v6572
        %v6574 = vpop.f32.mrb[0].mxu0
        %v6575 = vadd.f32 0.0, %v6574
        %6576 = vmatprep.mubr.bf16.mxu0 %v6304
        %6577 = vmatmul.mubr.bf16.gmra.mrb[0].mxu0 %v6303
        %v6578 = vpop.f32.mrb[0].mxu0
        %v6579 = vadd.f32 0.0, %v6578
        %v6580 = vpop.f32.mrb[0].mxu0
        %v6581 = vadd.f32 0.0, %v6580
        %v6582 = vpop.f32.mrb[0].mxu0
        %v6583 = vadd.f32 0.0, %v6582
        %v6584 = vpop.f32.mrb[0].mxu0
        %v6585 = vadd.f32 0.0, %v6584
        %6586 = vmatprep.mubr.bf16.mxu0 %v6306
        %6587 = vmatmul.mubr.bf16.gmra.mrb[0].mxu0 %v6305
        %v6588 = vpop.f32.mrb[0].mxu0
        %v6589 = vadd.f32 0.0, %v6588
        %v6590 = vpop.f32.mrb[0].mxu0
        %v6591 = vadd.f32 0.0, %v6590
        %v6592 = vpop.f32.mrb[0].mxu0
        %v6593 = vadd.f32 0.0, %v6592
        %v6594 = vpop.f32.mrb[0].mxu0
        %v6595 = vadd.f32 0.0, %v6594
        %6596 = vmatprep.mubr.bf16.mxu0 %v6308
        %6597 = vmatmul.mubr.bf16.gmra.mrb[0].mxu0 %v6307
        %v6598 = vpop.f32.mrb[0].mxu0
        %v6599 = vadd.f32 0.0, %v6598
        %v6600 = vpop.f32.mrb[0].mxu0
        %v6601 = vadd.f32 0.0, %v6600
        %v6602 = vpop.f32.mrb[0].mxu0
        %v6603 = vadd.f32 0.0, %v6602
        %v6604 = vpop.f32.mrb[0].mxu0
        %v6605 = vadd.f32 0.0, %v6604
        %6606 = vmatprep.mubr.bf16.mxu0 %v6310
        %6607 = vmatmul.mubr.bf16.gmra.mrb[0].mxu0 %v6309
        %v6608 = vpop.f32.mrb[0].mxu0
        %v6609 = vadd.f32 0.0, %v6608
        %v6610 = vpop.f32.mrb[0].mxu0
        %v6611 = vadd.f32 0.0, %v6610
        %v6612 = vpop.f32.mrb[0].mxu0
        %v6613 = vadd.f32 0.0, %v6612
        %v6614 = vpop.f32.mrb[0].mxu0
        %v6615 = vadd.f32 0.0, %v6614
        %6616 = vdwg.mxu0
        %v6617 = vld [vmem:[#allocation7] sm:$0xff]
        %v6618 = vld [vmem:[#allocation7 + $0x8] sm:$0xff]
        %v6619 = vld [vmem:[#allocation7 + $0x10] sm:$0xff]
        %v6620 = vld [vmem:[#allocation7 + $0x18] sm:$0xff]
        %v6621 = vld [vmem:[#allocation7 + $0x20] sm:$0xff]
        %v6622 = vld [vmem:[#allocation7 + $0x28] sm:$0xff]
        %v6623 = vld [vmem:[#allocation7 + $0x30] sm:$0xff]
        %v6624 = vld [vmem:[#allocation7 + $0x38] sm:$0xff]
        %v6625 = vld [vmem:[#allocation7 + $0x40] sm:$0xff]
        %v6626 = vld [vmem:[#allocation7 + $0x48] sm:$0xff]
        %v6627 = vld [vmem:[#allocation7 + $0x50] sm:$0xff]
        %v6628 = vld [vmem:[#allocation7 + $0x58] sm:$0xff]
        %v6629 = vld [vmem:[#allocation7 + $0x60] sm:$0xff]
        %v6630 = vld [vmem:[#allocation7 + $0x68] sm:$0xff]
        %v6631 = vld [vmem:[#allocation7 + $0x70] sm:$0xff]
        %v6632 = vld [vmem:[#allocation7 + $0x78] sm:$0xff]
        %v6633 = vld [vmem:[#allocation7 + $0x80] sm:$0xff]
        %v6634 = vld [vmem:[#allocation7 + $0x88] sm:$0xff]
        %v6635 = vld [vmem:[#allocation7 + $0x90] sm:$0xff]
        %v6636 = vld [vmem:[#allocation7 + $0x98] sm:$0xff]
        %v6637 = vld [vmem:[#allocation7 + $0xa0] sm:$0xff]
        %v6638 = vld [vmem:[#allocation7 + $0xa8] sm:$0xff]
        %v6639 = vld [vmem:[#allocation7 + $0xb0] sm:$0xff]
        %v6640 = vld [vmem:[#allocation7 + $0xb8] sm:$0xff]
        %v6641 = vpack.c.bf16 %v6350, %v6346
        %v6642 = vpack.c.bf16 %v6352, %v6348
        %v6643 = vpack.c.bf16 %v6360, %v6356
        %v6644 = vpack.c.bf16 %v6362, %v6358
        %v6645 = vpack.c.bf16 %v6370, %v6366
        %v6646 = vpack.c.bf16 %v6372, %v6368
        %v6647 = vpack.c.bf16 %v6380, %v6376
        %v6648 = vpack.c.bf16 %v6382, %v6378
        %v6649 = vpack.c.bf16 %v6390, %v6386
        %v6650 = vpack.c.bf16 %v6392, %v6388
        %v6651 = vpack.c.bf16 %v6400, %v6396
        %v6652 = vpack.c.bf16 %v6402, %v6398
        %v6653 = vpack.c.bf16 %v6410, %v6406
        %v6654 = vpack.c.bf16 %v6412, %v6408
        %v6655 = vpack.c.bf16 %v6420, %v6416
        %v6656 = vpack.c.bf16 %v6422, %v6418
        %v6657 = vpack.c.bf16 %v6430, %v6426
        %v6658 = vpack.c.bf16 %v6432, %v6428
        %v6659 = vpack.c.bf16 %v6440, %v6436
        %v6660 = vpack.c.bf16 %v6442, %v6438
        %v6661 = vpack.c.bf16 %v6450, %v6446
        %v6662 = vpack.c.bf16 %v6452, %v6448
        %v6663 = vpack.c.bf16 %v6460, %v6456
        %v6664 = vpack.c.bf16 %v6462, %v6458
        %s6665 = scalar_lea.vmem [#allocation7], 192
        %v6666 = vld [vmem:[%s6665] sm:$0xff]
        %v6667 = vld [vmem:[%s6665 + $0x8] sm:$0xff]
        %v6668 = vld [vmem:[%s6665 + $0x10] sm:$0xff]
        %v6669 = vld [vmem:[%s6665 + $0x18] sm:$0xff]
        %v6670 = vld [vmem:[%s6665 + $0x20] sm:$0xff]
        %v6671 = vld [vmem:[%s6665 + $0x28] sm:$0xff]
        %v6672 = vld [vmem:[%s6665 + $0x30] sm:$0xff]
        %v6673 = vld [vmem:[%s6665 + $0x38] sm:$0xff]
        %v6674 = vld [vmem:[%s6665 + $0x40] sm:$0xff]
        %v6675 = vld [vmem:[%s6665 + $0x48] sm:$0xff]
        %v6676 = vld [vmem:[%s6665 + $0x50] sm:$0xff]
        %v6677 = vld [vmem:[%s6665 + $0x58] sm:$0xff]
        %v6678 = vld [vmem:[%s6665 + $0x60] sm:$0xff]
        %v6679 = vld [vmem:[%s6665 + $0x68] sm:$0xff]
        %v6680 = vld [vmem:[%s6665 + $0x70] sm:$0xff]
        %v6681 = vld [vmem:[%s6665 + $0x78] sm:$0xff]
        %v6682 = vld [vmem:[%s6665 + $0x80] sm:$0xff]
        %v6683 = vld [vmem:[%s6665 + $0x88] sm:$0xff]
        %v6684 = vld [vmem:[%s6665 + $0x90] sm:$0xff]
        %v6685 = vld [vmem:[%s6665 + $0x98] sm:$0xff]
        %v6686 = vld [vmem:[%s6665 + $0xa0] sm:$0xff]
        %v6687 = vld [vmem:[%s6665 + $0xa8] sm:$0xff]
        %v6688 = vld [vmem:[%s6665 + $0xb0] sm:$0xff]
        %v6689 = vld [vmem:[%s6665 + $0xb8] sm:$0xff]
        %v6714 = vunpack.c.l.b16 %v6666
        %v6715 = vunpack.c.h.b16 %v6666
        %v6716 = vunpack.c.l.b16 %v6667
        %v6717 = vunpack.c.h.b16 %v6667
        %v6718 = vunpack.c.l.b16 %v6668
        %v6719 = vunpack.c.h.b16 %v6668
        %v6720 = vunpack.c.l.b16 %v6669
        %v6721 = vunpack.c.h.b16 %v6669
        %v6722 = vunpack.c.l.b16 %v6670
        %v6723 = vunpack.c.h.b16 %v6670
        %v6724 = vunpack.c.l.b16 %v6671
        %v6725 = vunpack.c.h.b16 %v6671
        %v6726 = vunpack.c.l.b16 %v6672
        %v6727 = vunpack.c.h.b16 %v6672
        %v6728 = vunpack.c.l.b16 %v6673
        %v6729 = vunpack.c.h.b16 %v6673
        %v6730 = vunpack.c.l.b16 %v6674
        %v6731 = vunpack.c.h.b16 %v6674
        %v6732 = vunpack.c.l.b16 %v6675
        %v6733 = vunpack.c.h.b16 %v6675
        %v6734 = vunpack.c.l.b16 %v6676
        %v6735 = vunpack.c.h.b16 %v6676
        %v6736 = vunpack.c.l.b16 %v6677
        %v6737 = vunpack.c.h.b16 %v6677
        %v6738 = vunpack.c.l.b16 %v6678
        %v6739 = vunpack.c.h.b16 %v6678
        %v6740 = vunpack.c.l.b16 %v6679
        %v6741 = vunpack.c.h.b16 %v6679
        %v6742 = vunpack.c.l.b16 %v6680
        %v6743 = vunpack.c.h.b16 %v6680
        %v6744 = vunpack.c.l.b16 %v6681
        %v6745 = vunpack.c.h.b16 %v6681
        %v6746 = vunpack.c.l.b16 %v6682
        %v6747 = vunpack.c.h.b16 %v6682
        %v6748 = vunpack.c.l.b16 %v6683
        %v6749 = vunpack.c.h.b16 %v6683
        %v6750 = vunpack.c.l.b16 %v6684
        %v6751 = vunpack.c.h.b16 %v6684
        %v6752 = vunpack.c.l.b16 %v6685
        %v6753 = vunpack.c.h.b16 %v6685
        %v6754 = vunpack.c.l.b16 %v6686
        %v6755 = vunpack.c.h.b16 %v6686
        %v6756 = vunpack.c.l.b16 %v6687
        %v6757 = vunpack.c.h.b16 %v6687
        %v6758 = vunpack.c.l.b16 %v6688
        %v6759 = vunpack.c.h.b16 %v6688
        %v6760 = vunpack.c.l.b16 %v6689
        %v6761 = vunpack.c.h.b16 %v6689
        %v6762 = vpack.c.b16 %v6716, %v6714
        %v6763 = vpack.c.b16 %v6717, %v6715
        %v6764 = vpack.c.b16 %v6720, %v6718
        %v6765 = vpack.c.b16 %v6721, %v6719
        %v6766 = vpack.c.b16 %v6724, %v6722
        %v6767 = vpack.c.b16 %v6725, %v6723
        %v6768 = vpack.c.b16 %v6728, %v6726
        %v6769 = vpack.c.b16 %v6729, %v6727
        %v6770 = vpack.c.b16 %v6732, %v6730
        %v6771 = vpack.c.b16 %v6733, %v6731
        %v6772 = vpack.c.b16 %v6736, %v6734
        %v6773 = vpack.c.b16 %v6737, %v6735
        %v6774 = vpack.c.b16 %v6740, %v6738
        %v6775 = vpack.c.b16 %v6741, %v6739
        %v6776 = vpack.c.b16 %v6744, %v6742
        %v6777 = vpack.c.b16 %v6745, %v6743
        %v6778 = vpack.c.b16 %v6748, %v6746
        %v6779 = vpack.c.b16 %v6749, %v6747
        %v6780 = vpack.c.b16 %v6752, %v6750
        %v6781 = vpack.c.b16 %v6753, %v6751
        %v6782 = vpack.c.b16 %v6756, %v6754
        %v6783 = vpack.c.b16 %v6757, %v6755
        %v6784 = vpack.c.b16 %v6760, %v6758
        %v6785 = vpack.c.b16 %v6761, %v6759
        %v6799 = vsel %vm5166, %v6763, 0
        %v6802 = vsel %vm5166, %v6765, 0
        %v6805 = vsel %vm5166, %v6767, 0
        %v6808 = vsel %vm5166, %v6769, 0
        %v6811 = vsel %vm5166, %v6771, 0
        %v6814 = vsel %vm5166, %v6773, 0
        %v6817 = vsel %vm5166, %v6775, 0
        %v6820 = vsel %vm5166, %v6777, 0
        %v6823 = vsel %vm5166, %v6779, 0
        %v6826 = vsel %vm5166, %v6781, 0
        %v6829 = vsel %vm5166, %v6783, 0
        %v6832 = vsel %vm5166, %v6785, 0
        %6834 = vmatprep.subr.bf16.mxu0 %v6642
        %6835 = vmatpush1.bf16.msra.mxu0 %v6641
        %6836 = vmatprep.subr.bf16.mxu0 %v6644
        %6837 = vmatpush1.bf16.msra.mxu0 %v6643
        %6838 = vmatprep.subr.bf16.mxu0 %v6646
        %6839 = vmatpush1.bf16.msra.mxu0 %v6645
        %6840 = vmatprep.subr.bf16.mxu0 %v6648
        %6841 = vmatpush1.bf16.msra.mxu0 %v6647
        %6842 = vmatprep.subr.bf16.mxu0 %v6650
        %6843 = vmatpush1.bf16.msra.mxu0 %v6649
        %6844 = vmatprep.subr.bf16.mxu0 %v6652
        %6845 = vmatpush1.bf16.msra.mxu0 %v6651
        %6846 = vmatprep.subr.bf16.mxu0 %v6654
        %6847 = vmatpush1.bf16.msra.mxu0 %v6653
        %6848 = vmatprep.subr.bf16.mxu0 %v6656
        %6849 = vmatpush1.bf16.msra.mxu0 %v6655
        %6850 = vmatprep.subr.bf16.mxu0 %v6658
        %6851 = vmatpush1.bf16.msra.mxu0 %v6657
        %6852 = vmatprep.subr.bf16.mxu0 %v6660
        %6853 = vmatpush1.bf16.msra.mxu0 %v6659
        %6854 = vmatprep.subr.bf16.mxu0 %v6662
        %6855 = vmatpush1.bf16.msra.mxu0 %v6661
        %6856 = vmatprep.subr.bf16.mxu0 %v6664
        %6857 = vmatpush1.bf16.msra.mxu0 %v6663
        %6858 = vmatprep.subr.bf16.mxu0 0
        %6859 = vmatpush1.bf16.msra.mxu0 0
        %6860 = vmatprep.subr.bf16.mxu0 0
        %6861 = vmatpush1.bf16.msra.mxu0 0
        %6862 = vmatprep.subr.bf16.mxu0 0
        %6863 = vmatpush1.bf16.msra.mxu0 0
        %6864 = vmatprep.subr.bf16.mxu0 0
        %6865 = vmatpush1.bf16.msra.mxu0 0
        %6866 = vmatprep.mubr.bf16.mxu0 %v6799
        %6867 = vmatmul.mubr.bf16.gmra.mrb[0].mxu0 %v6762
        %v6868 = vpop.f32.mrb[0].mxu0
        %v6869 = vadd.f32 0.0, %v6868
        %v6870 = vpop.f32.mrb[0].mxu0
        %v6871 = vadd.f32 0.0, %v6870
        %v6872 = vpop.f32.mrb[0].mxu0
        %v6873 = vadd.f32 0.0, %v6872
        %v6874 = vpop.f32.mrb[0].mxu0
        %v6875 = vadd.f32 0.0, %v6874
        %6876 = vmatprep.mubr.bf16.mxu0 %v6802
        %6877 = vmatmul.mubr.bf16.gmra.mrb[0].mxu0 %v6764
        %v6878 = vpop.f32.mrb[0].mxu0
        %v6879 = vadd.f32 0.0, %v6878
        %v6880 = vpop.f32.mrb[0].mxu0
        %v6881 = vadd.f32 0.0, %v6880
        %v6882 = vpop.f32.mrb[0].mxu0
        %v6883 = vadd.f32 0.0, %v6882
        %v6884 = vpop.f32.mrb[0].mxu0
        %v6885 = vadd.f32 0.0, %v6884
        %6886 = vmatprep.mubr.bf16.mxu0 %v6805
        %6887 = vmatmul.mubr.bf16.gmra.mrb[0].mxu0 %v6766
        %v6888 = vpop.f32.mrb[0].mxu0
        %v6889 = vadd.f32 0.0, %v6888
        %v6890 = vpop.f32.mrb[0].mxu0
        %v6891 = vadd.f32 0.0, %v6890
        %v6892 = vpop.f32.mrb[0].mxu0
        %v6893 = vadd.f32 0.0, %v6892
        %v6894 = vpop.f32.mrb[0].mxu0
        %v6895 = vadd.f32 0.0, %v6894
        %6896 = vmatprep.mubr.bf16.mxu0 %v6808
        %6897 = vmatmul.mubr.bf16.gmra.mrb[0].mxu0 %v6768
        %v6898 = vpop.f32.mrb[0].mxu0
        %v6899 = vadd.f32 0.0, %v6898
        %v6900 = vpop.f32.mrb[0].mxu0
        %v6901 = vadd.f32 0.0, %v6900
        %v6902 = vpop.f32.mrb[0].mxu0
        %v6903 = vadd.f32 0.0, %v6902
        %v6904 = vpop.f32.mrb[0].mxu0
        %v6905 = vadd.f32 0.0, %v6904
        %6906 = vmatprep.mubr.bf16.mxu0 %v6811
        %6907 = vmatmul.mubr.bf16.gmra.mrb[0].mxu0 %v6770
        %v6908 = vpop.f32.mrb[0].mxu0
        %v6909 = vadd.f32 0.0, %v6908
        %v6910 = vpop.f32.mrb[0].mxu0
        %v6911 = vadd.f32 0.0, %v6910
        %v6912 = vpop.f32.mrb[0].mxu0
        %v6913 = vadd.f32 0.0, %v6912
        %v6914 = vpop.f32.mrb[0].mxu0
        %v6915 = vadd.f32 0.0, %v6914
        %6916 = vmatprep.mubr.bf16.mxu0 %v6814
        %6917 = vmatmul.mubr.bf16.gmra.mrb[0].mxu0 %v6772
        %v6918 = vpop.f32.mrb[0].mxu0
        %v6919 = vadd.f32 0.0, %v6918
        %v6920 = vpop.f32.mrb[0].mxu0
        %v6921 = vadd.f32 0.0, %v6920
        %v6922 = vpop.f32.mrb[0].mxu0
        %v6923 = vadd.f32 0.0, %v6922
        %v6924 = vpop.f32.mrb[0].mxu0
        %v6925 = vadd.f32 0.0, %v6924
        %6926 = vmatprep.mubr.bf16.mxu0 %v6817
        %6927 = vmatmul.mubr.bf16.gmra.mrb[0].mxu0 %v6774
        %v6928 = vpop.f32.mrb[0].mxu0
        %v6929 = vadd.f32 0.0, %v6928
        %v6930 = vpop.f32.mrb[0].mxu0
        %v6931 = vadd.f32 0.0, %v6930
        %v6932 = vpop.f32.mrb[0].mxu0
        %v6933 = vadd.f32 0.0, %v6932
        %v6934 = vpop.f32.mrb[0].mxu0
        %v6935 = vadd.f32 0.0, %v6934
        %6936 = vmatprep.mubr.bf16.mxu0 %v6820
        %6937 = vmatmul.mubr.bf16.gmra.mrb[0].mxu0 %v6776
        %v6938 = vpop.f32.mrb[0].mxu0
        %v6939 = vadd.f32 0.0, %v6938
        %v6940 = vpop.f32.mrb[0].mxu0
        %v6941 = vadd.f32 0.0, %v6940
        %v6942 = vpop.f32.mrb[0].mxu0
        %v6943 = vadd.f32 0.0, %v6942
        %v6944 = vpop.f32.mrb[0].mxu0
        %v6945 = vadd.f32 0.0, %v6944
        %6946 = vmatprep.mubr.bf16.mxu0 %v6823
        %6947 = vmatmul.mubr.bf16.gmra.mrb[0].mxu0 %v6778
        %v6948 = vpop.f32.mrb[0].mxu0
        %v6949 = vadd.f32 0.0, %v6948
        %v6950 = vpop.f32.mrb[0].mxu0
        %v6951 = vadd.f32 0.0, %v6950
        %v6952 = vpop.f32.mrb[0].mxu0
        %v6953 = vadd.f32 0.0, %v6952
        %v6954 = vpop.f32.mrb[0].mxu0
        %v6955 = vadd.f32 0.0, %v6954
        %6956 = vmatprep.mubr.bf16.mxu0 %v6826
        %6957 = vmatmul.mubr.bf16.gmra.mrb[0].mxu0 %v6780
        %v6958 = vpop.f32.mrb[0].mxu0
        %v6959 = vadd.f32 0.0, %v6958
        %v6960 = vpop.f32.mrb[0].mxu0
        %v6961 = vadd.f32 0.0, %v6960
        %v6962 = vpop.f32.mrb[0].mxu0
        %v6963 = vadd.f32 0.0, %v6962
        %v6964 = vpop.f32.mrb[0].mxu0
        %v6965 = vadd.f32 0.0, %v6964
        %6966 = vmatprep.mubr.bf16.mxu0 %v6829
        %6967 = vmatmul.mubr.bf16.gmra.mrb[0].mxu0 %v6782
        %v6968 = vpop.f32.mrb[0].mxu0
        %v6969 = vadd.f32 0.0, %v6968
        %v6970 = vpop.f32.mrb[0].mxu0
        %v6971 = vadd.f32 0.0, %v6970
        %v6972 = vpop.f32.mrb[0].mxu0
        %v6973 = vadd.f32 0.0, %v6972
        %v6974 = vpop.f32.mrb[0].mxu0
        %v6975 = vadd.f32 0.0, %v6974
        %6976 = vmatprep.mubr.bf16.mxu0 %v6832
        %6977 = vmatmul.mubr.bf16.gmra.mrb[0].mxu0 %v6784
        %v6978 = vpop.f32.mrb[0].mxu0
        %v6979 = vadd.f32 0.0, %v6978
        %v6980 = vpop.f32.mrb[0].mxu0
        %v6981 = vadd.f32 0.0, %v6980
        %v6982 = vpop.f32.mrb[0].mxu0
        %v6983 = vadd.f32 0.0, %v6982
        %v6984 = vpop.f32.mrb[0].mxu0
        %v6985 = vadd.f32 0.0, %v6984
        %6986 = vdwg.mxu0
        %v7011 = vunpack.c.l.b16 %v6617
        %v7012 = vunpack.c.h.b16 %v6617
        %v7013 = vunpack.c.l.b16 %v6618
        %v7014 = vunpack.c.h.b16 %v6618
        %v7015 = vunpack.c.l.b16 %v6619
        %v7016 = vunpack.c.h.b16 %v6619
        %v7017 = vunpack.c.l.b16 %v6620
        %v7018 = vunpack.c.h.b16 %v6620
        %v7019 = vunpack.c.l.b16 %v6621
        %v7020 = vunpack.c.h.b16 %v6621
        %v7021 = vunpack.c.l.b16 %v6622
        %v7022 = vunpack.c.h.b16 %v6622
        %v7023 = vunpack.c.l.b16 %v6623
        %v7024 = vunpack.c.h.b16 %v6623
        %v7025 = vunpack.c.l.b16 %v6624
        %v7026 = vunpack.c.h.b16 %v6624
        %v7027 = vunpack.c.l.b16 %v6625
        %v7028 = vunpack.c.h.b16 %v6625
        %v7029 = vunpack.c.l.b16 %v6626
        %v7030 = vunpack.c.h.b16 %v6626
        %v7031 = vunpack.c.l.b16 %v6627
        %v7032 = vunpack.c.h.b16 %v6627
        %v7033 = vunpack.c.l.b16 %v6628
        %v7034 = vunpack.c.h.b16 %v6628
        %v7035 = vunpack.c.l.b16 %v6629
        %v7036 = vunpack.c.h.b16 %v6629
        %v7037 = vunpack.c.l.b16 %v6630
        %v7038 = vunpack.c.h.b16 %v6630
        %v7039 = vunpack.c.l.b16 %v6631
        %v7040 = vunpack.c.h.b16 %v6631
        %v7041 = vunpack.c.l.b16 %v6632
        %v7042 = vunpack.c.h.b16 %v6632
        %v7043 = vunpack.c.l.b16 %v6633
        %v7044 = vunpack.c.h.b16 %v6633
        %v7045 = vunpack.c.l.b16 %v6634
        %v7046 = vunpack.c.h.b16 %v6634
        %v7047 = vunpack.c.l.b16 %v6635
        %v7048 = vunpack.c.h.b16 %v6635
        %v7049 = vunpack.c.l.b16 %v6636
        %v7050 = vunpack.c.h.b16 %v6636
        %v7051 = vunpack.c.l.b16 %v6637
        %v7052 = vunpack.c.h.b16 %v6637
        %v7053 = vunpack.c.l.b16 %v6638
        %v7054 = vunpack.c.h.b16 %v6638
        %v7055 = vunpack.c.l.b16 %v6639
        %v7056 = vunpack.c.h.b16 %v6639
        %v7057 = vunpack.c.l.b16 %v6640
        %v7058 = vunpack.c.h.b16 %v6640
        %v7059 = vpack.c.b16 %v7013, %v7011
        %v7060 = vpack.c.b16 %v7014, %v7012
        %v7061 = vpack.c.b16 %v7017, %v7015
        %v7062 = vpack.c.b16 %v7018, %v7016
        %v7063 = vpack.c.b16 %v7021, %v7019
        %v7064 = vpack.c.b16 %v7022, %v7020
        %v7065 = vpack.c.b16 %v7025, %v7023
        %v7066 = vpack.c.b16 %v7026, %v7024
        %v7067 = vpack.c.b16 %v7029, %v7027
        %v7068 = vpack.c.b16 %v7030, %v7028
        %v7069 = vpack.c.b16 %v7033, %v7031
        %v7070 = vpack.c.b16 %v7034, %v7032
        %v7071 = vpack.c.b16 %v7037, %v7035
        %v7072 = vpack.c.b16 %v7038, %v7036
        %v7073 = vpack.c.b16 %v7041, %v7039
        %v7074 = vpack.c.b16 %v7042, %v7040
        %v7075 = vpack.c.b16 %v7045, %v7043
        %v7076 = vpack.c.b16 %v7046, %v7044
        %v7077 = vpack.c.b16 %v7049, %v7047
        %v7078 = vpack.c.b16 %v7050, %v7048
        %v7079 = vpack.c.b16 %v7053, %v7051
        %v7080 = vpack.c.b16 %v7054, %v7052
        %v7081 = vpack.c.b16 %v7057, %v7055
        %v7082 = vpack.c.b16 %v7058, %v7056
        %v7096 = vsel %vm5166, %v7060, 0
        %v7099 = vsel %vm5166, %v7062, 0
        %v7102 = vsel %vm5166, %v7064, 0
        %v7105 = vsel %vm5166, %v7066, 0
        %v7108 = vsel %vm5166, %v7068, 0
        %v7111 = vsel %vm5166, %v7070, 0
        %v7114 = vsel %vm5166, %v7072, 0
        %v7117 = vsel %vm5166, %v7074, 0
        %v7120 = vsel %vm5166, %v7076, 0
        %v7123 = vsel %vm5166, %v7078, 0
        %v7126 = vsel %vm5166, %v7080, 0
        %v7129 = vsel %vm5166, %v7082, 0
        %7131 = vmatprep.subr.bf16.mxu0 %v6288
        %7132 = vmatpush1.bf16.msra.mxu0 %v6287
        %7133 = vmatprep.subr.bf16.mxu0 %v6290
        %7134 = vmatpush1.bf16.msra.mxu0 %v6289
        %7135 = vmatprep.subr.bf16.mxu0 %v6292
        %7136 = vmatpush1.bf16.msra.mxu0 %v6291
        %7137 = vmatprep.subr.bf16.mxu0 %v6294
        %7138 = vmatpush1.bf16.msra.mxu0 %v6293
        %7139 = vmatprep.subr.bf16.mxu0 %v6296
        %7140 = vmatpush1.bf16.msra.mxu0 %v6295
        %7141 = vmatprep.subr.bf16.mxu0 %v6298
        %7142 = vmatpush1.bf16.msra.mxu0 %v6297
        %7143 = vmatprep.subr.bf16.mxu0 %v6300
        %7144 = vmatpush1.bf16.msra.mxu0 %v6299
        %7145 = vmatprep.subr.bf16.mxu0 %v6302
        %7146 = vmatpush1.bf16.msra.mxu0 %v6301
        %7147 = vmatprep.subr.bf16.mxu0 %v6304
        %7148 = vmatpush1.bf16.msra.mxu0 %v6303
        %7149 = vmatprep.subr.bf16.mxu0 %v6306
        %7150 = vmatpush1.bf16.msra.mxu0 %v6305
        %7151 = vmatprep.subr.bf16.mxu0 %v6308
        %7152 = vmatpush1.bf16.msra.mxu0 %v6307
        %7153 = vmatprep.subr.bf16.mxu0 %v6310
        %7154 = vmatpush1.bf16.msra.mxu0 %v6309
        %7155 = vmatprep.subr.bf16.mxu0 0
        %7156 = vmatpush1.bf16.msra.mxu0 0
        %7157 = vmatprep.subr.bf16.mxu0 0
        %7158 = vmatpush1.bf16.msra.mxu0 0
        %7159 = vmatprep.subr.bf16.mxu0 0
        %7160 = vmatpush1.bf16.msra.mxu0 0
        %7161 = vmatprep.subr.bf16.mxu0 0
        %7162 = vmatpush1.bf16.msra.mxu0 0
        %7163 = vmatprep.mubr.bf16.mxu0 %v7096
        %7164 = vmatmul.mubr.bf16.gmra.mrb[0].mxu0 %v7059
        %v7165 = vpop.f32.mrb[0].mxu0
        %v7166 = vadd.f32 %v6869, %v7165
        %v7167 = vpop.f32.mrb[0].mxu0
        %v7168 = vadd.f32 %v6871, %v7167
        %v7169 = vpop.f32.mrb[0].mxu0
        %v7170 = vadd.f32 %v6873, %v7169
        %v7171 = vpop.f32.mrb[0].mxu0
        %v7172 = vadd.f32 %v6875, %v7171
        %7173 = vmatprep.mubr.bf16.mxu0 %v7099
        %7174 = vmatmul.mubr.bf16.gmra.mrb[0].mxu0 %v7061
        %v7175 = vpop.f32.mrb[0].mxu0
        %v7176 = vadd.f32 %v6879, %v7175
        %v7177 = vpop.f32.mrb[0].mxu0
        %v7178 = vadd.f32 %v6881, %v7177
        %v7179 = vpop.f32.mrb[0].mxu0
        %v7180 = vadd.f32 %v6883, %v7179
        %v7181 = vpop.f32.mrb[0].mxu0
        %v7182 = vadd.f32 %v6885, %v7181
        %7183 = vmatprep.mubr.bf16.mxu0 %v7102
        %7184 = vmatmul.mubr.bf16.gmra.mrb[0].mxu0 %v7063
        %v7185 = vpop.f32.mrb[0].mxu0
        %v7186 = vadd.f32 %v6889, %v7185
        %v7187 = vpop.f32.mrb[0].mxu0
        %v7188 = vadd.f32 %v6891, %v7187
        %v7189 = vpop.f32.mrb[0].mxu0
        %v7190 = vadd.f32 %v6893, %v7189
        %v7191 = vpop.f32.mrb[0].mxu0
        %v7192 = vadd.f32 %v6895, %v7191
        %7193 = vmatprep.mubr.bf16.mxu0 %v7105
        %7194 = vmatmul.mubr.bf16.gmra.mrb[0].mxu0 %v7065
        %v7195 = vpop.f32.mrb[0].mxu0
        %v7196 = vadd.f32 %v6899, %v7195
        %v7197 = vpop.f32.mrb[0].mxu0
        %v7198 = vadd.f32 %v6901, %v7197
        %v7199 = vpop.f32.mrb[0].mxu0
        %v7200 = vadd.f32 %v6903, %v7199
        %v7201 = vpop.f32.mrb[0].mxu0
        %v7202 = vadd.f32 %v6905, %v7201
        %7203 = vmatprep.mubr.bf16.mxu0 %v7108
        %7204 = vmatmul.mubr.bf16.gmra.mrb[0].mxu0 %v7067
        %v7205 = vpop.f32.mrb[0].mxu0
        %v7206 = vadd.f32 %v6909, %v7205
        %v7207 = vpop.f32.mrb[0].mxu0
        %v7208 = vadd.f32 %v6911, %v7207
        %v7209 = vpop.f32.mrb[0].mxu0
        %v7210 = vadd.f32 %v6913, %v7209
        %v7211 = vpop.f32.mrb[0].mxu0
        %v7212 = vadd.f32 %v6915, %v7211
        %7213 = vmatprep.mubr.bf16.mxu0 %v7111
        %7214 = vmatmul.mubr.bf16.gmra.mrb[0].mxu0 %v7069
        %v7215 = vpop.f32.mrb[0].mxu0
        %v7216 = vadd.f32 %v6919, %v7215
        %v7217 = vpop.f32.mrb[0].mxu0
        %v7218 = vadd.f32 %v6921, %v7217
        %v7219 = vpop.f32.mrb[0].mxu0
        %v7220 = vadd.f32 %v6923, %v7219
        %v7221 = vpop.f32.mrb[0].mxu0
        %v7222 = vadd.f32 %v6925, %v7221
        %7223 = vmatprep.mubr.bf16.mxu0 %v7114
        %7224 = vmatmul.mubr.bf16.gmra.mrb[0].mxu0 %v7071
        %v7225 = vpop.f32.mrb[0].mxu0
        %v7226 = vadd.f32 %v6929, %v7225
        %v7227 = vpop.f32.mrb[0].mxu0
        %v7228 = vadd.f32 %v6931, %v7227
        %v7229 = vpop.f32.mrb[0].mxu0
        %v7230 = vadd.f32 %v6933, %v7229
        %v7231 = vpop.f32.mrb[0].mxu0
        %v7232 = vadd.f32 %v6935, %v7231
        %7233 = vmatprep.mubr.bf16.mxu0 %v7117
        %7234 = vmatmul.mubr.bf16.gmra.mrb[0].mxu0 %v7073
        %v7235 = vpop.f32.mrb[0].mxu0
        %v7236 = vadd.f32 %v6939, %v7235
        %v7237 = vpop.f32.mrb[0].mxu0
        %v7238 = vadd.f32 %v6941, %v7237
        %v7239 = vpop.f32.mrb[0].mxu0
        %v7240 = vadd.f32 %v6943, %v7239
        %v7241 = vpop.f32.mrb[0].mxu0
        %v7242 = vadd.f32 %v6945, %v7241
        %7243 = vmatprep.mubr.bf16.mxu0 %v7120
        %7244 = vmatmul.mubr.bf16.gmra.mrb[0].mxu0 %v7075
        %v7245 = vpop.f32.mrb[0].mxu0
        %v7246 = vadd.f32 %v6949, %v7245
        %v7247 = vpop.f32.mrb[0].mxu0
        %v7248 = vadd.f32 %v6951, %v7247
        %v7249 = vpop.f32.mrb[0].mxu0
        %v7250 = vadd.f32 %v6953, %v7249
        %v7251 = vpop.f32.mrb[0].mxu0
        %v7252 = vadd.f32 %v6955, %v7251
        %7253 = vmatprep.mubr.bf16.mxu0 %v7123
        %7254 = vmatmul.mubr.bf16.gmra.mrb[0].mxu0 %v7077
        %v7255 = vpop.f32.mrb[0].mxu0
        %v7256 = vadd.f32 %v6959, %v7255
        %v7257 = vpop.f32.mrb[0].mxu0
        %v7258 = vadd.f32 %v6961, %v7257
        %v7259 = vpop.f32.mrb[0].mxu0
        %v7260 = vadd.f32 %v6963, %v7259
        %v7261 = vpop.f32.mrb[0].mxu0
        %v7262 = vadd.f32 %v6965, %v7261
        %7263 = vmatprep.mubr.bf16.mxu0 %v7126
        %7264 = vmatmul.mubr.bf16.gmra.mrb[0].mxu0 %v7079
        %v7265 = vpop.f32.mrb[0].mxu0
        %v7266 = vadd.f32 %v6969, %v7265
        %v7267 = vpop.f32.mrb[0].mxu0
        %v7268 = vadd.f32 %v6971, %v7267
        %v7269 = vpop.f32.mrb[0].mxu0
        %v7270 = vadd.f32 %v6973, %v7269
        %v7271 = vpop.f32.mrb[0].mxu0
        %v7272 = vadd.f32 %v6975, %v7271
        %7273 = vmatprep.mubr.bf16.mxu0 %v7129
        %7274 = vmatmul.mubr.bf16.gmra.mrb[0].mxu0 %v7081
        %v7275 = vpop.f32.mrb[0].mxu0
        %v7276 = vadd.f32 %v6979, %v7275
        %v7277 = vpop.f32.mrb[0].mxu0
        %v7278 = vadd.f32 %v6981, %v7277
        %v7279 = vpop.f32.mrb[0].mxu0
        %v7280 = vadd.f32 %v6983, %v7279
        %v7281 = vpop.f32.mrb[0].mxu0
        %v7282 = vadd.f32 %v6985, %v7281
        %7283 = vdwg.mxu0
        %v7284 = vpack.c.bf16 %v6503, %v6499
        %v7285 = vpack.c.bf16 %v6505, %v6501
        %v7286 = vpack.c.bf16 %v6513, %v6509
        %v7287 = vpack.c.bf16 %v6515, %v6511
        %v7288 = vpack.c.bf16 %v6523, %v6519
        %v7289 = vpack.c.bf16 %v6525, %v6521
        %v7290 = vpack.c.bf16 %v6533, %v6529
        %v7291 = vpack.c.bf16 %v6535, %v6531
        %v7292 = vpack.c.bf16 %v6543, %v6539
        %v7293 = vpack.c.bf16 %v6545, %v6541
        %v7294 = vpack.c.bf16 %v6553, %v6549
        %v7295 = vpack.c.bf16 %v6555, %v6551
        %v7296 = vpack.c.bf16 %v6563, %v6559
        %v7297 = vpack.c.bf16 %v6565, %v6561
        %v7298 = vpack.c.bf16 %v6573, %v6569
        %v7299 = vpack.c.bf16 %v6575, %v6571
        %v7300 = vpack.c.bf16 %v6583, %v6579
        %v7301 = vpack.c.bf16 %v6585, %v6581
        %v7302 = vpack.c.bf16 %v6593, %v6589
        %v7303 = vpack.c.bf16 %v6595, %v6591
        %v7304 = vpack.c.bf16 %v6603, %v6599
        %v7305 = vpack.c.bf16 %v6605, %v6601
        %v7306 = vpack.c.bf16 %v6613, %v6609
        %v7307 = vpack.c.bf16 %v6615, %v6611
        %s7308 = scalar_lea.vmem [#allocation7], 384
        %v7309 = vld [vmem:[%s7308] sm:$0xff]
        %v7310 = vld [vmem:[%s7308 + $0x8] sm:$0xff]
        %v7311 = vld [vmem:[%s7308 + $0x10] sm:$0xff]
        %v7312 = vld [vmem:[%s7308 + $0x18] sm:$0xff]
        %v7313 = vld [vmem:[%s7308 + $0x20] sm:$0xff]
        %v7314 = vld [vmem:[%s7308 + $0x28] sm:$0xff]
        %v7315 = vld [vmem:[%s7308 + $0x30] sm:$0xff]
        %v7316 = vld [vmem:[%s7308 + $0x38] sm:$0xff]
        %v7317 = vld [vmem:[%s7308 + $0x40] sm:$0xff]
        %v7318 = vld [vmem:[%s7308 + $0x48] sm:$0xff]
        %v7319 = vld [vmem:[%s7308 + $0x50] sm:$0xff]
        %v7320 = vld [vmem:[%s7308 + $0x58] sm:$0xff]
        %v7321 = vld [vmem:[%s7308 + $0x60] sm:$0xff]
        %v7322 = vld [vmem:[%s7308 + $0x68] sm:$0xff]
        %v7323 = vld [vmem:[%s7308 + $0x70] sm:$0xff]
        %v7324 = vld [vmem:[%s7308 + $0x78] sm:$0xff]
        %v7325 = vld [vmem:[%s7308 + $0x80] sm:$0xff]
        %v7326 = vld [vmem:[%s7308 + $0x88] sm:$0xff]
        %v7327 = vld [vmem:[%s7308 + $0x90] sm:$0xff]
        %v7328 = vld [vmem:[%s7308 + $0x98] sm:$0xff]
        %v7329 = vld [vmem:[%s7308 + $0xa0] sm:$0xff]
        %v7330 = vld [vmem:[%s7308 + $0xa8] sm:$0xff]
        %v7331 = vld [vmem:[%s7308 + $0xb0] sm:$0xff]
        %v7332 = vld [vmem:[%s7308 + $0xb8] sm:$0xff]
        %v7357 = vunpack.c.l.b16 %v7309
        %v7358 = vunpack.c.h.b16 %v7309
        %v7359 = vunpack.c.l.b16 %v7310
        %v7360 = vunpack.c.h.b16 %v7310
        %v7361 = vunpack.c.l.b16 %v7311
        %v7362 = vunpack.c.h.b16 %v7311
        %v7363 = vunpack.c.l.b16 %v7312
        %v7364 = vunpack.c.h.b16 %v7312
        %v7365 = vunpack.c.l.b16 %v7313
        %v7366 = vunpack.c.h.b16 %v7313
        %v7367 = vunpack.c.l.b16 %v7314
        %v7368 = vunpack.c.h.b16 %v7314
        %v7369 = vunpack.c.l.b16 %v7315
        %v7370 = vunpack.c.h.b16 %v7315
        %v7371 = vunpack.c.l.b16 %v7316
        %v7372 = vunpack.c.h.b16 %v7316
        %v7373 = vunpack.c.l.b16 %v7317
        %v7374 = vunpack.c.h.b16 %v7317
        %v7375 = vunpack.c.l.b16 %v7318
        %v7376 = vunpack.c.h.b16 %v7318
        %v7377 = vunpack.c.l.b16 %v7319
        %v7378 = vunpack.c.h.b16 %v7319
        %v7379 = vunpack.c.l.b16 %v7320
        %v7380 = vunpack.c.h.b16 %v7320
        %v7381 = vunpack.c.l.b16 %v7321
        %v7382 = vunpack.c.h.b16 %v7321
        %v7383 = vunpack.c.l.b16 %v7322
        %v7384 = vunpack.c.h.b16 %v7322
        %v7385 = vunpack.c.l.b16 %v7323
        %v7386 = vunpack.c.h.b16 %v7323
        %v7387 = vunpack.c.l.b16 %v7324
        %v7388 = vunpack.c.h.b16 %v7324
        %v7389 = vunpack.c.l.b16 %v7325
        %v7390 = vunpack.c.h.b16 %v7325
        %v7391 = vunpack.c.l.b16 %v7326
        %v7392 = vunpack.c.h.b16 %v7326
        %v7393 = vunpack.c.l.b16 %v7327
        %v7394 = vunpack.c.h.b16 %v7327
        %v7395 = vunpack.c.l.b16 %v7328
        %v7396 = vunpack.c.h.b16 %v7328
        %v7397 = vunpack.c.l.b16 %v7329
        %v7398 = vunpack.c.h.b16 %v7329
        %v7399 = vunpack.c.l.b16 %v7330
        %v7400 = vunpack.c.h.b16 %v7330
        %v7401 = vunpack.c.l.b16 %v7331
        %v7402 = vunpack.c.h.b16 %v7331
        %v7403 = vunpack.c.l.b16 %v7332
        %v7404 = vunpack.c.h.b16 %v7332
        %v7405 = vpack.c.b16 %v7359, %v7357
        %v7406 = vpack.c.b16 %v7360, %v7358
        %v7407 = vpack.c.b16 %v7363, %v7361
        %v7408 = vpack.c.b16 %v7364, %v7362
        %v7409 = vpack.c.b16 %v7367, %v7365
        %v7410 = vpack.c.b16 %v7368, %v7366
        %v7411 = vpack.c.b16 %v7371, %v7369
        %v7412 = vpack.c.b16 %v7372, %v7370
        %v7413 = vpack.c.b16 %v7375, %v7373
        %v7414 = vpack.c.b16 %v7376, %v7374
        %v7415 = vpack.c.b16 %v7379, %v7377
        %v7416 = vpack.c.b16 %v7380, %v7378
        %v7417 = vpack.c.b16 %v7383, %v7381
        %v7418 = vpack.c.b16 %v7384, %v7382
        %v7419 = vpack.c.b16 %v7387, %v7385
        %v7420 = vpack.c.b16 %v7388, %v7386
        %v7421 = vpack.c.b16 %v7391, %v7389
        %v7422 = vpack.c.b16 %v7392, %v7390
        %v7423 = vpack.c.b16 %v7395, %v7393
        %v7424 = vpack.c.b16 %v7396, %v7394
        %v7425 = vpack.c.b16 %v7399, %v7397
        %v7426 = vpack.c.b16 %v7400, %v7398
        %v7427 = vpack.c.b16 %v7403, %v7401
        %v7428 = vpack.c.b16 %v7404, %v7402
        %v7442 = vsel %vm5166, %v7406, 0
        %v7445 = vsel %vm5166, %v7408, 0
        %v7448 = vsel %vm5166, %v7410, 0
        %v7451 = vsel %vm5166, %v7412, 0
        %v7454 = vsel %vm5166, %v7414, 0
        %v7457 = vsel %vm5166, %v7416, 0
        %v7460 = vsel %vm5166, %v7418, 0
        %v7463 = vsel %vm5166, %v7420, 0
        %v7466 = vsel %vm5166, %v7422, 0
        %v7469 = vsel %vm5166, %v7424, 0
        %v7472 = vsel %vm5166, %v7426, 0
        %v7475 = vsel %vm5166, %v7428, 0
        %7477 = vmatprep.subr.bf16.mxu0 %v7285
        %7478 = vmatpush1.bf16.msra.mxu0 %v7284
        %7479 = vmatprep.subr.bf16.mxu0 %v7287
        %7480 = vmatpush1.bf16.msra.mxu0 %v7286
        %7481 = vmatprep.subr.bf16.mxu0 %v7289
        %7482 = vmatpush1.bf16.msra.mxu0 %v7288
        %7483 = vmatprep.subr.bf16.mxu0 %v7291
        %7484 = vmatpush1.bf16.msra.mxu0 %v7290
        %7485 = vmatprep.subr.bf16.mxu0 %v7293
        %7486 = vmatpush1.bf16.msra.mxu0 %v7292
        %7487 = vmatprep.subr.bf16.mxu0 %v7295
        %7488 = vmatpush1.bf16.msra.mxu0 %v7294
        %7489 = vmatprep.subr.bf16.mxu0 %v7297
        %7490 = vmatpush1.bf16.msra.mxu0 %v7296
        %7491 = vmatprep.subr.bf16.mxu0 %v7299
        %7492 = vmatpush1.bf16.msra.mxu0 %v7298
        %7493 = vmatprep.subr.bf16.mxu0 %v7301
        %7494 = vmatpush1.bf16.msra.mxu0 %v7300
        %7495 = vmatprep.subr.bf16.mxu0 %v7303
        %7496 = vmatpush1.bf16.msra.mxu0 %v7302
        %7497 = vmatprep.subr.bf16.mxu0 %v7305
        %7498 = vmatpush1.bf16.msra.mxu0 %v7304
        %7499 = vmatprep.subr.bf16.mxu0 %v7307
        %7500 = vmatpush1.bf16.msra.mxu0 %v7306
        %7501 = vmatprep.subr.bf16.mxu0 0
        %7502 = vmatpush1.bf16.msra.mxu0 0
        %7503 = vmatprep.subr.bf16.mxu0 0
        %7504 = vmatpush1.bf16.msra.mxu0 0
        %7505 = vmatprep.subr.bf16.mxu0 0
        %7506 = vmatpush1.bf16.msra.mxu0 0
        %7507 = vmatprep.subr.bf16.mxu0 0
        %7508 = vmatpush1.bf16.msra.mxu0 0
        %7509 = vmatprep.mubr.bf16.mxu0 %v7442
        %7510 = vmatmul.mubr.bf16.gmra.mrb[0].mxu0 %v7405
        %v7511 = vpop.f32.mrb[0].mxu0
        %v7512 = vadd.f32 0.0, %v7511
        %v7513 = vpop.f32.mrb[0].mxu0
        %v7514 = vadd.f32 0.0, %v7513
        %v7515 = vpop.f32.mrb[0].mxu0
        %v7516 = vadd.f32 0.0, %v7515
        %v7517 = vpop.f32.mrb[0].mxu0
        %v7518 = vadd.f32 0.0, %v7517
        %7519 = vmatprep.mubr.bf16.mxu0 %v7445
        %7520 = vmatmul.mubr.bf16.gmra.mrb[0].mxu0 %v7407
        %v7521 = vpop.f32.mrb[0].mxu0
        %v7522 = vadd.f32 0.0, %v7521
        %v7523 = vpop.f32.mrb[0].mxu0
        %v7524 = vadd.f32 0.0, %v7523
        %v7525 = vpop.f32.mrb[0].mxu0
        %v7526 = vadd.f32 0.0, %v7525
        %v7527 = vpop.f32.mrb[0].mxu0
        %v7528 = vadd.f32 0.0, %v7527
        %7529 = vmatprep.mubr.bf16.mxu0 %v7448
        %7530 = vmatmul.mubr.bf16.gmra.mrb[0].mxu0 %v7409
        %v7531 = vpop.f32.mrb[0].mxu0
        %v7532 = vadd.f32 0.0, %v7531
        %v7533 = vpop.f32.mrb[0].mxu0
        %v7534 = vadd.f32 0.0, %v7533
        %v7535 = vpop.f32.mrb[0].mxu0
        %v7536 = vadd.f32 0.0, %v7535
        %v7537 = vpop.f32.mrb[0].mxu0
        %v7538 = vadd.f32 0.0, %v7537
        %7539 = vmatprep.mubr.bf16.mxu0 %v7451
        %7540 = vmatmul.mubr.bf16.gmra.mrb[0].mxu0 %v7411
        %v7541 = vpop.f32.mrb[0].mxu0
        %v7542 = vadd.f32 0.0, %v7541
        %v7543 = vpop.f32.mrb[0].mxu0
        %v7544 = vadd.f32 0.0, %v7543
        %v7545 = vpop.f32.mrb[0].mxu0
        %v7546 = vadd.f32 0.0, %v7545
        %v7547 = vpop.f32.mrb[0].mxu0
        %v7548 = vadd.f32 0.0, %v7547
        %7549 = vmatprep.mubr.bf16.mxu0 %v7454
        %7550 = vmatmul.mubr.bf16.gmra.mrb[0].mxu0 %v7413
        %v7551 = vpop.f32.mrb[0].mxu0
        %v7552 = vadd.f32 0.0, %v7551
        %v7553 = vpop.f32.mrb[0].mxu0
        %v7554 = vadd.f32 0.0, %v7553
        %v7555 = vpop.f32.mrb[0].mxu0
        %v7556 = vadd.f32 0.0, %v7555
        %v7557 = vpop.f32.mrb[0].mxu0
        %v7558 = vadd.f32 0.0, %v7557
        %7559 = vmatprep.mubr.bf16.mxu0 %v7457
        %7560 = vmatmul.mubr.bf16.gmra.mrb[0].mxu0 %v7415
        %v7561 = vpop.f32.mrb[0].mxu0
        %v7562 = vadd.f32 0.0, %v7561
        %v7563 = vpop.f32.mrb[0].mxu0
        %v7564 = vadd.f32 0.0, %v7563
        %v7565 = vpop.f32.mrb[0].mxu0
        %v7566 = vadd.f32 0.0, %v7565
        %v7567 = vpop.f32.mrb[0].mxu0
        %v7568 = vadd.f32 0.0, %v7567
        %7569 = vmatprep.mubr.bf16.mxu0 %v7460
        %7570 = vmatmul.mubr.bf16.gmra.mrb[0].mxu0 %v7417
        %v7571 = vpop.f32.mrb[0].mxu0
        %v7572 = vadd.f32 0.0, %v7571
        %v7573 = vpop.f32.mrb[0].mxu0
        %v7574 = vadd.f32 0.0, %v7573
        %v7575 = vpop.f32.mrb[0].mxu0
        %v7576 = vadd.f32 0.0, %v7575
        %v7577 = vpop.f32.mrb[0].mxu0
        %v7578 = vadd.f32 0.0, %v7577
        %7579 = vmatprep.mubr.bf16.mxu0 %v7463
        %7580 = vmatmul.mubr.bf16.gmra.mrb[0].mxu0 %v7419
        %v7581 = vpop.f32.mrb[0].mxu0
        %v7582 = vadd.f32 0.0, %v7581
        %v7583 = vpop.f32.mrb[0].mxu0
        %v7584 = vadd.f32 0.0, %v7583
        %v7585 = vpop.f32.mrb[0].mxu0
        %v7586 = vadd.f32 0.0, %v7585
        %v7587 = vpop.f32.mrb[0].mxu0
        %v7588 = vadd.f32 0.0, %v7587
        %7589 = vmatprep.mubr.bf16.mxu0 %v7466
        %7590 = vmatmul.mubr.bf16.gmra.mrb[0].mxu0 %v7421
        %v7591 = vpop.f32.mrb[0].mxu0
        %v7592 = vadd.f32 0.0, %v7591
        %v7593 = vpop.f32.mrb[0].mxu0
        %v7594 = vadd.f32 0.0, %v7593
        %v7595 = vpop.f32.mrb[0].mxu0
        %v7596 = vadd.f32 0.0, %v7595
        %v7597 = vpop.f32.mrb[0].mxu0
        %v7598 = vadd.f32 0.0, %v7597
        %7599 = vmatprep.mubr.bf16.mxu0 %v7469
        %7600 = vmatmul.mubr.bf16.gmra.mrb[0].mxu0 %v7423
        %v7601 = vpop.f32.mrb[0].mxu0
        %v7602 = vadd.f32 0.0, %v7601
        %v7603 = vpop.f32.mrb[0].mxu0
        %v7604 = vadd.f32 0.0, %v7603
        %v7605 = vpop.f32.mrb[0].mxu0
        %v7606 = vadd.f32 0.0, %v7605
        %v7607 = vpop.f32.mrb[0].mxu0
        %v7608 = vadd.f32 0.0, %v7607
        %7609 = vmatprep.mubr.bf16.mxu0 %v7472
        %7610 = vmatmul.mubr.bf16.gmra.mrb[0].mxu0 %v7425
        %v7611 = vpop.f32.mrb[0].mxu0
        %v7612 = vadd.f32 0.0, %v7611
        %v7613 = vpop.f32.mrb[0].mxu0
        %v7614 = vadd.f32 0.0, %v7613
        %v7615 = vpop.f32.mrb[0].mxu0
        %v7616 = vadd.f32 0.0, %v7615
        %v7617 = vpop.f32.mrb[0].mxu0
        %v7618 = vadd.f32 0.0, %v7617
        %7619 = vmatprep.mubr.bf16.mxu0 %v7475
        %7620 = vmatmul.mubr.bf16.gmra.mrb[0].mxu0 %v7427
        %v7621 = vpop.f32.mrb[0].mxu0
        %v7622 = vadd.f32 0.0, %v7621
        %v7623 = vpop.f32.mrb[0].mxu0
        %v7624 = vadd.f32 0.0, %v7623
        %v7625 = vpop.f32.mrb[0].mxu0
        %v7626 = vadd.f32 0.0, %v7625
        %v7627 = vpop.f32.mrb[0].mxu0
        %v7628 = vadd.f32 0.0, %v7627
        %7629 = vdwg.mxu0
        %v7630 = vadd.f32 %v7166, %v7512
        %v7631 = vadd.f32 %v7168, %v7514
        %v7632 = vadd.f32 %v7170, %v7516
        %v7633 = vadd.f32 %v7172, %v7518
        %v7634 = vadd.f32 %v7176, %v7522
        %v7635 = vadd.f32 %v7178, %v7524
        %v7636 = vadd.f32 %v7180, %v7526
        %v7637 = vadd.f32 %v7182, %v7528
        %v7638 = vadd.f32 %v7186, %v7532
        %v7639 = vadd.f32 %v7188, %v7534
        %v7640 = vadd.f32 %v7190, %v7536
        %v7641 = vadd.f32 %v7192, %v7538
        %v7642 = vadd.f32 %v7196, %v7542
        %v7643 = vadd.f32 %v7198, %v7544
        %v7644 = vadd.f32 %v7200, %v7546
        %v7645 = vadd.f32 %v7202, %v7548
        %v7646 = vadd.f32 %v7206, %v7552
        %v7647 = vadd.f32 %v7208, %v7554
        %v7648 = vadd.f32 %v7210, %v7556
        %v7649 = vadd.f32 %v7212, %v7558
        %v7650 = vadd.f32 %v7216, %v7562
        %v7651 = vadd.f32 %v7218, %v7564
        %v7652 = vadd.f32 %v7220, %v7566
        %v7653 = vadd.f32 %v7222, %v7568
        %v7654 = vadd.f32 %v7226, %v7572
        %v7655 = vadd.f32 %v7228, %v7574
        %v7656 = vadd.f32 %v7230, %v7576
        %v7657 = vadd.f32 %v7232, %v7578
        %v7658 = vadd.f32 %v7236, %v7582
        %v7659 = vadd.f32 %v7238, %v7584
        %v7660 = vadd.f32 %v7240, %v7586
        %v7661 = vadd.f32 %v7242, %v7588
        %v7662 = vadd.f32 %v7246, %v7592
        %v7663 = vadd.f32 %v7248, %v7594
        %v7664 = vadd.f32 %v7250, %v7596
        %v7665 = vadd.f32 %v7252, %v7598
        %v7666 = vadd.f32 %v7256, %v7602
        %v7667 = vadd.f32 %v7258, %v7604
        %v7668 = vadd.f32 %v7260, %v7606
        %v7669 = vadd.f32 %v7262, %v7608
        %v7670 = vadd.f32 %v7266, %v7612
        %v7671 = vadd.f32 %v7268, %v7614
        %v7672 = vadd.f32 %v7270, %v7616
        %v7673 = vadd.f32 %v7272, %v7618
        %v7674 = vadd.f32 %v7276, %v7622
        %v7675 = vadd.f32 %v7278, %v7624
        %v7676 = vadd.f32 %v7280, %v7626
        %v7677 = vadd.f32 %v7282, %v7628
        %v7678 = vld [vmem:[%s13] sm:$0xff]
        %v7679 = vld [vmem:[%s13 + $0x8] sm:$0xff]
        %v7680 = vld [vmem:[%s13 + $0x10] sm:$0xff]
        %v7681 = vld [vmem:[%s13 + $0x18] sm:$0xff]
        %v7682 = vld [vmem:[%s13 + $0x20] sm:$0xff]
        %v7683 = vld [vmem:[%s13 + $0x28] sm:$0xff]
        %v7684 = vld [vmem:[%s13 + $0x30] sm:$0xff]
        %v7685 = vld [vmem:[%s13 + $0x38] sm:$0xff]
        %v7686 = vld [vmem:[%s13 + $0x40] sm:$0xff]
        %v7687 = vld [vmem:[%s13 + $0x48] sm:$0xff]
        %v7688 = vld [vmem:[%s13 + $0x50] sm:$0xff]
        %v7689 = vld [vmem:[%s13 + $0x58] sm:$0xff]
        %v7690 = vld [vmem:[%s13 + $0x60] sm:$0xff]
        %v7691 = vld [vmem:[%s13 + $0x68] sm:$0xff]
        %v7692 = vld [vmem:[%s13 + $0x70] sm:$0xff]
        %v7693 = vld [vmem:[%s13 + $0x78] sm:$0xff]
        %v7694 = vld [vmem:[%s13 + $0x80] sm:$0xff]
        %v7695 = vld [vmem:[%s13 + $0x88] sm:$0xff]
        %v7696 = vld [vmem:[%s13 + $0x90] sm:$0xff]
        %v7697 = vld [vmem:[%s13 + $0x98] sm:$0xff]
        %v7698 = vld [vmem:[%s13 + $0xa0] sm:$0xff]
        %v7699 = vld [vmem:[%s13 + $0xa8] sm:$0xff]
        %v7700 = vld [vmem:[%s13 + $0xb0] sm:$0xff]
        %v7701 = vld [vmem:[%s13 + $0xb8] sm:$0xff]
        %7703 = vset.pattern.permute.xlu0 0
        %7704 = vperm.xlu0 %7703, %v7678
        %v7705 = vpop.permute.xlu0 %7704
        %7708 = vset.pattern.permute.xlu0 0
        %7709 = vperm.xlu0 %7708, %v7679
        %v7710 = vpop.permute.xlu0 %7709
        %7713 = vset.pattern.permute.xlu0 0
        %7714 = vperm.xlu0 %7713, %v7680
        %v7715 = vpop.permute.xlu0 %7714
        %7718 = vset.pattern.permute.xlu0 0
        %7719 = vperm.xlu0 %7718, %v7681
        %v7720 = vpop.permute.xlu0 %7719
        %7723 = vset.pattern.permute.xlu0 0
        %7724 = vperm.xlu0 %7723, %v7682
        %v7725 = vpop.permute.xlu0 %7724
        %7728 = vset.pattern.permute.xlu0 0
        %7729 = vperm.xlu0 %7728, %v7683
        %v7730 = vpop.permute.xlu0 %7729
        %7733 = vset.pattern.permute.xlu0 0
        %7734 = vperm.xlu0 %7733, %v7684
        %v7735 = vpop.permute.xlu0 %7734
        %7738 = vset.pattern.permute.xlu0 0
        %7739 = vperm.xlu0 %7738, %v7685
        %v7740 = vpop.permute.xlu0 %7739
        %7743 = vset.pattern.permute.xlu0 0
        %7744 = vperm.xlu0 %7743, %v7686
        %v7745 = vpop.permute.xlu0 %7744
        %7748 = vset.pattern.permute.xlu0 0
        %7749 = vperm.xlu0 %7748, %v7687
        %v7750 = vpop.permute.xlu0 %7749
        %7753 = vset.pattern.permute.xlu0 0
        %7754 = vperm.xlu0 %7753, %v7688
        %v7755 = vpop.permute.xlu0 %7754
        %7758 = vset.pattern.permute.xlu0 0
        %7759 = vperm.xlu0 %7758, %v7689
        %v7760 = vpop.permute.xlu0 %7759
        %7763 = vset.pattern.permute.xlu0 0
        %7764 = vperm.xlu0 %7763, %v7690
        %v7765 = vpop.permute.xlu0 %7764
        %7768 = vset.pattern.permute.xlu0 0
        %7769 = vperm.xlu0 %7768, %v7691
        %v7770 = vpop.permute.xlu0 %7769
        %7773 = vset.pattern.permute.xlu0 0
        %7774 = vperm.xlu0 %7773, %v7692
        %v7775 = vpop.permute.xlu0 %7774
        %7778 = vset.pattern.permute.xlu0 0
        %7779 = vperm.xlu0 %7778, %v7693
        %v7780 = vpop.permute.xlu0 %7779
        %7783 = vset.pattern.permute.xlu0 0
        %7784 = vperm.xlu0 %7783, %v7694
        %v7785 = vpop.permute.xlu0 %7784
        %7788 = vset.pattern.permute.xlu0 0
        %7789 = vperm.xlu0 %7788, %v7695
        %v7790 = vpop.permute.xlu0 %7789
        %7793 = vset.pattern.permute.xlu0 0
        %7794 = vperm.xlu0 %7793, %v7696
        %v7795 = vpop.permute.xlu0 %7794
        %7798 = vset.pattern.permute.xlu0 0
        %7799 = vperm.xlu0 %7798, %v7697
        %v7800 = vpop.permute.xlu0 %7799
        %7803 = vset.pattern.permute.xlu0 0
        %7804 = vperm.xlu0 %7803, %v7698
        %v7805 = vpop.permute.xlu0 %7804
        %7808 = vset.pattern.permute.xlu0 0
        %7809 = vperm.xlu0 %7808, %v7699
        %v7810 = vpop.permute.xlu0 %7809
        %7813 = vset.pattern.permute.xlu0 0
        %7814 = vperm.xlu0 %7813, %v7700
        %v7815 = vpop.permute.xlu0 %7814
        %7818 = vset.pattern.permute.xlu0 0
        %7819 = vperm.xlu0 %7818, %v7701
        %v7820 = vpop.permute.xlu0 %7819
        %v7822 = vadd.f32 %v7630, %v7705
        %v7823 = vadd.f32 %v7631, %v7705
        %v7824 = vadd.f32 %v7632, %v7710
        %v7825 = vadd.f32 %v7633, %v7710
        %v7826 = vadd.f32 %v7634, %v7715
        %v7827 = vadd.f32 %v7635, %v7715
        %v7828 = vadd.f32 %v7636, %v7720
        %v7829 = vadd.f32 %v7637, %v7720
        %v7830 = vadd.f32 %v7638, %v7725
        %v7831 = vadd.f32 %v7639, %v7725
        %v7832 = vadd.f32 %v7640, %v7730
        %v7833 = vadd.f32 %v7641, %v7730
        %v7834 = vadd.f32 %v7642, %v7735
        %v7835 = vadd.f32 %v7643, %v7735
        %v7836 = vadd.f32 %v7644, %v7740
        %v7837 = vadd.f32 %v7645, %v7740
        %v7838 = vadd.f32 %v7646, %v7745
        %v7839 = vadd.f32 %v7647, %v7745
        %v7840 = vadd.f32 %v7648, %v7750
        %v7841 = vadd.f32 %v7649, %v7750
        %v7842 = vadd.f32 %v7650, %v7755
        %v7843 = vadd.f32 %v7651, %v7755
        %v7844 = vadd.f32 %v7652, %v7760
        %v7845 = vadd.f32 %v7653, %v7760
        %v7846 = vadd.f32 %v7654, %v7765
        %v7847 = vadd.f32 %v7655, %v7765
        %v7848 = vadd.f32 %v7656, %v7770
        %v7849 = vadd.f32 %v7657, %v7770
        %v7850 = vadd.f32 %v7658, %v7775
        %v7851 = vadd.f32 %v7659, %v7775
        %v7852 = vadd.f32 %v7660, %v7780
        %v7853 = vadd.f32 %v7661, %v7780
        %v7854 = vadd.f32 %v7662, %v7785
        %v7855 = vadd.f32 %v7663, %v7785
        %v7856 = vadd.f32 %v7664, %v7790
        %v7857 = vadd.f32 %v7665, %v7790
        %v7858 = vadd.f32 %v7666, %v7795
        %v7859 = vadd.f32 %v7667, %v7795
        %v7860 = vadd.f32 %v7668, %v7800
        %v7861 = vadd.f32 %v7669, %v7800
        %v7862 = vadd.f32 %v7670, %v7805
        %v7863 = vadd.f32 %v7671, %v7805
        %v7864 = vadd.f32 %v7672, %v7810
        %v7865 = vadd.f32 %v7673, %v7810
        %v7866 = vadd.f32 %v7674, %v7815
        %v7867 = vadd.f32 %v7675, %v7815
        %v7868 = vadd.f32 %v7676, %v7820
        %v7869 = vadd.f32 %v7677, %v7820
        %v7870 = vmax.f32 %v7822, 0.0
        %v7871 = vmax.f32 %v7823, 0.0
        %v7872 = vmax.f32 %v7824, 0.0
        %v7873 = vmax.f32 %v7825, 0.0
        %v7874 = vmax.f32 %v7826, 0.0
        %v7875 = vmax.f32 %v7827, 0.0
        %v7876 = vmax.f32 %v7828, 0.0
        %v7877 = vmax.f32 %v7829, 0.0
        %v7878 = vmax.f32 %v7830, 0.0
        %v7879 = vmax.f32 %v7831, 0.0
        %v7880 = vmax.f32 %v7832, 0.0
        %v7881 = vmax.f32 %v7833, 0.0
        %v7882 = vmax.f32 %v7834, 0.0
        %v7883 = vmax.f32 %v7835, 0.0
        %v7884 = vmax.f32 %v7836, 0.0
        %v7885 = vmax.f32 %v7837, 0.0
        %v7886 = vmax.f32 %v7838, 0.0
        %v7887 = vmax.f32 %v7839, 0.0
        %v7888 = vmax.f32 %v7840, 0.0
        %v7889 = vmax.f32 %v7841, 0.0
        %v7890 = vmax.f32 %v7842, 0.0
        %v7891 = vmax.f32 %v7843, 0.0
        %v7892 = vmax.f32 %v7844, 0.0
        %v7893 = vmax.f32 %v7845, 0.0
        %v7894 = vmax.f32 %v7846, 0.0
        %v7895 = vmax.f32 %v7847, 0.0
        %v7896 = vmax.f32 %v7848, 0.0
        %v7897 = vmax.f32 %v7849, 0.0
        %v7898 = vmax.f32 %v7850, 0.0
        %v7899 = vmax.f32 %v7851, 0.0
        %v7900 = vmax.f32 %v7852, 0.0
        %v7901 = vmax.f32 %v7853, 0.0
        %v7902 = vmax.f32 %v7854, 0.0
        %v7903 = vmax.f32 %v7855, 0.0
        %v7904 = vmax.f32 %v7856, 0.0
        %v7905 = vmax.f32 %v7857, 0.0
        %v7906 = vmax.f32 %v7858, 0.0
        %v7907 = vmax.f32 %v7859, 0.0
        %v7908 = vmax.f32 %v7860, 0.0
        %v7909 = vmax.f32 %v7861, 0.0
        %v7910 = vmax.f32 %v7862, 0.0
        %v7911 = vmax.f32 %v7863, 0.0
        %v7912 = vmax.f32 %v7864, 0.0
        %v7913 = vmax.f32 %v7865, 0.0
        %v7914 = vmax.f32 %v7866, 0.0
        %v7915 = vmax.f32 %v7867, 0.0
        %v7916 = vmax.f32 %v7868, 0.0
        %v7917 = vmax.f32 %v7869, 0.0
        %v7918 = vpack.c.bf16 %v7872, %v7870
        %v7919 = vpack.c.bf16 %v7873, %v7871
        %v7920 = vpack.c.bf16 %v7876, %v7874
        %v7921 = vpack.c.bf16 %v7877, %v7875
        %v7922 = vpack.c.bf16 %v7880, %v7878
        %v7923 = vpack.c.bf16 %v7881, %v7879
        %v7924 = vpack.c.bf16 %v7884, %v7882
        %v7925 = vpack.c.bf16 %v7885, %v7883
        %v7926 = vpack.c.bf16 %v7888, %v7886
        %v7927 = vpack.c.bf16 %v7889, %v7887
        %v7928 = vpack.c.bf16 %v7892, %v7890
        %v7929 = vpack.c.bf16 %v7893, %v7891
        %v7930 = vpack.c.bf16 %v7896, %v7894
        %v7931 = vpack.c.bf16 %v7897, %v7895
        %v7932 = vpack.c.bf16 %v7900, %v7898
        %v7933 = vpack.c.bf16 %v7901, %v7899
        %v7934 = vpack.c.bf16 %v7904, %v7902
        %v7935 = vpack.c.bf16 %v7905, %v7903
        %v7936 = vpack.c.bf16 %v7908, %v7906
        %v7937 = vpack.c.bf16 %v7909, %v7907
        %v7938 = vpack.c.bf16 %v7912, %v7910
        %v7939 = vpack.c.bf16 %v7913, %v7911
        %v7940 = vpack.c.bf16 %v7916, %v7914
        %v7941 = vpack.c.bf16 %v7917, %v7915
        %7942 = vmatprep.subr.bf16.mxu0 %v828
        %7943 = vmatpush1.bf16.msra.mxu0 %v827
        %7944 = vmatprep.subr.bf16.mxu0 %v832
        %7945 = vmatpush1.bf16.msra.mxu0 %v831
        %7946 = vmatprep.subr.bf16.mxu0 %v836
        %7947 = vmatpush1.bf16.msra.mxu0 %v835
        %7948 = vmatprep.subr.bf16.mxu0 %v840
        %7949 = vmatpush1.bf16.msra.mxu0 %v839
        %7950 = vmatprep.subr.bf16.mxu0 %v844
        %7951 = vmatpush1.bf16.msra.mxu0 %v843
        %7952 = vmatprep.subr.bf16.mxu0 %v848
        %7953 = vmatpush1.bf16.msra.mxu0 %v847
        %7954 = vmatprep.subr.bf16.mxu0 %v852
        %7955 = vmatpush1.bf16.msra.mxu0 %v851
        %7956 = vmatprep.subr.bf16.mxu0 %v856
        %7957 = vmatpush1.bf16.msra.mxu0 %v855
        %7958 = vmatprep.subr.bf16.mxu0 %v860
        %7959 = vmatpush1.bf16.msra.mxu0 %v859
        %7960 = vmatprep.subr.bf16.mxu0 %v864
        %7961 = vmatpush1.bf16.msra.mxu0 %v863
        %7962 = vmatprep.subr.bf16.mxu0 %v868
        %7963 = vmatpush1.bf16.msra.mxu0 %v867
        %7964 = vmatprep.subr.bf16.mxu0 %v872
        %7965 = vmatpush1.bf16.msra.mxu0 %v871
        %7966 = vmatprep.subr.bf16.mxu0 %v876
        %7967 = vmatpush1.bf16.msra.mxu0 %v875
        %7968 = vmatprep.subr.bf16.mxu0 %v880
        %7969 = vmatpush1.bf16.msra.mxu0 %v879
        %7970 = vmatprep.subr.bf16.mxu0 %v884
        %7971 = vmatpush1.bf16.msra.mxu0 %v883
        %7972 = vmatprep.subr.bf16.mxu0 %v888
        %7973 = vmatpush1.bf16.msra.mxu0 %v887
        %7974 = vmatprep.mubr.bf16.mxu0 %v7919
        %7975 = vmatmul.mubr.bf16.gmra.mrb[0].mxu0 %v7918
        %v7976 = vpop.f32.mrb[0].mxu0
        %v7977 = vadd.f32 0.0, %v7976
        %v7978 = vpop.f32.mrb[0].mxu0
        %v7979 = vadd.f32 0.0, %v7978
        %v7980 = vpop.f32.mrb[0].mxu0
        %v7981 = vadd.f32 0.0, %v7980
        %v7982 = vpop.f32.mrb[0].mxu0
        %v7983 = vadd.f32 0.0, %v7982
        %7984 = vmatprep.mubr.bf16.mxu0 %v7921
        %7985 = vmatmul.mubr.bf16.gmra.mrb[0].mxu0 %v7920
        %v7986 = vpop.f32.mrb[0].mxu0
        %v7987 = vadd.f32 0.0, %v7986
        %v7988 = vpop.f32.mrb[0].mxu0
        %v7989 = vadd.f32 0.0, %v7988
        %v7990 = vpop.f32.mrb[0].mxu0
        %v7991 = vadd.f32 0.0, %v7990
        %v7992 = vpop.f32.mrb[0].mxu0
        %v7993 = vadd.f32 0.0, %v7992
        %7994 = vmatprep.mubr.bf16.mxu0 %v7923
        %7995 = vmatmul.mubr.bf16.gmra.mrb[0].mxu0 %v7922
        %v7996 = vpop.f32.mrb[0].mxu0
        %v7997 = vadd.f32 0.0, %v7996
        %v7998 = vpop.f32.mrb[0].mxu0
        %v7999 = vadd.f32 0.0, %v7998
        %v8000 = vpop.f32.mrb[0].mxu0
        %v8001 = vadd.f32 0.0, %v8000
        %v8002 = vpop.f32.mrb[0].mxu0
        %v8003 = vadd.f32 0.0, %v8002
        %8004 = vmatprep.mubr.bf16.mxu0 %v7925
        %8005 = vmatmul.mubr.bf16.gmra.mrb[0].mxu0 %v7924
        %v8006 = vpop.f32.mrb[0].mxu0
        %v8007 = vadd.f32 0.0, %v8006
        %v8008 = vpop.f32.mrb[0].mxu0
        %v8009 = vadd.f32 0.0, %v8008
        %v8010 = vpop.f32.mrb[0].mxu0
        %v8011 = vadd.f32 0.0, %v8010
        %v8012 = vpop.f32.mrb[0].mxu0
        %v8013 = vadd.f32 0.0, %v8012
        %8014 = vmatprep.mubr.bf16.mxu0 %v7927
        %8015 = vmatmul.mubr.bf16.gmra.mrb[0].mxu0 %v7926
        %v8016 = vpop.f32.mrb[0].mxu0
        %v8017 = vadd.f32 0.0, %v8016
        %v8018 = vpop.f32.mrb[0].mxu0
        %v8019 = vadd.f32 0.0, %v8018
        %v8020 = vpop.f32.mrb[0].mxu0
        %v8021 = vadd.f32 0.0, %v8020
        %v8022 = vpop.f32.mrb[0].mxu0
        %v8023 = vadd.f32 0.0, %v8022
        %8024 = vmatprep.mubr.bf16.mxu0 %v7929
        %8025 = vmatmul.mubr.bf16.gmra.mrb[0].mxu0 %v7928
        %v8026 = vpop.f32.mrb[0].mxu0
        %v8027 = vadd.f32 0.0, %v8026
        %v8028 = vpop.f32.mrb[0].mxu0
        %v8029 = vadd.f32 0.0, %v8028
        %v8030 = vpop.f32.mrb[0].mxu0
        %v8031 = vadd.f32 0.0, %v8030
        %v8032 = vpop.f32.mrb[0].mxu0
        %v8033 = vadd.f32 0.0, %v8032
        %8034 = vmatprep.mubr.bf16.mxu0 %v7931
        %8035 = vmatmul.mubr.bf16.gmra.mrb[0].mxu0 %v7930
        %v8036 = vpop.f32.mrb[0].mxu0
        %v8037 = vadd.f32 0.0, %v8036
        %v8038 = vpop.f32.mrb[0].mxu0
        %v8039 = vadd.f32 0.0, %v8038
        %v8040 = vpop.f32.mrb[0].mxu0
        %v8041 = vadd.f32 0.0, %v8040
        %v8042 = vpop.f32.mrb[0].mxu0
        %v8043 = vadd.f32 0.0, %v8042
        %8044 = vmatprep.mubr.bf16.mxu0 %v7933
        %8045 = vmatmul.mubr.bf16.gmra.mrb[0].mxu0 %v7932
        %v8046 = vpop.f32.mrb[0].mxu0
        %v8047 = vadd.f32 0.0, %v8046
        %v8048 = vpop.f32.mrb[0].mxu0
        %v8049 = vadd.f32 0.0, %v8048
        %v8050 = vpop.f32.mrb[0].mxu0
        %v8051 = vadd.f32 0.0, %v8050
        %v8052 = vpop.f32.mrb[0].mxu0
        %v8053 = vadd.f32 0.0, %v8052
        %8054 = vmatprep.mubr.bf16.mxu0 %v7935
        %8055 = vmatmul.mubr.bf16.gmra.mrb[0].mxu0 %v7934
        %v8056 = vpop.f32.mrb[0].mxu0
        %v8057 = vadd.f32 0.0, %v8056
        %v8058 = vpop.f32.mrb[0].mxu0
        %v8059 = vadd.f32 0.0, %v8058
        %v8060 = vpop.f32.mrb[0].mxu0
        %v8061 = vadd.f32 0.0, %v8060
        %v8062 = vpop.f32.mrb[0].mxu0
        %v8063 = vadd.f32 0.0, %v8062
        %8064 = vmatprep.mubr.bf16.mxu0 %v7937
        %8065 = vmatmul.mubr.bf16.gmra.mrb[0].mxu0 %v7936
        %v8066 = vpop.f32.mrb[0].mxu0
        %v8067 = vadd.f32 0.0, %v8066
        %v8068 = vpop.f32.mrb[0].mxu0
        %v8069 = vadd.f32 0.0, %v8068
        %v8070 = vpop.f32.mrb[0].mxu0
        %v8071 = vadd.f32 0.0, %v8070
        %v8072 = vpop.f32.mrb[0].mxu0
        %v8073 = vadd.f32 0.0, %v8072
        %8074 = vmatprep.mubr.bf16.mxu0 %v7939
        %8075 = vmatmul.mubr.bf16.gmra.mrb[0].mxu0 %v7938
        %v8076 = vpop.f32.mrb[0].mxu0
        %v8077 = vadd.f32 0.0, %v8076
        %v8078 = vpop.f32.mrb[0].mxu0
        %v8079 = vadd.f32 0.0, %v8078
        %v8080 = vpop.f32.mrb[0].mxu0
        %v8081 = vadd.f32 0.0, %v8080
        %v8082 = vpop.f32.mrb[0].mxu0
        %v8083 = vadd.f32 0.0, %v8082
        %8084 = vmatprep.mubr.bf16.mxu0 %v7941
        %8085 = vmatmul.mubr.bf16.gmra.mrb[0].mxu0 %v7940
        %v8086 = vpop.f32.mrb[0].mxu0
        %v8087 = vadd.f32 0.0, %v8086
        %v8088 = vpop.f32.mrb[0].mxu0
        %v8089 = vadd.f32 0.0, %v8088
        %v8090 = vpop.f32.mrb[0].mxu0
        %v8091 = vadd.f32 0.0, %v8090
        %v8092 = vpop.f32.mrb[0].mxu0
        %v8093 = vadd.f32 0.0, %v8092
        %8094 = vdwg.mxu0
        %8095 = vmatprep.subr.bf16.mxu0 %v830
        %8096 = vmatpush1.bf16.msra.mxu0 %v829
        %8097 = vmatprep.subr.bf16.mxu0 %v834
        %8098 = vmatpush1.bf16.msra.mxu0 %v833
        %8099 = vmatprep.subr.bf16.mxu0 %v838
        %8100 = vmatpush1.bf16.msra.mxu0 %v837
        %8101 = vmatprep.subr.bf16.mxu0 %v842
        %8102 = vmatpush1.bf16.msra.mxu0 %v841
        %8103 = vmatprep.subr.bf16.mxu0 %v846
        %8104 = vmatpush1.bf16.msra.mxu0 %v845
        %8105 = vmatprep.subr.bf16.mxu0 %v850
        %8106 = vmatpush1.bf16.msra.mxu0 %v849
        %8107 = vmatprep.subr.bf16.mxu0 %v854
        %8108 = vmatpush1.bf16.msra.mxu0 %v853
        %8109 = vmatprep.subr.bf16.mxu0 %v858
        %8110 = vmatpush1.bf16.msra.mxu0 %v857
        %8111 = vmatprep.subr.bf16.mxu0 %v862
        %8112 = vmatpush1.bf16.msra.mxu0 %v861
        %8113 = vmatprep.subr.bf16.mxu0 %v866
        %8114 = vmatpush1.bf16.msra.mxu0 %v865
        %8115 = vmatprep.subr.bf16.mxu0 %v870
        %8116 = vmatpush1.bf16.msra.mxu0 %v869
        %8117 = vmatprep.subr.bf16.mxu0 %v874
        %8118 = vmatpush1.bf16.msra.mxu0 %v873
        %8119 = vmatprep.subr.bf16.mxu0 %v878
        %8120 = vmatpush1.bf16.msra.mxu0 %v877
        %8121 = vmatprep.subr.bf16.mxu0 %v882
        %8122 = vmatpush1.bf16.msra.mxu0 %v881
        %8123 = vmatprep.subr.bf16.mxu0 %v886
        %8124 = vmatpush1.bf16.msra.mxu0 %v885
        %8125 = vmatprep.subr.bf16.mxu0 %v890
        %8126 = vmatpush1.bf16.msra.mxu0 %v889
        %8127 = vmatprep.mubr.bf16.mxu0 %v7919
        %8128 = vmatmul.mubr.bf16.gmra.mrb[0].mxu0 %v7918
        %v8129 = vpop.f32.mrb[0].mxu0
        %v8130 = vadd.f32 0.0, %v8129
        %v8131 = vpop.f32.mrb[0].mxu0
        %v8132 = vadd.f32 0.0, %v8131
        %v8133 = vpop.f32.mrb[0].mxu0
        %v8134 = vadd.f32 0.0, %v8133
        %v8135 = vpop.f32.mrb[0].mxu0
        %v8136 = vadd.f32 0.0, %v8135
        %8137 = vmatprep.mubr.bf16.mxu0 %v7921
        %8138 = vmatmul.mubr.bf16.gmra.mrb[0].mxu0 %v7920
        %v8139 = vpop.f32.mrb[0].mxu0
        %v8140 = vadd.f32 0.0, %v8139
        %v8141 = vpop.f32.mrb[0].mxu0
        %v8142 = vadd.f32 0.0, %v8141
        %v8143 = vpop.f32.mrb[0].mxu0
        %v8144 = vadd.f32 0.0, %v8143
        %v8145 = vpop.f32.mrb[0].mxu0
        %v8146 = vadd.f32 0.0, %v8145
        %8147 = vmatprep.mubr.bf16.mxu0 %v7923
        %8148 = vmatmul.mubr.bf16.gmra.mrb[0].mxu0 %v7922
        %v8149 = vpop.f32.mrb[0].mxu0
        %v8150 = vadd.f32 0.0, %v8149
        %v8151 = vpop.f32.mrb[0].mxu0
        %v8152 = vadd.f32 0.0, %v8151
        %v8153 = vpop.f32.mrb[0].mxu0
        %v8154 = vadd.f32 0.0, %v8153
        %v8155 = vpop.f32.mrb[0].mxu0
        %v8156 = vadd.f32 0.0, %v8155
        %8157 = vmatprep.mubr.bf16.mxu0 %v7925
        %8158 = vmatmul.mubr.bf16.gmra.mrb[0].mxu0 %v7924
        %v8159 = vpop.f32.mrb[0].mxu0
        %v8160 = vadd.f32 0.0, %v8159
        %v8161 = vpop.f32.mrb[0].mxu0
        %v8162 = vadd.f32 0.0, %v8161
        %v8163 = vpop.f32.mrb[0].mxu0
        %v8164 = vadd.f32 0.0, %v8163
        %v8165 = vpop.f32.mrb[0].mxu0
        %v8166 = vadd.f32 0.0, %v8165
        %8167 = vmatprep.mubr.bf16.mxu0 %v7927
        %8168 = vmatmul.mubr.bf16.gmra.mrb[0].mxu0 %v7926
        %v8169 = vpop.f32.mrb[0].mxu0
        %v8170 = vadd.f32 0.0, %v8169
        %v8171 = vpop.f32.mrb[0].mxu0
        %v8172 = vadd.f32 0.0, %v8171
        %v8173 = vpop.f32.mrb[0].mxu0
        %v8174 = vadd.f32 0.0, %v8173
        %v8175 = vpop.f32.mrb[0].mxu0
        %v8176 = vadd.f32 0.0, %v8175
        %8177 = vmatprep.mubr.bf16.mxu0 %v7929
        %8178 = vmatmul.mubr.bf16.gmra.mrb[0].mxu0 %v7928
        %v8179 = vpop.f32.mrb[0].mxu0
        %v8180 = vadd.f32 0.0, %v8179
        %v8181 = vpop.f32.mrb[0].mxu0
        %v8182 = vadd.f32 0.0, %v8181
        %v8183 = vpop.f32.mrb[0].mxu0
        %v8184 = vadd.f32 0.0, %v8183
        %v8185 = vpop.f32.mrb[0].mxu0
        %v8186 = vadd.f32 0.0, %v8185
        %8187 = vmatprep.mubr.bf16.mxu0 %v7931
        %8188 = vmatmul.mubr.bf16.gmra.mrb[0].mxu0 %v7930
        %v8189 = vpop.f32.mrb[0].mxu0
        %v8190 = vadd.f32 0.0, %v8189
        %v8191 = vpop.f32.mrb[0].mxu0
        %v8192 = vadd.f32 0.0, %v8191
        %v8193 = vpop.f32.mrb[0].mxu0
        %v8194 = vadd.f32 0.0, %v8193
        %v8195 = vpop.f32.mrb[0].mxu0
        %v8196 = vadd.f32 0.0, %v8195
        %8197 = vmatprep.mubr.bf16.mxu0 %v7933
        %8198 = vmatmul.mubr.bf16.gmra.mrb[0].mxu0 %v7932
        %v8199 = vpop.f32.mrb[0].mxu0
        %v8200 = vadd.f32 0.0, %v8199
        %v8201 = vpop.f32.mrb[0].mxu0
        %v8202 = vadd.f32 0.0, %v8201
        %v8203 = vpop.f32.mrb[0].mxu0
        %v8204 = vadd.f32 0.0, %v8203
        %v8205 = vpop.f32.mrb[0].mxu0
        %v8206 = vadd.f32 0.0, %v8205
        %8207 = vmatprep.mubr.bf16.mxu0 %v7935
        %8208 = vmatmul.mubr.bf16.gmra.mrb[0].mxu0 %v7934
        %v8209 = vpop.f32.mrb[0].mxu0
        %v8210 = vadd.f32 0.0, %v8209
        %v8211 = vpop.f32.mrb[0].mxu0
        %v8212 = vadd.f32 0.0, %v8211
        %v8213 = vpop.f32.mrb[0].mxu0
        %v8214 = vadd.f32 0.0, %v8213
        %v8215 = vpop.f32.mrb[0].mxu0
        %v8216 = vadd.f32 0.0, %v8215
        %8217 = vmatprep.mubr.bf16.mxu0 %v7937
        %8218 = vmatmul.mubr.bf16.gmra.mrb[0].mxu0 %v7936
        %v8219 = vpop.f32.mrb[0].mxu0
        %v8220 = vadd.f32 0.0, %v8219
        %v8221 = vpop.f32.mrb[0].mxu0
        %v8222 = vadd.f32 0.0, %v8221
        %v8223 = vpop.f32.mrb[0].mxu0
        %v8224 = vadd.f32 0.0, %v8223
        %v8225 = vpop.f32.mrb[0].mxu0
        %v8226 = vadd.f32 0.0, %v8225
        %8227 = vmatprep.mubr.bf16.mxu0 %v7939
        %8228 = vmatmul.mubr.bf16.gmra.mrb[0].mxu0 %v7938
        %v8229 = vpop.f32.mrb[0].mxu0
        %v8230 = vadd.f32 0.0, %v8229
        %v8231 = vpop.f32.mrb[0].mxu0
        %v8232 = vadd.f32 0.0, %v8231
        %v8233 = vpop.f32.mrb[0].mxu0
        %v8234 = vadd.f32 0.0, %v8233
        %v8235 = vpop.f32.mrb[0].mxu0
        %v8236 = vadd.f32 0.0, %v8235
        %8237 = vmatprep.mubr.bf16.mxu0 %v7941
        %8238 = vmatmul.mubr.bf16.gmra.mrb[0].mxu0 %v7940
        %v8239 = vpop.f32.mrb[0].mxu0
        %v8240 = vadd.f32 0.0, %v8239
        %v8241 = vpop.f32.mrb[0].mxu0
        %v8242 = vadd.f32 0.0, %v8241
        %v8243 = vpop.f32.mrb[0].mxu0
        %v8244 = vadd.f32 0.0, %v8243
        %v8245 = vpop.f32.mrb[0].mxu0
        %v8246 = vadd.f32 0.0, %v8245
        %8247 = vdwg.mxu0
        %v8248 = vld [vmem:[%s14] sm:$0xff]
        %v8249 = vld [vmem:[%s14 + $0x8] sm:$0xff]
        %v8250 = vld [vmem:[%s14 + $0x10] sm:$0xff]
        %v8251 = vld [vmem:[%s14 + $0x18] sm:$0xff]
        %v8252 = vld [vmem:[%s14 + $0x20] sm:$0xff]
        %v8253 = vld [vmem:[%s14 + $0x28] sm:$0xff]
        %v8254 = vld [vmem:[%s14 + $0x30] sm:$0xff]
        %v8255 = vld [vmem:[%s14 + $0x38] sm:$0xff]
        %v8256 = vld [vmem:[%s14 + $0x40] sm:$0xff]
        %v8257 = vld [vmem:[%s14 + $0x48] sm:$0xff]
        %v8258 = vld [vmem:[%s14 + $0x50] sm:$0xff]
        %v8259 = vld [vmem:[%s14 + $0x58] sm:$0xff]
        %v8260 = vpack.c.bf16 %v7981, %v7977
        %v8261 = vpack.c.bf16 %v7983, %v7979
        %v8262 = vpack.c.bf16 %v7991, %v7987
        %v8263 = vpack.c.bf16 %v7993, %v7989
        %v8264 = vpack.c.bf16 %v8001, %v7997
        %v8265 = vpack.c.bf16 %v8003, %v7999
        %v8266 = vpack.c.bf16 %v8011, %v8007
        %v8267 = vpack.c.bf16 %v8013, %v8009
        %v8268 = vpack.c.bf16 %v8021, %v8017
        %v8269 = vpack.c.bf16 %v8023, %v8019
        %v8270 = vpack.c.bf16 %v8031, %v8027
        %v8271 = vpack.c.bf16 %v8033, %v8029
        %v8272 = vpack.c.bf16 %v8041, %v8037
        %v8273 = vpack.c.bf16 %v8043, %v8039
        %v8274 = vpack.c.bf16 %v8051, %v8047
        %v8275 = vpack.c.bf16 %v8053, %v8049
        %v8276 = vpack.c.bf16 %v8061, %v8057
        %v8277 = vpack.c.bf16 %v8063, %v8059
        %v8278 = vpack.c.bf16 %v8071, %v8067
        %v8279 = vpack.c.bf16 %v8073, %v8069
        %v8280 = vpack.c.bf16 %v8081, %v8077
        %v8281 = vpack.c.bf16 %v8083, %v8079
        %v8282 = vpack.c.bf16 %v8091, %v8087
        %v8283 = vpack.c.bf16 %v8093, %v8089
        %s8284 = scalar_lea.vmem %s14, 96
        %v8285 = vld [vmem:[%s8284] sm:$0xff]
        %v8286 = vld [vmem:[%s8284 + $0x8] sm:$0xff]
        %v8287 = vld [vmem:[%s8284 + $0x10] sm:$0xff]
        %v8288 = vld [vmem:[%s8284 + $0x18] sm:$0xff]
        %v8289 = vld [vmem:[%s8284 + $0x20] sm:$0xff]
        %v8290 = vld [vmem:[%s8284 + $0x28] sm:$0xff]
        %v8291 = vld [vmem:[%s8284 + $0x30] sm:$0xff]
        %v8292 = vld [vmem:[%s8284 + $0x38] sm:$0xff]
        %v8293 = vld [vmem:[%s8284 + $0x40] sm:$0xff]
        %v8294 = vld [vmem:[%s8284 + $0x48] sm:$0xff]
        %v8295 = vld [vmem:[%s8284 + $0x50] sm:$0xff]
        %v8296 = vld [vmem:[%s8284 + $0x58] sm:$0xff]
        %v8309 = vunpack.c.l.b16 %v8285
        %v8310 = vunpack.c.h.b16 %v8285
        %v8311 = vunpack.c.l.b16 %v8286
        %v8312 = vunpack.c.h.b16 %v8286
        %v8313 = vunpack.c.l.b16 %v8287
        %v8314 = vunpack.c.h.b16 %v8287
        %v8315 = vunpack.c.l.b16 %v8288
        %v8316 = vunpack.c.h.b16 %v8288
        %v8317 = vunpack.c.l.b16 %v8289
        %v8318 = vunpack.c.h.b16 %v8289
        %v8319 = vunpack.c.l.b16 %v8290
        %v8320 = vunpack.c.h.b16 %v8290
        %v8321 = vunpack.c.l.b16 %v8291
        %v8322 = vunpack.c.h.b16 %v8291
        %v8323 = vunpack.c.l.b16 %v8292
        %v8324 = vunpack.c.h.b16 %v8292
        %v8325 = vunpack.c.l.b16 %v8293
        %v8326 = vunpack.c.h.b16 %v8293
        %v8327 = vunpack.c.l.b16 %v8294
        %v8328 = vunpack.c.h.b16 %v8294
        %v8329 = vunpack.c.l.b16 %v8295
        %v8330 = vunpack.c.h.b16 %v8295
        %v8331 = vunpack.c.l.b16 %v8296
        %v8332 = vunpack.c.h.b16 %v8296
        %v8333 = vpack.c.b16 %v8311, %v8309
        %v8334 = vpack.c.b16 %v8312, %v8310
        %v8335 = vpack.c.b16 %v8315, %v8313
        %v8336 = vpack.c.b16 %v8316, %v8314
        %v8337 = vpack.c.b16 %v8319, %v8317
        %v8338 = vpack.c.b16 %v8320, %v8318
        %v8339 = vpack.c.b16 %v8323, %v8321
        %v8340 = vpack.c.b16 %v8324, %v8322
        %v8341 = vpack.c.b16 %v8327, %v8325
        %v8342 = vpack.c.b16 %v8328, %v8326
        %v8343 = vpack.c.b16 %v8331, %v8329
        %v8344 = vpack.c.b16 %v8332, %v8330
        %v8352 = vsel %vm5166, %v8334, 0
        %v8355 = vsel %vm5166, %v8336, 0
        %v8358 = vsel %vm5166, %v8338, 0
        %v8361 = vsel %vm5166, %v8340, 0
        %v8364 = vsel %vm5166, %v8342, 0
        %v8367 = vsel %vm5166, %v8344, 0
        %8369 = vmatprep.subr.bf16.mxu0 %v8261
        %8370 = vmatpush1.bf16.msra.mxu0 %v8260
        %8371 = vmatprep.subr.bf16.mxu0 %v8263
        %8372 = vmatpush1.bf16.msra.mxu0 %v8262
        %8373 = vmatprep.subr.bf16.mxu0 %v8265
        %8374 = vmatpush1.bf16.msra.mxu0 %v8264
        %8375 = vmatprep.subr.bf16.mxu0 %v8267
        %8376 = vmatpush1.bf16.msra.mxu0 %v8266
        %8377 = vmatprep.subr.bf16.mxu0 %v8269
        %8378 = vmatpush1.bf16.msra.mxu0 %v8268
        %8379 = vmatprep.subr.bf16.mxu0 %v8271
        %8380 = vmatpush1.bf16.msra.mxu0 %v8270
        %8381 = vmatprep.subr.bf16.mxu0 %v8273
        %8382 = vmatpush1.bf16.msra.mxu0 %v8272
        %8383 = vmatprep.subr.bf16.mxu0 %v8275
        %8384 = vmatpush1.bf16.msra.mxu0 %v8274
        %8385 = vmatprep.subr.bf16.mxu0 %v8277
        %8386 = vmatpush1.bf16.msra.mxu0 %v8276
        %8387 = vmatprep.subr.bf16.mxu0 %v8279
        %8388 = vmatpush1.bf16.msra.mxu0 %v8278
        %8389 = vmatprep.subr.bf16.mxu0 %v8281
        %8390 = vmatpush1.bf16.msra.mxu0 %v8280
        %8391 = vmatprep.subr.bf16.mxu0 %v8283
        %8392 = vmatpush1.bf16.msra.mxu0 %v8282
        %8393 = vmatprep.subr.bf16.mxu0 0
        %8394 = vmatpush1.bf16.msra.mxu0 0
        %8395 = vmatprep.subr.bf16.mxu0 0
        %8396 = vmatpush1.bf16.msra.mxu0 0
        %8397 = vmatprep.subr.bf16.mxu0 0
        %8398 = vmatpush1.bf16.msra.mxu0 0
        %8399 = vmatprep.subr.bf16.mxu0 0
        %8400 = vmatpush1.bf16.msra.mxu0 0
        %8401 = vmatprep.mubr.bf16.mxu0 %v8352
        %8402 = vmatmul.mubr.bf16.gmra.mrb[0].mxu0 %v8333
        %v8403 = vpop.f32.mrb[0].mxu0
        %v8404 = vadd.f32 0.0, %v8403
        %v8405 = vpop.f32.mrb[0].mxu0
        %v8406 = vadd.f32 0.0, %v8405
        %v8407 = vpop.f32.mrb[0].mxu0
        %v8408 = vadd.f32 0.0, %v8407
        %v8409 = vpop.f32.mrb[0].mxu0
        %v8410 = vadd.f32 0.0, %v8409
        %8411 = vmatprep.mubr.bf16.mxu0 %v8355
        %8412 = vmatmul.mubr.bf16.gmra.mrb[0].mxu0 %v8335
        %v8413 = vpop.f32.mrb[0].mxu0
        %v8414 = vadd.f32 0.0, %v8413
        %v8415 = vpop.f32.mrb[0].mxu0
        %v8416 = vadd.f32 0.0, %v8415
        %v8417 = vpop.f32.mrb[0].mxu0
        %v8418 = vadd.f32 0.0, %v8417
        %v8419 = vpop.f32.mrb[0].mxu0
        %v8420 = vadd.f32 0.0, %v8419
        %8421 = vmatprep.mubr.bf16.mxu0 %v8358
        %8422 = vmatmul.mubr.bf16.gmra.mrb[0].mxu0 %v8337
        %v8423 = vpop.f32.mrb[0].mxu0
        %v8424 = vadd.f32 0.0, %v8423
        %v8425 = vpop.f32.mrb[0].mxu0
        %v8426 = vadd.f32 0.0, %v8425
        %v8427 = vpop.f32.mrb[0].mxu0
        %v8428 = vadd.f32 0.0, %v8427
        %v8429 = vpop.f32.mrb[0].mxu0
        %v8430 = vadd.f32 0.0, %v8429
        %8431 = vmatprep.mubr.bf16.mxu0 %v8361
        %8432 = vmatmul.mubr.bf16.gmra.mrb[0].mxu0 %v8339
        %v8433 = vpop.f32.mrb[0].mxu0
        %v8434 = vadd.f32 0.0, %v8433
        %v8435 = vpop.f32.mrb[0].mxu0
        %v8436 = vadd.f32 0.0, %v8435
        %v8437 = vpop.f32.mrb[0].mxu0
        %v8438 = vadd.f32 0.0, %v8437
        %v8439 = vpop.f32.mrb[0].mxu0
        %v8440 = vadd.f32 0.0, %v8439
        %8441 = vmatprep.mubr.bf16.mxu0 %v8364
        %8442 = vmatmul.mubr.bf16.gmra.mrb[0].mxu0 %v8341
        %v8443 = vpop.f32.mrb[0].mxu0
        %v8444 = vadd.f32 0.0, %v8443
        %v8445 = vpop.f32.mrb[0].mxu0
        %v8446 = vadd.f32 0.0, %v8445
        %v8447 = vpop.f32.mrb[0].mxu0
        %v8448 = vadd.f32 0.0, %v8447
        %v8449 = vpop.f32.mrb[0].mxu0
        %v8450 = vadd.f32 0.0, %v8449
        %8451 = vmatprep.mubr.bf16.mxu0 %v8367
        %8452 = vmatmul.mubr.bf16.gmra.mrb[0].mxu0 %v8343
        %v8453 = vpop.f32.mrb[0].mxu0
        %v8454 = vadd.f32 0.0, %v8453
        %v8455 = vpop.f32.mrb[0].mxu0
        %v8456 = vadd.f32 0.0, %v8455
        %v8457 = vpop.f32.mrb[0].mxu0
        %v8458 = vadd.f32 0.0, %v8457
        %v8459 = vpop.f32.mrb[0].mxu0
        %v8460 = vadd.f32 0.0, %v8459
        %8461 = vdwg.mxu0
        %v8474 = vunpack.c.l.b16 %v8248
        %v8475 = vunpack.c.h.b16 %v8248
        %v8476 = vunpack.c.l.b16 %v8249
        %v8477 = vunpack.c.h.b16 %v8249
        %v8478 = vunpack.c.l.b16 %v8250
        %v8479 = vunpack.c.h.b16 %v8250
        %v8480 = vunpack.c.l.b16 %v8251
        %v8481 = vunpack.c.h.b16 %v8251
        %v8482 = vunpack.c.l.b16 %v8252
        %v8483 = vunpack.c.h.b16 %v8252
        %v8484 = vunpack.c.l.b16 %v8253
        %v8485 = vunpack.c.h.b16 %v8253
        %v8486 = vunpack.c.l.b16 %v8254
        %v8487 = vunpack.c.h.b16 %v8254
        %v8488 = vunpack.c.l.b16 %v8255
        %v8489 = vunpack.c.h.b16 %v8255
        %v8490 = vunpack.c.l.b16 %v8256
        %v8491 = vunpack.c.h.b16 %v8256
        %v8492 = vunpack.c.l.b16 %v8257
        %v8493 = vunpack.c.h.b16 %v8257
        %v8494 = vunpack.c.l.b16 %v8258
        %v8495 = vunpack.c.h.b16 %v8258
        %v8496 = vunpack.c.l.b16 %v8259
        %v8497 = vunpack.c.h.b16 %v8259
        %v8498 = vpack.c.b16 %v8476, %v8474
        %v8499 = vpack.c.b16 %v8477, %v8475
        %v8500 = vpack.c.b16 %v8480, %v8478
        %v8501 = vpack.c.b16 %v8481, %v8479
        %v8502 = vpack.c.b16 %v8484, %v8482
        %v8503 = vpack.c.b16 %v8485, %v8483
        %v8504 = vpack.c.b16 %v8488, %v8486
        %v8505 = vpack.c.b16 %v8489, %v8487
        %v8506 = vpack.c.b16 %v8492, %v8490
        %v8507 = vpack.c.b16 %v8493, %v8491
        %v8508 = vpack.c.b16 %v8496, %v8494
        %v8509 = vpack.c.b16 %v8497, %v8495
        %v8517 = vsel %vm5166, %v8499, 0
        %v8520 = vsel %vm5166, %v8501, 0
        %v8523 = vsel %vm5166, %v8503, 0
        %v8526 = vsel %vm5166, %v8505, 0
        %v8529 = vsel %vm5166, %v8507, 0
        %v8532 = vsel %vm5166, %v8509, 0
        %8534 = vmatprep.subr.bf16.mxu0 %v7919
        %8535 = vmatpush1.bf16.msra.mxu0 %v7918
        %8536 = vmatprep.subr.bf16.mxu0 %v7921
        %8537 = vmatpush1.bf16.msra.mxu0 %v7920
        %8538 = vmatprep.subr.bf16.mxu0 %v7923
        %8539 = vmatpush1.bf16.msra.mxu0 %v7922
        %8540 = vmatprep.subr.bf16.mxu0 %v7925
        %8541 = vmatpush1.bf16.msra.mxu0 %v7924
        %8542 = vmatprep.subr.bf16.mxu0 %v7927
        %8543 = vmatpush1.bf16.msra.mxu0 %v7926
        %8544 = vmatprep.subr.bf16.mxu0 %v7929
        %8545 = vmatpush1.bf16.msra.mxu0 %v7928
        %8546 = vmatprep.subr.bf16.mxu0 %v7931
        %8547 = vmatpush1.bf16.msra.mxu0 %v7930
        %8548 = vmatprep.subr.bf16.mxu0 %v7933
        %8549 = vmatpush1.bf16.msra.mxu0 %v7932
        %8550 = vmatprep.subr.bf16.mxu0 %v7935
        %8551 = vmatpush1.bf16.msra.mxu0 %v7934
        %8552 = vmatprep.subr.bf16.mxu0 %v7937
        %8553 = vmatpush1.bf16.msra.mxu0 %v7936
        %8554 = vmatprep.subr.bf16.mxu0 %v7939
        %8555 = vmatpush1.bf16.msra.mxu0 %v7938
        %8556 = vmatprep.subr.bf16.mxu0 %v7941
        %8557 = vmatpush1.bf16.msra.mxu0 %v7940
        %8558 = vmatprep.subr.bf16.mxu0 0
        %8559 = vmatpush1.bf16.msra.mxu0 0
        %8560 = vmatprep.subr.bf16.mxu0 0
        %8561 = vmatpush1.bf16.msra.mxu0 0
        %8562 = vmatprep.subr.bf16.mxu0 0
        %8563 = vmatpush1.bf16.msra.mxu0 0
        %8564 = vmatprep.subr.bf16.mxu0 0
        %8565 = vmatpush1.bf16.msra.mxu0 0
        %8566 = vmatprep.mubr.bf16.mxu0 %v8517
        %8567 = vmatmul.mubr.bf16.gmra.mrb[0].mxu0 %v8498
        %v8568 = vpop.f32.mrb[0].mxu0
        %v8569 = vadd.f32 %v8404, %v8568
        %v8570 = vpop.f32.mrb[0].mxu0
        %v8571 = vadd.f32 %v8406, %v8570
        %v8572 = vpop.f32.mrb[0].mxu0
        %v8573 = vadd.f32 %v8408, %v8572
        %v8574 = vpop.f32.mrb[0].mxu0
        %v8575 = vadd.f32 %v8410, %v8574
        %8576 = vmatprep.mubr.bf16.mxu0 %v8520
        %8577 = vmatmul.mubr.bf16.gmra.mrb[0].mxu0 %v8500
        %v8578 = vpop.f32.mrb[0].mxu0
        %v8579 = vadd.f32 %v8414, %v8578
        %v8580 = vpop.f32.mrb[0].mxu0
        %v8581 = vadd.f32 %v8416, %v8580
        %v8582 = vpop.f32.mrb[0].mxu0
        %v8583 = vadd.f32 %v8418, %v8582
        %v8584 = vpop.f32.mrb[0].mxu0
        %v8585 = vadd.f32 %v8420, %v8584
        %8586 = vmatprep.mubr.bf16.mxu0 %v8523
        %8587 = vmatmul.mubr.bf16.gmra.mrb[0].mxu0 %v8502
        %v8588 = vpop.f32.mrb[0].mxu0
        %v8589 = vadd.f32 %v8424, %v8588
        %v8590 = vpop.f32.mrb[0].mxu0
        %v8591 = vadd.f32 %v8426, %v8590
        %v8592 = vpop.f32.mrb[0].mxu0
        %v8593 = vadd.f32 %v8428, %v8592
        %v8594 = vpop.f32.mrb[0].mxu0
        %v8595 = vadd.f32 %v8430, %v8594
        %8596 = vmatprep.mubr.bf16.mxu0 %v8526
        %8597 = vmatmul.mubr.bf16.gmra.mrb[0].mxu0 %v8504
        %v8598 = vpop.f32.mrb[0].mxu0
        %v8599 = vadd.f32 %v8434, %v8598
        %v8600 = vpop.f32.mrb[0].mxu0
        %v8601 = vadd.f32 %v8436, %v8600
        %v8602 = vpop.f32.mrb[0].mxu0
        %v8603 = vadd.f32 %v8438, %v8602
        %v8604 = vpop.f32.mrb[0].mxu0
        %v8605 = vadd.f32 %v8440, %v8604
        %8606 = vmatprep.mubr.bf16.mxu0 %v8529
        %8607 = vmatmul.mubr.bf16.gmra.mrb[0].mxu0 %v8506
        %v8608 = vpop.f32.mrb[0].mxu0
        %v8609 = vadd.f32 %v8444, %v8608
        %v8610 = vpop.f32.mrb[0].mxu0
        %v8611 = vadd.f32 %v8446, %v8610
        %v8612 = vpop.f32.mrb[0].mxu0
        %v8613 = vadd.f32 %v8448, %v8612
        %v8614 = vpop.f32.mrb[0].mxu0
        %v8615 = vadd.f32 %v8450, %v8614
        %8616 = vmatprep.mubr.bf16.mxu0 %v8532
        %8617 = vmatmul.mubr.bf16.gmra.mrb[0].mxu0 %v8508
        %v8618 = vpop.f32.mrb[0].mxu0
        %v8619 = vadd.f32 %v8454, %v8618
        %v8620 = vpop.f32.mrb[0].mxu0
        %v8621 = vadd.f32 %v8456, %v8620
        %v8622 = vpop.f32.mrb[0].mxu0
        %v8623 = vadd.f32 %v8458, %v8622
        %v8624 = vpop.f32.mrb[0].mxu0
        %v8625 = vadd.f32 %v8460, %v8624
        %8626 = vdwg.mxu0
        %v8627 = vpack.c.bf16 %v8134, %v8130
        %v8628 = vpack.c.bf16 %v8136, %v8132
        %v8629 = vpack.c.bf16 %v8144, %v8140
        %v8630 = vpack.c.bf16 %v8146, %v8142
        %v8631 = vpack.c.bf16 %v8154, %v8150
        %v8632 = vpack.c.bf16 %v8156, %v8152
        %v8633 = vpack.c.bf16 %v8164, %v8160
        %v8634 = vpack.c.bf16 %v8166, %v8162
        %v8635 = vpack.c.bf16 %v8174, %v8170
        %v8636 = vpack.c.bf16 %v8176, %v8172
        %v8637 = vpack.c.bf16 %v8184, %v8180
        %v8638 = vpack.c.bf16 %v8186, %v8182
        %v8639 = vpack.c.bf16 %v8194, %v8190
        %v8640 = vpack.c.bf16 %v8196, %v8192
        %v8641 = vpack.c.bf16 %v8204, %v8200
        %v8642 = vpack.c.bf16 %v8206, %v8202
        %v8643 = vpack.c.bf16 %v8214, %v8210
        %v8644 = vpack.c.bf16 %v8216, %v8212
        %v8645 = vpack.c.bf16 %v8224, %v8220
        %v8646 = vpack.c.bf16 %v8226, %v8222
        %v8647 = vpack.c.bf16 %v8234, %v8230
        %v8648 = vpack.c.bf16 %v8236, %v8232
        %v8649 = vpack.c.bf16 %v8244, %v8240
        %v8650 = vpack.c.bf16 %v8246, %v8242
        %s8651 = scalar_lea.vmem %s14, 192
        %v8652 = vld [vmem:[%s8651] sm:$0xff]
        %v8653 = vld [vmem:[%s8651 + $0x8] sm:$0xff]
        %v8654 = vld [vmem:[%s8651 + $0x10] sm:$0xff]
        %v8655 = vld [vmem:[%s8651 + $0x18] sm:$0xff]
        %v8656 = vld [vmem:[%s8651 + $0x20] sm:$0xff]
        %v8657 = vld [vmem:[%s8651 + $0x28] sm:$0xff]
        %v8658 = vld [vmem:[%s8651 + $0x30] sm:$0xff]
        %v8659 = vld [vmem:[%s8651 + $0x38] sm:$0xff]
        %v8660 = vld [vmem:[%s8651 + $0x40] sm:$0xff]
        %v8661 = vld [vmem:[%s8651 + $0x48] sm:$0xff]
        %v8662 = vld [vmem:[%s8651 + $0x50] sm:$0xff]
        %v8663 = vld [vmem:[%s8651 + $0x58] sm:$0xff]
        %v8676 = vunpack.c.l.b16 %v8652
        %v8677 = vunpack.c.h.b16 %v8652
        %v8678 = vunpack.c.l.b16 %v8653
        %v8679 = vunpack.c.h.b16 %v8653
        %v8680 = vunpack.c.l.b16 %v8654
        %v8681 = vunpack.c.h.b16 %v8654
        %v8682 = vunpack.c.l.b16 %v8655
        %v8683 = vunpack.c.h.b16 %v8655
        %v8684 = vunpack.c.l.b16 %v8656
        %v8685 = vunpack.c.h.b16 %v8656
        %v8686 = vunpack.c.l.b16 %v8657
        %v8687 = vunpack.c.h.b16 %v8657
        %v8688 = vunpack.c.l.b16 %v8658
        %v8689 = vunpack.c.h.b16 %v8658
        %v8690 = vunpack.c.l.b16 %v8659
        %v8691 = vunpack.c.h.b16 %v8659
        %v8692 = vunpack.c.l.b16 %v8660
        %v8693 = vunpack.c.h.b16 %v8660
        %v8694 = vunpack.c.l.b16 %v8661
        %v8695 = vunpack.c.h.b16 %v8661
        %v8696 = vunpack.c.l.b16 %v8662
        %v8697 = vunpack.c.h.b16 %v8662
        %v8698 = vunpack.c.l.b16 %v8663
        %v8699 = vunpack.c.h.b16 %v8663
        %v8700 = vpack.c.b16 %v8678, %v8676
        %v8701 = vpack.c.b16 %v8679, %v8677
        %v8702 = vpack.c.b16 %v8682, %v8680
        %v8703 = vpack.c.b16 %v8683, %v8681
        %v8704 = vpack.c.b16 %v8686, %v8684
        %v8705 = vpack.c.b16 %v8687, %v8685
        %v8706 = vpack.c.b16 %v8690, %v8688
        %v8707 = vpack.c.b16 %v8691, %v8689
        %v8708 = vpack.c.b16 %v8694, %v8692
        %v8709 = vpack.c.b16 %v8695, %v8693
        %v8710 = vpack.c.b16 %v8698, %v8696
        %v8711 = vpack.c.b16 %v8699, %v8697
        %v8719 = vsel %vm5166, %v8701, 0
        %v8722 = vsel %vm5166, %v8703, 0
        %v8725 = vsel %vm5166, %v8705, 0
        %v8728 = vsel %vm5166, %v8707, 0
        %v8731 = vsel %vm5166, %v8709, 0
        %v8734 = vsel %vm5166, %v8711, 0
        %8736 = vmatprep.subr.bf16.mxu0 %v8628
        %8737 = vmatpush1.bf16.msra.mxu0 %v8627
        %8738 = vmatprep.subr.bf16.mxu0 %v8630
        %8739 = vmatpush1.bf16.msra.mxu0 %v8629
        %8740 = vmatprep.subr.bf16.mxu0 %v8632
        %8741 = vmatpush1.bf16.msra.mxu0 %v8631
        %8742 = vmatprep.subr.bf16.mxu0 %v8634
        %8743 = vmatpush1.bf16.msra.mxu0 %v8633
        %8744 = vmatprep.subr.bf16.mxu0 %v8636
        %8745 = vmatpush1.bf16.msra.mxu0 %v8635
        %8746 = vmatprep.subr.bf16.mxu0 %v8638
        %8747 = vmatpush1.bf16.msra.mxu0 %v8637
        %8748 = vmatprep.subr.bf16.mxu0 %v8640
        %8749 = vmatpush1.bf16.msra.mxu0 %v8639
        %8750 = vmatprep.subr.bf16.mxu0 %v8642
        %8751 = vmatpush1.bf16.msra.mxu0 %v8641
        %8752 = vmatprep.subr.bf16.mxu0 %v8644
        %8753 = vmatpush1.bf16.msra.mxu0 %v8643
        %8754 = vmatprep.subr.bf16.mxu0 %v8646
        %8755 = vmatpush1.bf16.msra.mxu0 %v8645
        %8756 = vmatprep.subr.bf16.mxu0 %v8648
        %8757 = vmatpush1.bf16.msra.mxu0 %v8647
        %8758 = vmatprep.subr.bf16.mxu0 %v8650
        %8759 = vmatpush1.bf16.msra.mxu0 %v8649
        %8760 = vmatprep.subr.bf16.mxu0 0
        %8761 = vmatpush1.bf16.msra.mxu0 0
        %8762 = vmatprep.subr.bf16.mxu0 0
        %8763 = vmatpush1.bf16.msra.mxu0 0
        %8764 = vmatprep.subr.bf16.mxu0 0
        %8765 = vmatpush1.bf16.msra.mxu0 0
        %8766 = vmatprep.subr.bf16.mxu0 0
        %8767 = vmatpush1.bf16.msra.mxu0 0
        %8768 = vmatprep.mubr.bf16.mxu0 %v8719
        %8769 = vmatmul.mubr.bf16.gmra.mrb[0].mxu0 %v8700
        %v8770 = vpop.f32.mrb[0].mxu0
        %v8771 = vadd.f32 0.0, %v8770
        %v8772 = vpop.f32.mrb[0].mxu0
        %v8773 = vadd.f32 0.0, %v8772
        %v8774 = vpop.f32.mrb[0].mxu0
        %v8775 = vadd.f32 0.0, %v8774
        %v8776 = vpop.f32.mrb[0].mxu0
        %v8777 = vadd.f32 0.0, %v8776
        %8778 = vmatprep.mubr.bf16.mxu0 %v8722
        %8779 = vmatmul.mubr.bf16.gmra.mrb[0].mxu0 %v8702
        %v8780 = vpop.f32.mrb[0].mxu0
        %v8781 = vadd.f32 0.0, %v8780
        %v8782 = vpop.f32.mrb[0].mxu0
        %v8783 = vadd.f32 0.0, %v8782
        %v8784 = vpop.f32.mrb[0].mxu0
        %v8785 = vadd.f32 0.0, %v8784
        %v8786 = vpop.f32.mrb[0].mxu0
        %v8787 = vadd.f32 0.0, %v8786
        %8788 = vmatprep.mubr.bf16.mxu0 %v8725
        %8789 = vmatmul.mubr.bf16.gmra.mrb[0].mxu0 %v8704
        %v8790 = vpop.f32.mrb[0].mxu0
        %v8791 = vadd.f32 0.0, %v8790
        %v8792 = vpop.f32.mrb[0].mxu0
        %v8793 = vadd.f32 0.0, %v8792
        %v8794 = vpop.f32.mrb[0].mxu0
        %v8795 = vadd.f32 0.0, %v8794
        %v8796 = vpop.f32.mrb[0].mxu0
        %v8797 = vadd.f32 0.0, %v8796
        %8798 = vmatprep.mubr.bf16.mxu0 %v8728
        %8799 = vmatmul.mubr.bf16.gmra.mrb[0].mxu0 %v8706
        %v8800 = vpop.f32.mrb[0].mxu0
        %v8801 = vadd.f32 0.0, %v8800
        %v8802 = vpop.f32.mrb[0].mxu0
        %v8803 = vadd.f32 0.0, %v8802
        %v8804 = vpop.f32.mrb[0].mxu0
        %v8805 = vadd.f32 0.0, %v8804
        %v8806 = vpop.f32.mrb[0].mxu0
        %v8807 = vadd.f32 0.0, %v8806
        %8808 = vmatprep.mubr.bf16.mxu0 %v8731
        %8809 = vmatmul.mubr.bf16.gmra.mrb[0].mxu0 %v8708
        %v8810 = vpop.f32.mrb[0].mxu0
        %v8811 = vadd.f32 0.0, %v8810
        %v8812 = vpop.f32.mrb[0].mxu0
        %v8813 = vadd.f32 0.0, %v8812
        %v8814 = vpop.f32.mrb[0].mxu0
        %v8815 = vadd.f32 0.0, %v8814
        %v8816 = vpop.f32.mrb[0].mxu0
        %v8817 = vadd.f32 0.0, %v8816
        %8818 = vmatprep.mubr.bf16.mxu0 %v8734
        %8819 = vmatmul.mubr.bf16.gmra.mrb[0].mxu0 %v8710
        %v8820 = vpop.f32.mrb[0].mxu0
        %v8821 = vadd.f32 0.0, %v8820
        %v8822 = vpop.f32.mrb[0].mxu0
        %v8823 = vadd.f32 0.0, %v8822
        %v8824 = vpop.f32.mrb[0].mxu0
        %v8825 = vadd.f32 0.0, %v8824
        %v8826 = vpop.f32.mrb[0].mxu0
        %v8827 = vadd.f32 0.0, %v8826
        %8828 = vdwg.mxu0
        %v8829 = vadd.f32 %v8569, %v8771
        %v8830 = vadd.f32 %v8571, %v8773
        %v8831 = vadd.f32 %v8573, %v8775
        %v8832 = vadd.f32 %v8575, %v8777
        %v8833 = vadd.f32 %v8579, %v8781
        %v8834 = vadd.f32 %v8581, %v8783
        %v8835 = vadd.f32 %v8583, %v8785
        %v8836 = vadd.f32 %v8585, %v8787
        %v8837 = vadd.f32 %v8589, %v8791
        %v8838 = vadd.f32 %v8591, %v8793
        %v8839 = vadd.f32 %v8593, %v8795
        %v8840 = vadd.f32 %v8595, %v8797
        %v8841 = vadd.f32 %v8599, %v8801
        %v8842 = vadd.f32 %v8601, %v8803
        %v8843 = vadd.f32 %v8603, %v8805
        %v8844 = vadd.f32 %v8605, %v8807
        %v8845 = vadd.f32 %v8609, %v8811
        %v8846 = vadd.f32 %v8611, %v8813
        %v8847 = vadd.f32 %v8613, %v8815
        %v8848 = vadd.f32 %v8615, %v8817
        %v8849 = vadd.f32 %v8619, %v8821
        %v8850 = vadd.f32 %v8621, %v8823
        %v8851 = vadd.f32 %v8623, %v8825
        %v8852 = vadd.f32 %v8625, %v8827
        %v8853 = vld [vmem:[%s15] sm:$0xff]
        %v8854 = vld [vmem:[%s15 + $0x8] sm:$0xff]
        %v8855 = vld [vmem:[%s15 + $0x10] sm:$0xff]
        %v8856 = vld [vmem:[%s15 + $0x18] sm:$0xff]
        %v8857 = vld [vmem:[%s15 + $0x20] sm:$0xff]
        %v8858 = vld [vmem:[%s15 + $0x28] sm:$0xff]
        %v8859 = vld [vmem:[%s15 + $0x30] sm:$0xff]
        %v8860 = vld [vmem:[%s15 + $0x38] sm:$0xff]
        %v8861 = vld [vmem:[%s15 + $0x40] sm:$0xff]
        %v8862 = vld [vmem:[%s15 + $0x48] sm:$0xff]
        %v8863 = vld [vmem:[%s15 + $0x50] sm:$0xff]
        %v8864 = vld [vmem:[%s15 + $0x58] sm:$0xff]
        %8866 = vset.pattern.permute.xlu0 0
        %8867 = vperm.xlu0 %8866, %v8853
        %v8868 = vpop.permute.xlu0 %8867
        %8871 = vset.pattern.permute.xlu0 0
        %8872 = vperm.xlu0 %8871, %v8854
        %v8873 = vpop.permute.xlu0 %8872
        %8876 = vset.pattern.permute.xlu0 0
        %8877 = vperm.xlu0 %8876, %v8855
        %v8878 = vpop.permute.xlu0 %8877
        %8881 = vset.pattern.permute.xlu0 0
        %8882 = vperm.xlu0 %8881, %v8856
        %v8883 = vpop.permute.xlu0 %8882
        %8886 = vset.pattern.permute.xlu0 0
        %8887 = vperm.xlu0 %8886, %v8857
        %v8888 = vpop.permute.xlu0 %8887
        %8891 = vset.pattern.permute.xlu0 0
        %8892 = vperm.xlu0 %8891, %v8858
        %v8893 = vpop.permute.xlu0 %8892
        %8896 = vset.pattern.permute.xlu0 0
        %8897 = vperm.xlu0 %8896, %v8859
        %v8898 = vpop.permute.xlu0 %8897
        %8901 = vset.pattern.permute.xlu0 0
        %8902 = vperm.xlu0 %8901, %v8860
        %v8903 = vpop.permute.xlu0 %8902
        %8906 = vset.pattern.permute.xlu0 0
        %8907 = vperm.xlu0 %8906, %v8861
        %v8908 = vpop.permute.xlu0 %8907
        %8911 = vset.pattern.permute.xlu0 0
        %8912 = vperm.xlu0 %8911, %v8862
        %v8913 = vpop.permute.xlu0 %8912
        %8916 = vset.pattern.permute.xlu0 0
        %8917 = vperm.xlu0 %8916, %v8863
        %v8918 = vpop.permute.xlu0 %8917
        %8921 = vset.pattern.permute.xlu0 0
        %8922 = vperm.xlu0 %8921, %v8864
        %v8923 = vpop.permute.xlu0 %8922
        %v8925 = vadd.f32 %v8829, %v8868
        %v8926 = vadd.f32 %v8830, %v8868
        %v8927 = vadd.f32 %v8831, %v8873
        %v8928 = vadd.f32 %v8832, %v8873
        %v8929 = vadd.f32 %v8833, %v8878
        %v8930 = vadd.f32 %v8834, %v8878
        %v8931 = vadd.f32 %v8835, %v8883
        %v8932 = vadd.f32 %v8836, %v8883
        %v8933 = vadd.f32 %v8837, %v8888
        %v8934 = vadd.f32 %v8838, %v8888
        %v8935 = vadd.f32 %v8839, %v8893
        %v8936 = vadd.f32 %v8840, %v8893
        %v8937 = vadd.f32 %v8841, %v8898
        %v8938 = vadd.f32 %v8842, %v8898
        %v8939 = vadd.f32 %v8843, %v8903
        %v8940 = vadd.f32 %v8844, %v8903
        %v8941 = vadd.f32 %v8845, %v8908
        %v8942 = vadd.f32 %v8846, %v8908
        %v8943 = vadd.f32 %v8847, %v8913
        %v8944 = vadd.f32 %v8848, %v8913
        %v8945 = vadd.f32 %v8849, %v8918
        %v8946 = vadd.f32 %v8850, %v8918
        %v8947 = vadd.f32 %v8851, %v8923
        %v8948 = vadd.f32 %v8852, %v8923
        %v8949 = vmax.f32 %v8925, 0.0
        %v8950 = vmax.f32 %v8926, 0.0
        %v8951 = vmax.f32 %v8927, 0.0
        %v8952 = vmax.f32 %v8928, 0.0
        %v8953 = vmax.f32 %v8929, 0.0
        %v8954 = vmax.f32 %v8930, 0.0
        %v8955 = vmax.f32 %v8931, 0.0
        %v8956 = vmax.f32 %v8932, 0.0
        %v8957 = vmax.f32 %v8933, 0.0
        %v8958 = vmax.f32 %v8934, 0.0
        %v8959 = vmax.f32 %v8935, 0.0
        %v8960 = vmax.f32 %v8936, 0.0
        %v8961 = vmax.f32 %v8937, 0.0
        %v8962 = vmax.f32 %v8938, 0.0
        %v8963 = vmax.f32 %v8939, 0.0
        %v8964 = vmax.f32 %v8940, 0.0
        %v8965 = vmax.f32 %v8941, 0.0
        %v8966 = vmax.f32 %v8942, 0.0
        %v8967 = vmax.f32 %v8943, 0.0
        %v8968 = vmax.f32 %v8944, 0.0
        %v8969 = vmax.f32 %v8945, 0.0
        %v8970 = vmax.f32 %v8946, 0.0
        %v8971 = vmax.f32 %v8947, 0.0
        %v8972 = vmax.f32 %v8948, 0.0
        %8973 = vst [vmem:[%s558] sm:$0xff] %v8949
        %8974 = vst [vmem:[%s558 + $0x8] sm:$0xff] %v8950
        %8975 = vst [vmem:[%s558 + $0x10] sm:$0xff] %v8951
        %8976 = vst [vmem:[%s558 + $0x18] sm:$0xff] %v8952
        %8977 = vst [vmem:[%s558 + $0x20] sm:$0xff] %v8953
        %8978 = vst [vmem:[%s558 + $0x28] sm:$0xff] %v8954
        %8979 = vst [vmem:[%s558 + $0x30] sm:$0xff] %v8955
        %8980 = vst [vmem:[%s558 + $0x38] sm:$0xff] %v8956
        %8981 = vst [vmem:[%s558 + $0x40] sm:$0xff] %v8957
        %8982 = vst [vmem:[%s558 + $0x48] sm:$0xff] %v8958
        %8983 = vst [vmem:[%s558 + $0x50] sm:$0xff] %v8959
        %8984 = vst [vmem:[%s558 + $0x58] sm:$0xff] %v8960
        %8985 = vst [vmem:[%s558 + $0x60] sm:$0xff] %v8961
        %8986 = vst [vmem:[%s558 + $0x68] sm:$0xff] %v8962
        %8987 = vst [vmem:[%s558 + $0x70] sm:$0xff] %v8963
        %8988 = vst [vmem:[%s558 + $0x78] sm:$0xff] %v8964
        %8989 = vst [vmem:[%s558 + $0x80] sm:$0xff] %v8965
        %8990 = vst [vmem:[%s558 + $0x88] sm:$0xff] %v8966
        %8991 = vst [vmem:[%s558 + $0x90] sm:$0xff] %v8967
        %8992 = vst [vmem:[%s558 + $0x98] sm:$0xff] %v8968
        %8993 = vst [vmem:[%s558 + $0xa0] sm:$0xff] %v8969
        %8994 = vst [vmem:[%s558 + $0xa8] sm:$0xff] %v8970
        %8995 = vst [vmem:[%s558 + $0xb0] sm:$0xff] %v8971
        %8996 = vst [vmem:[%s558 + $0xb8] sm:$0xff] %v8972
        %s8997 = sand.u32 %s381, 1
        %s8998 = scalar_lea.sflag [#allocation4], %s8997
        %s8999 = sand.u32 %s381, 1
        %s9000 = smul.addr %s8999, 192
        %s9001 = scalar_lea.vmem [#allocation8], %s9000
        // Predicated region
        $region97: #{tpu_custom_call.1} parent=83 // pred_check
          %p9002 = pneg %p391
        $region98: #{tpu_custom_call.1} parent=83 // pred_check_branch
          %9004 = sbr.rel (%p9002) target = $region100
        $region99: #{tpu_custom_call.1} parent=83 // pred_region
          %s9006 = ssub.s32 3072, 3072
          %9007 = vsyncadd %s8998, %s9006
          %s9008 = smul.addr %s32, 24
          %s9009 = smul.addr %s9008, 128
          %s9010 = scalar_lea.hbm %s16, %s9009
          %s9011 = sshll.u32 %s9001, 4
          %s9012 = int_to_ptr.vmem [resolvable:$true] %s9011
          %9017 = dma.vmem_to_hbm [thread:$0]  %s9012, 3072, %s9010, %s8998, 256, 256, 16
        $region100: #{tpu_custom_call.1} parent=83 // pred_fallthru
          _
      $region84: #{tpu_custom_call.1} parent=5 // pred_fallthru
        _
      %p9018 = scmp.le.s32.totalorder 2, %s27
      // Predicated region
      $region101: #{tpu_custom_call.1} parent=5 // pred_check
        %p9019 = pneg %p9018
      $region102: #{tpu_custom_call.1} parent=5 // pred_check_branch
        %9021 = sbr.rel (%p9019) target = $region104
      $region103: #{tpu_custom_call.1} parent=5 // pred_region
        %s9022 = ssub.s32 %s27, 2
        // Predicated region
        $region105: #{tpu_custom_call.1} parent=103 // pred_check
          %p9023 = pneg %p397
        $region106: #{tpu_custom_call.1} parent=103 // pred_check_branch
          %9025 = sbr.rel (%p9023) target = $region108
        $region107: #{tpu_custom_call.1} parent=103 // pred_region
          %s9026 = sand.u32 %s382, 1
          %s9027 = scalar_lea.sflag [#allocation4], %s9026
          %s9028 = sand.u32 %s382, 1
          %s9029 = smul.addr %s9028, 192
          %s9030 = scalar_lea.vmem [#allocation8], %s9029
          %9031 = dma.done %s9027, 3072
        $region108: #{tpu_custom_call.1} parent=103 // pred_fallthru
          _
      $region104: #{tpu_custom_call.1} parent=5 // pred_fallthru
        _
    $region6: #{tpu_custom_call.1} parent=1 // loop_footer
      %s31 = sadd.s32 1, %s27
    $region7: #{tpu_custom_call.1} parent=1 // loop_footer_branch
      %26 = sbr.rel target = $region3
    $region8: #{tpu_custom_call.1} parent=1 // loop_exit
      _
    %9032 = vsyncpa [#allocation3], 1
    %s9033 = scalar_lea.sflag [#allocation3], 1
    %9034 = vsyncpa %s9033, 1
    %9035 = vsyncpa [#allocation6], 1
    %9036 = vsyncpa [#allocation4], 1
    %s9037 = scalar_lea.sflag [#allocation4], 1
    %9038 = vsyncpa %s9037, 1

</llo_original>
